<compile_context>
chip_gen: v5e
topology: v5e:2x2
jax: 0.10.0
libtpu: 0.0.40
codegen_flags: <defaults>
</compile_context>

<pallas_src>
import functools
import numpy as np
import jax
import jax.numpy as jnp
from jax.experimental import pallas as pl
from jax.experimental.pallas import tpu as pltpu

DTYPE = jnp.float32            # activation storage dtype
ENABLE_BF16_WEIGHTS = False    # flip for production on v6e/v7x (halves the folded
                               # 1 MB image-operator DMA; loosens the self-check)
MAX_ROW_TILE = 1024
MAX_K_TILE = 2048
MAX_PACKED_LANES = 1024
LANE_PAD = 128                 # lane width of the in-kernel image-view buffers
_HI = jax.lax.Precision.HIGHEST

# Canonical 8-D activation layout: (B, nd, nh, nw, pd, ph, pw, C)
PATCH_AXES = (4, 5, 6)
IMAGE_AXES = (1, 2, 3)
BRANCH_AXES = PATCH_AXES + IMAGE_AXES


# ----------------------------------------------------------------------------
# Hardware-aware knobs
# ----------------------------------------------------------------------------
@functools.lru_cache(maxsize=1)
def _vmem_limit_bytes():
    cap = None
    try:
        cap = int(pltpu.get_tpu_info().vmem_capacity_bytes)
    except Exception:
        try:
            kind = jax.devices()[0].device_kind.lower()
            cap = 64 * 2**20 if 'v7' in kind else 128 * 2**20
        except Exception:
            cap = 128 * 2**20
    # headroom for compiler scratch: v7x (64 MiB) -> ~48 MiB, v5e/v6e -> ~100 MiB
    return int(min(max(cap - 16 * 2**20, 32 * 2**20), 100 * 2**20))


def _block_weight_dtype():
    if not ENABLE_BF16_WEIGHTS:
        return jnp.float32
    try:
        kind = jax.devices()[0].device_kind.lower()
    except Exception:
        return jnp.float32
    # v5e (and older) has no bf16 VPU -> keep f32 there (review guidance)
    if ('v5 lite' in kind) or ('v5e' in kind) or ('v5lite' in kind) or ('v4' in kind):
        return jnp.float32
    return jnp.bfloat16


def _round_up(n, m):
    return ((n + m - 1) // m) * m


# ----------------------------------------------------------------------------
# Generic Pallas matmul (used by the standalone LinearAlongDims2 op).
# Lane-dense (padded to a multiple of 128) output, K-tiled accumulator grid.
# ----------------------------------------------------------------------------
def _matmul_bias_kernel(x_ref, w_ref, b_ref, o_ref, acc_ref):
    @pl.when(pl.program_id(1) == 0)
    def _init():
        acc_ref[...] = jnp.zeros_like(acc_ref)

    acc_ref[...] += jnp.dot(x_ref[...], w_ref[...],
                            preferred_element_type=jnp.float32)

    @pl.when(pl.program_id(1) == pl.num_programs(1) - 1)
    def _finalize():
        o_ref[...] = (acc_ref[...] + b_ref[...]).astype(o_ref.dtype)


def _row_tile(M):
    if M <= MAX_ROW_TILE:
        if M >= 256 and M % 16 == 0:
            return M // 2          # >=2 "parallel" steps -> both v7x TensorCores
        return M
    for tm in range(MAX_ROW_TILE, 7, -8):
        if M % tm == 0:
            return tm
    return MAX_ROW_TILE            # rows are independent; OOB rows never stored


def _k_tile(K):
    if K <= MAX_K_TILE:
        return K
    for tk in range(MAX_K_TILE, 127, -128):
        if K % tk == 0:
            return tk
    return K                       # single (large) K block fallback


def _pallas_matmul(x2d, w, bvec, out_dtype=None):
    """y = x2d @ w + bvec.  Output lanes padded up to a multiple of 128 so the
    kernel stores are unmasked; reduction (K) axis tiled with an f32 VMEM
    accumulator so the weight never has to fit VMEM as one block."""
    M, K = x2d.shape
    K2, N = w.shape
    assert K == K2
    out_dtype = out_dtype or x2d.dtype
    bvec = jnp.asarray(bvec, jnp.float32)
    Np = max(128, _round_up(N, 128))
    if Np != N:
        w = jnp.pad(w, ((0, 0), (0, Np - N)))
        bvec = jnp.pad(bvec, (0, Np - N))
    tm, tk = _row_tile(M), _k_tile(K)
    grid = (pl.cdiv(M, tm), pl.cdiv(K, tk))
    b2 = bvec.reshape(1, Np)

    out = pl.pallas_call(
        _matmul_bias_kernel,
        out_shape=jax.ShapeDtypeStruct((M, Np), out_dtype),
        grid_spec=pltpu.PrefetchScalarGridSpec(
            num_scalar_prefetch=0, grid=grid,
            in_specs=[pl.BlockSpec((tm, tk), lambda i, k: (i, k)),
                      pl.BlockSpec((tk, Np), lambda i, k: (k, 0)),
                      pl.BlockSpec((1, Np), lambda i, k: (0, 0))],
            out_specs=pl.BlockSpec((tm, Np), lambda i, k: (i, 0)),
            scratch_shapes=[pltpu.VMEM((tm, Np), jnp.float32)]),
        compiler_params=pltpu.CompilerParams(
            dimension_semantics=("parallel", "arbitrary"),
            vmem_limit_bytes=_vmem_limit_bytes()),
    )(x2d, w, b2)
    return out[:, :N] if Np != N else out


def _choose_pack(M, K, N):
    """Power-of-two row-pack factor so packed K and N reach >=128 lanes."""
    if min(K, N) >= 128:
        return 1
    best, p = 1, 1
    while p <= M and p * max(K, N) <= MAX_PACKED_LANES:
        if M % p == 0:
            best = p
            if p * K >= 128 and p * N >= 128:
                return p
        p *= 2
    return best


def packed_linear(x2d, w, bvec, out_dtype=None):
    """Generic path only (the fused forward never calls this).  The kron/tile
    packing here runs per call; for repeated use hoist the packed weights once
    -- prepare_params() does exactly that for the hot path."""
    M, K = x2d.shape
    N = w.shape[1]
    pack = _choose_pack(M, K, N)
    if pack == 1:
        return _pallas_matmul(x2d, w, bvec, out_dtype)
    xp = x2d.reshape(M // pack, pack * K)
    wp = jnp.kron(jnp.eye(pack, dtype=w.dtype), w)
    bp = jnp.tile(jnp.asarray(bvec, jnp.float32).reshape(-1), pack)
    out = _pallas_matmul(xp, wp, bp, out_dtype)
    return out.reshape(M, N)


# ----------------------------------------------------------------------------
# The spec module: LinearAlongDims2.forward as a standalone Pallas op.
# ----------------------------------------------------------------------------
def linear_along_dims2(x, dims, weight, bias=None):
    """y = einsum(module.einstr, x, weight) (+ bias).  `weight` uses the
    module's interleaved (in_1, out_1, in_2, out_2, ...) layout over the sorted
    `dims`; `bias` may be ANY shape broadcastable to the output."""
    if isinstance(dims, int):
        dims = (dims,)
    dims = sorted(int(d) for d in dims)
    r = len(dims)
    in_sizes = [x.shape[d] for d in dims]
    out_sizes = [int(weight.shape[2 * i + 1]) for i in range(r)]
    K = int(np.prod(in_sizes))
    N = int(np.prod(out_sizes))
    others = [a for a in range(x.ndim) if a not in dims]
    perm = others + dims
    xp = jnp.transpose(x, perm)
    batch_shape = xp.shape[:len(others)]
    M = int(np.prod(batch_shape)) if batch_shape else 1
    x2 = xp.reshape(M, K)
    # interleaved (i1,o1,i2,o2,...) -> dense (prod(in), prod(out)) matrix
    w2 = jnp.transpose(weight, tuple(range(0, 2 * r, 2)) + tuple(range(1, 2 * r, 2)))
    w2 = w2.reshape(K, N).astype(x.dtype)
    # bias: fold into the kernel iff it reduces to a vector over the output
    # dims (covers the module's (1,..,out,..,1) layout); otherwise add after.
    bvec, bias_after = jnp.zeros((N,), jnp.float32), None
    if bias is not None:
        b = jnp.asarray(bias, jnp.float32)
        if b.ndim == x.ndim and all(int(b.shape[a]) == 1 for a in others):
            bd = jnp.transpose(b, perm).reshape(tuple(int(b.shape[d]) for d in dims))
            bvec = jnp.broadcast_to(bd, tuple(out_sizes)).reshape(N)
        else:
            bias_after = bias
    y2 = packed_linear(x2, w2, bvec, out_dtype=x.dtype)
    y = y2.reshape(tuple(batch_shape) + tuple(out_sizes))
    y = jnp.transpose(y, tuple(int(i) for i in np.argsort(perm)))
    if bias_after is not None:
        y = y + bias_after
    return y


# ----------------------------------------------------------------------------
# One-time (host-side) folding of the six axial branches per block into two
# dense group operators + one combined bias map, in the kernel's lane order.
# Canonical in-kernel layout:  rows = r = (nd,nh,nw),  lanes = c*P + p.
# Transposed image view:       rows = c*R + r,          lanes = p.
# ----------------------------------------------------------------------------
def _fold_group_operator(branches, axes, sizes, C):
    """Dense operator of the SUM of the axial branches over `axes` on the
    channel-major flattened (C, *sizes) index.  Rows = input index, columns =
    output index (right-multiplication layout)."""
    s0, s1, s2 = sizes
    eyes = [np.eye(s, dtype=np.float32) for s in sizes]
    acc = np.zeros((C, s0, s1, s2, C, s0, s1, s2), np.float32)
    spec = {axes[0]: ('cCaA,hH,wW->cahwCAHW', (eyes[1], eyes[2])),
            axes[1]: ('cCaA,dD,wW->cdawCDAW', (eyes[0], eyes[2])),
            axes[2]: ('cCaA,dD,hH->cdhaCDHA', (eyes[0], eyes[1]))}
    for axis, w, _ in branches:
        eq, (e1, e2) = spec[axis]
        acc += np.einsum(eq, np.asarray(w, np.float32), e1, e2)
    S = C * s0 * s1 * s2
    return acc.reshape(S, S)


def _fold_bias(img_br, pat_br, img_sizes, pat_sizes, C):
    nd, nh, nw = img_sizes
    pd, ph, pw = pat_sizes
    b_img = np.zeros((nd, nh, nw, C), np.float32)
    for axis, _, b in img_br:
        b = np.asarray(b, np.float32)                       # (A, C)
        if axis == 1:
            b_img += b[:, None, None, :]
        elif axis == 2:
            b_img += b[None, :, None, :]
        else:
            b_img += b[None, None, :, :]
    b_pat = np.zeros((pd, ph, pw, C), np.float32)
    for axis, _, b in pat_br:
        b = np.asarray(b, np.float32)
        if axis == 4:
            b_pat += b[:, None, None, :]
        elif axis == 5:
            b_pat += b[None, :, None, :]
        else:
            b_pat += b[None, None, :, :]
    R, P = nd * nh * nw, pd * ph * pw
    bi = b_img.reshape(R, C)                                # [r, c]
    bp = b_pat.reshape(P, C)                                # [p, c]
    return (bi[:, :, None] + bp.T[None, :, :]).reshape(R, C * P)


def prepare_params(params, cfg):
    """One-time reparameterization (outside the jitted forward): everything the
    fused kernel consumes is prebuilt here (review: no per-call repacking)."""
    nd, nh, nw = cfg['num_patches']
    pd, ph, pw = cfg['patch_size']
    C = cfg['filters']
    wdt = _block_weight_dtype()
    prepared = {
        'in_w': jnp.asarray(params['in_w'], jnp.float32),
        'in_b': jnp.asarray(params['in_b'], jnp.float32),
        'out_w': jnp.asarray(params['out_w'], jnp.float32),
        'out_b': jnp.asarray(params['out_b'], jnp.float32),
        'blocks': [],
    }
    for raw in params['blocks']:
        img_br = [t for t in raw if t[0] in IMAGE_AXES]
        pat_br = [t for t in raw if t[0] in PATCH_AXES]
        w_img = _fold_group_operator(img_br, IMAGE_AXES, (nd, nh, nw), C)
        w_pat = _fold_group_operator(pat_br, PATCH_AXES, (pd, ph, pw), C)
        prepared['blocks'].append(dict(
            # image operator used as  yT = W_imgT @ imgT  -> output index on rows
            w_imgT=jnp.asarray(w_img.T, wdt),
            # patch operator used as  act @ W_patch       -> input index on rows
            w_patch=jnp.asarray(w_pat, wdt),
            bias_can=jnp.asarray(
                _fold_bias(img_br, pat_br, (nd, nh, nw), (pd, ph, pw), C),
                jnp.float32)))
    return prepared


# ----------------------------------------------------------------------------
# The single fused forward kernel.
# ----------------------------------------------------------------------------
def _make_forward_kernel(*, R, P, C, Cin, Cout, num_layers):
    f32 = jnp.float32

    def kernel(*refs):
        x_ref, w_in, b_in, w_out, b_out = refs[:5]
        blk = refs[5:5 + 3 * num_layers]
        out_ref = refs[5 + 3 * num_layers]
        act_ref, imgT_ref, yT_ref, tmp_ref = refs[6 + 3 * num_layers:]

        # zero once: pad lanes [P:LANE_PAD] of the image buffer stay zero
        imgT_ref[...] = jnp.zeros((C * R, LANE_PAD), f32)

        # ---- in-projection (VPU prologue, scalar weights from SMEM) ---------
        for co in range(C):
            acc = jnp.zeros((R, P), f32)
            for ci in range(Cin):
                acc = acc + w_in[ci, co] * x_ref[:, ci * P:(ci + 1) * P].astype(f32)
            act_ref[:, co * P:(co + 1) * P] = acc + b_in[co]

        # ---- residual axial blocks ------------------------------------------
        for li in range(num_layers):
            w_imgT = blk[3 * li]
            w_patch = blk[3 * li + 1]
            bias = blk[3 * li + 2]
            act = act_ref[...]                               # (R, C*P)
            # canonical (c,p) lane-blocks -> rows of the transposed image view:
            # pure same-shape (R,P) block copies, no in-kernel transpose needed.
            for c in range(C):
                imgT_ref[c * R:(c + 1) * R, 0:P] = act_ref[:, c * P:(c + 1) * P]
            # all three image-axis branches folded into ONE operator
            yT_ref[...] = jnp.dot(w_imgT[...].astype(f32), imgT_ref[...],
                                  preferred_element_type=f32)
            # all three patch-axis branches + the summed branch biases
            tmp_ref[...] = jnp.dot(act, w_patch[...].astype(f32),
                                   preferred_element_type=f32) + bias[...]
            # image contribution back in canonical layout (same-shape copies)
            for c in range(C):
                tmp_ref[:, c * P:(c + 1) * P] += yT_ref[c * R:(c + 1) * R, 0:P]
            t = tmp_ref[...]
            t = jnp.where(t >= 0.0, t, 0.01 * t)             # F.leaky_relu default
            act_ref[...] = act + t

        # ---- out-projection (VPU epilogue) -----------------------------------
        for co in range(Cout):
            acc = jnp.zeros((R, P), f32)
            for ci in range(C):
                acc = acc + w_out[ci, co] * act_ref[:, ci * P:(ci + 1) * P]
            out_ref[:, co * P:(co + 1) * P] = (acc + b_out[co]).astype(out_ref.dtype)

    return kernel


def _fused_forward(xk, prepared, *, R, P, C, Cin, Cout):
    B = xk.shape[0]
    num_layers = len(prepared['blocks'])
    kernel = _make_forward_kernel(R=R, P=P, C=C, Cin=Cin, Cout=Cout,
                                  num_layers=num_layers)

    args = [xk, prepared['in_w'], prepared['in_b'],
            prepared['out_w'], prepared['out_b']]
    in_specs = [
        pl.BlockSpec((None, R, Cin * P), lambda b: (b, 0, 0)),   # one batch elem/step
        pl.BlockSpec(memory_space=pltpu.SMEM),                   # in_w  (Cin, C)
        pl.BlockSpec(memory_space=pltpu.SMEM),                   # in_b  (C,)
        pl.BlockSpec(memory_space=pltpu.SMEM),                   # out_w (C, Cout)
        pl.BlockSpec(memory_space=pltpu.SMEM),                   # out_b (Cout,)
    ]
    for blk in prepared['blocks']:
        args += [blk['w_imgT'], blk['w_patch'], blk['bias_can']]
        in_specs += [
            pl.BlockSpec((C * R, C * R), lambda b: (0, 0)),      # VMEM-resident
            pl.BlockSpec((C * P, C * P), lambda b: (0, 0)),
            pl.BlockSpec((R, C * P), lambda b: (0, 0)),
        ]

    limit = _vmem_limit_bytes()
    blk_bytes = sum(int(np.prod(a.shape)) * a.dtype.itemsize for a in args[5:])
    if 2 * blk_bytes + (2 << 20) > limit:
        # TODO(synk): add a K-tiled accumulator fallback (as in _matmul_bias_kernel)
        # for configs whose folded (nd*nh*nw*C)^2 image operator exceeds VMEM.
        raise NotImplementedError("folded block operators exceed the VMEM budget")

    return pl.pallas_call(
        kernel,
        out_shape=jax.ShapeDtypeStruct((B, R, Cout * P), DTYPE),
        grid_spec=pltpu.PrefetchScalarGridSpec(
            num_scalar_prefetch=0,
            grid=(B,),                                           # batch over the grid ->
            in_specs=in_specs,                                   # both v7x TensorCores
            out_specs=pl.BlockSpec((None, R, Cout * P), lambda b: (b, 0, 0)),
            scratch_shapes=[
                pltpu.VMEM((R, C * P), jnp.float32),             # canonical activation
                pltpu.VMEM((C * R, LANE_PAD), jnp.float32),      # transposed image view
                pltpu.VMEM((C * R, LANE_PAD), jnp.float32),      # image-branch result
                pltpu.VMEM((R, C * P), jnp.float32),             # block-tail accumulator
            ]),
        compiler_params=pltpu.CompilerParams(
            dimension_semantics=("parallel",),
            vmem_limit_bytes=limit),
    )(*args)


# ----------------------------------------------------------------------------
# Glue (plain JAX): trilinear resize, patchify / unpatchify.
# ----------------------------------------------------------------------------
def _resize_axis_align_corners(x, axis, out_size):
    in_size = x.shape[axis]
    if out_size == in_size:
        return x
    if in_size == 1 or out_size == 1:
        idx = jnp.zeros((out_size,), dtype=jnp.int32)
        return jnp.take(x, idx, axis=axis)
    coords = jnp.arange(out_size, dtype=jnp.float32) * ((in_size - 1) / (out_size - 1))
    lo = jnp.clip(jnp.floor(coords).astype(jnp.int32), 0, in_size - 2)
    hi = lo + 1
    w = (coords - lo.astype(jnp.float32)).astype(x.dtype)
    xlo = jnp.take(x, lo, axis=axis)
    xhi = jnp.take(x, hi, axis=axis)
    shape = [1] * x.ndim
    shape[axis] = out_size
    w = w.reshape(shape)
    return xlo * (1 - w) + xhi * w


def trilinear_resize(x, out_dhw):
    for ax, s in zip((2, 3, 4), out_dhw):
        x = _resize_axis_align_corners(x, ax, s)
    return x


def patchify(x, patch):
    B, C, D, H, W = x.shape
    pd, ph, pw = patch
    nd, nh, nw = D // pd, H // ph, W // pw
    x = x.reshape(B, C, nd, pd, nh, ph, nw, pw)
    return jnp.transpose(x, (0, 2, 4, 6, 3, 5, 7, 1))


def unpatchify(x8):
    B, nd, nh, nw, pd, ph, pw, C = x8.shape
    x = jnp.transpose(x8, (0, 1, 4, 2, 5, 3, 6, 7))
    return x.reshape(B, nd * pd, nh * ph, nw * pw, C)


# ----------------------------------------------------------------------------
# Optimized forward (one Pallas call) and plain-jnp reference.
# ----------------------------------------------------------------------------
def axial_mlp_3d_forward(x, prepared, config):
    B, Cin, d, h, w = x.shape
    nd, nh, nw = config['num_patches']
    pd, ph, pw = config['patch_size']
    C = config['filters']
    R, P = nd * nh * nw, pd * ph * pw
    Cout = prepared['out_w'].shape[1]

    x = trilinear_resize(x, config['interm_size'])             # (B, Cin, D, H, W)
    x8 = patchify(x, config['patch_size'])                     # (B,nd,nh,nw,pd,ph,pw,Cin)
    # kernel lane order is (channel, patch-position); rows are (nd,nh,nw)
    xk = jnp.transpose(x8, (0, 1, 2, 3, 7, 4, 5, 6)).reshape(B, R, Cin * P).astype(DTYPE)

    out2 = _fused_forward(xk, prepared, R=R, P=P, C=C, Cin=Cin, Cout=Cout)

    y8 = out2.reshape(B, nd, nh, nw, Cout, pd, ph, pw)
    y8 = jnp.transpose(y8, (0, 1, 2, 3, 5, 6, 7, 4))           # back to canonical
    y = unpatchify(y8)                                         # (B, D, H, W, Cout)
    y = jnp.transpose(y, (0, 4, 1, 2, 3)).astype(jnp.float32)  # NCDHW (tiny tensor)
    return trilinear_resize(y, (d, h, w))


def _branch_ref(x8, axis, w):
    """One axial branch (LinearAlongDims2 over (channel, spatial `axis`)),
    channels-last; w layout = (in_C, out_C, in_A, out_A)."""
    xm = jnp.moveaxis(x8, axis, -2)
    ym = jnp.einsum('...ac,cCaA->...AC', xm, w, precision=_HI)
    return jnp.moveaxis(ym, -2, axis)


def _block_reference(x8, raw):
    y = jnp.zeros_like(x8)
    for axis, w, b in raw:
        t = _branch_ref(x8, axis, w)
        bshape = [1] * 8
        bshape[axis] = b.shape[0]
        bshape[-1] = b.shape[1]
        y = y + t + b.reshape(bshape)
    y = jnp.where(y >= 0, y, 0.01 * y)
    return x8 + y


def axial_mlp_3d_reference(x, params, config):
    """Plain-jnp einsum reference mirroring the PyTorch graph 1:1."""
    B, Cin, d, h, w = x.shape
    x = trilinear_resize(x, config['interm_size'])
    x8 = patchify(x, config['patch_size'])
    x8 = jnp.einsum('...c,cf->...f', x8, params['in_w'], precision=_HI) + params['in_b']
    for raw in params['blocks']:
        x8 = _block_reference(x8, raw)
    x8 = jnp.einsum('...c,cf->...f', x8, params['out_w'], precision=_HI) + params['out_b']
    y = unpatchify(x8)
    y = jnp.transpose(y, (0, 4, 1, 2, 3))
    return trilinear_resize(y, (d, h, w))


# ----------------------------------------------------------------------------
# Deterministic synthetic parameters (nn.Linear-style uniform init).
# ----------------------------------------------------------------------------
def _uniform(key, shape, fan_in):
    bound = 1.0 / np.sqrt(fan_in)
    return jax.random.uniform(key, shape, jnp.float32, -bound, bound)


def init_params(key, cfg):
    C = cfg['filters']
    nd, nh, nw = cfg['num_patches']
    pd, ph, pw = cfg['patch_size']
    axis_size = {1: nd, 2: nh, 3: nw, 4: pd, 5: ph, 6: pw}
    key, k1, k2, k3, k4 = jax.random.split(key, 5)
    params = {
        'in_w': _uniform(k1, (cfg['in_channels'], C), cfg['in_channels']),
        'in_b': _uniform(k2, (C,), cfg['in_channels']),
        'out_w': _uniform(k3, (C, cfg['out_channels']), C),
        'out_b': _uniform(k4, (cfg['out_channels'],), C),
        'blocks': [],
    }
    for _ in range(cfg['num_layers']):
        raw = []
        for axis in BRANCH_AXES:
            A = axis_size[axis]
            key, kw, kb = jax.random.split(key, 3)
            fan_in = A * C
            # reference module's interleaved (in_C, out_C, in_A, out_A) layout
            w = _uniform(kw, (C, C, A, A), fan_in)
            # bias content over (out_A, out_C); random so the bias path is exercised
            b = _uniform(kb, (A, C), fan_in)
            raw.append((axis, w, b))
        params['blocks'].append(raw)
    return params


if __name__ == "__main__":
    patch_size = (2, 2, 2)
    interm_size = (8, 8, 8)
    num_patches = tuple(interm_size[i] // patch_size[i] for i in range(3))
    cfg = dict(patch_size=patch_size, interm_size=interm_size,
               num_patches=num_patches, in_channels=4, out_channels=3,
               filters=8, num_layers=2)

    key = jax.random.PRNGKey(0)
    kx, kp = jax.random.split(key)
    x = jax.random.normal(kx, (2, cfg['in_channels'], 10, 8, 12), jnp.float32)
    params = init_params(kp, cfg)
    prepared = prepare_params(params, cfg)      # one-time host-side weight folding

    fwd = jax.jit(functools.partial(axial_mlp_3d_forward, config=cfg))
    out = fwd(x, prepared)
    jax.block_until_ready(out)
    assert out.shape == (2, cfg['out_channels'], 10, 8, 12), out.shape
    assert bool(jnp.all(jnp.isfinite(out)))

    # Tight self-check (f32 accumulation everywhere) vs the plain-jnp reference.
    ref = axial_mlp_3d_reference(x, params, cfg)
    np.testing.assert_allclose(np.asarray(out), np.asarray(ref), rtol=2e-3, atol=2e-3)

    # Standalone check of the literal LinearAlongDims2 forward (the spec module):
    # num_dims=5, dims=[1, 3]  ->  einstr 'abcde,bfdg->afcge'.
    k1, k2, k3 = jax.random.split(jax.random.PRNGKey(1), 3)
    xs = jax.random.normal(k1, (2, 4, 6, 8, 16), jnp.float32)
    ws = jax.random.uniform(k2, (4, 5, 8, 7), jnp.float32, -0.2, 0.2)
    bs = jax.random.uniform(k3, (1, 5, 1, 7, 1), jnp.float32, -0.2, 0.2)
    lad = jax.jit(lambda a, w_, b_: linear_along_dims2(a, (1, 3), w_, b_))
    ys = lad(xs, ws, bs)
    jax.block_until_ready(ys)
    ys_ref = jnp.einsum('abcde,bfdg->afcge', xs, ws, precision=_HI) + bs
    np.testing.assert_allclose(np.asarray(ys), np.asarray(ys_ref), rtol=1e-3, atol=1e-3)

    # Broadcast-shaped bias (only broadcastable, not reshapeable to (35,)).
    bs2 = jax.random.uniform(k3, (1, 5, 1, 1, 1), jnp.float32, -0.2, 0.2)
    ys2 = jax.jit(lambda a, w_, b_: linear_along_dims2(a, (1, 3), w_, b_))(xs, ws, bs2)
    jax.block_until_ready(ys2)
    ys2_ref = jnp.einsum('abcde,bfdg->afcge', xs, ws, precision=_HI) + bs2
    np.testing.assert_allclose(np.asarray(ys2), np.asarray(ys2_ref), rtol=1e-3, atol=1e-3)

    print("KERNEL_OK")
</pallas_src>

<mosaic_0001>
module attributes {stable_mosaic.version = 11 : i64} {
  func.func @kernel(%arg0: i32, %arg1: memref<1x64x32xf32, #tpu.memory_space<vmem>>, %arg2: memref<4x8xf32, #tpu.memory_space<smem>>, %arg3: memref<8xf32, #tpu.memory_space<smem>>, %arg4: memref<8x3xf32, #tpu.memory_space<smem>>, %arg5: memref<3xf32, #tpu.memory_space<smem>>, %arg6: memref<512x512xf32, #tpu.memory_space<vmem>>, %arg7: memref<64x64xf32, #tpu.memory_space<vmem>>, %arg8: memref<64x64xf32, #tpu.memory_space<vmem>>, %arg9: memref<512x512xf32, #tpu.memory_space<vmem>>, %arg10: memref<64x64xf32, #tpu.memory_space<vmem>>, %arg11: memref<64x64xf32, #tpu.memory_space<vmem>>, %arg12: memref<1x64x24xf32, #tpu.memory_space<vmem>>, %arg13: memref<64x64xf32, #tpu.memory_space<vmem>>, %arg14: memref<512x128xf32, #tpu.memory_space<vmem>>, %arg15: memref<512x128xf32, #tpu.memory_space<vmem>>, %arg16: memref<64x64xf32, #tpu.memory_space<vmem>>) attributes {dimension_semantics = [#tpu.dimension_semantics<parallel>], iteration_bounds = array<i64: 2>, scalar_prefetch = 0 : i64, scratch_operands = 4 : i64, tpu.core_type = #tpu.core_type<tc>, window_params = [{transform_indices = @transform_0, window_bounds = array<i64: 1, 64, 32>}, {transform_indices = @transform_1, window_bounds = array<i64: 4, 8>}, {transform_indices = @transform_2, window_bounds = array<i64: 8>}, {transform_indices = @transform_3, window_bounds = array<i64: 8, 3>}, {transform_indices = @transform_4, window_bounds = array<i64: 3>}, {pipeline_mode = #tpu.pipeline_mode<synchronous>, transform_indices = @transform_5, window_bounds = array<i64: 512, 512>}, {pipeline_mode = #tpu.pipeline_mode<synchronous>, transform_indices = @transform_6, window_bounds = array<i64: 64, 64>}, {pipeline_mode = #tpu.pipeline_mode<synchronous>, transform_indices = @transform_7, window_bounds = array<i64: 64, 64>}, {pipeline_mode = #tpu.pipeline_mode<synchronous>, transform_indices = @transform_8, window_bounds = array<i64: 512, 512>}, {pipeline_mode = #tpu.pipeline_mode<synchronous>, transform_indices = @transform_9, window_bounds = array<i64: 64, 64>}, {pipeline_mode = #tpu.pipeline_mode<synchronous>, transform_indices = @transform_10, window_bounds = array<i64: 64, 64>}, {transform_indices = @transform_11, window_bounds = array<i64: 1, 64, 24>}]} {
    %cst = arith.constant 0.000000e+00 : f32
    %0 = vector.broadcast %cst : f32 to vector<512x128xf32>
    %c0 = arith.constant 0 : index
    %c0_0 = arith.constant 0 : index
    %1 = vector.load %arg14[%c0, %c0_0] : memref<512x128xf32, #tpu.memory_space<vmem>>, vector<512x128xf32>
    tpu.vector_store %arg14[%c0, %c0_0], %0 {strides = array<i32>} : memref<512x128xf32, #tpu.memory_space<vmem>>, vector<512x128xf32>,
    %cst_1 = arith.constant 0.000000e+00 : f32
    %2 = vector.broadcast %cst_1 : f32 to vector<64x8xf32>
    %c0_2 = arith.constant 0 : index
    %c0_3 = arith.constant 0 : index
    %3 = memref.load %arg2[%c0_2, %c0_3] : memref<4x8xf32, #tpu.memory_space<smem>>
    %c0_4 = arith.constant 0 : index
    %c0_5 = arith.constant 0 : index
    %c0_6 = arith.constant 0 : index
    %4 = vector.load %arg1[%c0_4, %c0_5, %c0_6] : memref<1x64x32xf32, #tpu.memory_space<vmem>>, vector<1x64x8xf32>
    %5 = vector.shape_cast %4 : vector<1x64x8xf32> to vector<64x8xf32>
    %6 = vector.broadcast %3 : f32 to vector<64x8xf32>
    %7 = arith.mulf %6, %5 : vector<64x8xf32>
    %8 = arith.addf %2, %7 : vector<64x8xf32>
    %c1 = arith.constant 1 : index
    %c0_7 = arith.constant 0 : index
    %9 = memref.load %arg2[%c1, %c0_7] : memref<4x8xf32, #tpu.memory_space<smem>>
    %c0_8 = arith.constant 0 : index
    %c0_9 = arith.constant 0 : index
    %c8 = arith.constant 8 : index
    %10 = vector.load %arg1[%c0_8, %c0_9, %c8] : memref<1x64x32xf32, #tpu.memory_space<vmem>>, vector<1x64x8xf32>
    %11 = vector.shape_cast %10 : vector<1x64x8xf32> to vector<64x8xf32>
    %12 = vector.broadcast %9 : f32 to vector<64x8xf32>
    %13 = arith.mulf %12, %11 : vector<64x8xf32>
    %14 = arith.addf %8, %13 : vector<64x8xf32>
    %c2 = arith.constant 2 : index
    %c0_10 = arith.constant 0 : index
    %15 = memref.load %arg2[%c2, %c0_10] : memref<4x8xf32, #tpu.memory_space<smem>>
    %c0_11 = arith.constant 0 : index
    %c0_12 = arith.constant 0 : index
    %c16 = arith.constant 16 : index
    %16 = vector.load %arg1[%c0_11, %c0_12, %c16] : memref<1x64x32xf32, #tpu.memory_space<vmem>>, vector<1x64x8xf32>
    %17 = vector.shape_cast %16 : vector<1x64x8xf32> to vector<64x8xf32>
    %18 = vector.broadcast %15 : f32 to vector<64x8xf32>
    %19 = arith.mulf %18, %17 : vector<64x8xf32>
    %20 = arith.addf %14, %19 : vector<64x8xf32>
    %c3 = arith.constant 3 : index
    %c0_13 = arith.constant 0 : index
    %21 = memref.load %arg2[%c3, %c0_13] : memref<4x8xf32, #tpu.memory_space<smem>>
    %c0_14 = arith.constant 0 : index
    %c0_15 = arith.constant 0 : index
    %c24 = arith.constant 24 : index
    %22 = vector.load %arg1[%c0_14, %c0_15, %c24] : memref<1x64x32xf32, #tpu.memory_space<vmem>>, vector<1x64x8xf32>
    %23 = vector.shape_cast %22 : vector<1x64x8xf32> to vector<64x8xf32>
    %24 = vector.broadcast %21 : f32 to vector<64x8xf32>
    %25 = arith.mulf %24, %23 : vector<64x8xf32>
    %26 = arith.addf %20, %25 : vector<64x8xf32>
    %c0_16 = arith.constant 0 : index
    %27 = memref.load %arg3[%c0_16] : memref<8xf32, #tpu.memory_space<smem>>
    %28 = vector.broadcast %27 : f32 to vector<64x8xf32>
    %29 = arith.addf %26, %28 : vector<64x8xf32>
    %c0_17 = arith.constant 0 : index
    %c0_18 = arith.constant 0 : index
    %30 = vector.load %arg13[%c0_17, %c0_18] : memref<64x64xf32, #tpu.memory_space<vmem>>, vector<64x8xf32>
    tpu.vector_store %arg13[%c0_17, %c0_18], %29 {strides = array<i32>} : memref<64x64xf32, #tpu.memory_space<vmem>>, vector<64x8xf32>,
    %cst_19 = arith.constant 0.000000e+00 : f32
    %31 = vector.broadcast %cst_19 : f32 to vector<64x8xf32>
    %c0_20 = arith.constant 0 : index
    %c1_21 = arith.constant 1 : index
    %32 = memref.load %arg2[%c0_20, %c1_21] : memref<4x8xf32, #tpu.memory_space<smem>>
    %c0_22 = arith.constant 0 : index
    %c0_23 = arith.constant 0 : index
    %c0_24 = arith.constant 0 : index
    %33 = vector.load %arg1[%c0_22, %c0_23, %c0_24] : memref<1x64x32xf32, #tpu.memory_space<vmem>>, vector<1x64x8xf32>
    %34 = vector.shape_cast %33 : vector<1x64x8xf32> to vector<64x8xf32>
    %35 = vector.broadcast %32 : f32 to vector<64x8xf32>
    %36 = arith.mulf %35, %34 : vector<64x8xf32>
    %37 = arith.addf %31, %36 : vector<64x8xf32>
    %c1_25 = arith.constant 1 : index
    %c1_26 = arith.constant 1 : index
    %38 = memref.load %arg2[%c1_25, %c1_26] : memref<4x8xf32, #tpu.memory_space<smem>>
    %c0_27 = arith.constant 0 : index
    %c0_28 = arith.constant 0 : index
    %c8_29 = arith.constant 8 : index
    %39 = vector.load %arg1[%c0_27, %c0_28, %c8_29] : memref<1x64x32xf32, #tpu.memory_space<vmem>>, vector<1x64x8xf32>
    %40 = vector.shape_cast %39 : vector<1x64x8xf32> to vector<64x8xf32>
    %41 = vector.broadcast %38 : f32 to vector<64x8xf32>
    %42 = arith.mulf %41, %40 : vector<64x8xf32>
    %43 = arith.addf %37, %42 : vector<64x8xf32>
    %c2_30 = arith.constant 2 : index
    %c1_31 = arith.constant 1 : index
    %44 = memref.load %arg2[%c2_30, %c1_31] : memref<4x8xf32, #tpu.memory_space<smem>>
    %c0_32 = arith.constant 0 : index
    %c0_33 = arith.constant 0 : index
    %c16_34 = arith.constant 16 : index
    %45 = vector.load %arg1[%c0_32, %c0_33, %c16_34] : memref<1x64x32xf32, #tpu.memory_space<vmem>>, vector<1x64x8xf32>
    %46 = vector.shape_cast %45 : vector<1x64x8xf32> to vector<64x8xf32>
    %47 = vector.broadcast %44 : f32 to vector<64x8xf32>
    %48 = arith.mulf %47, %46 : vector<64x8xf32>
    %49 = arith.addf %43, %48 : vector<64x8xf32>
    %c3_35 = arith.constant 3 : index
    %c1_36 = arith.constant 1 : index
    %50 = memref.load %arg2[%c3_35, %c1_36] : memref<4x8xf32, #tpu.memory_space<smem>>
    %c0_37 = arith.constant 0 : index
    %c0_38 = arith.constant 0 : index
    %c24_39 = arith.constant 24 : index
    %51 = vector.load %arg1[%c0_37, %c0_38, %c24_39] : memref<1x64x32xf32, #tpu.memory_space<vmem>>, vector<1x64x8xf32>
    %52 = vector.shape_cast %51 : vector<1x64x8xf32> to vector<64x8xf32>
    %53 = vector.broadcast %50 : f32 to vector<64x8xf32>
    %54 = arith.mulf %53, %52 : vector<64x8xf32>
    %55 = arith.addf %49, %54 : vector<64x8xf32>
    %c1_40 = arith.constant 1 : index
    %56 = memref.load %arg3[%c1_40] : memref<8xf32, #tpu.memory_space<smem>>
    %57 = vector.broadcast %56 : f32 to vector<64x8xf32>
    %58 = arith.addf %55, %57 : vector<64x8xf32>
    %c0_41 = arith.constant 0 : index
    %c8_42 = arith.constant 8 : index
    %59 = vector.load %arg13[%c0_41, %c8_42] : memref<64x64xf32, #tpu.memory_space<vmem>>, vector<64x8xf32>
    tpu.vector_store %arg13[%c0_41, %c8_42], %58 {strides = array<i32>} : memref<64x64xf32, #tpu.memory_space<vmem>>, vector<64x8xf32>,
    %cst_43 = arith.constant 0.000000e+00 : f32
    %60 = vector.broadcast %cst_43 : f32 to vector<64x8xf32>
    %c0_44 = arith.constant 0 : index
    %c2_45 = arith.constant 2 : index
    %61 = memref.load %arg2[%c0_44, %c2_45] : memref<4x8xf32, #tpu.memory_space<smem>>
    %c0_46 = arith.constant 0 : index
    %c0_47 = arith.constant 0 : index
    %c0_48 = arith.constant 0 : index
    %62 = vector.load %arg1[%c0_46, %c0_47, %c0_48] : memref<1x64x32xf32, #tpu.memory_space<vmem>>, vector<1x64x8xf32>
    %63 = vector.shape_cast %62 : vector<1x64x8xf32> to vector<64x8xf32>
    %64 = vector.broadcast %61 : f32 to vector<64x8xf32>
    %65 = arith.mulf %64, %63 : vector<64x8xf32>
    %66 = arith.addf %60, %65 : vector<64x8xf32>
    %c1_49 = arith.constant 1 : index
    %c2_50 = arith.constant 2 : index
    %67 = memref.load %arg2[%c1_49, %c2_50] : memref<4x8xf32, #tpu.memory_space<smem>>
    %c0_51 = arith.constant 0 : index
    %c0_52 = arith.constant 0 : index
    %c8_53 = arith.constant 8 : index
    %68 = vector.load %arg1[%c0_51, %c0_52, %c8_53] : memref<1x64x32xf32, #tpu.memory_space<vmem>>, vector<1x64x8xf32>
    %69 = vector.shape_cast %68 : vector<1x64x8xf32> to vector<64x8xf32>
    %70 = vector.broadcast %67 : f32 to vector<64x8xf32>
    %71 = arith.mulf %70, %69 : vector<64x8xf32>
    %72 = arith.addf %66, %71 : vector<64x8xf32>
    %c2_54 = arith.constant 2 : index
    %c2_55 = arith.constant 2 : index
    %73 = memref.load %arg2[%c2_54, %c2_55] : memref<4x8xf32, #tpu.memory_space<smem>>
    %c0_56 = arith.constant 0 : index
    %c0_57 = arith.constant 0 : index
    %c16_58 = arith.constant 16 : index
    %74 = vector.load %arg1[%c0_56, %c0_57, %c16_58] : memref<1x64x32xf32, #tpu.memory_space<vmem>>, vector<1x64x8xf32>
    %75 = vector.shape_cast %74 : vector<1x64x8xf32> to vector<64x8xf32>
    %76 = vector.broadcast %73 : f32 to vector<64x8xf32>
    %77 = arith.mulf %76, %75 : vector<64x8xf32>
    %78 = arith.addf %72, %77 : vector<64x8xf32>
    %c3_59 = arith.constant 3 : index
    %c2_60 = arith.constant 2 : index
    %79 = memref.load %arg2[%c3_59, %c2_60] : memref<4x8xf32, #tpu.memory_space<smem>>
    %c0_61 = arith.constant 0 : index
    %c0_62 = arith.constant 0 : index
    %c24_63 = arith.constant 24 : index
    %80 = vector.load %arg1[%c0_61, %c0_62, %c24_63] : memref<1x64x32xf32, #tpu.memory_space<vmem>>, vector<1x64x8xf32>
    %81 = vector.shape_cast %80 : vector<1x64x8xf32> to vector<64x8xf32>
    %82 = vector.broadcast %79 : f32 to vector<64x8xf32>
    %83 = arith.mulf %82, %81 : vector<64x8xf32>
    %84 = arith.addf %78, %83 : vector<64x8xf32>
    %c2_64 = arith.constant 2 : index
    %85 = memref.load %arg3[%c2_64] : memref<8xf32, #tpu.memory_space<smem>>
    %86 = vector.broadcast %85 : f32 to vector<64x8xf32>
    %87 = arith.addf %84, %86 : vector<64x8xf32>
    %c0_65 = arith.constant 0 : index
    %c16_66 = arith.constant 16 : index
    %88 = vector.load %arg13[%c0_65, %c16_66] : memref<64x64xf32, #tpu.memory_space<vmem>>, vector<64x8xf32>
    tpu.vector_store %arg13[%c0_65, %c16_66], %87 {strides = array<i32>} : memref<64x64xf32, #tpu.memory_space<vmem>>, vector<64x8xf32>,
    %cst_67 = arith.constant 0.000000e+00 : f32
    %89 = vector.broadcast %cst_67 : f32 to vector<64x8xf32>
    %c0_68 = arith.constant 0 : index
    %c3_69 = arith.constant 3 : index
    %90 = memref.load %arg2[%c0_68, %c3_69] : memref<4x8xf32, #tpu.memory_space<smem>>
    %c0_70 = arith.constant 0 : index
    %c0_71 = arith.constant 0 : index
    %c0_72 = arith.constant 0 : index
    %91 = vector.load %arg1[%c0_70, %c0_71, %c0_72] : memref<1x64x32xf32, #tpu.memory_space<vmem>>, vector<1x64x8xf32>
    %92 = vector.shape_cast %91 : vector<1x64x8xf32> to vector<64x8xf32>
    %93 = vector.broadcast %90 : f32 to vector<64x8xf32>
    %94 = arith.mulf %93, %92 : vector<64x8xf32>
    %95 = arith.addf %89, %94 : vector<64x8xf32>
    %c1_73 = arith.constant 1 : index
    %c3_74 = arith.constant 3 : index
    %96 = memref.load %arg2[%c1_73, %c3_74] : memref<4x8xf32, #tpu.memory_space<smem>>
    %c0_75 = arith.constant 0 : index
    %c0_76 = arith.constant 0 : index
    %c8_77 = arith.constant 8 : index
    %97 = vector.load %arg1[%c0_75, %c0_76, %c8_77] : memref<1x64x32xf32, #tpu.memory_space<vmem>>, vector<1x64x8xf32>
    %98 = vector.shape_cast %97 : vector<1x64x8xf32> to vector<64x8xf32>
    %99 = vector.broadcast %96 : f32 to vector<64x8xf32>
    %100 = arith.mulf %99, %98 : vector<64x8xf32>
    %101 = arith.addf %95, %100 : vector<64x8xf32>
    %c2_78 = arith.constant 2 : index
    %c3_79 = arith.constant 3 : index
    %102 = memref.load %arg2[%c2_78, %c3_79] : memref<4x8xf32, #tpu.memory_space<smem>>
    %c0_80 = arith.constant 0 : index
    %c0_81 = arith.constant 0 : index
    %c16_82 = arith.constant 16 : index
    %103 = vector.load %arg1[%c0_80, %c0_81, %c16_82] : memref<1x64x32xf32, #tpu.memory_space<vmem>>, vector<1x64x8xf32>
    %104 = vector.shape_cast %103 : vector<1x64x8xf32> to vector<64x8xf32>
    %105 = vector.broadcast %102 : f32 to vector<64x8xf32>
    %106 = arith.mulf %105, %104 : vector<64x8xf32>
    %107 = arith.addf %101, %106 : vector<64x8xf32>
    %c3_83 = arith.constant 3 : index
    %c3_84 = arith.constant 3 : index
    %108 = memref.load %arg2[%c3_83, %c3_84] : memref<4x8xf32, #tpu.memory_space<smem>>
    %c0_85 = arith.constant 0 : index
    %c0_86 = arith.constant 0 : index
    %c24_87 = arith.constant 24 : index
    %109 = vector.load %arg1[%c0_85, %c0_86, %c24_87] : memref<1x64x32xf32, #tpu.memory_space<vmem>>, vector<1x64x8xf32>
    %110 = vector.shape_cast %109 : vector<1x64x8xf32> to vector<64x8xf32>
    %111 = vector.broadcast %108 : f32 to vector<64x8xf32>
    %112 = arith.mulf %111, %110 : vector<64x8xf32>
    %113 = arith.addf %107, %112 : vector<64x8xf32>
    %c3_88 = arith.constant 3 : index
    %114 = memref.load %arg3[%c3_88] : memref<8xf32, #tpu.memory_space<smem>>
    %115 = vector.broadcast %114 : f32 to vector<64x8xf32>
    %116 = arith.addf %113, %115 : vector<64x8xf32>
    %c0_89 = arith.constant 0 : index
    %c24_90 = arith.constant 24 : index
    %117 = vector.load %arg13[%c0_89, %c24_90] : memref<64x64xf32, #tpu.memory_space<vmem>>, vector<64x8xf32>
    tpu.vector_store %arg13[%c0_89, %c24_90], %116 {strides = array<i32>} : memref<64x64xf32, #tpu.memory_space<vmem>>, vector<64x8xf32>,
    %cst_91 = arith.constant 0.000000e+00 : f32
    %118 = vector.broadcast %cst_91 : f32 to vector<64x8xf32>
    %c0_92 = arith.constant 0 : index
    %c4 = arith.constant 4 : index
    %119 = memref.load %arg2[%c0_92, %c4] : memref<4x8xf32, #tpu.memory_space<smem>>
    %c0_93 = arith.constant 0 : index
    %c0_94 = arith.constant 0 : index
    %c0_95 = arith.constant 0 : index
    %120 = vector.load %arg1[%c0_93, %c0_94, %c0_95] : memref<1x64x32xf32, #tpu.memory_space<vmem>>, vector<1x64x8xf32>
    %121 = vector.shape_cast %120 : vector<1x64x8xf32> to vector<64x8xf32>
    %122 = vector.broadcast %119 : f32 to vector<64x8xf32>
    %123 = arith.mulf %122, %121 : vector<64x8xf32>
    %124 = arith.addf %118, %123 : vector<64x8xf32>
    %c1_96 = arith.constant 1 : index
    %c4_97 = arith.constant 4 : index
    %125 = memref.load %arg2[%c1_96, %c4_97] : memref<4x8xf32, #tpu.memory_space<smem>>
    %c0_98 = arith.constant 0 : index
    %c0_99 = arith.constant 0 : index
    %c8_100 = arith.constant 8 : index
    %126 = vector.load %arg1[%c0_98, %c0_99, %c8_100] : memref<1x64x32xf32, #tpu.memory_space<vmem>>, vector<1x64x8xf32>
    %127 = vector.shape_cast %126 : vector<1x64x8xf32> to vector<64x8xf32>
    %128 = vector.broadcast %125 : f32 to vector<64x8xf32>
    %129 = arith.mulf %128, %127 : vector<64x8xf32>
    %130 = arith.addf %124, %129 : vector<64x8xf32>
    %c2_101 = arith.constant 2 : index
    %c4_102 = arith.constant 4 : index
    %131 = memref.load %arg2[%c2_101, %c4_102] : memref<4x8xf32, #tpu.memory_space<smem>>
    %c0_103 = arith.constant 0 : index
    %c0_104 = arith.constant 0 : index
    %c16_105 = arith.constant 16 : index
    %132 = vector.load %arg1[%c0_103, %c0_104, %c16_105] : memref<1x64x32xf32, #tpu.memory_space<vmem>>, vector<1x64x8xf32>
    %133 = vector.shape_cast %132 : vector<1x64x8xf32> to vector<64x8xf32>
    %134 = vector.broadcast %131 : f32 to vector<64x8xf32>
    %135 = arith.mulf %134, %133 : vector<64x8xf32>
    %136 = arith.addf %130, %135 : vector<64x8xf32>
    %c3_106 = arith.constant 3 : index
    %c4_107 = arith.constant 4 : index
    %137 = memref.load %arg2[%c3_106, %c4_107] : memref<4x8xf32, #tpu.memory_space<smem>>
    %c0_108 = arith.constant 0 : index
    %c0_109 = arith.constant 0 : index
    %c24_110 = arith.constant 24 : index
    %138 = vector.load %arg1[%c0_108, %c0_109, %c24_110] : memref<1x64x32xf32, #tpu.memory_space<vmem>>, vector<1x64x8xf32>
    %139 = vector.shape_cast %138 : vector<1x64x8xf32> to vector<64x8xf32>
    %140 = vector.broadcast %137 : f32 to vector<64x8xf32>
    %141 = arith.mulf %140, %139 : vector<64x8xf32>
    %142 = arith.addf %136, %141 : vector<64x8xf32>
    %c4_111 = arith.constant 4 : index
    %143 = memref.load %arg3[%c4_111] : memref<8xf32, #tpu.memory_space<smem>>
    %144 = vector.broadcast %143 : f32 to vector<64x8xf32>
    %145 = arith.addf %142, %144 : vector<64x8xf32>
    %c0_112 = arith.constant 0 : index
    %c32 = arith.constant 32 : index
    %146 = vector.load %arg13[%c0_112, %c32] : memref<64x64xf32, #tpu.memory_space<vmem>>, vector<64x8xf32>
    tpu.vector_store %arg13[%c0_112, %c32], %145 {strides = array<i32>} : memref<64x64xf32, #tpu.memory_space<vmem>>, vector<64x8xf32>,
    %cst_113 = arith.constant 0.000000e+00 : f32
    %147 = vector.broadcast %cst_113 : f32 to vector<64x8xf32>
    %c0_114 = arith.constant 0 : index
    %c5 = arith.constant 5 : index
    %148 = memref.load %arg2[%c0_114, %c5] : memref<4x8xf32, #tpu.memory_space<smem>>
    %c0_115 = arith.constant 0 : index
    %c0_116 = arith.constant 0 : index
    %c0_117 = arith.constant 0 : index
    %149 = vector.load %arg1[%c0_115, %c0_116, %c0_117] : memref<1x64x32xf32, #tpu.memory_space<vmem>>, vector<1x64x8xf32>
    %150 = vector.shape_cast %149 : vector<1x64x8xf32> to vector<64x8xf32>
    %151 = vector.broadcast %148 : f32 to vector<64x8xf32>
    %152 = arith.mulf %151, %150 : vector<64x8xf32>
    %153 = arith.addf %147, %152 : vector<64x8xf32>
    %c1_118 = arith.constant 1 : index
    %c5_119 = arith.constant 5 : index
    %154 = memref.load %arg2[%c1_118, %c5_119] : memref<4x8xf32, #tpu.memory_space<smem>>
    %c0_120 = arith.constant 0 : index
    %c0_121 = arith.constant 0 : index
    %c8_122 = arith.constant 8 : index
    %155 = vector.load %arg1[%c0_120, %c0_121, %c8_122] : memref<1x64x32xf32, #tpu.memory_space<vmem>>, vector<1x64x8xf32>
    %156 = vector.shape_cast %155 : vector<1x64x8xf32> to vector<64x8xf32>
    %157 = vector.broadcast %154 : f32 to vector<64x8xf32>
    %158 = arith.mulf %157, %156 : vector<64x8xf32>
    %159 = arith.addf %153, %158 : vector<64x8xf32>
    %c2_123 = arith.constant 2 : index
    %c5_124 = arith.constant 5 : index
    %160 = memref.load %arg2[%c2_123, %c5_124] : memref<4x8xf32, #tpu.memory_space<smem>>
    %c0_125 = arith.constant 0 : index
    %c0_126 = arith.constant 0 : index
    %c16_127 = arith.constant 16 : index
    %161 = vector.load %arg1[%c0_125, %c0_126, %c16_127] : memref<1x64x32xf32, #tpu.memory_space<vmem>>, vector<1x64x8xf32>
    %162 = vector.shape_cast %161 : vector<1x64x8xf32> to vector<64x8xf32>
    %163 = vector.broadcast %160 : f32 to vector<64x8xf32>
    %164 = arith.mulf %163, %162 : vector<64x8xf32>
    %165 = arith.addf %159, %164 : vector<64x8xf32>
    %c3_128 = arith.constant 3 : index
    %c5_129 = arith.constant 5 : index
    %166 = memref.load %arg2[%c3_128, %c5_129] : memref<4x8xf32, #tpu.memory_space<smem>>
    %c0_130 = arith.constant 0 : index
    %c0_131 = arith.constant 0 : index
    %c24_132 = arith.constant 24 : index
    %167 = vector.load %arg1[%c0_130, %c0_131, %c24_132] : memref<1x64x32xf32, #tpu.memory_space<vmem>>, vector<1x64x8xf32>
    %168 = vector.shape_cast %167 : vector<1x64x8xf32> to vector<64x8xf32>
    %169 = vector.broadcast %166 : f32 to vector<64x8xf32>
    %170 = arith.mulf %169, %168 : vector<64x8xf32>
    %171 = arith.addf %165, %170 : vector<64x8xf32>
    %c5_133 = arith.constant 5 : index
    %172 = memref.load %arg3[%c5_133] : memref<8xf32, #tpu.memory_space<smem>>
    %173 = vector.broadcast %172 : f32 to vector<64x8xf32>
    %174 = arith.addf %171, %173 : vector<64x8xf32>
    %c0_134 = arith.constant 0 : index
    %c40 = arith.constant 40 : index
    %175 = vector.load %arg13[%c0_134, %c40] : memref<64x64xf32, #tpu.memory_space<vmem>>, vector<64x8xf32>
    tpu.vector_store %arg13[%c0_134, %c40], %174 {strides = array<i32>} : memref<64x64xf32, #tpu.memory_space<vmem>>, vector<64x8xf32>,
    %cst_135 = arith.constant 0.000000e+00 : f32
    %176 = vector.broadcast %cst_135 : f32 to vector<64x8xf32>
    %c0_136 = arith.constant 0 : index
    %c6 = arith.constant 6 : index
    %177 = memref.load %arg2[%c0_136, %c6] : memref<4x8xf32, #tpu.memory_space<smem>>
    %c0_137 = arith.constant 0 : index
    %c0_138 = arith.constant 0 : index
    %c0_139 = arith.constant 0 : index
    %178 = vector.load %arg1[%c0_137, %c0_138, %c0_139] : memref<1x64x32xf32, #tpu.memory_space<vmem>>, vector<1x64x8xf32>
    %179 = vector.shape_cast %178 : vector<1x64x8xf32> to vector<64x8xf32>
    %180 = vector.broadcast %177 : f32 to vector<64x8xf32>
    %181 = arith.mulf %180, %179 : vector<64x8xf32>
    %182 = arith.addf %176, %181 : vector<64x8xf32>
    %c1_140 = arith.constant 1 : index
    %c6_141 = arith.constant 6 : index
    %183 = memref.load %arg2[%c1_140, %c6_141] : memref<4x8xf32, #tpu.memory_space<smem>>
    %c0_142 = arith.constant 0 : index
    %c0_143 = arith.constant 0 : index
    %c8_144 = arith.constant 8 : index
    %184 = vector.load %arg1[%c0_142, %c0_143, %c8_144] : memref<1x64x32xf32, #tpu.memory_space<vmem>>, vector<1x64x8xf32>
    %185 = vector.shape_cast %184 : vector<1x64x8xf32> to vector<64x8xf32>
    %186 = vector.broadcast %183 : f32 to vector<64x8xf32>
    %187 = arith.mulf %186, %185 : vector<64x8xf32>
    %188 = arith.addf %182, %187 : vector<64x8xf32>
    %c2_145 = arith.constant 2 : index
    %c6_146 = arith.constant 6 : index
    %189 = memref.load %arg2[%c2_145, %c6_146] : memref<4x8xf32, #tpu.memory_space<smem>>
    %c0_147 = arith.constant 0 : index
    %c0_148 = arith.constant 0 : index
    %c16_149 = arith.constant 16 : index
    %190 = vector.load %arg1[%c0_147, %c0_148, %c16_149] : memref<1x64x32xf32, #tpu.memory_space<vmem>>, vector<1x64x8xf32>
    %191 = vector.shape_cast %190 : vector<1x64x8xf32> to vector<64x8xf32>
    %192 = vector.broadcast %189 : f32 to vector<64x8xf32>
    %193 = arith.mulf %192, %191 : vector<64x8xf32>
    %194 = arith.addf %188, %193 : vector<64x8xf32>
    %c3_150 = arith.constant 3 : index
    %c6_151 = arith.constant 6 : index
    %195 = memref.load %arg2[%c3_150, %c6_151] : memref<4x8xf32, #tpu.memory_space<smem>>
    %c0_152 = arith.constant 0 : index
    %c0_153 = arith.constant 0 : index
    %c24_154 = arith.constant 24 : index
    %196 = vector.load %arg1[%c0_152, %c0_153, %c24_154] : memref<1x64x32xf32, #tpu.memory_space<vmem>>, vector<1x64x8xf32>
    %197 = vector.shape_cast %196 : vector<1x64x8xf32> to vector<64x8xf32>
    %198 = vector.broadcast %195 : f32 to vector<64x8xf32>
    %199 = arith.mulf %198, %197 : vector<64x8xf32>
    %200 = arith.addf %194, %199 : vector<64x8xf32>
    %c6_155 = arith.constant 6 : index
    %201 = memref.load %arg3[%c6_155] : memref<8xf32, #tpu.memory_space<smem>>
    %202 = vector.broadcast %201 : f32 to vector<64x8xf32>
    %203 = arith.addf %200, %202 : vector<64x8xf32>
    %c0_156 = arith.constant 0 : index
    %c48 = arith.constant 48 : index
    %204 = vector.load %arg13[%c0_156, %c48] : memref<64x64xf32, #tpu.memory_space<vmem>>, vector<64x8xf32>
    tpu.vector_store %arg13[%c0_156, %c48], %203 {strides = array<i32>} : memref<64x64xf32, #tpu.memory_space<vmem>>, vector<64x8xf32>,
    %cst_157 = arith.constant 0.000000e+00 : f32
    %205 = vector.broadcast %cst_157 : f32 to vector<64x8xf32>
    %c0_158 = arith.constant 0 : index
    %c7 = arith.constant 7 : index
    %206 = memref.load %arg2[%c0_158, %c7] : memref<4x8xf32, #tpu.memory_space<smem>>
    %c0_159 = arith.constant 0 : index
    %c0_160 = arith.constant 0 : index
    %c0_161 = arith.constant 0 : index
    %207 = vector.load %arg1[%c0_159, %c0_160, %c0_161] : memref<1x64x32xf32, #tpu.memory_space<vmem>>, vector<1x64x8xf32>
    %208 = vector.shape_cast %207 : vector<1x64x8xf32> to vector<64x8xf32>
    %209 = vector.broadcast %206 : f32 to vector<64x8xf32>
    %210 = arith.mulf %209, %208 : vector<64x8xf32>
    %211 = arith.addf %205, %210 : vector<64x8xf32>
    %c1_162 = arith.constant 1 : index
    %c7_163 = arith.constant 7 : index
    %212 = memref.load %arg2[%c1_162, %c7_163] : memref<4x8xf32, #tpu.memory_space<smem>>
    %c0_164 = arith.constant 0 : index
    %c0_165 = arith.constant 0 : index
    %c8_166 = arith.constant 8 : index
    %213 = vector.load %arg1[%c0_164, %c0_165, %c8_166] : memref<1x64x32xf32, #tpu.memory_space<vmem>>, vector<1x64x8xf32>
    %214 = vector.shape_cast %213 : vector<1x64x8xf32> to vector<64x8xf32>
    %215 = vector.broadcast %212 : f32 to vector<64x8xf32>
    %216 = arith.mulf %215, %214 : vector<64x8xf32>
    %217 = arith.addf %211, %216 : vector<64x8xf32>
    %c2_167 = arith.constant 2 : index
    %c7_168 = arith.constant 7 : index
    %218 = memref.load %arg2[%c2_167, %c7_168] : memref<4x8xf32, #tpu.memory_space<smem>>
    %c0_169 = arith.constant 0 : index
    %c0_170 = arith.constant 0 : index
    %c16_171 = arith.constant 16 : index
    %219 = vector.load %arg1[%c0_169, %c0_170, %c16_171] : memref<1x64x32xf32, #tpu.memory_space<vmem>>, vector<1x64x8xf32>
    %220 = vector.shape_cast %219 : vector<1x64x8xf32> to vector<64x8xf32>
    %221 = vector.broadcast %218 : f32 to vector<64x8xf32>
    %222 = arith.mulf %221, %220 : vector<64x8xf32>
    %223 = arith.addf %217, %222 : vector<64x8xf32>
    %c3_172 = arith.constant 3 : index
    %c7_173 = arith.constant 7 : index
    %224 = memref.load %arg2[%c3_172, %c7_173] : memref<4x8xf32, #tpu.memory_space<smem>>
    %c0_174 = arith.constant 0 : index
    %c0_175 = arith.constant 0 : index
    %c24_176 = arith.constant 24 : index
    %225 = vector.load %arg1[%c0_174, %c0_175, %c24_176] : memref<1x64x32xf32, #tpu.memory_space<vmem>>, vector<1x64x8xf32>
    %226 = vector.shape_cast %225 : vector<1x64x8xf32> to vector<64x8xf32>
    %227 = vector.broadcast %224 : f32 to vector<64x8xf32>
    %228 = arith.mulf %227, %226 : vector<64x8xf32>
    %229 = arith.addf %223, %228 : vector<64x8xf32>
    %c7_177 = arith.constant 7 : index
    %230 = memref.load %arg3[%c7_177] : memref<8xf32, #tpu.memory_space<smem>>
    %231 = vector.broadcast %230 : f32 to vector<64x8xf32>
    %232 = arith.addf %229, %231 : vector<64x8xf32>
    %c0_178 = arith.constant 0 : index
    %c56 = arith.constant 56 : index
    %233 = vector.load %arg13[%c0_178, %c56] : memref<64x64xf32, #tpu.memory_space<vmem>>, vector<64x8xf32>
    tpu.vector_store %arg13[%c0_178, %c56], %232 {strides = array<i32>} : memref<64x64xf32, #tpu.memory_space<vmem>>, vector<64x8xf32>,
    %c0_179 = arith.constant 0 : index
    %c0_180 = arith.constant 0 : index
    %234 = vector.load %arg13[%c0_179, %c0_180] : memref<64x64xf32, #tpu.memory_space<vmem>>, vector<64x64xf32>
    %c0_181 = arith.constant 0 : index
    %c0_182 = arith.constant 0 : index
    %235 = vector.load %arg13[%c0_181, %c0_182] : memref<64x64xf32, #tpu.memory_space<vmem>>, vector<64x8xf32>
    %c0_183 = arith.constant 0 : index
    %c0_184 = arith.constant 0 : index
    %236 = vector.load %arg14[%c0_183, %c0_184] : memref<512x128xf32, #tpu.memory_space<vmem>>, vector<64x8xf32>
    tpu.vector_store %arg14[%c0_183, %c0_184], %235 {strides = array<i32>} : memref<512x128xf32, #tpu.memory_space<vmem>>, vector<64x8xf32>,
    %c0_185 = arith.constant 0 : index
    %c8_186 = arith.constant 8 : index
    %237 = vector.load %arg13[%c0_185, %c8_186] : memref<64x64xf32, #tpu.memory_space<vmem>>, vector<64x8xf32>
    %c64 = arith.constant 64 : index
    %c0_187 = arith.constant 0 : index
    %238 = vector.load %arg14[%c64, %c0_187] : memref<512x128xf32, #tpu.memory_space<vmem>>, vector<64x8xf32>
    tpu.vector_store %arg14[%c64, %c0_187], %237 {strides = array<i32>} : memref<512x128xf32, #tpu.memory_space<vmem>>, vector<64x8xf32>,
    %c0_188 = arith.constant 0 : index
    %c16_189 = arith.constant 16 : index
    %239 = vector.load %arg13[%c0_188, %c16_189] : memref<64x64xf32, #tpu.memory_space<vmem>>, vector<64x8xf32>
    %c128 = arith.constant 128 : index
    %c0_190 = arith.constant 0 : index
    %240 = vector.load %arg14[%c128, %c0_190] : memref<512x128xf32, #tpu.memory_space<vmem>>, vector<64x8xf32>
    tpu.vector_store %arg14[%c128, %c0_190], %239 {strides = array<i32>} : memref<512x128xf32, #tpu.memory_space<vmem>>, vector<64x8xf32>,
    %c0_191 = arith.constant 0 : index
    %c24_192 = arith.constant 24 : index
    %241 = vector.load %arg13[%c0_191, %c24_192] : memref<64x64xf32, #tpu.memory_space<vmem>>, vector<64x8xf32>
    %c192 = arith.constant 192 : index
    %c0_193 = arith.constant 0 : index
    %242 = vector.load %arg14[%c192, %c0_193] : memref<512x128xf32, #tpu.memory_space<vmem>>, vector<64x8xf32>
    tpu.vector_store %arg14[%c192, %c0_193], %241 {strides = array<i32>} : memref<512x128xf32, #tpu.memory_space<vmem>>, vector<64x8xf32>,
    %c0_194 = arith.constant 0 : index
    %c32_195 = arith.constant 32 : index
    %243 = vector.load %arg13[%c0_194, %c32_195] : memref<64x64xf32, #tpu.memory_space<vmem>>, vector<64x8xf32>
    %c256 = arith.constant 256 : index
    %c0_196 = arith.constant 0 : index
    %244 = vector.load %arg14[%c256, %c0_196] : memref<512x128xf32, #tpu.memory_space<vmem>>, vector<64x8xf32>
    tpu.vector_store %arg14[%c256, %c0_196], %243 {strides = array<i32>} : memref<512x128xf32, #tpu.memory_space<vmem>>, vector<64x8xf32>,
    %c0_197 = arith.constant 0 : index
    %c40_198 = arith.constant 40 : index
    %245 = vector.load %arg13[%c0_197, %c40_198] : memref<64x64xf32, #tpu.memory_space<vmem>>, vector<64x8xf32>
    %c320 = arith.constant 320 : index
    %c0_199 = arith.constant 0 : index
    %246 = vector.load %arg14[%c320, %c0_199] : memref<512x128xf32, #tpu.memory_space<vmem>>, vector<64x8xf32>
    tpu.vector_store %arg14[%c320, %c0_199], %245 {strides = array<i32>} : memref<512x128xf32, #tpu.memory_space<vmem>>, vector<64x8xf32>,
    %c0_200 = arith.constant 0 : index
    %c48_201 = arith.constant 48 : index
    %247 = vector.load %arg13[%c0_200, %c48_201] : memref<64x64xf32, #tpu.memory_space<vmem>>, vector<64x8xf32>
    %c384 = arith.constant 384 : index
    %c0_202 = arith.constant 0 : index
    %248 = vector.load %arg14[%c384, %c0_202] : memref<512x128xf32, #tpu.memory_space<vmem>>, vector<64x8xf32>
    tpu.vector_store %arg14[%c384, %c0_202], %247 {strides = array<i32>} : memref<512x128xf32, #tpu.memory_space<vmem>>, vector<64x8xf32>,
    %c0_203 = arith.constant 0 : index
    %c56_204 = arith.constant 56 : index
    %249 = vector.load %arg13[%c0_203, %c56_204] : memref<64x64xf32, #tpu.memory_space<vmem>>, vector<64x8xf32>
    %c448 = arith.constant 448 : index
    %c0_205 = arith.constant 0 : index
    %250 = vector.load %arg14[%c448, %c0_205] : memref<512x128xf32, #tpu.memory_space<vmem>>, vector<64x8xf32>
    tpu.vector_store %arg14[%c448, %c0_205], %249 {strides = array<i32>} : memref<512x128xf32, #tpu.memory_space<vmem>>, vector<64x8xf32>,
    %c0_206 = arith.constant 0 : index
    %c0_207 = arith.constant 0 : index
    %251 = vector.load %arg6[%c0_206, %c0_207] : memref<512x512xf32, #tpu.memory_space<vmem>>, vector<512x512xf32>
    %c0_208 = arith.constant 0 : index
    %c0_209 = arith.constant 0 : index
    %252 = vector.load %arg14[%c0_208, %c0_209] : memref<512x128xf32, #tpu.memory_space<vmem>>, vector<512x128xf32>
    %cst_210 = arith.constant dense<0.000000e+00> : vector<512x128xf32>
    %253 = tpu.matmul %251, %252, %cst_210 {dimension_numbers = #tpu.dot_dimension_numbers<[1], [0], [0], [1], [0, 0, 1, 1], [], []>} : vector<512x512xf32>, vector<512x128xf32>, vector<512x128xf32> -> vector<512x128xf32>
    %c0_211 = arith.constant 0 : index
    %c0_212 = arith.constant 0 : index
    %254 = vector.load %arg15[%c0_211, %c0_212] : memref<512x128xf32, #tpu.memory_space<vmem>>, vector<512x128xf32>
    tpu.vector_store %arg15[%c0_211, %c0_212], %253 {strides = array<i32>} : memref<512x128xf32, #tpu.memory_space<vmem>>, vector<512x128xf32>,
    %c0_213 = arith.constant 0 : index
    %c0_214 = arith.constant 0 : index
    %255 = vector.load %arg7[%c0_213, %c0_214] : memref<64x64xf32, #tpu.memory_space<vmem>>, vector<64x64xf32>
    %cst_215 = arith.constant dense<0.000000e+00> : vector<64x64xf32>
    %256 = tpu.matmul %234, %255, %cst_215 {dimension_numbers = #tpu.dot_dimension_numbers<[1], [0], [0], [1], [0, 0, 1, 1], [], []>} : vector<64x64xf32>, vector<64x64xf32>, vector<64x64xf32> -> vector<64x64xf32>
    %c0_216 = arith.constant 0 : index
    %c0_217 = arith.constant 0 : index
    %257 = vector.load %arg8[%c0_216, %c0_217] : memref<64x64xf32, #tpu.memory_space<vmem>>, vector<64x64xf32>
    %258 = arith.addf %256, %257 : vector<64x64xf32>
    %c0_218 = arith.constant 0 : index
    %c0_219 = arith.constant 0 : index
    %259 = vector.load %arg16[%c0_218, %c0_219] : memref<64x64xf32, #tpu.memory_space<vmem>>, vector<64x64xf32>
    tpu.vector_store %arg16[%c0_218, %c0_219], %258 {strides = array<i32>} : memref<64x64xf32, #tpu.memory_space<vmem>>, vector<64x64xf32>,
    %c0_220 = arith.constant 0 : index
    %c0_221 = arith.constant 0 : index
    %260 = vector.load %arg16[%c0_220, %c0_221] : memref<64x64xf32, #tpu.memory_space<vmem>>, vector<64x8xf32>
    %c0_222 = arith.constant 0 : index
    %c0_223 = arith.constant 0 : index
    %261 = vector.load %arg15[%c0_222, %c0_223] : memref<512x128xf32, #tpu.memory_space<vmem>>, vector<64x8xf32>
    %262 = arith.addf %260, %261 : vector<64x8xf32>
    %c0_224 = arith.constant 0 : index
    %c0_225 = arith.constant 0 : index
    %263 = vector.load %arg16[%c0_224, %c0_225] : memref<64x64xf32, #tpu.memory_space<vmem>>, vector<64x8xf32>
    tpu.vector_store %arg16[%c0_224, %c0_225], %262 {strides = array<i32>} : memref<64x64xf32, #tpu.memory_space<vmem>>, vector<64x8xf32>,
    %c0_226 = arith.constant 0 : index
    %c8_227 = arith.constant 8 : index
    %264 = vector.load %arg16[%c0_226, %c8_227] : memref<64x64xf32, #tpu.memory_space<vmem>>, vector<64x8xf32>
    %c64_228 = arith.constant 64 : index
    %c0_229 = arith.constant 0 : index
    %265 = vector.load %arg15[%c64_228, %c0_229] : memref<512x128xf32, #tpu.memory_space<vmem>>, vector<64x8xf32>
    %266 = arith.addf %264, %265 : vector<64x8xf32>
    %c0_230 = arith.constant 0 : index
    %c8_231 = arith.constant 8 : index
    %267 = vector.load %arg16[%c0_230, %c8_231] : memref<64x64xf32, #tpu.memory_space<vmem>>, vector<64x8xf32>
    tpu.vector_store %arg16[%c0_230, %c8_231], %266 {strides = array<i32>} : memref<64x64xf32, #tpu.memory_space<vmem>>, vector<64x8xf32>,
    %c0_232 = arith.constant 0 : index
    %c16_233 = arith.constant 16 : index
    %268 = vector.load %arg16[%c0_232, %c16_233] : memref<64x64xf32, #tpu.memory_space<vmem>>, vector<64x8xf32>
    %c128_234 = arith.constant 128 : index
    %c0_235 = arith.constant 0 : index
    %269 = vector.load %arg15[%c128_234, %c0_235] : memref<512x128xf32, #tpu.memory_space<vmem>>, vector<64x8xf32>
    %270 = arith.addf %268, %269 : vector<64x8xf32>
    %c0_236 = arith.constant 0 : index
    %c16_237 = arith.constant 16 : index
    %271 = vector.load %arg16[%c0_236, %c16_237] : memref<64x64xf32, #tpu.memory_space<vmem>>, vector<64x8xf32>
    tpu.vector_store %arg16[%c0_236, %c16_237], %270 {strides = array<i32>} : memref<64x64xf32, #tpu.memory_space<vmem>>, vector<64x8xf32>,
    %c0_238 = arith.constant 0 : index
    %c24_239 = arith.constant 24 : index
    %272 = vector.load %arg16[%c0_238, %c24_239] : memref<64x64xf32, #tpu.memory_space<vmem>>, vector<64x8xf32>
    %c192_240 = arith.constant 192 : index
    %c0_241 = arith.constant 0 : index
    %273 = vector.load %arg15[%c192_240, %c0_241] : memref<512x128xf32, #tpu.memory_space<vmem>>, vector<64x8xf32>
    %274 = arith.addf %272, %273 : vector<64x8xf32>
    %c0_242 = arith.constant 0 : index
    %c24_243 = arith.constant 24 : index
    %275 = vector.load %arg16[%c0_242, %c24_243] : memref<64x64xf32, #tpu.memory_space<vmem>>, vector<64x8xf32>
    tpu.vector_store %arg16[%c0_242, %c24_243], %274 {strides = array<i32>} : memref<64x64xf32, #tpu.memory_space<vmem>>, vector<64x8xf32>,
    %c0_244 = arith.constant 0 : index
    %c32_245 = arith.constant 32 : index
    %276 = vector.load %arg16[%c0_244, %c32_245] : memref<64x64xf32, #tpu.memory_space<vmem>>, vector<64x8xf32>
    %c256_246 = arith.constant 256 : index
    %c0_247 = arith.constant 0 : index
    %277 = vector.load %arg15[%c256_246, %c0_247] : memref<512x128xf32, #tpu.memory_space<vmem>>, vector<64x8xf32>
    %278 = arith.addf %276, %277 : vector<64x8xf32>
    %c0_248 = arith.constant 0 : index
    %c32_249 = arith.constant 32 : index
    %279 = vector.load %arg16[%c0_248, %c32_249] : memref<64x64xf32, #tpu.memory_space<vmem>>, vector<64x8xf32>
    tpu.vector_store %arg16[%c0_248, %c32_249], %278 {strides = array<i32>} : memref<64x64xf32, #tpu.memory_space<vmem>>, vector<64x8xf32>,
    %c0_250 = arith.constant 0 : index
    %c40_251 = arith.constant 40 : index
    %280 = vector.load %arg16[%c0_250, %c40_251] : memref<64x64xf32, #tpu.memory_space<vmem>>, vector<64x8xf32>
    %c320_252 = arith.constant 320 : index
    %c0_253 = arith.constant 0 : index
    %281 = vector.load %arg15[%c320_252, %c0_253] : memref<512x128xf32, #tpu.memory_space<vmem>>, vector<64x8xf32>
    %282 = arith.addf %280, %281 : vector<64x8xf32>
    %c0_254 = arith.constant 0 : index
    %c40_255 = arith.constant 40 : index
    %283 = vector.load %arg16[%c0_254, %c40_255] : memref<64x64xf32, #tpu.memory_space<vmem>>, vector<64x8xf32>
    tpu.vector_store %arg16[%c0_254, %c40_255], %282 {strides = array<i32>} : memref<64x64xf32, #tpu.memory_space<vmem>>, vector<64x8xf32>,
    %c0_256 = arith.constant 0 : index
    %c48_257 = arith.constant 48 : index
    %284 = vector.load %arg16[%c0_256, %c48_257] : memref<64x64xf32, #tpu.memory_space<vmem>>, vector<64x8xf32>
    %c384_258 = arith.constant 384 : index
    %c0_259 = arith.constant 0 : index
    %285 = vector.load %arg15[%c384_258, %c0_259] : memref<512x128xf32, #tpu.memory_space<vmem>>, vector<64x8xf32>
    %286 = arith.addf %284, %285 : vector<64x8xf32>
    %c0_260 = arith.constant 0 : index
    %c48_261 = arith.constant 48 : index
    %287 = vector.load %arg16[%c0_260, %c48_261] : memref<64x64xf32, #tpu.memory_space<vmem>>, vector<64x8xf32>
    tpu.vector_store %arg16[%c0_260, %c48_261], %286 {strides = array<i32>} : memref<64x64xf32, #tpu.memory_space<vmem>>, vector<64x8xf32>,
    %c0_262 = arith.constant 0 : index
    %c56_263 = arith.constant 56 : index
    %288 = vector.load %arg16[%c0_262, %c56_263] : memref<64x64xf32, #tpu.memory_space<vmem>>, vector<64x8xf32>
    %c448_264 = arith.constant 448 : index
    %c0_265 = arith.constant 0 : index
    %289 = vector.load %arg15[%c448_264, %c0_265] : memref<512x128xf32, #tpu.memory_space<vmem>>, vector<64x8xf32>
    %290 = arith.addf %288, %289 : vector<64x8xf32>
    %c0_266 = arith.constant 0 : index
    %c56_267 = arith.constant 56 : index
    %291 = vector.load %arg16[%c0_266, %c56_267] : memref<64x64xf32, #tpu.memory_space<vmem>>, vector<64x8xf32>
    tpu.vector_store %arg16[%c0_266, %c56_267], %290 {strides = array<i32>} : memref<64x64xf32, #tpu.memory_space<vmem>>, vector<64x8xf32>,
    %c0_268 = arith.constant 0 : index
    %c0_269 = arith.constant 0 : index
    %292 = vector.load %arg16[%c0_268, %c0_269] : memref<64x64xf32, #tpu.memory_space<vmem>>, vector<64x64xf32>
    %cst_270 = arith.constant 0.000000e+00 : f32
    %293 = vector.broadcast %cst_270 : f32 to vector<64x64xf32>
    %294 = arith.cmpf oge, %292, %293 : vector<64x64xf32>
    %cst_271 = arith.constant 0.00999999977 : f32
    %295 = vector.broadcast %cst_271 : f32 to vector<64x64xf32>
    %296 = arith.mulf %295, %292 : vector<64x64xf32>
    %297 = arith.select %294, %292, %296 : vector<64x64xi1>, vector<64x64xf32>
    %298 = arith.addf %234, %297 : vector<64x64xf32>
    %c0_272 = arith.constant 0 : index
    %c0_273 = arith.constant 0 : index
    %299 = vector.load %arg13[%c0_272, %c0_273] : memref<64x64xf32, #tpu.memory_space<vmem>>, vector<64x64xf32>
    tpu.vector_store %arg13[%c0_272, %c0_273], %298 {strides = array<i32>} : memref<64x64xf32, #tpu.memory_space<vmem>>, vector<64x64xf32>,
    %c0_274 = arith.constant 0 : index
    %c0_275 = arith.constant 0 : index
    %300 = vector.load %arg13[%c0_274, %c0_275] : memref<64x64xf32, #tpu.memory_space<vmem>>, vector<64x64xf32>
    %c0_276 = arith.constant 0 : index
    %c0_277 = arith.constant 0 : index
    %301 = vector.load %arg13[%c0_276, %c0_277] : memref<64x64xf32, #tpu.memory_space<vmem>>, vector<64x8xf32>
    %c0_278 = arith.constant 0 : index
    %c0_279 = arith.constant 0 : index
    %302 = vector.load %arg14[%c0_278, %c0_279] : memref<512x128xf32, #tpu.memory_space<vmem>>, vector<64x8xf32>
    tpu.vector_store %arg14[%c0_278, %c0_279], %301 {strides = array<i32>} : memref<512x128xf32, #tpu.memory_space<vmem>>, vector<64x8xf32>,
    %c0_280 = arith.constant 0 : index
    %c8_281 = arith.constant 8 : index
    %303 = vector.load %arg13[%c0_280, %c8_281] : memref<64x64xf32, #tpu.memory_space<vmem>>, vector<64x8xf32>
    %c64_282 = arith.constant 64 : index
    %c0_283 = arith.constant 0 : index
    %304 = vector.load %arg14[%c64_282, %c0_283] : memref<512x128xf32, #tpu.memory_space<vmem>>, vector<64x8xf32>
    tpu.vector_store %arg14[%c64_282, %c0_283], %303 {strides = array<i32>} : memref<512x128xf32, #tpu.memory_space<vmem>>, vector<64x8xf32>,
    %c0_284 = arith.constant 0 : index
    %c16_285 = arith.constant 16 : index
    %305 = vector.load %arg13[%c0_284, %c16_285] : memref<64x64xf32, #tpu.memory_space<vmem>>, vector<64x8xf32>
    %c128_286 = arith.constant 128 : index
    %c0_287 = arith.constant 0 : index
    %306 = vector.load %arg14[%c128_286, %c0_287] : memref<512x128xf32, #tpu.memory_space<vmem>>, vector<64x8xf32>
    tpu.vector_store %arg14[%c128_286, %c0_287], %305 {strides = array<i32>} : memref<512x128xf32, #tpu.memory_space<vmem>>, vector<64x8xf32>,
    %c0_288 = arith.constant 0 : index
    %c24_289 = arith.constant 24 : index
    %307 = vector.load %arg13[%c0_288, %c24_289] : memref<64x64xf32, #tpu.memory_space<vmem>>, vector<64x8xf32>
    %c192_290 = arith.constant 192 : index
    %c0_291 = arith.constant 0 : index
    %308 = vector.load %arg14[%c192_290, %c0_291] : memref<512x128xf32, #tpu.memory_space<vmem>>, vector<64x8xf32>
    tpu.vector_store %arg14[%c192_290, %c0_291], %307 {strides = array<i32>} : memref<512x128xf32, #tpu.memory_space<vmem>>, vector<64x8xf32>,
    %c0_292 = arith.constant 0 : index
    %c32_293 = arith.constant 32 : index
    %309 = vector.load %arg13[%c0_292, %c32_293] : memref<64x64xf32, #tpu.memory_space<vmem>>, vector<64x8xf32>
    %c256_294 = arith.constant 256 : index
    %c0_295 = arith.constant 0 : index
    %310 = vector.load %arg14[%c256_294, %c0_295] : memref<512x128xf32, #tpu.memory_space<vmem>>, vector<64x8xf32>
    tpu.vector_store %arg14[%c256_294, %c0_295], %309 {strides = array<i32>} : memref<512x128xf32, #tpu.memory_space<vmem>>, vector<64x8xf32>,
    %c0_296 = arith.constant 0 : index
    %c40_297 = arith.constant 40 : index
    %311 = vector.load %arg13[%c0_296, %c40_297] : memref<64x64xf32, #tpu.memory_space<vmem>>, vector<64x8xf32>
    %c320_298 = arith.constant 320 : index
    %c0_299 = arith.constant 0 : index
    %312 = vector.load %arg14[%c320_298, %c0_299] : memref<512x128xf32, #tpu.memory_space<vmem>>, vector<64x8xf32>
    tpu.vector_store %arg14[%c320_298, %c0_299], %311 {strides = array<i32>} : memref<512x128xf32, #tpu.memory_space<vmem>>, vector<64x8xf32>,
    %c0_300 = arith.constant 0 : index
    %c48_301 = arith.constant 48 : index
    %313 = vector.load %arg13[%c0_300, %c48_301] : memref<64x64xf32, #tpu.memory_space<vmem>>, vector<64x8xf32>
    %c384_302 = arith.constant 384 : index
    %c0_303 = arith.constant 0 : index
    %314 = vector.load %arg14[%c384_302, %c0_303] : memref<512x128xf32, #tpu.memory_space<vmem>>, vector<64x8xf32>
    tpu.vector_store %arg14[%c384_302, %c0_303], %313 {strides = array<i32>} : memref<512x128xf32, #tpu.memory_space<vmem>>, vector<64x8xf32>,
    %c0_304 = arith.constant 0 : index
    %c56_305 = arith.constant 56 : index
    %315 = vector.load %arg13[%c0_304, %c56_305] : memref<64x64xf32, #tpu.memory_space<vmem>>, vector<64x8xf32>
    %c448_306 = arith.constant 448 : index
    %c0_307 = arith.constant 0 : index
    %316 = vector.load %arg14[%c448_306, %c0_307] : memref<512x128xf32, #tpu.memory_space<vmem>>, vector<64x8xf32>
    tpu.vector_store %arg14[%c448_306, %c0_307], %315 {strides = array<i32>} : memref<512x128xf32, #tpu.memory_space<vmem>>, vector<64x8xf32>,
    %c0_308 = arith.constant 0 : index
    %c0_309 = arith.constant 0 : index
    %317 = vector.load %arg9[%c0_308, %c0_309] : memref<512x512xf32, #tpu.memory_space<vmem>>, vector<512x512xf32>
    %c0_310 = arith.constant 0 : index
    %c0_311 = arith.constant 0 : index
    %318 = vector.load %arg14[%c0_310, %c0_311] : memref<512x128xf32, #tpu.memory_space<vmem>>, vector<512x128xf32>
    %cst_312 = arith.constant dense<0.000000e+00> : vector<512x128xf32>
    %319 = tpu.matmul %317, %318, %cst_312 {dimension_numbers = #tpu.dot_dimension_numbers<[1], [0], [0], [1], [0, 0, 1, 1], [], []>} : vector<512x512xf32>, vector<512x128xf32>, vector<512x128xf32> -> vector<512x128xf32>
    %c0_313 = arith.constant 0 : index
    %c0_314 = arith.constant 0 : index
    %320 = vector.load %arg15[%c0_313, %c0_314] : memref<512x128xf32, #tpu.memory_space<vmem>>, vector<512x128xf32>
    tpu.vector_store %arg15[%c0_313, %c0_314], %319 {strides = array<i32>} : memref<512x128xf32, #tpu.memory_space<vmem>>, vector<512x128xf32>,
    %c0_315 = arith.constant 0 : index
    %c0_316 = arith.constant 0 : index
    %321 = vector.load %arg10[%c0_315, %c0_316] : memref<64x64xf32, #tpu.memory_space<vmem>>, vector<64x64xf32>
    %cst_317 = arith.constant dense<0.000000e+00> : vector<64x64xf32>
    %322 = tpu.matmul %300, %321, %cst_317 {dimension_numbers = #tpu.dot_dimension_numbers<[1], [0], [0], [1], [0, 0, 1, 1], [], []>} : vector<64x64xf32>, vector<64x64xf32>, vector<64x64xf32> -> vector<64x64xf32>
    %c0_318 = arith.constant 0 : index
    %c0_319 = arith.constant 0 : index
    %323 = vector.load %arg11[%c0_318, %c0_319] : memref<64x64xf32, #tpu.memory_space<vmem>>, vector<64x64xf32>
    %324 = arith.addf %322, %323 : vector<64x64xf32>
    %c0_320 = arith.constant 0 : index
    %c0_321 = arith.constant 0 : index
    %325 = vector.load %arg16[%c0_320, %c0_321] : memref<64x64xf32, #tpu.memory_space<vmem>>, vector<64x64xf32>
    tpu.vector_store %arg16[%c0_320, %c0_321], %324 {strides = array<i32>} : memref<64x64xf32, #tpu.memory_space<vmem>>, vector<64x64xf32>,
    %c0_322 = arith.constant 0 : index
    %c0_323 = arith.constant 0 : index
    %326 = vector.load %arg16[%c0_322, %c0_323] : memref<64x64xf32, #tpu.memory_space<vmem>>, vector<64x8xf32>
    %c0_324 = arith.constant 0 : index
    %c0_325 = arith.constant 0 : index
    %327 = vector.load %arg15[%c0_324, %c0_325] : memref<512x128xf32, #tpu.memory_space<vmem>>, vector<64x8xf32>
    %328 = arith.addf %326, %327 : vector<64x8xf32>
    %c0_326 = arith.constant 0 : index
    %c0_327 = arith.constant 0 : index
    %329 = vector.load %arg16[%c0_326, %c0_327] : memref<64x64xf32, #tpu.memory_space<vmem>>, vector<64x8xf32>
    tpu.vector_store %arg16[%c0_326, %c0_327], %328 {strides = array<i32>} : memref<64x64xf32, #tpu.memory_space<vmem>>, vector<64x8xf32>,
    %c0_328 = arith.constant 0 : index
    %c8_329 = arith.constant 8 : index
    %330 = vector.load %arg16[%c0_328, %c8_329] : memref<64x64xf32, #tpu.memory_space<vmem>>, vector<64x8xf32>
    %c64_330 = arith.constant 64 : index
    %c0_331 = arith.constant 0 : index
    %331 = vector.load %arg15[%c64_330, %c0_331] : memref<512x128xf32, #tpu.memory_space<vmem>>, vector<64x8xf32>
    %332 = arith.addf %330, %331 : vector<64x8xf32>
    %c0_332 = arith.constant 0 : index
    %c8_333 = arith.constant 8 : index
    %333 = vector.load %arg16[%c0_332, %c8_333] : memref<64x64xf32, #tpu.memory_space<vmem>>, vector<64x8xf32>
    tpu.vector_store %arg16[%c0_332, %c8_333], %332 {strides = array<i32>} : memref<64x64xf32, #tpu.memory_space<vmem>>, vector<64x8xf32>,
    %c0_334 = arith.constant 0 : index
    %c16_335 = arith.constant 16 : index
    %334 = vector.load %arg16[%c0_334, %c16_335] : memref<64x64xf32, #tpu.memory_space<vmem>>, vector<64x8xf32>
    %c128_336 = arith.constant 128 : index
    %c0_337 = arith.constant 0 : index
    %335 = vector.load %arg15[%c128_336, %c0_337] : memref<512x128xf32, #tpu.memory_space<vmem>>, vector<64x8xf32>
    %336 = arith.addf %334, %335 : vector<64x8xf32>
    %c0_338 = arith.constant 0 : index
    %c16_339 = arith.constant 16 : index
    %337 = vector.load %arg16[%c0_338, %c16_339] : memref<64x64xf32, #tpu.memory_space<vmem>>, vector<64x8xf32>
    tpu.vector_store %arg16[%c0_338, %c16_339], %336 {strides = array<i32>} : memref<64x64xf32, #tpu.memory_space<vmem>>, vector<64x8xf32>,
    %c0_340 = arith.constant 0 : index
    %c24_341 = arith.constant 24 : index
    %338 = vector.load %arg16[%c0_340, %c24_341] : memref<64x64xf32, #tpu.memory_space<vmem>>, vector<64x8xf32>
    %c192_342 = arith.constant 192 : index
    %c0_343 = arith.constant 0 : index
    %339 = vector.load %arg15[%c192_342, %c0_343] : memref<512x128xf32, #tpu.memory_space<vmem>>, vector<64x8xf32>
    %340 = arith.addf %338, %339 : vector<64x8xf32>
    %c0_344 = arith.constant 0 : index
    %c24_345 = arith.constant 24 : index
    %341 = vector.load %arg16[%c0_344, %c24_345] : memref<64x64xf32, #tpu.memory_space<vmem>>, vector<64x8xf32>
    tpu.vector_store %arg16[%c0_344, %c24_345], %340 {strides = array<i32>} : memref<64x64xf32, #tpu.memory_space<vmem>>, vector<64x8xf32>,
    %c0_346 = arith.constant 0 : index
    %c32_347 = arith.constant 32 : index
    %342 = vector.load %arg16[%c0_346, %c32_347] : memref<64x64xf32, #tpu.memory_space<vmem>>, vector<64x8xf32>
    %c256_348 = arith.constant 256 : index
    %c0_349 = arith.constant 0 : index
    %343 = vector.load %arg15[%c256_348, %c0_349] : memref<512x128xf32, #tpu.memory_space<vmem>>, vector<64x8xf32>
    %344 = arith.addf %342, %343 : vector<64x8xf32>
    %c0_350 = arith.constant 0 : index
    %c32_351 = arith.constant 32 : index
    %345 = vector.load %arg16[%c0_350, %c32_351] : memref<64x64xf32, #tpu.memory_space<vmem>>, vector<64x8xf32>
    tpu.vector_store %arg16[%c0_350, %c32_351], %344 {strides = array<i32>} : memref<64x64xf32, #tpu.memory_space<vmem>>, vector<64x8xf32>,
    %c0_352 = arith.constant 0 : index
    %c40_353 = arith.constant 40 : index
    %346 = vector.load %arg16[%c0_352, %c40_353] : memref<64x64xf32, #tpu.memory_space<vmem>>, vector<64x8xf32>
    %c320_354 = arith.constant 320 : index
    %c0_355 = arith.constant 0 : index
    %347 = vector.load %arg15[%c320_354, %c0_355] : memref<512x128xf32, #tpu.memory_space<vmem>>, vector<64x8xf32>
    %348 = arith.addf %346, %347 : vector<64x8xf32>
    %c0_356 = arith.constant 0 : index
    %c40_357 = arith.constant 40 : index
    %349 = vector.load %arg16[%c0_356, %c40_357] : memref<64x64xf32, #tpu.memory_space<vmem>>, vector<64x8xf32>
    tpu.vector_store %arg16[%c0_356, %c40_357], %348 {strides = array<i32>} : memref<64x64xf32, #tpu.memory_space<vmem>>, vector<64x8xf32>,
    %c0_358 = arith.constant 0 : index
    %c48_359 = arith.constant 48 : index
    %350 = vector.load %arg16[%c0_358, %c48_359] : memref<64x64xf32, #tpu.memory_space<vmem>>, vector<64x8xf32>
    %c384_360 = arith.constant 384 : index
    %c0_361 = arith.constant 0 : index
    %351 = vector.load %arg15[%c384_360, %c0_361] : memref<512x128xf32, #tpu.memory_space<vmem>>, vector<64x8xf32>
    %352 = arith.addf %350, %351 : vector<64x8xf32>
    %c0_362 = arith.constant 0 : index
    %c48_363 = arith.constant 48 : index
    %353 = vector.load %arg16[%c0_362, %c48_363] : memref<64x64xf32, #tpu.memory_space<vmem>>, vector<64x8xf32>
    tpu.vector_store %arg16[%c0_362, %c48_363], %352 {strides = array<i32>} : memref<64x64xf32, #tpu.memory_space<vmem>>, vector<64x8xf32>,
    %c0_364 = arith.constant 0 : index
    %c56_365 = arith.constant 56 : index
    %354 = vector.load %arg16[%c0_364, %c56_365] : memref<64x64xf32, #tpu.memory_space<vmem>>, vector<64x8xf32>
    %c448_366 = arith.constant 448 : index
    %c0_367 = arith.constant 0 : index
    %355 = vector.load %arg15[%c448_366, %c0_367] : memref<512x128xf32, #tpu.memory_space<vmem>>, vector<64x8xf32>
    %356 = arith.addf %354, %355 : vector<64x8xf32>
    %c0_368 = arith.constant 0 : index
    %c56_369 = arith.constant 56 : index
    %357 = vector.load %arg16[%c0_368, %c56_369] : memref<64x64xf32, #tpu.memory_space<vmem>>, vector<64x8xf32>
    tpu.vector_store %arg16[%c0_368, %c56_369], %356 {strides = array<i32>} : memref<64x64xf32, #tpu.memory_space<vmem>>, vector<64x8xf32>,
    %c0_370 = arith.constant 0 : index
    %c0_371 = arith.constant 0 : index
    %358 = vector.load %arg16[%c0_370, %c0_371] : memref<64x64xf32, #tpu.memory_space<vmem>>, vector<64x64xf32>
    %cst_372 = arith.constant 0.000000e+00 : f32
    %359 = vector.broadcast %cst_372 : f32 to vector<64x64xf32>
    %360 = arith.cmpf oge, %358, %359 : vector<64x64xf32>
    %cst_373 = arith.constant 0.00999999977 : f32
    %361 = vector.broadcast %cst_373 : f32 to vector<64x64xf32>
    %362 = arith.mulf %361, %358 : vector<64x64xf32>
    %363 = arith.select %360, %358, %362 : vector<64x64xi1>, vector<64x64xf32>
    %364 = arith.addf %300, %363 : vector<64x64xf32>
    %c0_374 = arith.constant 0 : index
    %c0_375 = arith.constant 0 : index
    %365 = vector.load %arg13[%c0_374, %c0_375] : memref<64x64xf32, #tpu.memory_space<vmem>>, vector<64x64xf32>
    tpu.vector_store %arg13[%c0_374, %c0_375], %364 {strides = array<i32>} : memref<64x64xf32, #tpu.memory_space<vmem>>, vector<64x64xf32>,
    %cst_376 = arith.constant 0.000000e+00 : f32
    %366 = vector.broadcast %cst_376 : f32 to vector<64x8xf32>
    %c0_377 = arith.constant 0 : index
    %c0_378 = arith.constant 0 : index
    %367 = memref.load %arg4[%c0_377, %c0_378] : memref<8x3xf32, #tpu.memory_space<smem>>
    %c0_379 = arith.constant 0 : index
    %c0_380 = arith.constant 0 : index
    %368 = vector.load %arg13[%c0_379, %c0_380] : memref<64x64xf32, #tpu.memory_space<vmem>>, vector<64x8xf32>
    %369 = vector.broadcast %367 : f32 to vector<64x8xf32>
    %370 = arith.mulf %369, %368 : vector<64x8xf32>
    %371 = arith.addf %366, %370 : vector<64x8xf32>
    %c1_381 = arith.constant 1 : index
    %c0_382 = arith.constant 0 : index
    %372 = memref.load %arg4[%c1_381, %c0_382] : memref<8x3xf32, #tpu.memory_space<smem>>
    %c0_383 = arith.constant 0 : index
    %c8_384 = arith.constant 8 : index
    %373 = vector.load %arg13[%c0_383, %c8_384] : memref<64x64xf32, #tpu.memory_space<vmem>>, vector<64x8xf32>
    %374 = vector.broadcast %372 : f32 to vector<64x8xf32>
    %375 = arith.mulf %374, %373 : vector<64x8xf32>
    %376 = arith.addf %371, %375 : vector<64x8xf32>
    %c2_385 = arith.constant 2 : index
    %c0_386 = arith.constant 0 : index
    %377 = memref.load %arg4[%c2_385, %c0_386] : memref<8x3xf32, #tpu.memory_space<smem>>
    %c0_387 = arith.constant 0 : index
    %c16_388 = arith.constant 16 : index
    %378 = vector.load %arg13[%c0_387, %c16_388] : memref<64x64xf32, #tpu.memory_space<vmem>>, vector<64x8xf32>
    %379 = vector.broadcast %377 : f32 to vector<64x8xf32>
    %380 = arith.mulf %379, %378 : vector<64x8xf32>
    %381 = arith.addf %376, %380 : vector<64x8xf32>
    %c3_389 = arith.constant 3 : index
    %c0_390 = arith.constant 0 : index
    %382 = memref.load %arg4[%c3_389, %c0_390] : memref<8x3xf32, #tpu.memory_space<smem>>
    %c0_391 = arith.constant 0 : index
    %c24_392 = arith.constant 24 : index
    %383 = vector.load %arg13[%c0_391, %c24_392] : memref<64x64xf32, #tpu.memory_space<vmem>>, vector<64x8xf32>
    %384 = vector.broadcast %382 : f32 to vector<64x8xf32>
    %385 = arith.mulf %384, %383 : vector<64x8xf32>
    %386 = arith.addf %381, %385 : vector<64x8xf32>
    %c4_393 = arith.constant 4 : index
    %c0_394 = arith.constant 0 : index
    %387 = memref.load %arg4[%c4_393, %c0_394] : memref<8x3xf32, #tpu.memory_space<smem>>
    %c0_395 = arith.constant 0 : index
    %c32_396 = arith.constant 32 : index
    %388 = vector.load %arg13[%c0_395, %c32_396] : memref<64x64xf32, #tpu.memory_space<vmem>>, vector<64x8xf32>
    %389 = vector.broadcast %387 : f32 to vector<64x8xf32>
    %390 = arith.mulf %389, %388 : vector<64x8xf32>
    %391 = arith.addf %386, %390 : vector<64x8xf32>
    %c5_397 = arith.constant 5 : index
    %c0_398 = arith.constant 0 : index
    %392 = memref.load %arg4[%c5_397, %c0_398] : memref<8x3xf32, #tpu.memory_space<smem>>
    %c0_399 = arith.constant 0 : index
    %c40_400 = arith.constant 40 : index
    %393 = vector.load %arg13[%c0_399, %c40_400] : memref<64x64xf32, #tpu.memory_space<vmem>>, vector<64x8xf32>
    %394 = vector.broadcast %392 : f32 to vector<64x8xf32>
    %395 = arith.mulf %394, %393 : vector<64x8xf32>
    %396 = arith.addf %391, %395 : vector<64x8xf32>
    %c6_401 = arith.constant 6 : index
    %c0_402 = arith.constant 0 : index
    %397 = memref.load %arg4[%c6_401, %c0_402] : memref<8x3xf32, #tpu.memory_space<smem>>
    %c0_403 = arith.constant 0 : index
    %c48_404 = arith.constant 48 : index
    %398 = vector.load %arg13[%c0_403, %c48_404] : memref<64x64xf32, #tpu.memory_space<vmem>>, vector<64x8xf32>
    %399 = vector.broadcast %397 : f32 to vector<64x8xf32>
    %400 = arith.mulf %399, %398 : vector<64x8xf32>
    %401 = arith.addf %396, %400 : vector<64x8xf32>
    %c7_405 = arith.constant 7 : index
    %c0_406 = arith.constant 0 : index
    %402 = memref.load %arg4[%c7_405, %c0_406] : memref<8x3xf32, #tpu.memory_space<smem>>
    %c0_407 = arith.constant 0 : index
    %c56_408 = arith.constant 56 : index
    %403 = vector.load %arg13[%c0_407, %c56_408] : memref<64x64xf32, #tpu.memory_space<vmem>>, vector<64x8xf32>
    %404 = vector.broadcast %402 : f32 to vector<64x8xf32>
    %405 = arith.mulf %404, %403 : vector<64x8xf32>
    %406 = arith.addf %401, %405 : vector<64x8xf32>
    %c0_409 = arith.constant 0 : index
    %407 = memref.load %arg5[%c0_409] : memref<3xf32, #tpu.memory_space<smem>>
    %408 = vector.broadcast %407 : f32 to vector<64x8xf32>
    %409 = arith.addf %406, %408 : vector<64x8xf32>
    %c0_410 = arith.constant 0 : index
    %c0_411 = arith.constant 0 : index
    %c0_412 = arith.constant 0 : index
    %410 = vector.load %arg12[%c0_410, %c0_411, %c0_412] : memref<1x64x24xf32, #tpu.memory_space<vmem>>, vector<1x64x8xf32>
    %411 = vector.shape_cast %410 : vector<1x64x8xf32> to vector<64x8xf32>
    %412 = vector.shape_cast %409 : vector<64x8xf32> to vector<1x64x8xf32>
    tpu.vector_store %arg12[%c0_410, %c0_411, %c0_412], %412 {strides = array<i32>} : memref<1x64x24xf32, #tpu.memory_space<vmem>>, vector<1x64x8xf32>,
    %cst_413 = arith.constant 0.000000e+00 : f32
    %413 = vector.broadcast %cst_413 : f32 to vector<64x8xf32>
    %c0_414 = arith.constant 0 : index
    %c1_415 = arith.constant 1 : index
    %414 = memref.load %arg4[%c0_414, %c1_415] : memref<8x3xf32, #tpu.memory_space<smem>>
    %c0_416 = arith.constant 0 : index
    %c0_417 = arith.constant 0 : index
    %415 = vector.load %arg13[%c0_416, %c0_417] : memref<64x64xf32, #tpu.memory_space<vmem>>, vector<64x8xf32>
    %416 = vector.broadcast %414 : f32 to vector<64x8xf32>
    %417 = arith.mulf %416, %415 : vector<64x8xf32>
    %418 = arith.addf %413, %417 : vector<64x8xf32>
    %c1_418 = arith.constant 1 : index
    %c1_419 = arith.constant 1 : index
    %419 = memref.load %arg4[%c1_418, %c1_419] : memref<8x3xf32, #tpu.memory_space<smem>>
    %c0_420 = arith.constant 0 : index
    %c8_421 = arith.constant 8 : index
    %420 = vector.load %arg13[%c0_420, %c8_421] : memref<64x64xf32, #tpu.memory_space<vmem>>, vector<64x8xf32>
    %421 = vector.broadcast %419 : f32 to vector<64x8xf32>
    %422 = arith.mulf %421, %420 : vector<64x8xf32>
    %423 = arith.addf %418, %422 : vector<64x8xf32>
    %c2_422 = arith.constant 2 : index
    %c1_423 = arith.constant 1 : index
    %424 = memref.load %arg4[%c2_422, %c1_423] : memref<8x3xf32, #tpu.memory_space<smem>>
    %c0_424 = arith.constant 0 : index
    %c16_425 = arith.constant 16 : index
    %425 = vector.load %arg13[%c0_424, %c16_425] : memref<64x64xf32, #tpu.memory_space<vmem>>, vector<64x8xf32>
    %426 = vector.broadcast %424 : f32 to vector<64x8xf32>
    %427 = arith.mulf %426, %425 : vector<64x8xf32>
    %428 = arith.addf %423, %427 : vector<64x8xf32>
    %c3_426 = arith.constant 3 : index
    %c1_427 = arith.constant 1 : index
    %429 = memref.load %arg4[%c3_426, %c1_427] : memref<8x3xf32, #tpu.memory_space<smem>>
    %c0_428 = arith.constant 0 : index
    %c24_429 = arith.constant 24 : index
    %430 = vector.load %arg13[%c0_428, %c24_429] : memref<64x64xf32, #tpu.memory_space<vmem>>, vector<64x8xf32>
    %431 = vector.broadcast %429 : f32 to vector<64x8xf32>
    %432 = arith.mulf %431, %430 : vector<64x8xf32>
    %433 = arith.addf %428, %432 : vector<64x8xf32>
    %c4_430 = arith.constant 4 : index
    %c1_431 = arith.constant 1 : index
    %434 = memref.load %arg4[%c4_430, %c1_431] : memref<8x3xf32, #tpu.memory_space<smem>>
    %c0_432 = arith.constant 0 : index
    %c32_433 = arith.constant 32 : index
    %435 = vector.load %arg13[%c0_432, %c32_433] : memref<64x64xf32, #tpu.memory_space<vmem>>, vector<64x8xf32>
    %436 = vector.broadcast %434 : f32 to vector<64x8xf32>
    %437 = arith.mulf %436, %435 : vector<64x8xf32>
    %438 = arith.addf %433, %437 : vector<64x8xf32>
    %c5_434 = arith.constant 5 : index
    %c1_435 = arith.constant 1 : index
    %439 = memref.load %arg4[%c5_434, %c1_435] : memref<8x3xf32, #tpu.memory_space<smem>>
    %c0_436 = arith.constant 0 : index
    %c40_437 = arith.constant 40 : index
    %440 = vector.load %arg13[%c0_436, %c40_437] : memref<64x64xf32, #tpu.memory_space<vmem>>, vector<64x8xf32>
    %441 = vector.broadcast %439 : f32 to vector<64x8xf32>
    %442 = arith.mulf %441, %440 : vector<64x8xf32>
    %443 = arith.addf %438, %442 : vector<64x8xf32>
    %c6_438 = arith.constant 6 : index
    %c1_439 = arith.constant 1 : index
    %444 = memref.load %arg4[%c6_438, %c1_439] : memref<8x3xf32, #tpu.memory_space<smem>>
    %c0_440 = arith.constant 0 : index
    %c48_441 = arith.constant 48 : index
    %445 = vector.load %arg13[%c0_440, %c48_441] : memref<64x64xf32, #tpu.memory_space<vmem>>, vector<64x8xf32>
    %446 = vector.broadcast %444 : f32 to vector<64x8xf32>
    %447 = arith.mulf %446, %445 : vector<64x8xf32>
    %448 = arith.addf %443, %447 : vector<64x8xf32>
    %c7_442 = arith.constant 7 : index
    %c1_443 = arith.constant 1 : index
    %449 = memref.load %arg4[%c7_442, %c1_443] : memref<8x3xf32, #tpu.memory_space<smem>>
    %c0_444 = arith.constant 0 : index
    %c56_445 = arith.constant 56 : index
    %450 = vector.load %arg13[%c0_444, %c56_445] : memref<64x64xf32, #tpu.memory_space<vmem>>, vector<64x8xf32>
    %451 = vector.broadcast %449 : f32 to vector<64x8xf32>
    %452 = arith.mulf %451, %450 : vector<64x8xf32>
    %453 = arith.addf %448, %452 : vector<64x8xf32>
    %c1_446 = arith.constant 1 : index
    %454 = memref.load %arg5[%c1_446] : memref<3xf32, #tpu.memory_space<smem>>
    %455 = vector.broadcast %454 : f32 to vector<64x8xf32>
    %456 = arith.addf %453, %455 : vector<64x8xf32>
    %c0_447 = arith.constant 0 : index
    %c0_448 = arith.constant 0 : index
    %c8_449 = arith.constant 8 : index
    %457 = vector.load %arg12[%c0_447, %c0_448, %c8_449] : memref<1x64x24xf32, #tpu.memory_space<vmem>>, vector<1x64x8xf32>
    %458 = vector.shape_cast %457 : vector<1x64x8xf32> to vector<64x8xf32>
    %459 = vector.shape_cast %456 : vector<64x8xf32> to vector<1x64x8xf32>
    tpu.vector_store %arg12[%c0_447, %c0_448, %c8_449], %459 {strides = array<i32>} : memref<1x64x24xf32, #tpu.memory_space<vmem>>, vector<1x64x8xf32>,
    %cst_450 = arith.constant 0.000000e+00 : f32
    %460 = vector.broadcast %cst_450 : f32 to vector<64x8xf32>
    %c0_451 = arith.constant 0 : index
    %c2_452 = arith.constant 2 : index
    %461 = memref.load %arg4[%c0_451, %c2_452] : memref<8x3xf32, #tpu.memory_space<smem>>
    %c0_453 = arith.constant 0 : index
    %c0_454 = arith.constant 0 : index
    %462 = vector.load %arg13[%c0_453, %c0_454] : memref<64x64xf32, #tpu.memory_space<vmem>>, vector<64x8xf32>
    %463 = vector.broadcast %461 : f32 to vector<64x8xf32>
    %464 = arith.mulf %463, %462 : vector<64x8xf32>
    %465 = arith.addf %460, %464 : vector<64x8xf32>
    %c1_455 = arith.constant 1 : index
    %c2_456 = arith.constant 2 : index
    %466 = memref.load %arg4[%c1_455, %c2_456] : memref<8x3xf32, #tpu.memory_space<smem>>
    %c0_457 = arith.constant 0 : index
    %c8_458 = arith.constant 8 : index
    %467 = vector.load %arg13[%c0_457, %c8_458] : memref<64x64xf32, #tpu.memory_space<vmem>>, vector<64x8xf32>
    %468 = vector.broadcast %466 : f32 to vector<64x8xf32>
    %469 = arith.mulf %468, %467 : vector<64x8xf32>
    %470 = arith.addf %465, %469 : vector<64x8xf32>
    %c2_459 = arith.constant 2 : index
    %c2_460 = arith.constant 2 : index
    %471 = memref.load %arg4[%c2_459, %c2_460] : memref<8x3xf32, #tpu.memory_space<smem>>
    %c0_461 = arith.constant 0 : index
    %c16_462 = arith.constant 16 : index
    %472 = vector.load %arg13[%c0_461, %c16_462] : memref<64x64xf32, #tpu.memory_space<vmem>>, vector<64x8xf32>
    %473 = vector.broadcast %471 : f32 to vector<64x8xf32>
    %474 = arith.mulf %473, %472 : vector<64x8xf32>
    %475 = arith.addf %470, %474 : vector<64x8xf32>
    %c3_463 = arith.constant 3 : index
    %c2_464 = arith.constant 2 : index
    %476 = memref.load %arg4[%c3_463, %c2_464] : memref<8x3xf32, #tpu.memory_space<smem>>
    %c0_465 = arith.constant 0 : index
    %c24_466 = arith.constant 24 : index
    %477 = vector.load %arg13[%c0_465, %c24_466] : memref<64x64xf32, #tpu.memory_space<vmem>>, vector<64x8xf32>
    %478 = vector.broadcast %476 : f32 to vector<64x8xf32>
    %479 = arith.mulf %478, %477 : vector<64x8xf32>
    %480 = arith.addf %475, %479 : vector<64x8xf32>
    %c4_467 = arith.constant 4 : index
    %c2_468 = arith.constant 2 : index
    %481 = memref.load %arg4[%c4_467, %c2_468] : memref<8x3xf32, #tpu.memory_space<smem>>
    %c0_469 = arith.constant 0 : index
    %c32_470 = arith.constant 32 : index
    %482 = vector.load %arg13[%c0_469, %c32_470] : memref<64x64xf32, #tpu.memory_space<vmem>>, vector<64x8xf32>
    %483 = vector.broadcast %481 : f32 to vector<64x8xf32>
    %484 = arith.mulf %483, %482 : vector<64x8xf32>
    %485 = arith.addf %480, %484 : vector<64x8xf32>
    %c5_471 = arith.constant 5 : index
    %c2_472 = arith.constant 2 : index
    %486 = memref.load %arg4[%c5_471, %c2_472] : memref<8x3xf32, #tpu.memory_space<smem>>
    %c0_473 = arith.constant 0 : index
    %c40_474 = arith.constant 40 : index
    %487 = vector.load %arg13[%c0_473, %c40_474] : memref<64x64xf32, #tpu.memory_space<vmem>>, vector<64x8xf32>
    %488 = vector.broadcast %486 : f32 to vector<64x8xf32>
    %489 = arith.mulf %488, %487 : vector<64x8xf32>
    %490 = arith.addf %485, %489 : vector<64x8xf32>
    %c6_475 = arith.constant 6 : index
    %c2_476 = arith.constant 2 : index
    %491 = memref.load %arg4[%c6_475, %c2_476] : memref<8x3xf32, #tpu.memory_space<smem>>
    %c0_477 = arith.constant 0 : index
    %c48_478 = arith.constant 48 : index
    %492 = vector.load %arg13[%c0_477, %c48_478] : memref<64x64xf32, #tpu.memory_space<vmem>>, vector<64x8xf32>
    %493 = vector.broadcast %491 : f32 to vector<64x8xf32>
    %494 = arith.mulf %493, %492 : vector<64x8xf32>
    %495 = arith.addf %490, %494 : vector<64x8xf32>
    %c7_479 = arith.constant 7 : index
    %c2_480 = arith.constant 2 : index
    %496 = memref.load %arg4[%c7_479, %c2_480] : memref<8x3xf32, #tpu.memory_space<smem>>
    %c0_481 = arith.constant 0 : index
    %c56_482 = arith.constant 56 : index
    %497 = vector.load %arg13[%c0_481, %c56_482] : memref<64x64xf32, #tpu.memory_space<vmem>>, vector<64x8xf32>
    %498 = vector.broadcast %496 : f32 to vector<64x8xf32>
    %499 = arith.mulf %498, %497 : vector<64x8xf32>
    %500 = arith.addf %495, %499 : vector<64x8xf32>
    %c2_483 = arith.constant 2 : index
    %501 = memref.load %arg5[%c2_483] : memref<3xf32, #tpu.memory_space<smem>>
    %502 = vector.broadcast %501 : f32 to vector<64x8xf32>
    %503 = arith.addf %500, %502 : vector<64x8xf32>
    %c0_484 = arith.constant 0 : index
    %c0_485 = arith.constant 0 : index
    %c16_486 = arith.constant 16 : index
    %504 = vector.load %arg12[%c0_484, %c0_485, %c16_486] : memref<1x64x24xf32, #tpu.memory_space<vmem>>, vector<1x64x8xf32>
    %505 = vector.shape_cast %504 : vector<1x64x8xf32> to vector<64x8xf32>
    %506 = vector.shape_cast %503 : vector<64x8xf32> to vector<1x64x8xf32>
    tpu.vector_store %arg12[%c0_484, %c0_485, %c16_486], %506 {strides = array<i32>} : memref<1x64x24xf32, #tpu.memory_space<vmem>>, vector<1x64x8xf32>,
    return
  }
  func.func @transform_0(%arg0: i32) -> (i32, i32, i32) {
    %c0_i32 = arith.constant 0 : i32
    %c0_i32_0 = arith.constant 0 : i32
    %c0_i32_1 = arith.constant 0 : i32
    return %arg0, %c0_i32, %c0_i32_0 : i32, i32, i32
  }
  func.func @transform_1(%arg0: i32) -> (i32, i32) {
    %c0_i32 = arith.constant 0 : i32
    %c0_i32_0 = arith.constant 0 : i32
    %c0_i32_1 = arith.constant 0 : i32
    return %c0_i32, %c0_i32_0 : i32, i32
  }
  func.func @transform_2(%arg0: i32) -> i32 {
    %c0_i32 = arith.constant 0 : i32
    %c0_i32_0 = arith.constant 0 : i32
    return %c0_i32 : i32
  }
  func.func @transform_3(%arg0: i32) -> (i32, i32) {
    %c0_i32 = arith.constant 0 : i32
    %c0_i32_0 = arith.constant 0 : i32
    %c0_i32_1 = arith.constant 0 : i32
    return %c0_i32, %c0_i32_0 : i32, i32
  }
  func.func @transform_4(%arg0: i32) -> i32 {
    %c0_i32 = arith.constant 0 : i32
    %c0_i32_0 = arith.constant 0 : i32
    return %c0_i32 : i32
  }
  func.func @transform_5(%arg0: i32) -> (i32, i32) {
    %c0_i32 = arith.constant 0 : i32
    %c0_i32_0 = arith.constant 0 : i32
    %c0_i32_1 = arith.constant 0 : i32
    return %c0_i32, %c0_i32_0 : i32, i32
  }
  func.func @transform_6(%arg0: i32) -> (i32, i32) {
    %c0_i32 = arith.constant 0 : i32
    %c0_i32_0 = arith.constant 0 : i32
    %c0_i32_1 = arith.constant 0 : i32
    return %c0_i32, %c0_i32_0 : i32, i32
  }
  func.func @transform_7(%arg0: i32) -> (i32, i32) {
    %c0_i32 = arith.constant 0 : i32
    %c0_i32_0 = arith.constant 0 : i32
    %c0_i32_1 = arith.constant 0 : i32
    return %c0_i32, %c0_i32_0 : i32, i32
  }
  func.func @transform_8(%arg0: i32) -> (i32, i32) {
    %c0_i32 = arith.constant 0 : i32
    %c0_i32_0 = arith.constant 0 : i32
    %c0_i32_1 = arith.constant 0 : i32
    return %c0_i32, %c0_i32_0 : i32, i32
  }
  func.func @transform_9(%arg0: i32) -> (i32, i32) {
    %c0_i32 = arith.constant 0 : i32
    %c0_i32_0 = arith.constant 0 : i32
    %c0_i32_1 = arith.constant 0 : i32
    return %c0_i32, %c0_i32_0 : i32, i32
  }
  func.func @transform_10(%arg0: i32) -> (i32, i32) {
    %c0_i32 = arith.constant 0 : i32
    %c0_i32_0 = arith.constant 0 : i32
    %c0_i32_1 = arith.constant 0 : i32
    return %c0_i32, %c0_i32_0 : i32, i32
  }
  func.func @transform_11(%arg0: i32) -> (i32, i32, i32) {
    %c0_i32 = arith.constant 0 : i32
    %c0_i32_0 = arith.constant 0 : i32
    %c0_i32_1 = arith.constant 0 : i32
    return %arg0, %c0_i32, %c0_i32_0 : i32, i32, i32
  }
}

</mosaic_0001>

<llo_original>
// kernel: axial_mlp_3d_forward.1
$region0: #{axial_mlp_3d_forward.1}
  #allocation0 [shape = 'u32[]', space=smem, size = 0x4, offset = 0x4, fixed_abs, tag = 'smem constant byte address 0x4 - core index']
  #allocation1 [shape = 'u32[72,128]{1,0:T(1,128)}', space=vmem, size = 0x9000, scoped, tag = 'internal scratch']
  #allocation2 [shape = 'f32[64,64]{1,0:T(8,128)}', space=vmem, size = 0x8000, scoped, tag = 'scratch operand']
  #allocation3 [shape = 'f32[512,128]{1,0:T(8,128)}', space=vmem, size = 0x40000, scoped, tag = 'scratch operand']
  #allocation4 [shape = 'f32[512,128]{1,0:T(8,128)}', space=vmem, size = 0x40000, scoped, tag = 'scratch operand']
  #allocation5 [shape = 'f32[64,64]{1,0:T(8,128)}', space=vmem, size = 0x8000, scoped, tag = 'scratch operand']
  %s0 = inlined_call_operand.vmem [shape: f32[2,64,32], index: 0, kind: input, shape index: {}]
  %s1 = inlined_call_operand.vmem [shape: f32[4,8], index: 1, kind: input, shape index: {}]
  %s2 = inlined_call_operand.vmem [shape: f32[8], index: 2, kind: input, shape index: {}]
  %s3 = inlined_call_operand.vmem [shape: f32[8,3], index: 3, kind: input, shape index: {}]
  %s4 = inlined_call_operand.vmem [shape: f32[3], index: 4, kind: input, shape index: {}]
  %s5 = inlined_call_operand.vmem [shape: f32[512,512], index: 5, kind: input, shape index: {}]
  %s6 = inlined_call_operand.vmem [shape: f32[64,64], index: 6, kind: input, shape index: {}]
  %s7 = inlined_call_operand.vmem [shape: f32[64,64], index: 7, kind: input, shape index: {}]
  %s8 = inlined_call_operand.vmem [shape: f32[512,512], index: 8, kind: input, shape index: {}]
  %s9 = inlined_call_operand.vmem [shape: f32[64,64], index: 9, kind: input, shape index: {}]
  %s10 = inlined_call_operand.vmem [shape: f32[64,64], index: 10, kind: input, shape index: {}]
  %s11 = inlined_call_operand.vmem [shape: f32[2,64,24], index: 11, kind: output, shape index: {}]
  %s12 = sld [smem:[#allocation0]]
  $region93: #{axial_mlp_3d_forward.1} parent=0
    _
  %s14 = ssub.s32 1, %s12
  %s15 = scalar_select 0, %s14, %s12
  $region1: #{axial_mlp_3d_forward.1} parent=0
    #allocation6 [shape = 'u8[2048]{0}', space=smem, size = 0x800, scoped, tag = 'input window, operand 1, single buffered']
    #allocation7 [shape = 's32[2]{0}', space=sflag, size = 0x8, scoped, tag = 'scoped memory for axial_mlp_3d_forward.1']
    #allocation8 [shape = 'u8[512]{0}', space=smem, size = 0x200, scoped, tag = 'input window, operand 2, single buffered']
    #allocation9 [shape = 's32[1]{0}', space=sflag, size = 0x4, scoped, tag = 'scoped memory for axial_mlp_3d_forward.1']
    #allocation10 [shape = 'u8[4096]{0}', space=smem, size = 0x1000, scoped, tag = 'input window, operand 3, single buffered']
    #allocation11 [shape = 'u8[512]{0}', space=smem, size = 0x200, scoped, tag = 'input window, operand 4, single buffered']
    #allocation12 [shape = 's32[1]{0}', space=sflag, size = 0x4, scoped, tag = 'scoped memory for axial_mlp_3d_forward.1']
    %16 = vsyncpa [#allocation7], 0
    %17 = vsyncpa [#allocation9], 0
    %18 = vsyncpa [#allocation12], 0
    loop: start=0, step=1, limit=4
    $region2: #{axial_mlp_3d_forward.1} parent=1 // loop_pre_header
      _
    $region3: #{axial_mlp_3d_forward.1} parent=1 // loop_header
      %s20 = sphi 0, %s24
      %p21 = scmp.ge.s32.totalorder %s20, 4
      %s30 = sphi 0, %s32
      %s33 = sphi 0, %s30
      %s34 = sphi 0, %s33
      %s50 = sphi 0, %s34
      %s54 = sphi 0, %s54
      %s56 = sphi 0, %s54
      %s57 = sphi 0, %s56
      %s71 = sphi 0, %s57
      %s75 = sphi 0, %s75
      %s77 = sphi 0, %s75
      %s78 = sphi 0, %s77
      %s92 = sphi 0, %s78
      %s96 = sphi 0, %s96
      %s98 = sphi 0, %s96
      %s99 = sphi 0, %s98
      %s113 = sphi 0, %s99
      %s117 = sphi 0, %s117
      %s119 = sphi 0, %s117
      %s120 = sphi 0, %s119
      %s134 = sphi 0, %s120
      %s138 = sphi 0, %s138
      %s140 = sphi 0, %s138
      %s141 = sphi 0, %s140
      %s155 = sphi 0, %s141
      %s159 = sphi 0, %s159
      %s161 = sphi 0, %s159
      %s162 = sphi 0, %s161
      %s176 = sphi 0, %s162
      %s180 = sphi 0, %s180
      %s182 = sphi 0, %s180
      %s183 = sphi 0, %s182
      %s197 = sphi 0, %s183
      %s201 = sphi 0, %s201
      %s203 = sphi 0, %s201
      %s204 = sphi 0, %s203
      %s218 = sphi 0, %s204
      %s222 = sphi 0, %s222
      %s224 = sphi 0, %s222
      %s225 = sphi 0, %s224
      %s239 = sphi 0, %s225
      %s243 = sphi 0, %s243
      %s245 = sphi 0, %s243
      %s246 = sphi 0, %s245
      %s260 = sphi 0, %s246
      %s266 = sphi 0, %s268
      %s269 = sphi 0, %s266
      %s270 = sphi 0, %s269
      %s286 = sphi 0, %s270
    $region4: #{axial_mlp_3d_forward.1} parent=1 // loop_header_branch
      %23 = sbr.rel (%p21) target = $region8
    $region5: #{axial_mlp_3d_forward.1} parent=1 // loop_body
      %s25 = ssub.s32 %s20, 1
      %s26 = ssub.s32 %s20, 2
      %s27 = sadd.s32 %s20, 1
      %s28 = ssub.s32 %s20, %s27
      %p29 = scmp.eq.s32.totalorder %s28, 0
      %s31 = sadd.s32 %s30, 1
      %s32 = scalar_select %p29, %s30, %s31
      %p35 = pneg %p29
      %p36 = scmp.eq.s32.totalorder %s20, 1
      %p37 = por %p35, %p36
      %p38 = scmp.ne.s32.totalorder %s30, %s33
      %p39 = scmp.eq.s32.totalorder %s20, 0
      %p40 = por %p38, %p39
      %p41 = scmp.ne.s32.totalorder %s30, %s33
      %p42 = scmp.eq.s32.totalorder %s25, 1
      %p43 = por %p41, %p42
      %p44 = scmp.ne.s32.totalorder %s33, %s34
      %p45 = scmp.eq.s32.totalorder %s25, 0
      %p46 = por %p44, %p45
      %p47 = scmp.ne.s32.totalorder %s33, %s34
      %p48 = scmp.eq.s32.totalorder %s26, 1
      %p49 = por %p47, %p48
      %p51 = scmp.ne.s32.totalorder %s34, %s50
      %p52 = scmp.eq.s32.totalorder %s26, 0
      %p53 = por %p51, %p52
      %s55 = sadd.s32 %s54, 1
      %p58 = scmp.eq.s32.totalorder %s20, 1
      %p59 = scmp.ne.s32.totalorder %s54, %s56
      %p60 = scmp.eq.s32.totalorder %s20, 0
      %p61 = por %p59, %p60
      %p62 = scmp.ne.s32.totalorder %s54, %s56
      %p63 = scmp.eq.s32.totalorder %s25, 1
      %p64 = por %p62, %p63
      %p65 = scmp.ne.s32.totalorder %s56, %s57
      %p66 = scmp.eq.s32.totalorder %s25, 0
      %p67 = por %p65, %p66
      %p68 = scmp.ne.s32.totalorder %s56, %s57
      %p69 = scmp.eq.s32.totalorder %s26, 1
      %p70 = por %p68, %p69
      %p72 = scmp.ne.s32.totalorder %s57, %s71
      %p73 = scmp.eq.s32.totalorder %s26, 0
      %p74 = por %p72, %p73
      %s76 = sadd.s32 %s75, 1
      %p79 = scmp.eq.s32.totalorder %s20, 1
      %p80 = scmp.ne.s32.totalorder %s75, %s77
      %p81 = scmp.eq.s32.totalorder %s20, 0
      %p82 = por %p80, %p81
      %p83 = scmp.ne.s32.totalorder %s75, %s77
      %p84 = scmp.eq.s32.totalorder %s25, 1
      %p85 = por %p83, %p84
      %p86 = scmp.ne.s32.totalorder %s77, %s78
      %p87 = scmp.eq.s32.totalorder %s25, 0
      %p88 = por %p86, %p87
      %p89 = scmp.ne.s32.totalorder %s77, %s78
      %p90 = scmp.eq.s32.totalorder %s26, 1
      %p91 = por %p89, %p90
      %p93 = scmp.ne.s32.totalorder %s78, %s92
      %p94 = scmp.eq.s32.totalorder %s26, 0
      %p95 = por %p93, %p94
      %s97 = sadd.s32 %s96, 1
      %p100 = scmp.eq.s32.totalorder %s20, 1
      %p101 = scmp.ne.s32.totalorder %s96, %s98
      %p102 = scmp.eq.s32.totalorder %s20, 0
      %p103 = por %p101, %p102
      %p104 = scmp.ne.s32.totalorder %s96, %s98
      %p105 = scmp.eq.s32.totalorder %s25, 1
      %p106 = por %p104, %p105
      %p107 = scmp.ne.s32.totalorder %s98, %s99
      %p108 = scmp.eq.s32.totalorder %s25, 0
      %p109 = por %p107, %p108
      %p110 = scmp.ne.s32.totalorder %s98, %s99
      %p111 = scmp.eq.s32.totalorder %s26, 1
      %p112 = por %p110, %p111
      %p114 = scmp.ne.s32.totalorder %s99, %s113
      %p115 = scmp.eq.s32.totalorder %s26, 0
      %p116 = por %p114, %p115
      %s118 = sadd.s32 %s117, 1
      %p121 = scmp.eq.s32.totalorder %s20, 1
      %p122 = scmp.ne.s32.totalorder %s117, %s119
      %p123 = scmp.eq.s32.totalorder %s20, 0
      %p124 = por %p122, %p123
      %p125 = scmp.ne.s32.totalorder %s117, %s119
      %p126 = scmp.eq.s32.totalorder %s25, 1
      %p127 = por %p125, %p126
      %p128 = scmp.ne.s32.totalorder %s119, %s120
      %p129 = scmp.eq.s32.totalorder %s25, 0
      %p130 = por %p128, %p129
      %p131 = scmp.ne.s32.totalorder %s119, %s120
      %p132 = scmp.eq.s32.totalorder %s26, 1
      %p133 = por %p131, %p132
      %p135 = scmp.ne.s32.totalorder %s120, %s134
      %p136 = scmp.eq.s32.totalorder %s26, 0
      %p137 = por %p135, %p136
      %s139 = sadd.s32 %s138, 1
      %p142 = scmp.eq.s32.totalorder %s20, 1
      %p143 = scmp.ne.s32.totalorder %s138, %s140
      %p144 = scmp.eq.s32.totalorder %s20, 0
      %p145 = por %p143, %p144
      %p146 = scmp.ne.s32.totalorder %s138, %s140
      %p147 = scmp.eq.s32.totalorder %s25, 1
      %p148 = por %p146, %p147
      %p149 = scmp.ne.s32.totalorder %s140, %s141
      %p150 = scmp.eq.s32.totalorder %s25, 0
      %p151 = por %p149, %p150
      %p152 = scmp.ne.s32.totalorder %s140, %s141
      %p153 = scmp.eq.s32.totalorder %s26, 1
      %p154 = por %p152, %p153
      %p156 = scmp.ne.s32.totalorder %s141, %s155
      %p157 = scmp.eq.s32.totalorder %s26, 0
      %p158 = por %p156, %p157
      %s160 = sadd.s32 %s159, 1
      %p163 = scmp.eq.s32.totalorder %s20, 1
      %p164 = scmp.ne.s32.totalorder %s159, %s161
      %p165 = scmp.eq.s32.totalorder %s20, 0
      %p166 = por %p164, %p165
      %p167 = scmp.ne.s32.totalorder %s159, %s161
      %p168 = scmp.eq.s32.totalorder %s25, 1
      %p169 = por %p167, %p168
      %p170 = scmp.ne.s32.totalorder %s161, %s162
      %p171 = scmp.eq.s32.totalorder %s25, 0
      %p172 = por %p170, %p171
      %p173 = scmp.ne.s32.totalorder %s161, %s162
      %p174 = scmp.eq.s32.totalorder %s26, 1
      %p175 = por %p173, %p174
      %p177 = scmp.ne.s32.totalorder %s162, %s176
      %p178 = scmp.eq.s32.totalorder %s26, 0
      %p179 = por %p177, %p178
      %s181 = sadd.s32 %s180, 1
      %p184 = scmp.eq.s32.totalorder %s20, 1
      %p185 = scmp.ne.s32.totalorder %s180, %s182
      %p186 = scmp.eq.s32.totalorder %s20, 0
      %p187 = por %p185, %p186
      %p188 = scmp.ne.s32.totalorder %s180, %s182
      %p189 = scmp.eq.s32.totalorder %s25, 1
      %p190 = por %p188, %p189
      %p191 = scmp.ne.s32.totalorder %s182, %s183
      %p192 = scmp.eq.s32.totalorder %s25, 0
      %p193 = por %p191, %p192
      %p194 = scmp.ne.s32.totalorder %s182, %s183
      %p195 = scmp.eq.s32.totalorder %s26, 1
      %p196 = por %p194, %p195
      %p198 = scmp.ne.s32.totalorder %s183, %s197
      %p199 = scmp.eq.s32.totalorder %s26, 0
      %p200 = por %p198, %p199
      %s202 = sadd.s32 %s201, 1
      %p205 = scmp.eq.s32.totalorder %s20, 1
      %p206 = scmp.ne.s32.totalorder %s201, %s203
      %p207 = scmp.eq.s32.totalorder %s20, 0
      %p208 = por %p206, %p207
      %p209 = scmp.ne.s32.totalorder %s201, %s203
      %p210 = scmp.eq.s32.totalorder %s25, 1
      %p211 = por %p209, %p210
      %p212 = scmp.ne.s32.totalorder %s203, %s204
      %p213 = scmp.eq.s32.totalorder %s25, 0
      %p214 = por %p212, %p213
      %p215 = scmp.ne.s32.totalorder %s203, %s204
      %p216 = scmp.eq.s32.totalorder %s26, 1
      %p217 = por %p215, %p216
      %p219 = scmp.ne.s32.totalorder %s204, %s218
      %p220 = scmp.eq.s32.totalorder %s26, 0
      %p221 = por %p219, %p220
      %s223 = sadd.s32 %s222, 1
      %p226 = scmp.eq.s32.totalorder %s20, 1
      %p227 = scmp.ne.s32.totalorder %s222, %s224
      %p228 = scmp.eq.s32.totalorder %s20, 0
      %p229 = por %p227, %p228
      %p230 = scmp.ne.s32.totalorder %s222, %s224
      %p231 = scmp.eq.s32.totalorder %s25, 1
      %p232 = por %p230, %p231
      %p233 = scmp.ne.s32.totalorder %s224, %s225
      %p234 = scmp.eq.s32.totalorder %s25, 0
      %p235 = por %p233, %p234
      %p236 = scmp.ne.s32.totalorder %s224, %s225
      %p237 = scmp.eq.s32.totalorder %s26, 1
      %p238 = por %p236, %p237
      %p240 = scmp.ne.s32.totalorder %s225, %s239
      %p241 = scmp.eq.s32.totalorder %s26, 0
      %p242 = por %p240, %p241
      %s244 = sadd.s32 %s243, 1
      %p247 = scmp.eq.s32.totalorder %s20, 1
      %p248 = scmp.ne.s32.totalorder %s243, %s245
      %p249 = scmp.eq.s32.totalorder %s20, 0
      %p250 = por %p248, %p249
      %p251 = scmp.ne.s32.totalorder %s243, %s245
      %p252 = scmp.eq.s32.totalorder %s25, 1
      %p253 = por %p251, %p252
      %p254 = scmp.ne.s32.totalorder %s245, %s246
      %p255 = scmp.eq.s32.totalorder %s25, 0
      %p256 = por %p254, %p255
      %p257 = scmp.ne.s32.totalorder %s245, %s246
      %p258 = scmp.eq.s32.totalorder %s26, 1
      %p259 = por %p257, %p258
      %p261 = scmp.ne.s32.totalorder %s246, %s260
      %p262 = scmp.eq.s32.totalorder %s26, 0
      %p263 = por %p261, %p262
      %s264 = ssub.s32 %s20, %s27
      %p265 = scmp.eq.s32.totalorder %s264, 0
      %s267 = sadd.s32 %s266, 1
      %s268 = scalar_select %p265, %s266, %s267
      %p271 = pneg %p265
      %p272 = scmp.eq.s32.totalorder %s20, 1
      %p273 = por %p271, %p272
      %p274 = scmp.ne.s32.totalorder %s266, %s269
      %p275 = scmp.eq.s32.totalorder %s20, 0
      %p276 = por %p274, %p275
      %p277 = scmp.ne.s32.totalorder %s266, %s269
      %p278 = scmp.eq.s32.totalorder %s25, 1
      %p279 = por %p277, %p278
      %p280 = scmp.ne.s32.totalorder %s269, %s270
      %p281 = scmp.eq.s32.totalorder %s25, 0
      %p282 = por %p280, %p281
      %p283 = scmp.ne.s32.totalorder %s269, %s270
      %p284 = scmp.eq.s32.totalorder %s26, 1
      %p285 = por %p283, %p284
      %p287 = scmp.ne.s32.totalorder %s270, %s286
      %p288 = scmp.eq.s32.totalorder %s26, 0
      %p289 = por %p287, %p288
      %p290 = scmp.le.s32.totalorder 1, %s20
      %p291 = scmp.lt.s32.totalorder %s20, 3
      %p292 = pnand %p290, %p291
      %p293 = pneg %p292
      // Predicated region
      $region9: #{axial_mlp_3d_forward.1} parent=5 // pred_check
        _
      $region10: #{axial_mlp_3d_forward.1} parent=5 // pred_check_branch
        %295 = sbr.rel (%p292) target = $region12
      $region11: #{axial_mlp_3d_forward.1} parent=5 // pred_region
        %s296 = ssub.s32 %s20, 1
        // Predicated region
        $region13: #{axial_mlp_3d_forward.1} parent=11 // pred_check
          %p297 = pneg %p67
        $region14: #{axial_mlp_3d_forward.1} parent=11 // pred_check_branch
          %299 = sbr.rel (%p297) target = $region16
        $region15: #{axial_mlp_3d_forward.1} parent=11 // pred_region
          %301 = vsyncadd [#allocation7], 0
          %s303 = sshll.u32 %s1, 4
          %s304 = int_to_ptr.vmem [resolvable:$true] %s303
          %306 = dma.vmem_to_smem %s304, 64, [#allocation6], [#allocation7]
        $region16: #{axial_mlp_3d_forward.1} parent=11 // pred_fallthru
          _
        // Predicated region
        $region17: #{axial_mlp_3d_forward.1} parent=11 // pred_check
          %p307 = pneg %p88
        $region18: #{axial_mlp_3d_forward.1} parent=11 // pred_check_branch
          %309 = sbr.rel (%p307) target = $region20
        $region19: #{axial_mlp_3d_forward.1} parent=11 // pred_region
          %311 = vsyncadd [#allocation9], 0
          %s313 = sshll.u32 %s2, 4
          %s314 = int_to_ptr.vmem [resolvable:$true] %s313
          %316 = dma.vmem_to_smem %s314, 16, [#allocation8], [#allocation9]
        $region20: #{axial_mlp_3d_forward.1} parent=11 // pred_fallthru
          _
        // Predicated region
        $region21: #{axial_mlp_3d_forward.1} parent=11 // pred_check
          %p317 = pneg %p109
        $region22: #{axial_mlp_3d_forward.1} parent=11 // pred_check_branch
          %319 = sbr.rel (%p317) target = $region24
        $region23: #{axial_mlp_3d_forward.1} parent=11 // pred_region
          %321 = vsyncadd [#allocation9], 0
          %s323 = sshll.u32 %s3, 4
          %s324 = int_to_ptr.vmem [resolvable:$true] %s323
          %326 = dma.vmem_to_smem %s324, 128, [#allocation10], [#allocation9]
        $region24: #{axial_mlp_3d_forward.1} parent=11 // pred_fallthru
          _
        // Predicated region
        $region25: #{axial_mlp_3d_forward.1} parent=11 // pred_check
          %p327 = pneg %p130
        $region26: #{axial_mlp_3d_forward.1} parent=11 // pred_check_branch
          %329 = sbr.rel (%p327) target = $region28
        $region27: #{axial_mlp_3d_forward.1} parent=11 // pred_region
          %331 = vsyncadd [#allocation12], 0
          %s333 = sshll.u32 %s4, 4
          %s334 = int_to_ptr.vmem [resolvable:$true] %s333
          %336 = dma.vmem_to_smem %s334, 16, [#allocation11], [#allocation12]
        $region28: #{axial_mlp_3d_forward.1} parent=11 // pred_fallthru
          _
        // Predicated region
        $region29: #{axial_mlp_3d_forward.1} parent=11 // pred_check
          %p337 = pneg %p151
        $region30: #{axial_mlp_3d_forward.1} parent=11 // pred_check_branch
          %339 = sbr.rel (%p337) target = $region32
        $region31: #{axial_mlp_3d_forward.1} parent=11 // pred_region
          _
        $region32: #{axial_mlp_3d_forward.1} parent=11 // pred_fallthru
          _
        // Predicated region
        $region33: #{axial_mlp_3d_forward.1} parent=11 // pred_check
          %p340 = pneg %p172
        $region34: #{axial_mlp_3d_forward.1} parent=11 // pred_check_branch
          %342 = sbr.rel (%p340) target = $region36
        $region35: #{axial_mlp_3d_forward.1} parent=11 // pred_region
          _
        $region36: #{axial_mlp_3d_forward.1} parent=11 // pred_fallthru
          _
        // Predicated region
        $region37: #{axial_mlp_3d_forward.1} parent=11 // pred_check
          %p343 = pneg %p193
        $region38: #{axial_mlp_3d_forward.1} parent=11 // pred_check_branch
          %345 = sbr.rel (%p343) target = $region40
        $region39: #{axial_mlp_3d_forward.1} parent=11 // pred_region
          _
        $region40: #{axial_mlp_3d_forward.1} parent=11 // pred_fallthru
          _
        // Predicated region
        $region41: #{axial_mlp_3d_forward.1} parent=11 // pred_check
          %p346 = pneg %p214
        $region42: #{axial_mlp_3d_forward.1} parent=11 // pred_check_branch
          %348 = sbr.rel (%p346) target = $region44
        $region43: #{axial_mlp_3d_forward.1} parent=11 // pred_region
          _
        $region44: #{axial_mlp_3d_forward.1} parent=11 // pred_fallthru
          _
        // Predicated region
        $region45: #{axial_mlp_3d_forward.1} parent=11 // pred_check
          %p349 = pneg %p235
        $region46: #{axial_mlp_3d_forward.1} parent=11 // pred_check_branch
          %351 = sbr.rel (%p349) target = $region48
        $region47: #{axial_mlp_3d_forward.1} parent=11 // pred_region
          _
        $region48: #{axial_mlp_3d_forward.1} parent=11 // pred_fallthru
          _
        // Predicated region
        $region49: #{axial_mlp_3d_forward.1} parent=11 // pred_check
          %p352 = pneg %p256
        $region50: #{axial_mlp_3d_forward.1} parent=11 // pred_check_branch
          %354 = sbr.rel (%p352) target = $region52
        $region51: #{axial_mlp_3d_forward.1} parent=11 // pred_region
          _
        $region52: #{axial_mlp_3d_forward.1} parent=11 // pred_fallthru
          _
      $region12: #{axial_mlp_3d_forward.1} parent=5 // pred_fallthru
        _
      %p355 = scmp.lt.s32.totalorder %s20, 2
      // Predicated region
      $region53: #{axial_mlp_3d_forward.1} parent=5 // pred_check
        %p356 = pneg %p355
      $region54: #{axial_mlp_3d_forward.1} parent=5 // pred_check_branch
        %358 = sbr.rel (%p356) target = $region56
      $region55: #{axial_mlp_3d_forward.1} parent=5 // pred_region
        // Predicated region
        $region57: #{axial_mlp_3d_forward.1} parent=55 // pred_check
          %p359 = pneg %p40
        $region58: #{axial_mlp_3d_forward.1} parent=55 // pred_check_branch
          %361 = sbr.rel (%p359) target = $region60
        $region59: #{axial_mlp_3d_forward.1} parent=55 // pred_region
          %p362 = scmp.lt.s32.totalorder %s20, 1
          %s363 = scalar_select %p362, %s20, 1
          %s364 = smul.addr %s363, 8
          %s365 = smul.addr %s364, 8
          %s366 = scalar_lea.vmem %s0, %s365
        $region60: #{axial_mlp_3d_forward.1} parent=55 // pred_fallthru
          _
      $region56: #{axial_mlp_3d_forward.1} parent=5 // pred_fallthru
        _
      %p367 = scmp.le.s32.totalorder 1, %s20
      %p368 = scmp.lt.s32.totalorder %s20, 3
      %p369 = pnand %p367, %p368
      %p370 = pneg %p369
      // Predicated region
      $region61: #{axial_mlp_3d_forward.1} parent=5 // pred_check
        _
      $region62: #{axial_mlp_3d_forward.1} parent=5 // pred_check_branch
        %372 = sbr.rel (%p369) target = $region64
      $region63: #{axial_mlp_3d_forward.1} parent=5 // pred_region
        %s373 = ssub.s32 %s20, 1
        // Predicated region
        $region65: #{axial_mlp_3d_forward.1} parent=63 // pred_check
          %p374 = pneg %p67
        $region66: #{axial_mlp_3d_forward.1} parent=63 // pred_check_branch
          %376 = sbr.rel (%p374) target = $region68
        $region67: #{axial_mlp_3d_forward.1} parent=63 // pred_region
          %378 = dma.done [#allocation7], 64
        $region68: #{axial_mlp_3d_forward.1} parent=63 // pred_fallthru
          _
        // Predicated region
        $region69: #{axial_mlp_3d_forward.1} parent=63 // pred_check
          %p379 = pneg %p88
        $region70: #{axial_mlp_3d_forward.1} parent=63 // pred_check_branch
          %381 = sbr.rel (%p379) target = $region72
        $region71: #{axial_mlp_3d_forward.1} parent=63 // pred_region
          %383 = dma.done [#allocation9], 16
        $region72: #{axial_mlp_3d_forward.1} parent=63 // pred_fallthru
          _
        // Predicated region
        $region73: #{axial_mlp_3d_forward.1} parent=63 // pred_check
          %p384 = pneg %p109
        $region74: #{axial_mlp_3d_forward.1} parent=63 // pred_check_branch
          %386 = sbr.rel (%p384) target = $region76
        $region75: #{axial_mlp_3d_forward.1} parent=63 // pred_region
          %388 = dma.done [#allocation9], 128
        $region76: #{axial_mlp_3d_forward.1} parent=63 // pred_fallthru
          _
        // Predicated region
        $region77: #{axial_mlp_3d_forward.1} parent=63 // pred_check
          %p389 = pneg %p130
        $region78: #{axial_mlp_3d_forward.1} parent=63 // pred_check_branch
          %391 = sbr.rel (%p389) target = $region80
        $region79: #{axial_mlp_3d_forward.1} parent=63 // pred_region
          %393 = dma.done [#allocation12], 16
        $region80: #{axial_mlp_3d_forward.1} parent=63 // pred_fallthru
          _
        %394 = sfence
        %p395 = scmp.lt.s32.totalorder %s25, 1
        %s396 = scalar_select %p395, %s25, 1
        %s397 = smul.addr %s396, 8
        %s398 = smul.addr %s397, 8
        %s399 = scalar_lea.vmem %s0, %s398
        %p400 = pneg %p46
        %p401 = pneg %p43
        %p402 = pneg %p67
        %p403 = pneg %p64
        %p404 = pneg %p88
        %p405 = pneg %p85
        %p406 = pneg %p109
        %p407 = pneg %p106
        %p408 = pneg %p130
        %p409 = pneg %p127
        %p410 = pneg %p151
        %p411 = pneg %p148
        %p412 = pneg %p172
        %p413 = pneg %p169
        %p414 = pneg %p193
        %p415 = pneg %p190
        %p416 = pneg %p214
        %p417 = pneg %p211
        %p418 = pneg %p235
        %p419 = pneg %p232
        %p420 = pneg %p256
        %p421 = pneg %p253
        %p422 = pneg %p282
        %p423 = pneg %p279
        %p424 = scmp.lt.s32.totalorder %s25, 1
        %s425 = scalar_select %p424, %s25, 1
        %s426 = smul.addr %s425, 8
        %s427 = smul.addr %s426, 8
        %s428 = scalar_lea.vmem %s11, %s427
        %p429 = scmp.lt.s32.totalorder %s25, 1
        %s430 = scalar_select %p429, %s25, 1
        %s431 = smul.addr %s430, 8
        %s432 = smul.addr %s431, 8
        %s433 = scalar_lea.vmem %s0, %s432
        %p434 = scmp.lt.s32.totalorder %s25, 1
        %s435 = scalar_select %p434, %s25, 1
        %s436 = smul.addr %s435, 8
        %s437 = smul.addr %s436, 8
        %s438 = scalar_lea.vmem %s11, %s437
        %439 = vst [vmem:[#allocation3] sm:$0xff] 0.0
        %440 = vst [vmem:[#allocation3 + $0x8] sm:$0xff] 0.0
        %441 = vst [vmem:[#allocation3 + $0x10] sm:$0xff] 0.0
        %442 = vst [vmem:[#allocation3 + $0x18] sm:$0xff] 0.0
        %443 = vst [vmem:[#allocation3 + $0x20] sm:$0xff] 0.0
        %444 = vst [vmem:[#allocation3 + $0x28] sm:$0xff] 0.0
        %445 = vst [vmem:[#allocation3 + $0x30] sm:$0xff] 0.0
        %446 = vst [vmem:[#allocation3 + $0x38] sm:$0xff] 0.0
        %447 = vst [vmem:[#allocation3 + $0x40] sm:$0xff] 0.0
        %448 = vst [vmem:[#allocation3 + $0x48] sm:$0xff] 0.0
        %449 = vst [vmem:[#allocation3 + $0x50] sm:$0xff] 0.0
        %450 = vst [vmem:[#allocation3 + $0x58] sm:$0xff] 0.0
        %451 = vst [vmem:[#allocation3 + $0x60] sm:$0xff] 0.0
        %452 = vst [vmem:[#allocation3 + $0x68] sm:$0xff] 0.0
        %453 = vst [vmem:[#allocation3 + $0x70] sm:$0xff] 0.0
        %454 = vst [vmem:[#allocation3 + $0x78] sm:$0xff] 0.0
        %455 = vst [vmem:[#allocation3 + $0x80] sm:$0xff] 0.0
        %456 = vst [vmem:[#allocation3 + $0x88] sm:$0xff] 0.0
        %457 = vst [vmem:[#allocation3 + $0x90] sm:$0xff] 0.0
        %458 = vst [vmem:[#allocation3 + $0x98] sm:$0xff] 0.0
        %459 = vst [vmem:[#allocation3 + $0xa0] sm:$0xff] 0.0
        %460 = vst [vmem:[#allocation3 + $0xa8] sm:$0xff] 0.0
        %461 = vst [vmem:[#allocation3 + $0xb0] sm:$0xff] 0.0
        %462 = vst [vmem:[#allocation3 + $0xb8] sm:$0xff] 0.0
        %463 = vst [vmem:[#allocation3 + $0xc0] sm:$0xff] 0.0
        %464 = vst [vmem:[#allocation3 + $0xc8] sm:$0xff] 0.0
        %465 = vst [vmem:[#allocation3 + $0xd0] sm:$0xff] 0.0
        %466 = vst [vmem:[#allocation3 + $0xd8] sm:$0xff] 0.0
        %467 = vst [vmem:[#allocation3 + $0xe0] sm:$0xff] 0.0
        %468 = vst [vmem:[#allocation3 + $0xe8] sm:$0xff] 0.0
        %469 = vst [vmem:[#allocation3 + $0xf0] sm:$0xff] 0.0
        %470 = vst [vmem:[#allocation3 + $0xf8] sm:$0xff] 0.0
        %471 = vst [vmem:[#allocation3 + $0x100] sm:$0xff] 0.0
        %472 = vst [vmem:[#allocation3 + $0x108] sm:$0xff] 0.0
        %473 = vst [vmem:[#allocation3 + $0x110] sm:$0xff] 0.0
        %474 = vst [vmem:[#allocation3 + $0x118] sm:$0xff] 0.0
        %475 = vst [vmem:[#allocation3 + $0x120] sm:$0xff] 0.0
        %476 = vst [vmem:[#allocation3 + $0x128] sm:$0xff] 0.0
        %477 = vst [vmem:[#allocation3 + $0x130] sm:$0xff] 0.0
        %478 = vst [vmem:[#allocation3 + $0x138] sm:$0xff] 0.0
        %479 = vst [vmem:[#allocation3 + $0x140] sm:$0xff] 0.0
        %480 = vst [vmem:[#allocation3 + $0x148] sm:$0xff] 0.0
        %481 = vst [vmem:[#allocation3 + $0x150] sm:$0xff] 0.0
        %482 = vst [vmem:[#allocation3 + $0x158] sm:$0xff] 0.0
        %483 = vst [vmem:[#allocation3 + $0x160] sm:$0xff] 0.0
        %484 = vst [vmem:[#allocation3 + $0x168] sm:$0xff] 0.0
        %485 = vst [vmem:[#allocation3 + $0x170] sm:$0xff] 0.0
        %486 = vst [vmem:[#allocation3 + $0x178] sm:$0xff] 0.0
        %487 = vst [vmem:[#allocation3 + $0x180] sm:$0xff] 0.0
        %488 = vst [vmem:[#allocation3 + $0x188] sm:$0xff] 0.0
        %489 = vst [vmem:[#allocation3 + $0x190] sm:$0xff] 0.0
        %490 = vst [vmem:[#allocation3 + $0x198] sm:$0xff] 0.0
        %491 = vst [vmem:[#allocation3 + $0x1a0] sm:$0xff] 0.0
        %492 = vst [vmem:[#allocation3 + $0x1a8] sm:$0xff] 0.0
        %493 = vst [vmem:[#allocation3 + $0x1b0] sm:$0xff] 0.0
        %494 = vst [vmem:[#allocation3 + $0x1b8] sm:$0xff] 0.0
        %495 = vst [vmem:[#allocation3 + $0x1c0] sm:$0xff] 0.0
        %496 = vst [vmem:[#allocation3 + $0x1c8] sm:$0xff] 0.0
        %497 = vst [vmem:[#allocation3 + $0x1d0] sm:$0xff] 0.0
        %498 = vst [vmem:[#allocation3 + $0x1d8] sm:$0xff] 0.0
        %499 = vst [vmem:[#allocation3 + $0x1e0] sm:$0xff] 0.0
        %500 = vst [vmem:[#allocation3 + $0x1e8] sm:$0xff] 0.0
        %501 = vst [vmem:[#allocation3 + $0x1f0] sm:$0xff] 0.0
        %502 = vst [vmem:[#allocation3 + $0x1f8] sm:$0xff] 0.0
        %s503 = sld [smem:[#allocation6]]
        %v504 = vld [vmem:[%s433] sm:$0xff]
        %v505 = vld [vmem:[%s433 + $0x8] sm:$0xff]
        %v506 = vld [vmem:[%s433 + $0x10] sm:$0xff]
        %v507 = vld [vmem:[%s433 + $0x18] sm:$0xff]
        %v508 = vld [vmem:[%s433 + $0x20] sm:$0xff]
        %v509 = vld [vmem:[%s433 + $0x28] sm:$0xff]
        %v510 = vld [vmem:[%s433 + $0x30] sm:$0xff]
        %v511 = vld [vmem:[%s433 + $0x38] sm:$0xff]
        %v512 = vstv %s503
        %v513 = vmul.f32 %v512, %v504
        %v514 = vmul.f32 %v512, %v505
        %v515 = vmul.f32 %v512, %v506
        %v516 = vmul.f32 %v512, %v507
        %v517 = vmul.f32 %v512, %v508
        %v518 = vmul.f32 %v512, %v509
        %v519 = vmul.f32 %v512, %v510
        %v520 = vmul.f32 %v512, %v511
        %v521 = vadd.f32 %v513, 0.0
        %v522 = vadd.f32 %v514, 0.0
        %v523 = vadd.f32 %v515, 0.0
        %v524 = vadd.f32 %v516, 0.0
        %v525 = vadd.f32 %v517, 0.0
        %v526 = vadd.f32 %v518, 0.0
        %v527 = vadd.f32 %v519, 0.0
        %v528 = vadd.f32 %v520, 0.0
        %s529 = sld [smem:[#allocation6 + $0x80]]
        %v530 = vstv %s529
        %v531 = vmul.f32 %v530, %v504
        %v532 = vmul.f32 %v530, %v505
        %v533 = vmul.f32 %v530, %v506
        %v534 = vmul.f32 %v530, %v507
        %v535 = vmul.f32 %v530, %v508
        %v536 = vmul.f32 %v530, %v509
        %v537 = vmul.f32 %v530, %v510
        %v538 = vmul.f32 %v530, %v511
        %547 = vrot.lane.b32.xlu0 %v531, 120
        %v548 = vpop.permute.xlu0 %547
        %549 = vrot.lane.b32.xlu0 %v532, 120
        %v550 = vpop.permute.xlu0 %549
        %551 = vrot.lane.b32.xlu0 %v533, 120
        %v552 = vpop.permute.xlu0 %551
        %553 = vrot.lane.b32.xlu0 %v534, 120
        %v554 = vpop.permute.xlu0 %553
        %555 = vrot.lane.b32.xlu0 %v535, 120
        %v556 = vpop.permute.xlu0 %555
        %557 = vrot.lane.b32.xlu0 %v536, 120
        %v558 = vpop.permute.xlu0 %557
        %559 = vrot.lane.b32.xlu0 %v537, 120
        %v560 = vpop.permute.xlu0 %559
        %561 = vrot.lane.b32.xlu0 %v538, 120
        %v562 = vpop.permute.xlu0 %561
        %v571 = vadd.f32 %v521, %v548
        %v572 = vadd.f32 %v522, %v550
        %v573 = vadd.f32 %v523, %v552
        %v574 = vadd.f32 %v524, %v554
        %v575 = vadd.f32 %v525, %v556
        %v576 = vadd.f32 %v526, %v558
        %v577 = vadd.f32 %v527, %v560
        %v578 = vadd.f32 %v528, %v562
        %s579 = sld [smem:[#allocation6 + $0x100]]
        %v580 = vstv %s579
        %v581 = vmul.f32 %v580, %v504
        %v582 = vmul.f32 %v580, %v505
        %v583 = vmul.f32 %v580, %v506
        %v584 = vmul.f32 %v580, %v507
        %v585 = vmul.f32 %v580, %v508
        %v586 = vmul.f32 %v580, %v509
        %v587 = vmul.f32 %v580, %v510
        %v588 = vmul.f32 %v580, %v511
        %597 = vrot.lane.b32.xlu0 %v581, 112
        %v598 = vpop.permute.xlu0 %597
        %599 = vrot.lane.b32.xlu0 %v582, 112
        %v600 = vpop.permute.xlu0 %599
        %601 = vrot.lane.b32.xlu0 %v583, 112
        %v602 = vpop.permute.xlu0 %601
        %603 = vrot.lane.b32.xlu0 %v584, 112
        %v604 = vpop.permute.xlu0 %603
        %605 = vrot.lane.b32.xlu0 %v585, 112
        %v606 = vpop.permute.xlu0 %605
        %607 = vrot.lane.b32.xlu0 %v586, 112
        %v608 = vpop.permute.xlu0 %607
        %609 = vrot.lane.b32.xlu0 %v587, 112
        %v610 = vpop.permute.xlu0 %609
        %611 = vrot.lane.b32.xlu0 %v588, 112
        %v612 = vpop.permute.xlu0 %611
        %v621 = vadd.f32 %v571, %v598
        %v622 = vadd.f32 %v572, %v600
        %v623 = vadd.f32 %v573, %v602
        %v624 = vadd.f32 %v574, %v604
        %v625 = vadd.f32 %v575, %v606
        %v626 = vadd.f32 %v576, %v608
        %v627 = vadd.f32 %v577, %v610
        %v628 = vadd.f32 %v578, %v612
        %s629 = sld [smem:[#allocation6 + $0x180]]
        %v630 = vstv %s629
        %v631 = vmul.f32 %v630, %v504
        %v632 = vmul.f32 %v630, %v505
        %v633 = vmul.f32 %v630, %v506
        %v634 = vmul.f32 %v630, %v507
        %v635 = vmul.f32 %v630, %v508
        %v636 = vmul.f32 %v630, %v509
        %v637 = vmul.f32 %v630, %v510
        %v638 = vmul.f32 %v630, %v511
        %647 = vrot.lane.b32.xlu0 %v631, 104
        %v648 = vpop.permute.xlu0 %647
        %649 = vrot.lane.b32.xlu0 %v632, 104
        %v650 = vpop.permute.xlu0 %649
        %651 = vrot.lane.b32.xlu0 %v633, 104
        %v652 = vpop.permute.xlu0 %651
        %653 = vrot.lane.b32.xlu0 %v634, 104
        %v654 = vpop.permute.xlu0 %653
        %655 = vrot.lane.b32.xlu0 %v635, 104
        %v656 = vpop.permute.xlu0 %655
        %657 = vrot.lane.b32.xlu0 %v636, 104
        %v658 = vpop.permute.xlu0 %657
        %659 = vrot.lane.b32.xlu0 %v637, 104
        %v660 = vpop.permute.xlu0 %659
        %661 = vrot.lane.b32.xlu0 %v638, 104
        %v662 = vpop.permute.xlu0 %661
        %v671 = vadd.f32 %v621, %v648
        %v672 = vadd.f32 %v622, %v650
        %v673 = vadd.f32 %v623, %v652
        %v674 = vadd.f32 %v624, %v654
        %v675 = vadd.f32 %v625, %v656
        %v676 = vadd.f32 %v626, %v658
        %v677 = vadd.f32 %v627, %v660
        %v678 = vadd.f32 %v628, %v662
        %s679 = sld [smem:[#allocation8]]
        %v680 = vstv %s679
        %v681 = vadd.f32 %v671, %v680
        %v682 = vadd.f32 %v672, %v680
        %v683 = vadd.f32 %v673, %v680
        %v684 = vadd.f32 %v674, %v680
        %v685 = vadd.f32 %v675, %v680
        %v686 = vadd.f32 %v676, %v680
        %v687 = vadd.f32 %v677, %v680
        %v688 = vadd.f32 %v678, %v680
        %vm689 = vcmask 64512
        %690 = vst.msk [vmem:[#allocation2] sm:$0xff] %vm689, %v681
        %691 = vst.msk [vmem:[#allocation2 + $0x8] sm:$0xff] %vm689, %v682
        %692 = vst.msk [vmem:[#allocation2 + $0x10] sm:$0xff] %vm689, %v683
        %693 = vst.msk [vmem:[#allocation2 + $0x18] sm:$0xff] %vm689, %v684
        %694 = vst.msk [vmem:[#allocation2 + $0x20] sm:$0xff] %vm689, %v685
        %695 = vst.msk [vmem:[#allocation2 + $0x28] sm:$0xff] %vm689, %v686
        %696 = vst.msk [vmem:[#allocation2 + $0x30] sm:$0xff] %vm689, %v687
        %697 = vst.msk [vmem:[#allocation2 + $0x38] sm:$0xff] %vm689, %v688
        %s698 = sld [smem:[#allocation6 + $0x1]]
        %v699 = vld [vmem:[%s433] sm:$0xff]
        %v700 = vld [vmem:[%s433 + $0x8] sm:$0xff]
        %v701 = vld [vmem:[%s433 + $0x10] sm:$0xff]
        %v702 = vld [vmem:[%s433 + $0x18] sm:$0xff]
        %v703 = vld [vmem:[%s433 + $0x20] sm:$0xff]
        %v704 = vld [vmem:[%s433 + $0x28] sm:$0xff]
        %v705 = vld [vmem:[%s433 + $0x30] sm:$0xff]
        %v706 = vld [vmem:[%s433 + $0x38] sm:$0xff]
        %v707 = vstv %s698
        %v708 = vmul.f32 %v707, %v699
        %v709 = vmul.f32 %v707, %v700
        %v710 = vmul.f32 %v707, %v701
        %v711 = vmul.f32 %v707, %v702
        %v712 = vmul.f32 %v707, %v703
        %v713 = vmul.f32 %v707, %v704
        %v714 = vmul.f32 %v707, %v705
        %v715 = vmul.f32 %v707, %v706
        %v716 = vadd.f32 %v708, 0.0
        %v717 = vadd.f32 %v709, 0.0
        %v718 = vadd.f32 %v710, 0.0
        %v719 = vadd.f32 %v711, 0.0
        %v720 = vadd.f32 %v712, 0.0
        %v721 = vadd.f32 %v713, 0.0
        %v722 = vadd.f32 %v714, 0.0
        %v723 = vadd.f32 %v715, 0.0
        %s724 = sld [smem:[#allocation6 + $0x81]]
        %v725 = vstv %s724
        %v726 = vmul.f32 %v725, %v699
        %v727 = vmul.f32 %v725, %v700
        %v728 = vmul.f32 %v725, %v701
        %v729 = vmul.f32 %v725, %v702
        %v730 = vmul.f32 %v725, %v703
        %v731 = vmul.f32 %v725, %v704
        %v732 = vmul.f32 %v725, %v705
        %v733 = vmul.f32 %v725, %v706
        %742 = vrot.lane.b32.xlu0 %v726, 120
        %v743 = vpop.permute.xlu0 %742
        %744 = vrot.lane.b32.xlu0 %v727, 120
        %v745 = vpop.permute.xlu0 %744
        %746 = vrot.lane.b32.xlu0 %v728, 120
        %v747 = vpop.permute.xlu0 %746
        %748 = vrot.lane.b32.xlu0 %v729, 120
        %v749 = vpop.permute.xlu0 %748
        %750 = vrot.lane.b32.xlu0 %v730, 120
        %v751 = vpop.permute.xlu0 %750
        %752 = vrot.lane.b32.xlu0 %v731, 120
        %v753 = vpop.permute.xlu0 %752
        %754 = vrot.lane.b32.xlu0 %v732, 120
        %v755 = vpop.permute.xlu0 %754
        %756 = vrot.lane.b32.xlu0 %v733, 120
        %v757 = vpop.permute.xlu0 %756
        %v766 = vadd.f32 %v716, %v743
        %v767 = vadd.f32 %v717, %v745
        %v768 = vadd.f32 %v718, %v747
        %v769 = vadd.f32 %v719, %v749
        %v770 = vadd.f32 %v720, %v751
        %v771 = vadd.f32 %v721, %v753
        %v772 = vadd.f32 %v722, %v755
        %v773 = vadd.f32 %v723, %v757
        %s774 = sld [smem:[#allocation6 + $0x101]]
        %v775 = vstv %s774
        %v776 = vmul.f32 %v775, %v699
        %v777 = vmul.f32 %v775, %v700
        %v778 = vmul.f32 %v775, %v701
        %v779 = vmul.f32 %v775, %v702
        %v780 = vmul.f32 %v775, %v703
        %v781 = vmul.f32 %v775, %v704
        %v782 = vmul.f32 %v775, %v705
        %v783 = vmul.f32 %v775, %v706
        %792 = vrot.lane.b32.xlu0 %v776, 112
        %v793 = vpop.permute.xlu0 %792
        %794 = vrot.lane.b32.xlu0 %v777, 112
        %v795 = vpop.permute.xlu0 %794
        %796 = vrot.lane.b32.xlu0 %v778, 112
        %v797 = vpop.permute.xlu0 %796
        %798 = vrot.lane.b32.xlu0 %v779, 112
        %v799 = vpop.permute.xlu0 %798
        %800 = vrot.lane.b32.xlu0 %v780, 112
        %v801 = vpop.permute.xlu0 %800
        %802 = vrot.lane.b32.xlu0 %v781, 112
        %v803 = vpop.permute.xlu0 %802
        %804 = vrot.lane.b32.xlu0 %v782, 112
        %v805 = vpop.permute.xlu0 %804
        %806 = vrot.lane.b32.xlu0 %v783, 112
        %v807 = vpop.permute.xlu0 %806
        %v816 = vadd.f32 %v766, %v793
        %v817 = vadd.f32 %v767, %v795
        %v818 = vadd.f32 %v768, %v797
        %v819 = vadd.f32 %v769, %v799
        %v820 = vadd.f32 %v770, %v801
        %v821 = vadd.f32 %v771, %v803
        %v822 = vadd.f32 %v772, %v805
        %v823 = vadd.f32 %v773, %v807
        %s824 = sld [smem:[#allocation6 + $0x181]]
        %v825 = vstv %s824
        %v826 = vmul.f32 %v825, %v699
        %v827 = vmul.f32 %v825, %v700
        %v828 = vmul.f32 %v825, %v701
        %v829 = vmul.f32 %v825, %v702
        %v830 = vmul.f32 %v825, %v703
        %v831 = vmul.f32 %v825, %v704
        %v832 = vmul.f32 %v825, %v705
        %v833 = vmul.f32 %v825, %v706
        %842 = vrot.lane.b32.xlu0 %v826, 104
        %v843 = vpop.permute.xlu0 %842
        %844 = vrot.lane.b32.xlu0 %v827, 104
        %v845 = vpop.permute.xlu0 %844
        %846 = vrot.lane.b32.xlu0 %v828, 104
        %v847 = vpop.permute.xlu0 %846
        %848 = vrot.lane.b32.xlu0 %v829, 104
        %v849 = vpop.permute.xlu0 %848
        %850 = vrot.lane.b32.xlu0 %v830, 104
        %v851 = vpop.permute.xlu0 %850
        %852 = vrot.lane.b32.xlu0 %v831, 104
        %v853 = vpop.permute.xlu0 %852
        %854 = vrot.lane.b32.xlu0 %v832, 104
        %v855 = vpop.permute.xlu0 %854
        %856 = vrot.lane.b32.xlu0 %v833, 104
        %v857 = vpop.permute.xlu0 %856
        %v866 = vadd.f32 %v816, %v843
        %v867 = vadd.f32 %v817, %v845
        %v868 = vadd.f32 %v818, %v847
        %v869 = vadd.f32 %v819, %v849
        %v870 = vadd.f32 %v820, %v851
        %v871 = vadd.f32 %v821, %v853
        %v872 = vadd.f32 %v822, %v855
        %v873 = vadd.f32 %v823, %v857
        %s874 = sld [smem:[#allocation8 + $0x1]]
        %v875 = vstv %s874
        %v876 = vadd.f32 %v866, %v875
        %v877 = vadd.f32 %v867, %v875
        %v878 = vadd.f32 %v868, %v875
        %v879 = vadd.f32 %v869, %v875
        %v880 = vadd.f32 %v870, %v875
        %v881 = vadd.f32 %v871, %v875
        %v882 = vadd.f32 %v872, %v875
        %v883 = vadd.f32 %v873, %v875
        %892 = vrot.lane.b32.xlu0 %v876, 8
        %v893 = vpop.permute.xlu0 %892
        %894 = vrot.lane.b32.xlu0 %v877, 8
        %v895 = vpop.permute.xlu0 %894
        %896 = vrot.lane.b32.xlu0 %v878, 8
        %v897 = vpop.permute.xlu0 %896
        %898 = vrot.lane.b32.xlu0 %v879, 8
        %v899 = vpop.permute.xlu0 %898
        %900 = vrot.lane.b32.xlu0 %v880, 8
        %v901 = vpop.permute.xlu0 %900
        %902 = vrot.lane.b32.xlu0 %v881, 8
        %v903 = vpop.permute.xlu0 %902
        %904 = vrot.lane.b32.xlu0 %v882, 8
        %v905 = vpop.permute.xlu0 %904
        %906 = vrot.lane.b32.xlu0 %v883, 8
        %v907 = vpop.permute.xlu0 %906
        %vm916 = vcmask 130112
        %917 = vst.msk [vmem:[#allocation2] sm:$0xff] %vm916, %v893
        %918 = vst.msk [vmem:[#allocation2 + $0x8] sm:$0xff] %vm916, %v895
        %919 = vst.msk [vmem:[#allocation2 + $0x10] sm:$0xff] %vm916, %v897
        %920 = vst.msk [vmem:[#allocation2 + $0x18] sm:$0xff] %vm916, %v899
        %921 = vst.msk [vmem:[#allocation2 + $0x20] sm:$0xff] %vm916, %v901
        %922 = vst.msk [vmem:[#allocation2 + $0x28] sm:$0xff] %vm916, %v903
        %923 = vst.msk [vmem:[#allocation2 + $0x30] sm:$0xff] %vm916, %v905
        %924 = vst.msk [vmem:[#allocation2 + $0x38] sm:$0xff] %vm916, %v907
        %s925 = sld [smem:[#allocation6 + $0x2]]
        %v926 = vld [vmem:[%s433] sm:$0xff]
        %v927 = vld [vmem:[%s433 + $0x8] sm:$0xff]
        %v928 = vld [vmem:[%s433 + $0x10] sm:$0xff]
        %v929 = vld [vmem:[%s433 + $0x18] sm:$0xff]
        %v930 = vld [vmem:[%s433 + $0x20] sm:$0xff]
        %v931 = vld [vmem:[%s433 + $0x28] sm:$0xff]
        %v932 = vld [vmem:[%s433 + $0x30] sm:$0xff]
        %v933 = vld [vmem:[%s433 + $0x38] sm:$0xff]
        %v934 = vstv %s925
        %v935 = vmul.f32 %v934, %v926
        %v936 = vmul.f32 %v934, %v927
        %v937 = vmul.f32 %v934, %v928
        %v938 = vmul.f32 %v934, %v929
        %v939 = vmul.f32 %v934, %v930
        %v940 = vmul.f32 %v934, %v931
        %v941 = vmul.f32 %v934, %v932
        %v942 = vmul.f32 %v934, %v933
        %v943 = vadd.f32 %v935, 0.0
        %v944 = vadd.f32 %v936, 0.0
        %v945 = vadd.f32 %v937, 0.0
        %v946 = vadd.f32 %v938, 0.0
        %v947 = vadd.f32 %v939, 0.0
        %v948 = vadd.f32 %v940, 0.0
        %v949 = vadd.f32 %v941, 0.0
        %v950 = vadd.f32 %v942, 0.0
        %s951 = sld [smem:[#allocation6 + $0x82]]
        %v952 = vstv %s951
        %v953 = vmul.f32 %v952, %v926
        %v954 = vmul.f32 %v952, %v927
        %v955 = vmul.f32 %v952, %v928
        %v956 = vmul.f32 %v952, %v929
        %v957 = vmul.f32 %v952, %v930
        %v958 = vmul.f32 %v952, %v931
        %v959 = vmul.f32 %v952, %v932
        %v960 = vmul.f32 %v952, %v933
        %969 = vrot.lane.b32.xlu0 %v953, 120
        %v970 = vpop.permute.xlu0 %969
        %971 = vrot.lane.b32.xlu0 %v954, 120
        %v972 = vpop.permute.xlu0 %971
        %973 = vrot.lane.b32.xlu0 %v955, 120
        %v974 = vpop.permute.xlu0 %973
        %975 = vrot.lane.b32.xlu0 %v956, 120
        %v976 = vpop.permute.xlu0 %975
        %977 = vrot.lane.b32.xlu0 %v957, 120
        %v978 = vpop.permute.xlu0 %977
        %979 = vrot.lane.b32.xlu0 %v958, 120
        %v980 = vpop.permute.xlu0 %979
        %981 = vrot.lane.b32.xlu0 %v959, 120
        %v982 = vpop.permute.xlu0 %981
        %983 = vrot.lane.b32.xlu0 %v960, 120
        %v984 = vpop.permute.xlu0 %983
        %v993 = vadd.f32 %v943, %v970
        %v994 = vadd.f32 %v944, %v972
        %v995 = vadd.f32 %v945, %v974
        %v996 = vadd.f32 %v946, %v976
        %v997 = vadd.f32 %v947, %v978
        %v998 = vadd.f32 %v948, %v980
        %v999 = vadd.f32 %v949, %v982
        %v1000 = vadd.f32 %v950, %v984
        %s1001 = sld [smem:[#allocation6 + $0x102]]
        %v1002 = vstv %s1001
        %v1003 = vmul.f32 %v1002, %v926
        %v1004 = vmul.f32 %v1002, %v927
        %v1005 = vmul.f32 %v1002, %v928
        %v1006 = vmul.f32 %v1002, %v929
        %v1007 = vmul.f32 %v1002, %v930
        %v1008 = vmul.f32 %v1002, %v931
        %v1009 = vmul.f32 %v1002, %v932
        %v1010 = vmul.f32 %v1002, %v933
        %1019 = vrot.lane.b32.xlu0 %v1003, 112
        %v1020 = vpop.permute.xlu0 %1019
        %1021 = vrot.lane.b32.xlu0 %v1004, 112
        %v1022 = vpop.permute.xlu0 %1021
        %1023 = vrot.lane.b32.xlu0 %v1005, 112
        %v1024 = vpop.permute.xlu0 %1023
        %1025 = vrot.lane.b32.xlu0 %v1006, 112
        %v1026 = vpop.permute.xlu0 %1025
        %1027 = vrot.lane.b32.xlu0 %v1007, 112
        %v1028 = vpop.permute.xlu0 %1027
        %1029 = vrot.lane.b32.xlu0 %v1008, 112
        %v1030 = vpop.permute.xlu0 %1029
        %1031 = vrot.lane.b32.xlu0 %v1009, 112
        %v1032 = vpop.permute.xlu0 %1031
        %1033 = vrot.lane.b32.xlu0 %v1010, 112
        %v1034 = vpop.permute.xlu0 %1033
        %v1043 = vadd.f32 %v993, %v1020
        %v1044 = vadd.f32 %v994, %v1022
        %v1045 = vadd.f32 %v995, %v1024
        %v1046 = vadd.f32 %v996, %v1026
        %v1047 = vadd.f32 %v997, %v1028
        %v1048 = vadd.f32 %v998, %v1030
        %v1049 = vadd.f32 %v999, %v1032
        %v1050 = vadd.f32 %v1000, %v1034
        %s1051 = sld [smem:[#allocation6 + $0x182]]
        %v1052 = vstv %s1051
        %v1053 = vmul.f32 %v1052, %v926
        %v1054 = vmul.f32 %v1052, %v927
        %v1055 = vmul.f32 %v1052, %v928
        %v1056 = vmul.f32 %v1052, %v929
        %v1057 = vmul.f32 %v1052, %v930
        %v1058 = vmul.f32 %v1052, %v931
        %v1059 = vmul.f32 %v1052, %v932
        %v1060 = vmul.f32 %v1052, %v933
        %1069 = vrot.lane.b32.xlu0 %v1053, 104
        %v1070 = vpop.permute.xlu0 %1069
        %1071 = vrot.lane.b32.xlu0 %v1054, 104
        %v1072 = vpop.permute.xlu0 %1071
        %1073 = vrot.lane.b32.xlu0 %v1055, 104
        %v1074 = vpop.permute.xlu0 %1073
        %1075 = vrot.lane.b32.xlu0 %v1056, 104
        %v1076 = vpop.permute.xlu0 %1075
        %1077 = vrot.lane.b32.xlu0 %v1057, 104
        %v1078 = vpop.permute.xlu0 %1077
        %1079 = vrot.lane.b32.xlu0 %v1058, 104
        %v1080 = vpop.permute.xlu0 %1079
        %1081 = vrot.lane.b32.xlu0 %v1059, 104
        %v1082 = vpop.permute.xlu0 %1081
        %1083 = vrot.lane.b32.xlu0 %v1060, 104
        %v1084 = vpop.permute.xlu0 %1083
        %v1093 = vadd.f32 %v1043, %v1070
        %v1094 = vadd.f32 %v1044, %v1072
        %v1095 = vadd.f32 %v1045, %v1074
        %v1096 = vadd.f32 %v1046, %v1076
        %v1097 = vadd.f32 %v1047, %v1078
        %v1098 = vadd.f32 %v1048, %v1080
        %v1099 = vadd.f32 %v1049, %v1082
        %v1100 = vadd.f32 %v1050, %v1084
        %s1101 = sld [smem:[#allocation8 + $0x2]]
        %v1102 = vstv %s1101
        %v1103 = vadd.f32 %v1093, %v1102
        %v1104 = vadd.f32 %v1094, %v1102
        %v1105 = vadd.f32 %v1095, %v1102
        %v1106 = vadd.f32 %v1096, %v1102
        %v1107 = vadd.f32 %v1097, %v1102
        %v1108 = vadd.f32 %v1098, %v1102
        %v1109 = vadd.f32 %v1099, %v1102
        %v1110 = vadd.f32 %v1100, %v1102
        %1119 = vrot.lane.b32.xlu0 %v1103, 16
        %v1120 = vpop.permute.xlu0 %1119
        %1121 = vrot.lane.b32.xlu0 %v1104, 16
        %v1122 = vpop.permute.xlu0 %1121
        %1123 = vrot.lane.b32.xlu0 %v1105, 16
        %v1124 = vpop.permute.xlu0 %1123
        %1125 = vrot.lane.b32.xlu0 %v1106, 16
        %v1126 = vpop.permute.xlu0 %1125
        %1127 = vrot.lane.b32.xlu0 %v1107, 16
        %v1128 = vpop.permute.xlu0 %1127
        %1129 = vrot.lane.b32.xlu0 %v1108, 16
        %v1130 = vpop.permute.xlu0 %1129
        %1131 = vrot.lane.b32.xlu0 %v1109, 16
        %v1132 = vpop.permute.xlu0 %1131
        %1133 = vrot.lane.b32.xlu0 %v1110, 16
        %v1134 = vpop.permute.xlu0 %1133
        %vm1143 = vcmask 195712
        %1144 = vst.msk [vmem:[#allocation2] sm:$0xff] %vm1143, %v1120
        %1145 = vst.msk [vmem:[#allocation2 + $0x8] sm:$0xff] %vm1143, %v1122
        %1146 = vst.msk [vmem:[#allocation2 + $0x10] sm:$0xff] %vm1143, %v1124
        %1147 = vst.msk [vmem:[#allocation2 + $0x18] sm:$0xff] %vm1143, %v1126
        %1148 = vst.msk [vmem:[#allocation2 + $0x20] sm:$0xff] %vm1143, %v1128
        %1149 = vst.msk [vmem:[#allocation2 + $0x28] sm:$0xff] %vm1143, %v1130
        %1150 = vst.msk [vmem:[#allocation2 + $0x30] sm:$0xff] %vm1143, %v1132
        %1151 = vst.msk [vmem:[#allocation2 + $0x38] sm:$0xff] %vm1143, %v1134
        %s1152 = sld [smem:[#allocation6 + $0x3]]
        %v1153 = vld [vmem:[%s433] sm:$0xff]
        %v1154 = vld [vmem:[%s433 + $0x8] sm:$0xff]
        %v1155 = vld [vmem:[%s433 + $0x10] sm:$0xff]
        %v1156 = vld [vmem:[%s433 + $0x18] sm:$0xff]
        %v1157 = vld [vmem:[%s433 + $0x20] sm:$0xff]
        %v1158 = vld [vmem:[%s433 + $0x28] sm:$0xff]
        %v1159 = vld [vmem:[%s433 + $0x30] sm:$0xff]
        %v1160 = vld [vmem:[%s433 + $0x38] sm:$0xff]
        %v1161 = vstv %s1152
        %v1162 = vmul.f32 %v1161, %v1153
        %v1163 = vmul.f32 %v1161, %v1154
        %v1164 = vmul.f32 %v1161, %v1155
        %v1165 = vmul.f32 %v1161, %v1156
        %v1166 = vmul.f32 %v1161, %v1157
        %v1167 = vmul.f32 %v1161, %v1158
        %v1168 = vmul.f32 %v1161, %v1159
        %v1169 = vmul.f32 %v1161, %v1160
        %v1170 = vadd.f32 %v1162, 0.0
        %v1171 = vadd.f32 %v1163, 0.0
        %v1172 = vadd.f32 %v1164, 0.0
        %v1173 = vadd.f32 %v1165, 0.0
        %v1174 = vadd.f32 %v1166, 0.0
        %v1175 = vadd.f32 %v1167, 0.0
        %v1176 = vadd.f32 %v1168, 0.0
        %v1177 = vadd.f32 %v1169, 0.0
        %s1178 = sld [smem:[#allocation6 + $0x83]]
        %v1179 = vstv %s1178
        %v1180 = vmul.f32 %v1179, %v1153
        %v1181 = vmul.f32 %v1179, %v1154
        %v1182 = vmul.f32 %v1179, %v1155
        %v1183 = vmul.f32 %v1179, %v1156
        %v1184 = vmul.f32 %v1179, %v1157
        %v1185 = vmul.f32 %v1179, %v1158
        %v1186 = vmul.f32 %v1179, %v1159
        %v1187 = vmul.f32 %v1179, %v1160
        %1196 = vrot.lane.b32.xlu0 %v1180, 120
        %v1197 = vpop.permute.xlu0 %1196
        %1198 = vrot.lane.b32.xlu0 %v1181, 120
        %v1199 = vpop.permute.xlu0 %1198
        %1200 = vrot.lane.b32.xlu0 %v1182, 120
        %v1201 = vpop.permute.xlu0 %1200
        %1202 = vrot.lane.b32.xlu0 %v1183, 120
        %v1203 = vpop.permute.xlu0 %1202
        %1204 = vrot.lane.b32.xlu0 %v1184, 120
        %v1205 = vpop.permute.xlu0 %1204
        %1206 = vrot.lane.b32.xlu0 %v1185, 120
        %v1207 = vpop.permute.xlu0 %1206
        %1208 = vrot.lane.b32.xlu0 %v1186, 120
        %v1209 = vpop.permute.xlu0 %1208
        %1210 = vrot.lane.b32.xlu0 %v1187, 120
        %v1211 = vpop.permute.xlu0 %1210
        %v1220 = vadd.f32 %v1170, %v1197
        %v1221 = vadd.f32 %v1171, %v1199
        %v1222 = vadd.f32 %v1172, %v1201
        %v1223 = vadd.f32 %v1173, %v1203
        %v1224 = vadd.f32 %v1174, %v1205
        %v1225 = vadd.f32 %v1175, %v1207
        %v1226 = vadd.f32 %v1176, %v1209
        %v1227 = vadd.f32 %v1177, %v1211
        %s1228 = sld [smem:[#allocation6 + $0x103]]
        %v1229 = vstv %s1228
        %v1230 = vmul.f32 %v1229, %v1153
        %v1231 = vmul.f32 %v1229, %v1154
        %v1232 = vmul.f32 %v1229, %v1155
        %v1233 = vmul.f32 %v1229, %v1156
        %v1234 = vmul.f32 %v1229, %v1157
        %v1235 = vmul.f32 %v1229, %v1158
        %v1236 = vmul.f32 %v1229, %v1159
        %v1237 = vmul.f32 %v1229, %v1160
        %1246 = vrot.lane.b32.xlu0 %v1230, 112
        %v1247 = vpop.permute.xlu0 %1246
        %1248 = vrot.lane.b32.xlu0 %v1231, 112
        %v1249 = vpop.permute.xlu0 %1248
        %1250 = vrot.lane.b32.xlu0 %v1232, 112
        %v1251 = vpop.permute.xlu0 %1250
        %1252 = vrot.lane.b32.xlu0 %v1233, 112
        %v1253 = vpop.permute.xlu0 %1252
        %1254 = vrot.lane.b32.xlu0 %v1234, 112
        %v1255 = vpop.permute.xlu0 %1254
        %1256 = vrot.lane.b32.xlu0 %v1235, 112
        %v1257 = vpop.permute.xlu0 %1256
        %1258 = vrot.lane.b32.xlu0 %v1236, 112
        %v1259 = vpop.permute.xlu0 %1258
        %1260 = vrot.lane.b32.xlu0 %v1237, 112
        %v1261 = vpop.permute.xlu0 %1260
        %v1270 = vadd.f32 %v1220, %v1247
        %v1271 = vadd.f32 %v1221, %v1249
        %v1272 = vadd.f32 %v1222, %v1251
        %v1273 = vadd.f32 %v1223, %v1253
        %v1274 = vadd.f32 %v1224, %v1255
        %v1275 = vadd.f32 %v1225, %v1257
        %v1276 = vadd.f32 %v1226, %v1259
        %v1277 = vadd.f32 %v1227, %v1261
        %s1278 = sld [smem:[#allocation6 + $0x183]]
        %v1279 = vstv %s1278
        %v1280 = vmul.f32 %v1279, %v1153
        %v1281 = vmul.f32 %v1279, %v1154
        %v1282 = vmul.f32 %v1279, %v1155
        %v1283 = vmul.f32 %v1279, %v1156
        %v1284 = vmul.f32 %v1279, %v1157
        %v1285 = vmul.f32 %v1279, %v1158
        %v1286 = vmul.f32 %v1279, %v1159
        %v1287 = vmul.f32 %v1279, %v1160
        %1296 = vrot.lane.b32.xlu0 %v1280, 104
        %v1297 = vpop.permute.xlu0 %1296
        %1298 = vrot.lane.b32.xlu0 %v1281, 104
        %v1299 = vpop.permute.xlu0 %1298
        %1300 = vrot.lane.b32.xlu0 %v1282, 104
        %v1301 = vpop.permute.xlu0 %1300
        %1302 = vrot.lane.b32.xlu0 %v1283, 104
        %v1303 = vpop.permute.xlu0 %1302
        %1304 = vrot.lane.b32.xlu0 %v1284, 104
        %v1305 = vpop.permute.xlu0 %1304
        %1306 = vrot.lane.b32.xlu0 %v1285, 104
        %v1307 = vpop.permute.xlu0 %1306
        %1308 = vrot.lane.b32.xlu0 %v1286, 104
        %v1309 = vpop.permute.xlu0 %1308
        %1310 = vrot.lane.b32.xlu0 %v1287, 104
        %v1311 = vpop.permute.xlu0 %1310
        %v1320 = vadd.f32 %v1270, %v1297
        %v1321 = vadd.f32 %v1271, %v1299
        %v1322 = vadd.f32 %v1272, %v1301
        %v1323 = vadd.f32 %v1273, %v1303
        %v1324 = vadd.f32 %v1274, %v1305
        %v1325 = vadd.f32 %v1275, %v1307
        %v1326 = vadd.f32 %v1276, %v1309
        %v1327 = vadd.f32 %v1277, %v1311
        %s1328 = sld [smem:[#allocation8 + $0x3]]
        %v1329 = vstv %s1328
        %v1330 = vadd.f32 %v1320, %v1329
        %v1331 = vadd.f32 %v1321, %v1329
        %v1332 = vadd.f32 %v1322, %v1329
        %v1333 = vadd.f32 %v1323, %v1329
        %v1334 = vadd.f32 %v1324, %v1329
        %v1335 = vadd.f32 %v1325, %v1329
        %v1336 = vadd.f32 %v1326, %v1329
        %v1337 = vadd.f32 %v1327, %v1329
        %1346 = vrot.lane.b32.xlu0 %v1330, 24
        %v1347 = vpop.permute.xlu0 %1346
        %1348 = vrot.lane.b32.xlu0 %v1331, 24
        %v1349 = vpop.permute.xlu0 %1348
        %1350 = vrot.lane.b32.xlu0 %v1332, 24
        %v1351 = vpop.permute.xlu0 %1350
        %1352 = vrot.lane.b32.xlu0 %v1333, 24
        %v1353 = vpop.permute.xlu0 %1352
        %1354 = vrot.lane.b32.xlu0 %v1334, 24
        %v1355 = vpop.permute.xlu0 %1354
        %1356 = vrot.lane.b32.xlu0 %v1335, 24
        %v1357 = vpop.permute.xlu0 %1356
        %1358 = vrot.lane.b32.xlu0 %v1336, 24
        %v1359 = vpop.permute.xlu0 %1358
        %1360 = vrot.lane.b32.xlu0 %v1337, 24
        %v1361 = vpop.permute.xlu0 %1360
        %vm1370 = vcmask 261312
        %1371 = vst.msk [vmem:[#allocation2] sm:$0xff] %vm1370, %v1347
        %1372 = vst.msk [vmem:[#allocation2 + $0x8] sm:$0xff] %vm1370, %v1349
        %1373 = vst.msk [vmem:[#allocation2 + $0x10] sm:$0xff] %vm1370, %v1351
        %1374 = vst.msk [vmem:[#allocation2 + $0x18] sm:$0xff] %vm1370, %v1353
        %1375 = vst.msk [vmem:[#allocation2 + $0x20] sm:$0xff] %vm1370, %v1355
        %1376 = vst.msk [vmem:[#allocation2 + $0x28] sm:$0xff] %vm1370, %v1357
        %1377 = vst.msk [vmem:[#allocation2 + $0x30] sm:$0xff] %vm1370, %v1359
        %1378 = vst.msk [vmem:[#allocation2 + $0x38] sm:$0xff] %vm1370, %v1361
        %s1379 = sld [smem:[#allocation6 + $0x4]]
        %v1380 = vld [vmem:[%s433] sm:$0xff]
        %v1381 = vld [vmem:[%s433 + $0x8] sm:$0xff]
        %v1382 = vld [vmem:[%s433 + $0x10] sm:$0xff]
        %v1383 = vld [vmem:[%s433 + $0x18] sm:$0xff]
        %v1384 = vld [vmem:[%s433 + $0x20] sm:$0xff]
        %v1385 = vld [vmem:[%s433 + $0x28] sm:$0xff]
        %v1386 = vld [vmem:[%s433 + $0x30] sm:$0xff]
        %v1387 = vld [vmem:[%s433 + $0x38] sm:$0xff]
        %v1388 = vstv %s1379
        %v1389 = vmul.f32 %v1388, %v1380
        %v1390 = vmul.f32 %v1388, %v1381
        %v1391 = vmul.f32 %v1388, %v1382
        %v1392 = vmul.f32 %v1388, %v1383
        %v1393 = vmul.f32 %v1388, %v1384
        %v1394 = vmul.f32 %v1388, %v1385
        %v1395 = vmul.f32 %v1388, %v1386
        %v1396 = vmul.f32 %v1388, %v1387
        %v1397 = vadd.f32 %v1389, 0.0
        %v1398 = vadd.f32 %v1390, 0.0
        %v1399 = vadd.f32 %v1391, 0.0
        %v1400 = vadd.f32 %v1392, 0.0
        %v1401 = vadd.f32 %v1393, 0.0
        %v1402 = vadd.f32 %v1394, 0.0
        %v1403 = vadd.f32 %v1395, 0.0
        %v1404 = vadd.f32 %v1396, 0.0
        %s1405 = sld [smem:[#allocation6 + $0x84]]
        %v1406 = vstv %s1405
        %v1407 = vmul.f32 %v1406, %v1380
        %v1408 = vmul.f32 %v1406, %v1381
        %v1409 = vmul.f32 %v1406, %v1382
        %v1410 = vmul.f32 %v1406, %v1383
        %v1411 = vmul.f32 %v1406, %v1384
        %v1412 = vmul.f32 %v1406, %v1385
        %v1413 = vmul.f32 %v1406, %v1386
        %v1414 = vmul.f32 %v1406, %v1387
        %1423 = vrot.lane.b32.xlu0 %v1407, 120
        %v1424 = vpop.permute.xlu0 %1423
        %1425 = vrot.lane.b32.xlu0 %v1408, 120
        %v1426 = vpop.permute.xlu0 %1425
        %1427 = vrot.lane.b32.xlu0 %v1409, 120
        %v1428 = vpop.permute.xlu0 %1427
        %1429 = vrot.lane.b32.xlu0 %v1410, 120
        %v1430 = vpop.permute.xlu0 %1429
        %1431 = vrot.lane.b32.xlu0 %v1411, 120
        %v1432 = vpop.permute.xlu0 %1431
        %1433 = vrot.lane.b32.xlu0 %v1412, 120
        %v1434 = vpop.permute.xlu0 %1433
        %1435 = vrot.lane.b32.xlu0 %v1413, 120
        %v1436 = vpop.permute.xlu0 %1435
        %1437 = vrot.lane.b32.xlu0 %v1414, 120
        %v1438 = vpop.permute.xlu0 %1437
        %v1447 = vadd.f32 %v1397, %v1424
        %v1448 = vadd.f32 %v1398, %v1426
        %v1449 = vadd.f32 %v1399, %v1428
        %v1450 = vadd.f32 %v1400, %v1430
        %v1451 = vadd.f32 %v1401, %v1432
        %v1452 = vadd.f32 %v1402, %v1434
        %v1453 = vadd.f32 %v1403, %v1436
        %v1454 = vadd.f32 %v1404, %v1438
        %s1455 = sld [smem:[#allocation6 + $0x104]]
        %v1456 = vstv %s1455
        %v1457 = vmul.f32 %v1456, %v1380
        %v1458 = vmul.f32 %v1456, %v1381
        %v1459 = vmul.f32 %v1456, %v1382
        %v1460 = vmul.f32 %v1456, %v1383
        %v1461 = vmul.f32 %v1456, %v1384
        %v1462 = vmul.f32 %v1456, %v1385
        %v1463 = vmul.f32 %v1456, %v1386
        %v1464 = vmul.f32 %v1456, %v1387
        %1473 = vrot.lane.b32.xlu0 %v1457, 112
        %v1474 = vpop.permute.xlu0 %1473
        %1475 = vrot.lane.b32.xlu0 %v1458, 112
        %v1476 = vpop.permute.xlu0 %1475
        %1477 = vrot.lane.b32.xlu0 %v1459, 112
        %v1478 = vpop.permute.xlu0 %1477
        %1479 = vrot.lane.b32.xlu0 %v1460, 112
        %v1480 = vpop.permute.xlu0 %1479
        %1481 = vrot.lane.b32.xlu0 %v1461, 112
        %v1482 = vpop.permute.xlu0 %1481
        %1483 = vrot.lane.b32.xlu0 %v1462, 112
        %v1484 = vpop.permute.xlu0 %1483
        %1485 = vrot.lane.b32.xlu0 %v1463, 112
        %v1486 = vpop.permute.xlu0 %1485
        %1487 = vrot.lane.b32.xlu0 %v1464, 112
        %v1488 = vpop.permute.xlu0 %1487
        %v1497 = vadd.f32 %v1447, %v1474
        %v1498 = vadd.f32 %v1448, %v1476
        %v1499 = vadd.f32 %v1449, %v1478
        %v1500 = vadd.f32 %v1450, %v1480
        %v1501 = vadd.f32 %v1451, %v1482
        %v1502 = vadd.f32 %v1452, %v1484
        %v1503 = vadd.f32 %v1453, %v1486
        %v1504 = vadd.f32 %v1454, %v1488
        %s1505 = sld [smem:[#allocation6 + $0x184]]
        %v1506 = vstv %s1505
        %v1507 = vmul.f32 %v1506, %v1380
        %v1508 = vmul.f32 %v1506, %v1381
        %v1509 = vmul.f32 %v1506, %v1382
        %v1510 = vmul.f32 %v1506, %v1383
        %v1511 = vmul.f32 %v1506, %v1384
        %v1512 = vmul.f32 %v1506, %v1385
        %v1513 = vmul.f32 %v1506, %v1386
        %v1514 = vmul.f32 %v1506, %v1387
        %1523 = vrot.lane.b32.xlu0 %v1507, 104
        %v1524 = vpop.permute.xlu0 %1523
        %1525 = vrot.lane.b32.xlu0 %v1508, 104
        %v1526 = vpop.permute.xlu0 %1525
        %1527 = vrot.lane.b32.xlu0 %v1509, 104
        %v1528 = vpop.permute.xlu0 %1527
        %1529 = vrot.lane.b32.xlu0 %v1510, 104
        %v1530 = vpop.permute.xlu0 %1529
        %1531 = vrot.lane.b32.xlu0 %v1511, 104
        %v1532 = vpop.permute.xlu0 %1531
        %1533 = vrot.lane.b32.xlu0 %v1512, 104
        %v1534 = vpop.permute.xlu0 %1533
        %1535 = vrot.lane.b32.xlu0 %v1513, 104
        %v1536 = vpop.permute.xlu0 %1535
        %1537 = vrot.lane.b32.xlu0 %v1514, 104
        %v1538 = vpop.permute.xlu0 %1537
        %v1547 = vadd.f32 %v1497, %v1524
        %v1548 = vadd.f32 %v1498, %v1526
        %v1549 = vadd.f32 %v1499, %v1528
        %v1550 = vadd.f32 %v1500, %v1530
        %v1551 = vadd.f32 %v1501, %v1532
        %v1552 = vadd.f32 %v1502, %v1534
        %v1553 = vadd.f32 %v1503, %v1536
        %v1554 = vadd.f32 %v1504, %v1538
        %s1555 = sld [smem:[#allocation8 + $0x4]]
        %v1556 = vstv %s1555
        %v1557 = vadd.f32 %v1547, %v1556
        %v1558 = vadd.f32 %v1548, %v1556
        %v1559 = vadd.f32 %v1549, %v1556
        %v1560 = vadd.f32 %v1550, %v1556
        %v1561 = vadd.f32 %v1551, %v1556
        %v1562 = vadd.f32 %v1552, %v1556
        %v1563 = vadd.f32 %v1553, %v1556
        %v1564 = vadd.f32 %v1554, %v1556
        %1573 = vrot.lane.b32.xlu0 %v1557, 32
        %v1574 = vpop.permute.xlu0 %1573
        %1575 = vrot.lane.b32.xlu0 %v1558, 32
        %v1576 = vpop.permute.xlu0 %1575
        %1577 = vrot.lane.b32.xlu0 %v1559, 32
        %v1578 = vpop.permute.xlu0 %1577
        %1579 = vrot.lane.b32.xlu0 %v1560, 32
        %v1580 = vpop.permute.xlu0 %1579
        %1581 = vrot.lane.b32.xlu0 %v1561, 32
        %v1582 = vpop.permute.xlu0 %1581
        %1583 = vrot.lane.b32.xlu0 %v1562, 32
        %v1584 = vpop.permute.xlu0 %1583
        %1585 = vrot.lane.b32.xlu0 %v1563, 32
        %v1586 = vpop.permute.xlu0 %1585
        %1587 = vrot.lane.b32.xlu0 %v1564, 32
        %v1588 = vpop.permute.xlu0 %1587
        %vm1597 = vcmask 326912
        %1598 = vst.msk [vmem:[#allocation2] sm:$0xff] %vm1597, %v1574
        %1599 = vst.msk [vmem:[#allocation2 + $0x8] sm:$0xff] %vm1597, %v1576
        %1600 = vst.msk [vmem:[#allocation2 + $0x10] sm:$0xff] %vm1597, %v1578
        %1601 = vst.msk [vmem:[#allocation2 + $0x18] sm:$0xff] %vm1597, %v1580
        %1602 = vst.msk [vmem:[#allocation2 + $0x20] sm:$0xff] %vm1597, %v1582
        %1603 = vst.msk [vmem:[#allocation2 + $0x28] sm:$0xff] %vm1597, %v1584
        %1604 = vst.msk [vmem:[#allocation2 + $0x30] sm:$0xff] %vm1597, %v1586
        %1605 = vst.msk [vmem:[#allocation2 + $0x38] sm:$0xff] %vm1597, %v1588
        %s1606 = sld [smem:[#allocation6 + $0x5]]
        %v1607 = vld [vmem:[%s433] sm:$0xff]
        %v1608 = vld [vmem:[%s433 + $0x8] sm:$0xff]
        %v1609 = vld [vmem:[%s433 + $0x10] sm:$0xff]
        %v1610 = vld [vmem:[%s433 + $0x18] sm:$0xff]
        %v1611 = vld [vmem:[%s433 + $0x20] sm:$0xff]
        %v1612 = vld [vmem:[%s433 + $0x28] sm:$0xff]
        %v1613 = vld [vmem:[%s433 + $0x30] sm:$0xff]
        %v1614 = vld [vmem:[%s433 + $0x38] sm:$0xff]
        %v1615 = vstv %s1606
        %v1616 = vmul.f32 %v1615, %v1607
        %v1617 = vmul.f32 %v1615, %v1608
        %v1618 = vmul.f32 %v1615, %v1609
        %v1619 = vmul.f32 %v1615, %v1610
        %v1620 = vmul.f32 %v1615, %v1611
        %v1621 = vmul.f32 %v1615, %v1612
        %v1622 = vmul.f32 %v1615, %v1613
        %v1623 = vmul.f32 %v1615, %v1614
        %v1624 = vadd.f32 %v1616, 0.0
        %v1625 = vadd.f32 %v1617, 0.0
        %v1626 = vadd.f32 %v1618, 0.0
        %v1627 = vadd.f32 %v1619, 0.0
        %v1628 = vadd.f32 %v1620, 0.0
        %v1629 = vadd.f32 %v1621, 0.0
        %v1630 = vadd.f32 %v1622, 0.0
        %v1631 = vadd.f32 %v1623, 0.0
        %s1632 = sld [smem:[#allocation6 + $0x85]]
        %v1633 = vstv %s1632
        %v1634 = vmul.f32 %v1633, %v1607
        %v1635 = vmul.f32 %v1633, %v1608
        %v1636 = vmul.f32 %v1633, %v1609
        %v1637 = vmul.f32 %v1633, %v1610
        %v1638 = vmul.f32 %v1633, %v1611
        %v1639 = vmul.f32 %v1633, %v1612
        %v1640 = vmul.f32 %v1633, %v1613
        %v1641 = vmul.f32 %v1633, %v1614
        %1650 = vrot.lane.b32.xlu0 %v1634, 120
        %v1651 = vpop.permute.xlu0 %1650
        %1652 = vrot.lane.b32.xlu0 %v1635, 120
        %v1653 = vpop.permute.xlu0 %1652
        %1654 = vrot.lane.b32.xlu0 %v1636, 120
        %v1655 = vpop.permute.xlu0 %1654
        %1656 = vrot.lane.b32.xlu0 %v1637, 120
        %v1657 = vpop.permute.xlu0 %1656
        %1658 = vrot.lane.b32.xlu0 %v1638, 120
        %v1659 = vpop.permute.xlu0 %1658
        %1660 = vrot.lane.b32.xlu0 %v1639, 120
        %v1661 = vpop.permute.xlu0 %1660
        %1662 = vrot.lane.b32.xlu0 %v1640, 120
        %v1663 = vpop.permute.xlu0 %1662
        %1664 = vrot.lane.b32.xlu0 %v1641, 120
        %v1665 = vpop.permute.xlu0 %1664
        %v1674 = vadd.f32 %v1624, %v1651
        %v1675 = vadd.f32 %v1625, %v1653
        %v1676 = vadd.f32 %v1626, %v1655
        %v1677 = vadd.f32 %v1627, %v1657
        %v1678 = vadd.f32 %v1628, %v1659
        %v1679 = vadd.f32 %v1629, %v1661
        %v1680 = vadd.f32 %v1630, %v1663
        %v1681 = vadd.f32 %v1631, %v1665
        %s1682 = sld [smem:[#allocation6 + $0x105]]
        %v1683 = vstv %s1682
        %v1684 = vmul.f32 %v1683, %v1607
        %v1685 = vmul.f32 %v1683, %v1608
        %v1686 = vmul.f32 %v1683, %v1609
        %v1687 = vmul.f32 %v1683, %v1610
        %v1688 = vmul.f32 %v1683, %v1611
        %v1689 = vmul.f32 %v1683, %v1612
        %v1690 = vmul.f32 %v1683, %v1613
        %v1691 = vmul.f32 %v1683, %v1614
        %1700 = vrot.lane.b32.xlu0 %v1684, 112
        %v1701 = vpop.permute.xlu0 %1700
        %1702 = vrot.lane.b32.xlu0 %v1685, 112
        %v1703 = vpop.permute.xlu0 %1702
        %1704 = vrot.lane.b32.xlu0 %v1686, 112
        %v1705 = vpop.permute.xlu0 %1704
        %1706 = vrot.lane.b32.xlu0 %v1687, 112
        %v1707 = vpop.permute.xlu0 %1706
        %1708 = vrot.lane.b32.xlu0 %v1688, 112
        %v1709 = vpop.permute.xlu0 %1708
        %1710 = vrot.lane.b32.xlu0 %v1689, 112
        %v1711 = vpop.permute.xlu0 %1710
        %1712 = vrot.lane.b32.xlu0 %v1690, 112
        %v1713 = vpop.permute.xlu0 %1712
        %1714 = vrot.lane.b32.xlu0 %v1691, 112
        %v1715 = vpop.permute.xlu0 %1714
        %v1724 = vadd.f32 %v1674, %v1701
        %v1725 = vadd.f32 %v1675, %v1703
        %v1726 = vadd.f32 %v1676, %v1705
        %v1727 = vadd.f32 %v1677, %v1707
        %v1728 = vadd.f32 %v1678, %v1709
        %v1729 = vadd.f32 %v1679, %v1711
        %v1730 = vadd.f32 %v1680, %v1713
        %v1731 = vadd.f32 %v1681, %v1715
        %s1732 = sld [smem:[#allocation6 + $0x185]]
        %v1733 = vstv %s1732
        %v1734 = vmul.f32 %v1733, %v1607
        %v1735 = vmul.f32 %v1733, %v1608
        %v1736 = vmul.f32 %v1733, %v1609
        %v1737 = vmul.f32 %v1733, %v1610
        %v1738 = vmul.f32 %v1733, %v1611
        %v1739 = vmul.f32 %v1733, %v1612
        %v1740 = vmul.f32 %v1733, %v1613
        %v1741 = vmul.f32 %v1733, %v1614
        %1750 = vrot.lane.b32.xlu0 %v1734, 104
        %v1751 = vpop.permute.xlu0 %1750
        %1752 = vrot.lane.b32.xlu0 %v1735, 104
        %v1753 = vpop.permute.xlu0 %1752
        %1754 = vrot.lane.b32.xlu0 %v1736, 104
        %v1755 = vpop.permute.xlu0 %1754
        %1756 = vrot.lane.b32.xlu0 %v1737, 104
        %v1757 = vpop.permute.xlu0 %1756
        %1758 = vrot.lane.b32.xlu0 %v1738, 104
        %v1759 = vpop.permute.xlu0 %1758
        %1760 = vrot.lane.b32.xlu0 %v1739, 104
        %v1761 = vpop.permute.xlu0 %1760
        %1762 = vrot.lane.b32.xlu0 %v1740, 104
        %v1763 = vpop.permute.xlu0 %1762
        %1764 = vrot.lane.b32.xlu0 %v1741, 104
        %v1765 = vpop.permute.xlu0 %1764
        %v1774 = vadd.f32 %v1724, %v1751
        %v1775 = vadd.f32 %v1725, %v1753
        %v1776 = vadd.f32 %v1726, %v1755
        %v1777 = vadd.f32 %v1727, %v1757
        %v1778 = vadd.f32 %v1728, %v1759
        %v1779 = vadd.f32 %v1729, %v1761
        %v1780 = vadd.f32 %v1730, %v1763
        %v1781 = vadd.f32 %v1731, %v1765
        %s1782 = sld [smem:[#allocation8 + $0x5]]
        %v1783 = vstv %s1782
        %v1784 = vadd.f32 %v1774, %v1783
        %v1785 = vadd.f32 %v1775, %v1783
        %v1786 = vadd.f32 %v1776, %v1783
        %v1787 = vadd.f32 %v1777, %v1783
        %v1788 = vadd.f32 %v1778, %v1783
        %v1789 = vadd.f32 %v1779, %v1783
        %v1790 = vadd.f32 %v1780, %v1783
        %v1791 = vadd.f32 %v1781, %v1783
        %1800 = vrot.lane.b32.xlu0 %v1784, 40
        %v1801 = vpop.permute.xlu0 %1800
        %1802 = vrot.lane.b32.xlu0 %v1785, 40
        %v1803 = vpop.permute.xlu0 %1802
        %1804 = vrot.lane.b32.xlu0 %v1786, 40
        %v1805 = vpop.permute.xlu0 %1804
        %1806 = vrot.lane.b32.xlu0 %v1787, 40
        %v1807 = vpop.permute.xlu0 %1806
        %1808 = vrot.lane.b32.xlu0 %v1788, 40
        %v1809 = vpop.permute.xlu0 %1808
        %1810 = vrot.lane.b32.xlu0 %v1789, 40
        %v1811 = vpop.permute.xlu0 %1810
        %1812 = vrot.lane.b32.xlu0 %v1790, 40
        %v1813 = vpop.permute.xlu0 %1812
        %1814 = vrot.lane.b32.xlu0 %v1791, 40
        %v1815 = vpop.permute.xlu0 %1814
        %vm1824 = vcmask 392512
        %1825 = vst.msk [vmem:[#allocation2] sm:$0xff] %vm1824, %v1801
        %1826 = vst.msk [vmem:[#allocation2 + $0x8] sm:$0xff] %vm1824, %v1803
        %1827 = vst.msk [vmem:[#allocation2 + $0x10] sm:$0xff] %vm1824, %v1805
        %1828 = vst.msk [vmem:[#allocation2 + $0x18] sm:$0xff] %vm1824, %v1807
        %1829 = vst.msk [vmem:[#allocation2 + $0x20] sm:$0xff] %vm1824, %v1809
        %1830 = vst.msk [vmem:[#allocation2 + $0x28] sm:$0xff] %vm1824, %v1811
        %1831 = vst.msk [vmem:[#allocation2 + $0x30] sm:$0xff] %vm1824, %v1813
        %1832 = vst.msk [vmem:[#allocation2 + $0x38] sm:$0xff] %vm1824, %v1815
        %s1833 = sld [smem:[#allocation6 + $0x6]]
        %v1834 = vld [vmem:[%s433] sm:$0xff]
        %v1835 = vld [vmem:[%s433 + $0x8] sm:$0xff]
        %v1836 = vld [vmem:[%s433 + $0x10] sm:$0xff]
        %v1837 = vld [vmem:[%s433 + $0x18] sm:$0xff]
        %v1838 = vld [vmem:[%s433 + $0x20] sm:$0xff]
        %v1839 = vld [vmem:[%s433 + $0x28] sm:$0xff]
        %v1840 = vld [vmem:[%s433 + $0x30] sm:$0xff]
        %v1841 = vld [vmem:[%s433 + $0x38] sm:$0xff]
        %v1842 = vstv %s1833
        %v1843 = vmul.f32 %v1842, %v1834
        %v1844 = vmul.f32 %v1842, %v1835
        %v1845 = vmul.f32 %v1842, %v1836
        %v1846 = vmul.f32 %v1842, %v1837
        %v1847 = vmul.f32 %v1842, %v1838
        %v1848 = vmul.f32 %v1842, %v1839
        %v1849 = vmul.f32 %v1842, %v1840
        %v1850 = vmul.f32 %v1842, %v1841
        %v1851 = vadd.f32 %v1843, 0.0
        %v1852 = vadd.f32 %v1844, 0.0
        %v1853 = vadd.f32 %v1845, 0.0
        %v1854 = vadd.f32 %v1846, 0.0
        %v1855 = vadd.f32 %v1847, 0.0
        %v1856 = vadd.f32 %v1848, 0.0
        %v1857 = vadd.f32 %v1849, 0.0
        %v1858 = vadd.f32 %v1850, 0.0
        %s1859 = sld [smem:[#allocation6 + $0x86]]
        %v1860 = vstv %s1859
        %v1861 = vmul.f32 %v1860, %v1834
        %v1862 = vmul.f32 %v1860, %v1835
        %v1863 = vmul.f32 %v1860, %v1836
        %v1864 = vmul.f32 %v1860, %v1837
        %v1865 = vmul.f32 %v1860, %v1838
        %v1866 = vmul.f32 %v1860, %v1839
        %v1867 = vmul.f32 %v1860, %v1840
        %v1868 = vmul.f32 %v1860, %v1841
        %1877 = vrot.lane.b32.xlu0 %v1861, 120
        %v1878 = vpop.permute.xlu0 %1877
        %1879 = vrot.lane.b32.xlu0 %v1862, 120
        %v1880 = vpop.permute.xlu0 %1879
        %1881 = vrot.lane.b32.xlu0 %v1863, 120
        %v1882 = vpop.permute.xlu0 %1881
        %1883 = vrot.lane.b32.xlu0 %v1864, 120
        %v1884 = vpop.permute.xlu0 %1883
        %1885 = vrot.lane.b32.xlu0 %v1865, 120
        %v1886 = vpop.permute.xlu0 %1885
        %1887 = vrot.lane.b32.xlu0 %v1866, 120
        %v1888 = vpop.permute.xlu0 %1887
        %1889 = vrot.lane.b32.xlu0 %v1867, 120
        %v1890 = vpop.permute.xlu0 %1889
        %1891 = vrot.lane.b32.xlu0 %v1868, 120
        %v1892 = vpop.permute.xlu0 %1891
        %v1901 = vadd.f32 %v1851, %v1878
        %v1902 = vadd.f32 %v1852, %v1880
        %v1903 = vadd.f32 %v1853, %v1882
        %v1904 = vadd.f32 %v1854, %v1884
        %v1905 = vadd.f32 %v1855, %v1886
        %v1906 = vadd.f32 %v1856, %v1888
        %v1907 = vadd.f32 %v1857, %v1890
        %v1908 = vadd.f32 %v1858, %v1892
        %s1909 = sld [smem:[#allocation6 + $0x106]]
        %v1910 = vstv %s1909
        %v1911 = vmul.f32 %v1910, %v1834
        %v1912 = vmul.f32 %v1910, %v1835
        %v1913 = vmul.f32 %v1910, %v1836
        %v1914 = vmul.f32 %v1910, %v1837
        %v1915 = vmul.f32 %v1910, %v1838
        %v1916 = vmul.f32 %v1910, %v1839
        %v1917 = vmul.f32 %v1910, %v1840
        %v1918 = vmul.f32 %v1910, %v1841
        %1927 = vrot.lane.b32.xlu0 %v1911, 112
        %v1928 = vpop.permute.xlu0 %1927
        %1929 = vrot.lane.b32.xlu0 %v1912, 112
        %v1930 = vpop.permute.xlu0 %1929
        %1931 = vrot.lane.b32.xlu0 %v1913, 112
        %v1932 = vpop.permute.xlu0 %1931
        %1933 = vrot.lane.b32.xlu0 %v1914, 112
        %v1934 = vpop.permute.xlu0 %1933
        %1935 = vrot.lane.b32.xlu0 %v1915, 112
        %v1936 = vpop.permute.xlu0 %1935
        %1937 = vrot.lane.b32.xlu0 %v1916, 112
        %v1938 = vpop.permute.xlu0 %1937
        %1939 = vrot.lane.b32.xlu0 %v1917, 112
        %v1940 = vpop.permute.xlu0 %1939
        %1941 = vrot.lane.b32.xlu0 %v1918, 112
        %v1942 = vpop.permute.xlu0 %1941
        %v1951 = vadd.f32 %v1901, %v1928
        %v1952 = vadd.f32 %v1902, %v1930
        %v1953 = vadd.f32 %v1903, %v1932
        %v1954 = vadd.f32 %v1904, %v1934
        %v1955 = vadd.f32 %v1905, %v1936
        %v1956 = vadd.f32 %v1906, %v1938
        %v1957 = vadd.f32 %v1907, %v1940
        %v1958 = vadd.f32 %v1908, %v1942
        %s1959 = sld [smem:[#allocation6 + $0x186]]
        %v1960 = vstv %s1959
        %v1961 = vmul.f32 %v1960, %v1834
        %v1962 = vmul.f32 %v1960, %v1835
        %v1963 = vmul.f32 %v1960, %v1836
        %v1964 = vmul.f32 %v1960, %v1837
        %v1965 = vmul.f32 %v1960, %v1838
        %v1966 = vmul.f32 %v1960, %v1839
        %v1967 = vmul.f32 %v1960, %v1840
        %v1968 = vmul.f32 %v1960, %v1841
        %1977 = vrot.lane.b32.xlu0 %v1961, 104
        %v1978 = vpop.permute.xlu0 %1977
        %1979 = vrot.lane.b32.xlu0 %v1962, 104
        %v1980 = vpop.permute.xlu0 %1979
        %1981 = vrot.lane.b32.xlu0 %v1963, 104
        %v1982 = vpop.permute.xlu0 %1981
        %1983 = vrot.lane.b32.xlu0 %v1964, 104
        %v1984 = vpop.permute.xlu0 %1983
        %1985 = vrot.lane.b32.xlu0 %v1965, 104
        %v1986 = vpop.permute.xlu0 %1985
        %1987 = vrot.lane.b32.xlu0 %v1966, 104
        %v1988 = vpop.permute.xlu0 %1987
        %1989 = vrot.lane.b32.xlu0 %v1967, 104
        %v1990 = vpop.permute.xlu0 %1989
        %1991 = vrot.lane.b32.xlu0 %v1968, 104
        %v1992 = vpop.permute.xlu0 %1991
        %v2001 = vadd.f32 %v1951, %v1978
        %v2002 = vadd.f32 %v1952, %v1980
        %v2003 = vadd.f32 %v1953, %v1982
        %v2004 = vadd.f32 %v1954, %v1984
        %v2005 = vadd.f32 %v1955, %v1986
        %v2006 = vadd.f32 %v1956, %v1988
        %v2007 = vadd.f32 %v1957, %v1990
        %v2008 = vadd.f32 %v1958, %v1992
        %s2009 = sld [smem:[#allocation8 + $0x6]]
        %v2010 = vstv %s2009
        %v2011 = vadd.f32 %v2001, %v2010
        %v2012 = vadd.f32 %v2002, %v2010
        %v2013 = vadd.f32 %v2003, %v2010
        %v2014 = vadd.f32 %v2004, %v2010
        %v2015 = vadd.f32 %v2005, %v2010
        %v2016 = vadd.f32 %v2006, %v2010
        %v2017 = vadd.f32 %v2007, %v2010
        %v2018 = vadd.f32 %v2008, %v2010
        %2027 = vrot.lane.b32.xlu0 %v2011, 48
        %v2028 = vpop.permute.xlu0 %2027
        %2029 = vrot.lane.b32.xlu0 %v2012, 48
        %v2030 = vpop.permute.xlu0 %2029
        %2031 = vrot.lane.b32.xlu0 %v2013, 48
        %v2032 = vpop.permute.xlu0 %2031
        %2033 = vrot.lane.b32.xlu0 %v2014, 48
        %v2034 = vpop.permute.xlu0 %2033
        %2035 = vrot.lane.b32.xlu0 %v2015, 48
        %v2036 = vpop.permute.xlu0 %2035
        %2037 = vrot.lane.b32.xlu0 %v2016, 48
        %v2038 = vpop.permute.xlu0 %2037
        %2039 = vrot.lane.b32.xlu0 %v2017, 48
        %v2040 = vpop.permute.xlu0 %2039
        %2041 = vrot.lane.b32.xlu0 %v2018, 48
        %v2042 = vpop.permute.xlu0 %2041
        %vm2051 = vcmask 458112
        %2052 = vst.msk [vmem:[#allocation2] sm:$0xff] %vm2051, %v2028
        %2053 = vst.msk [vmem:[#allocation2 + $0x8] sm:$0xff] %vm2051, %v2030
        %2054 = vst.msk [vmem:[#allocation2 + $0x10] sm:$0xff] %vm2051, %v2032
        %2055 = vst.msk [vmem:[#allocation2 + $0x18] sm:$0xff] %vm2051, %v2034
        %2056 = vst.msk [vmem:[#allocation2 + $0x20] sm:$0xff] %vm2051, %v2036
        %2057 = vst.msk [vmem:[#allocation2 + $0x28] sm:$0xff] %vm2051, %v2038
        %2058 = vst.msk [vmem:[#allocation2 + $0x30] sm:$0xff] %vm2051, %v2040
        %2059 = vst.msk [vmem:[#allocation2 + $0x38] sm:$0xff] %vm2051, %v2042
        %s2060 = sld [smem:[#allocation6 + $0x7]]
        %v2061 = vld [vmem:[%s433] sm:$0xff]
        %v2062 = vld [vmem:[%s433 + $0x8] sm:$0xff]
        %v2063 = vld [vmem:[%s433 + $0x10] sm:$0xff]
        %v2064 = vld [vmem:[%s433 + $0x18] sm:$0xff]
        %v2065 = vld [vmem:[%s433 + $0x20] sm:$0xff]
        %v2066 = vld [vmem:[%s433 + $0x28] sm:$0xff]
        %v2067 = vld [vmem:[%s433 + $0x30] sm:$0xff]
        %v2068 = vld [vmem:[%s433 + $0x38] sm:$0xff]
        %v2069 = vstv %s2060
        %v2070 = vmul.f32 %v2069, %v2061
        %v2071 = vmul.f32 %v2069, %v2062
        %v2072 = vmul.f32 %v2069, %v2063
        %v2073 = vmul.f32 %v2069, %v2064
        %v2074 = vmul.f32 %v2069, %v2065
        %v2075 = vmul.f32 %v2069, %v2066
        %v2076 = vmul.f32 %v2069, %v2067
        %v2077 = vmul.f32 %v2069, %v2068
        %v2078 = vadd.f32 %v2070, 0.0
        %v2079 = vadd.f32 %v2071, 0.0
        %v2080 = vadd.f32 %v2072, 0.0
        %v2081 = vadd.f32 %v2073, 0.0
        %v2082 = vadd.f32 %v2074, 0.0
        %v2083 = vadd.f32 %v2075, 0.0
        %v2084 = vadd.f32 %v2076, 0.0
        %v2085 = vadd.f32 %v2077, 0.0
        %s2086 = sld [smem:[#allocation6 + $0x87]]
        %v2087 = vstv %s2086
        %v2088 = vmul.f32 %v2087, %v2061
        %v2089 = vmul.f32 %v2087, %v2062
        %v2090 = vmul.f32 %v2087, %v2063
        %v2091 = vmul.f32 %v2087, %v2064
        %v2092 = vmul.f32 %v2087, %v2065
        %v2093 = vmul.f32 %v2087, %v2066
        %v2094 = vmul.f32 %v2087, %v2067
        %v2095 = vmul.f32 %v2087, %v2068
        %2104 = vrot.lane.b32.xlu0 %v2088, 120
        %v2105 = vpop.permute.xlu0 %2104
        %2106 = vrot.lane.b32.xlu0 %v2089, 120
        %v2107 = vpop.permute.xlu0 %2106
        %2108 = vrot.lane.b32.xlu0 %v2090, 120
        %v2109 = vpop.permute.xlu0 %2108
        %2110 = vrot.lane.b32.xlu0 %v2091, 120
        %v2111 = vpop.permute.xlu0 %2110
        %2112 = vrot.lane.b32.xlu0 %v2092, 120
        %v2113 = vpop.permute.xlu0 %2112
        %2114 = vrot.lane.b32.xlu0 %v2093, 120
        %v2115 = vpop.permute.xlu0 %2114
        %2116 = vrot.lane.b32.xlu0 %v2094, 120
        %v2117 = vpop.permute.xlu0 %2116
        %2118 = vrot.lane.b32.xlu0 %v2095, 120
        %v2119 = vpop.permute.xlu0 %2118
        %v2128 = vadd.f32 %v2078, %v2105
        %v2129 = vadd.f32 %v2079, %v2107
        %v2130 = vadd.f32 %v2080, %v2109
        %v2131 = vadd.f32 %v2081, %v2111
        %v2132 = vadd.f32 %v2082, %v2113
        %v2133 = vadd.f32 %v2083, %v2115
        %v2134 = vadd.f32 %v2084, %v2117
        %v2135 = vadd.f32 %v2085, %v2119
        %s2136 = sld [smem:[#allocation6 + $0x107]]
        %v2137 = vstv %s2136
        %v2138 = vmul.f32 %v2137, %v2061
        %v2139 = vmul.f32 %v2137, %v2062
        %v2140 = vmul.f32 %v2137, %v2063
        %v2141 = vmul.f32 %v2137, %v2064
        %v2142 = vmul.f32 %v2137, %v2065
        %v2143 = vmul.f32 %v2137, %v2066
        %v2144 = vmul.f32 %v2137, %v2067
        %v2145 = vmul.f32 %v2137, %v2068
        %2154 = vrot.lane.b32.xlu0 %v2138, 112
        %v2155 = vpop.permute.xlu0 %2154
        %2156 = vrot.lane.b32.xlu0 %v2139, 112
        %v2157 = vpop.permute.xlu0 %2156
        %2158 = vrot.lane.b32.xlu0 %v2140, 112
        %v2159 = vpop.permute.xlu0 %2158
        %2160 = vrot.lane.b32.xlu0 %v2141, 112
        %v2161 = vpop.permute.xlu0 %2160
        %2162 = vrot.lane.b32.xlu0 %v2142, 112
        %v2163 = vpop.permute.xlu0 %2162
        %2164 = vrot.lane.b32.xlu0 %v2143, 112
        %v2165 = vpop.permute.xlu0 %2164
        %2166 = vrot.lane.b32.xlu0 %v2144, 112
        %v2167 = vpop.permute.xlu0 %2166
        %2168 = vrot.lane.b32.xlu0 %v2145, 112
        %v2169 = vpop.permute.xlu0 %2168
        %v2178 = vadd.f32 %v2128, %v2155
        %v2179 = vadd.f32 %v2129, %v2157
        %v2180 = vadd.f32 %v2130, %v2159
        %v2181 = vadd.f32 %v2131, %v2161
        %v2182 = vadd.f32 %v2132, %v2163
        %v2183 = vadd.f32 %v2133, %v2165
        %v2184 = vadd.f32 %v2134, %v2167
        %v2185 = vadd.f32 %v2135, %v2169
        %s2186 = sld [smem:[#allocation6 + $0x187]]
        %v2187 = vstv %s2186
        %v2188 = vmul.f32 %v2187, %v2061
        %v2189 = vmul.f32 %v2187, %v2062
        %v2190 = vmul.f32 %v2187, %v2063
        %v2191 = vmul.f32 %v2187, %v2064
        %v2192 = vmul.f32 %v2187, %v2065
        %v2193 = vmul.f32 %v2187, %v2066
        %v2194 = vmul.f32 %v2187, %v2067
        %v2195 = vmul.f32 %v2187, %v2068
        %2204 = vrot.lane.b32.xlu0 %v2188, 104
        %v2205 = vpop.permute.xlu0 %2204
        %2206 = vrot.lane.b32.xlu0 %v2189, 104
        %v2207 = vpop.permute.xlu0 %2206
        %2208 = vrot.lane.b32.xlu0 %v2190, 104
        %v2209 = vpop.permute.xlu0 %2208
        %2210 = vrot.lane.b32.xlu0 %v2191, 104
        %v2211 = vpop.permute.xlu0 %2210
        %2212 = vrot.lane.b32.xlu0 %v2192, 104
        %v2213 = vpop.permute.xlu0 %2212
        %2214 = vrot.lane.b32.xlu0 %v2193, 104
        %v2215 = vpop.permute.xlu0 %2214
        %2216 = vrot.lane.b32.xlu0 %v2194, 104
        %v2217 = vpop.permute.xlu0 %2216
        %2218 = vrot.lane.b32.xlu0 %v2195, 104
        %v2219 = vpop.permute.xlu0 %2218
        %v2228 = vadd.f32 %v2178, %v2205
        %v2229 = vadd.f32 %v2179, %v2207
        %v2230 = vadd.f32 %v2180, %v2209
        %v2231 = vadd.f32 %v2181, %v2211
        %v2232 = vadd.f32 %v2182, %v2213
        %v2233 = vadd.f32 %v2183, %v2215
        %v2234 = vadd.f32 %v2184, %v2217
        %v2235 = vadd.f32 %v2185, %v2219
        %s2236 = sld [smem:[#allocation8 + $0x7]]
        %v2237 = vstv %s2236
        %v2238 = vadd.f32 %v2228, %v2237
        %v2239 = vadd.f32 %v2229, %v2237
        %v2240 = vadd.f32 %v2230, %v2237
        %v2241 = vadd.f32 %v2231, %v2237
        %v2242 = vadd.f32 %v2232, %v2237
        %v2243 = vadd.f32 %v2233, %v2237
        %v2244 = vadd.f32 %v2234, %v2237
        %v2245 = vadd.f32 %v2235, %v2237
        %2254 = vrot.lane.b32.xlu0 %v2238, 56
        %v2255 = vpop.permute.xlu0 %2254
        %2256 = vrot.lane.b32.xlu0 %v2239, 56
        %v2257 = vpop.permute.xlu0 %2256
        %2258 = vrot.lane.b32.xlu0 %v2240, 56
        %v2259 = vpop.permute.xlu0 %2258
        %2260 = vrot.lane.b32.xlu0 %v2241, 56
        %v2261 = vpop.permute.xlu0 %2260
        %2262 = vrot.lane.b32.xlu0 %v2242, 56
        %v2263 = vpop.permute.xlu0 %2262
        %2264 = vrot.lane.b32.xlu0 %v2243, 56
        %v2265 = vpop.permute.xlu0 %2264
        %2266 = vrot.lane.b32.xlu0 %v2244, 56
        %v2267 = vpop.permute.xlu0 %2266
        %2268 = vrot.lane.b32.xlu0 %v2245, 56
        %v2269 = vpop.permute.xlu0 %2268
        %vm2278 = vcmask 523712
        %2279 = vst.msk [vmem:[#allocation2] sm:$0xff] %vm2278, %v2255
        %2280 = vst.msk [vmem:[#allocation2 + $0x8] sm:$0xff] %vm2278, %v2257
        %2281 = vst.msk [vmem:[#allocation2 + $0x10] sm:$0xff] %vm2278, %v2259
        %2282 = vst.msk [vmem:[#allocation2 + $0x18] sm:$0xff] %vm2278, %v2261
        %2283 = vst.msk [vmem:[#allocation2 + $0x20] sm:$0xff] %vm2278, %v2263
        %2284 = vst.msk [vmem:[#allocation2 + $0x28] sm:$0xff] %vm2278, %v2265
        %2285 = vst.msk [vmem:[#allocation2 + $0x30] sm:$0xff] %vm2278, %v2267
        %2286 = vst.msk [vmem:[#allocation2 + $0x38] sm:$0xff] %vm2278, %v2269
        %v2287 = vld [vmem:[#allocation2] sm:$0xff]
        %v2288 = vld [vmem:[#allocation2 + $0x8] sm:$0xff]
        %v2289 = vld [vmem:[#allocation2 + $0x10] sm:$0xff]
        %v2290 = vld [vmem:[#allocation2 + $0x18] sm:$0xff]
        %v2291 = vld [vmem:[#allocation2 + $0x20] sm:$0xff]
        %v2292 = vld [vmem:[#allocation2 + $0x28] sm:$0xff]
        %v2293 = vld [vmem:[#allocation2 + $0x30] sm:$0xff]
        %v2294 = vld [vmem:[#allocation2 + $0x38] sm:$0xff]
        %2295 = vst.msk [vmem:[#allocation3] sm:$0xff] %vm689, %v2287
        %2296 = vst.msk [vmem:[#allocation3 + $0x8] sm:$0xff] %vm689, %v2288
        %2297 = vst.msk [vmem:[#allocation3 + $0x10] sm:$0xff] %vm689, %v2289
        %2298 = vst.msk [vmem:[#allocation3 + $0x18] sm:$0xff] %vm689, %v2290
        %2299 = vst.msk [vmem:[#allocation3 + $0x20] sm:$0xff] %vm689, %v2291
        %2300 = vst.msk [vmem:[#allocation3 + $0x28] sm:$0xff] %vm689, %v2292
        %2301 = vst.msk [vmem:[#allocation3 + $0x30] sm:$0xff] %vm689, %v2293
        %2302 = vst.msk [vmem:[#allocation3 + $0x38] sm:$0xff] %vm689, %v2294
        %v2303 = vld [vmem:[#allocation2] sm:$0xff]
        %v2304 = vld [vmem:[#allocation2 + $0x8] sm:$0xff]
        %v2305 = vld [vmem:[#allocation2 + $0x10] sm:$0xff]
        %v2306 = vld [vmem:[#allocation2 + $0x18] sm:$0xff]
        %v2307 = vld [vmem:[#allocation2 + $0x20] sm:$0xff]
        %v2308 = vld [vmem:[#allocation2 + $0x28] sm:$0xff]
        %v2309 = vld [vmem:[#allocation2 + $0x30] sm:$0xff]
        %v2310 = vld [vmem:[#allocation2 + $0x38] sm:$0xff]
        %2319 = vrot.lane.b32.xlu0 %v2303, 120
        %v2320 = vpop.permute.xlu0 %2319
        %2321 = vrot.lane.b32.xlu0 %v2304, 120
        %v2322 = vpop.permute.xlu0 %2321
        %2323 = vrot.lane.b32.xlu0 %v2305, 120
        %v2324 = vpop.permute.xlu0 %2323
        %2325 = vrot.lane.b32.xlu0 %v2306, 120
        %v2326 = vpop.permute.xlu0 %2325
        %2327 = vrot.lane.b32.xlu0 %v2307, 120
        %v2328 = vpop.permute.xlu0 %2327
        %2329 = vrot.lane.b32.xlu0 %v2308, 120
        %v2330 = vpop.permute.xlu0 %2329
        %2331 = vrot.lane.b32.xlu0 %v2309, 120
        %v2332 = vpop.permute.xlu0 %2331
        %2333 = vrot.lane.b32.xlu0 %v2310, 120
        %v2334 = vpop.permute.xlu0 %2333
        %2343 = vst.msk [vmem:[#allocation3 + $0x40] sm:$0xff] %vm689, %v2320
        %2344 = vst.msk [vmem:[#allocation3 + $0x48] sm:$0xff] %vm689, %v2322
        %2345 = vst.msk [vmem:[#allocation3 + $0x50] sm:$0xff] %vm689, %v2324
        %2346 = vst.msk [vmem:[#allocation3 + $0x58] sm:$0xff] %vm689, %v2326
        %2347 = vst.msk [vmem:[#allocation3 + $0x60] sm:$0xff] %vm689, %v2328
        %2348 = vst.msk [vmem:[#allocation3 + $0x68] sm:$0xff] %vm689, %v2330
        %2349 = vst.msk [vmem:[#allocation3 + $0x70] sm:$0xff] %vm689, %v2332
        %2350 = vst.msk [vmem:[#allocation3 + $0x78] sm:$0xff] %vm689, %v2334
        %v2351 = vld [vmem:[#allocation2] sm:$0xff]
        %v2352 = vld [vmem:[#allocation2 + $0x8] sm:$0xff]
        %v2353 = vld [vmem:[#allocation2 + $0x10] sm:$0xff]
        %v2354 = vld [vmem:[#allocation2 + $0x18] sm:$0xff]
        %v2355 = vld [vmem:[#allocation2 + $0x20] sm:$0xff]
        %v2356 = vld [vmem:[#allocation2 + $0x28] sm:$0xff]
        %v2357 = vld [vmem:[#allocation2 + $0x30] sm:$0xff]
        %v2358 = vld [vmem:[#allocation2 + $0x38] sm:$0xff]
        %2367 = vrot.lane.b32.xlu0 %v2351, 112
        %v2368 = vpop.permute.xlu0 %2367
        %2369 = vrot.lane.b32.xlu0 %v2352, 112
        %v2370 = vpop.permute.xlu0 %2369
        %2371 = vrot.lane.b32.xlu0 %v2353, 112
        %v2372 = vpop.permute.xlu0 %2371
        %2373 = vrot.lane.b32.xlu0 %v2354, 112
        %v2374 = vpop.permute.xlu0 %2373
        %2375 = vrot.lane.b32.xlu0 %v2355, 112
        %v2376 = vpop.permute.xlu0 %2375
        %2377 = vrot.lane.b32.xlu0 %v2356, 112
        %v2378 = vpop.permute.xlu0 %2377
        %2379 = vrot.lane.b32.xlu0 %v2357, 112
        %v2380 = vpop.permute.xlu0 %2379
        %2381 = vrot.lane.b32.xlu0 %v2358, 112
        %v2382 = vpop.permute.xlu0 %2381
        %2391 = vst.msk [vmem:[#allocation3 + $0x80] sm:$0xff] %vm689, %v2368
        %2392 = vst.msk [vmem:[#allocation3 + $0x88] sm:$0xff] %vm689, %v2370
        %2393 = vst.msk [vmem:[#allocation3 + $0x90] sm:$0xff] %vm689, %v2372
        %2394 = vst.msk [vmem:[#allocation3 + $0x98] sm:$0xff] %vm689, %v2374
        %2395 = vst.msk [vmem:[#allocation3 + $0xa0] sm:$0xff] %vm689, %v2376
        %2396 = vst.msk [vmem:[#allocation3 + $0xa8] sm:$0xff] %vm689, %v2378
        %2397 = vst.msk [vmem:[#allocation3 + $0xb0] sm:$0xff] %vm689, %v2380
        %2398 = vst.msk [vmem:[#allocation3 + $0xb8] sm:$0xff] %vm689, %v2382
        %v2399 = vld [vmem:[#allocation2] sm:$0xff]
        %v2400 = vld [vmem:[#allocation2 + $0x8] sm:$0xff]
        %v2401 = vld [vmem:[#allocation2 + $0x10] sm:$0xff]
        %v2402 = vld [vmem:[#allocation2 + $0x18] sm:$0xff]
        %v2403 = vld [vmem:[#allocation2 + $0x20] sm:$0xff]
        %v2404 = vld [vmem:[#allocation2 + $0x28] sm:$0xff]
        %v2405 = vld [vmem:[#allocation2 + $0x30] sm:$0xff]
        %v2406 = vld [vmem:[#allocation2 + $0x38] sm:$0xff]
        %2415 = vrot.lane.b32.xlu0 %v2399, 104
        %v2416 = vpop.permute.xlu0 %2415
        %2417 = vrot.lane.b32.xlu0 %v2400, 104
        %v2418 = vpop.permute.xlu0 %2417
        %2419 = vrot.lane.b32.xlu0 %v2401, 104
        %v2420 = vpop.permute.xlu0 %2419
        %2421 = vrot.lane.b32.xlu0 %v2402, 104
        %v2422 = vpop.permute.xlu0 %2421
        %2423 = vrot.lane.b32.xlu0 %v2403, 104
        %v2424 = vpop.permute.xlu0 %2423
        %2425 = vrot.lane.b32.xlu0 %v2404, 104
        %v2426 = vpop.permute.xlu0 %2425
        %2427 = vrot.lane.b32.xlu0 %v2405, 104
        %v2428 = vpop.permute.xlu0 %2427
        %2429 = vrot.lane.b32.xlu0 %v2406, 104
        %v2430 = vpop.permute.xlu0 %2429
        %2439 = vst.msk [vmem:[#allocation3 + $0xc0] sm:$0xff] %vm689, %v2416
        %2440 = vst.msk [vmem:[#allocation3 + $0xc8] sm:$0xff] %vm689, %v2418
        %2441 = vst.msk [vmem:[#allocation3 + $0xd0] sm:$0xff] %vm689, %v2420
        %2442 = vst.msk [vmem:[#allocation3 + $0xd8] sm:$0xff] %vm689, %v2422
        %2443 = vst.msk [vmem:[#allocation3 + $0xe0] sm:$0xff] %vm689, %v2424
        %2444 = vst.msk [vmem:[#allocation3 + $0xe8] sm:$0xff] %vm689, %v2426
        %2445 = vst.msk [vmem:[#allocation3 + $0xf0] sm:$0xff] %vm689, %v2428
        %2446 = vst.msk [vmem:[#allocation3 + $0xf8] sm:$0xff] %vm689, %v2430
        %v2447 = vld [vmem:[#allocation2] sm:$0xff]
        %v2448 = vld [vmem:[#allocation2 + $0x8] sm:$0xff]
        %v2449 = vld [vmem:[#allocation2 + $0x10] sm:$0xff]
        %v2450 = vld [vmem:[#allocation2 + $0x18] sm:$0xff]
        %v2451 = vld [vmem:[#allocation2 + $0x20] sm:$0xff]
        %v2452 = vld [vmem:[#allocation2 + $0x28] sm:$0xff]
        %v2453 = vld [vmem:[#allocation2 + $0x30] sm:$0xff]
        %v2454 = vld [vmem:[#allocation2 + $0x38] sm:$0xff]
        %2463 = vrot.lane.b32.xlu0 %v2447, 96
        %v2464 = vpop.permute.xlu0 %2463
        %2465 = vrot.lane.b32.xlu0 %v2448, 96
        %v2466 = vpop.permute.xlu0 %2465
        %2467 = vrot.lane.b32.xlu0 %v2449, 96
        %v2468 = vpop.permute.xlu0 %2467
        %2469 = vrot.lane.b32.xlu0 %v2450, 96
        %v2470 = vpop.permute.xlu0 %2469
        %2471 = vrot.lane.b32.xlu0 %v2451, 96
        %v2472 = vpop.permute.xlu0 %2471
        %2473 = vrot.lane.b32.xlu0 %v2452, 96
        %v2474 = vpop.permute.xlu0 %2473
        %2475 = vrot.lane.b32.xlu0 %v2453, 96
        %v2476 = vpop.permute.xlu0 %2475
        %2477 = vrot.lane.b32.xlu0 %v2454, 96
        %v2478 = vpop.permute.xlu0 %2477
        %2487 = vst.msk [vmem:[#allocation3 + $0x100] sm:$0xff] %vm689, %v2464
        %2488 = vst.msk [vmem:[#allocation3 + $0x108] sm:$0xff] %vm689, %v2466
        %2489 = vst.msk [vmem:[#allocation3 + $0x110] sm:$0xff] %vm689, %v2468
        %2490 = vst.msk [vmem:[#allocation3 + $0x118] sm:$0xff] %vm689, %v2470
        %2491 = vst.msk [vmem:[#allocation3 + $0x120] sm:$0xff] %vm689, %v2472
        %2492 = vst.msk [vmem:[#allocation3 + $0x128] sm:$0xff] %vm689, %v2474
        %2493 = vst.msk [vmem:[#allocation3 + $0x130] sm:$0xff] %vm689, %v2476
        %2494 = vst.msk [vmem:[#allocation3 + $0x138] sm:$0xff] %vm689, %v2478
        %v2495 = vld [vmem:[#allocation2] sm:$0xff]
        %v2496 = vld [vmem:[#allocation2 + $0x8] sm:$0xff]
        %v2497 = vld [vmem:[#allocation2 + $0x10] sm:$0xff]
        %v2498 = vld [vmem:[#allocation2 + $0x18] sm:$0xff]
        %v2499 = vld [vmem:[#allocation2 + $0x20] sm:$0xff]
        %v2500 = vld [vmem:[#allocation2 + $0x28] sm:$0xff]
        %v2501 = vld [vmem:[#allocation2 + $0x30] sm:$0xff]
        %v2502 = vld [vmem:[#allocation2 + $0x38] sm:$0xff]
        %2511 = vrot.lane.b32.xlu0 %v2495, 88
        %v2512 = vpop.permute.xlu0 %2511
        %2513 = vrot.lane.b32.xlu0 %v2496, 88
        %v2514 = vpop.permute.xlu0 %2513
        %2515 = vrot.lane.b32.xlu0 %v2497, 88
        %v2516 = vpop.permute.xlu0 %2515
        %2517 = vrot.lane.b32.xlu0 %v2498, 88
        %v2518 = vpop.permute.xlu0 %2517
        %2519 = vrot.lane.b32.xlu0 %v2499, 88
        %v2520 = vpop.permute.xlu0 %2519
        %2521 = vrot.lane.b32.xlu0 %v2500, 88
        %v2522 = vpop.permute.xlu0 %2521
        %2523 = vrot.lane.b32.xlu0 %v2501, 88
        %v2524 = vpop.permute.xlu0 %2523
        %2525 = vrot.lane.b32.xlu0 %v2502, 88
        %v2526 = vpop.permute.xlu0 %2525
        %2535 = vst.msk [vmem:[#allocation3 + $0x140] sm:$0xff] %vm689, %v2512
        %2536 = vst.msk [vmem:[#allocation3 + $0x148] sm:$0xff] %vm689, %v2514
        %2537 = vst.msk [vmem:[#allocation3 + $0x150] sm:$0xff] %vm689, %v2516
        %2538 = vst.msk [vmem:[#allocation3 + $0x158] sm:$0xff] %vm689, %v2518
        %2539 = vst.msk [vmem:[#allocation3 + $0x160] sm:$0xff] %vm689, %v2520
        %2540 = vst.msk [vmem:[#allocation3 + $0x168] sm:$0xff] %vm689, %v2522
        %2541 = vst.msk [vmem:[#allocation3 + $0x170] sm:$0xff] %vm689, %v2524
        %2542 = vst.msk [vmem:[#allocation3 + $0x178] sm:$0xff] %vm689, %v2526
        %v2543 = vld [vmem:[#allocation2] sm:$0xff]
        %v2544 = vld [vmem:[#allocation2 + $0x8] sm:$0xff]
        %v2545 = vld [vmem:[#allocation2 + $0x10] sm:$0xff]
        %v2546 = vld [vmem:[#allocation2 + $0x18] sm:$0xff]
        %v2547 = vld [vmem:[#allocation2 + $0x20] sm:$0xff]
        %v2548 = vld [vmem:[#allocation2 + $0x28] sm:$0xff]
        %v2549 = vld [vmem:[#allocation2 + $0x30] sm:$0xff]
        %v2550 = vld [vmem:[#allocation2 + $0x38] sm:$0xff]
        %2559 = vrot.lane.b32.xlu0 %v2543, 80
        %v2560 = vpop.permute.xlu0 %2559
        %2561 = vrot.lane.b32.xlu0 %v2544, 80
        %v2562 = vpop.permute.xlu0 %2561
        %2563 = vrot.lane.b32.xlu0 %v2545, 80
        %v2564 = vpop.permute.xlu0 %2563
        %2565 = vrot.lane.b32.xlu0 %v2546, 80
        %v2566 = vpop.permute.xlu0 %2565
        %2567 = vrot.lane.b32.xlu0 %v2547, 80
        %v2568 = vpop.permute.xlu0 %2567
        %2569 = vrot.lane.b32.xlu0 %v2548, 80
        %v2570 = vpop.permute.xlu0 %2569
        %2571 = vrot.lane.b32.xlu0 %v2549, 80
        %v2572 = vpop.permute.xlu0 %2571
        %2573 = vrot.lane.b32.xlu0 %v2550, 80
        %v2574 = vpop.permute.xlu0 %2573
        %2583 = vst.msk [vmem:[#allocation3 + $0x180] sm:$0xff] %vm689, %v2560
        %2584 = vst.msk [vmem:[#allocation3 + $0x188] sm:$0xff] %vm689, %v2562
        %2585 = vst.msk [vmem:[#allocation3 + $0x190] sm:$0xff] %vm689, %v2564
        %2586 = vst.msk [vmem:[#allocation3 + $0x198] sm:$0xff] %vm689, %v2566
        %2587 = vst.msk [vmem:[#allocation3 + $0x1a0] sm:$0xff] %vm689, %v2568
        %2588 = vst.msk [vmem:[#allocation3 + $0x1a8] sm:$0xff] %vm689, %v2570
        %2589 = vst.msk [vmem:[#allocation3 + $0x1b0] sm:$0xff] %vm689, %v2572
        %2590 = vst.msk [vmem:[#allocation3 + $0x1b8] sm:$0xff] %vm689, %v2574
        %v2591 = vld [vmem:[#allocation2] sm:$0xff]
        %v2592 = vld [vmem:[#allocation2 + $0x8] sm:$0xff]
        %v2593 = vld [vmem:[#allocation2 + $0x10] sm:$0xff]
        %v2594 = vld [vmem:[#allocation2 + $0x18] sm:$0xff]
        %v2595 = vld [vmem:[#allocation2 + $0x20] sm:$0xff]
        %v2596 = vld [vmem:[#allocation2 + $0x28] sm:$0xff]
        %v2597 = vld [vmem:[#allocation2 + $0x30] sm:$0xff]
        %v2598 = vld [vmem:[#allocation2 + $0x38] sm:$0xff]
        %2607 = vrot.lane.b32.xlu0 %v2591, 72
        %v2608 = vpop.permute.xlu0 %2607
        %2609 = vrot.lane.b32.xlu0 %v2592, 72
        %v2610 = vpop.permute.xlu0 %2609
        %2611 = vrot.lane.b32.xlu0 %v2593, 72
        %v2612 = vpop.permute.xlu0 %2611
        %2613 = vrot.lane.b32.xlu0 %v2594, 72
        %v2614 = vpop.permute.xlu0 %2613
        %2615 = vrot.lane.b32.xlu0 %v2595, 72
        %v2616 = vpop.permute.xlu0 %2615
        %2617 = vrot.lane.b32.xlu0 %v2596, 72
        %v2618 = vpop.permute.xlu0 %2617
        %2619 = vrot.lane.b32.xlu0 %v2597, 72
        %v2620 = vpop.permute.xlu0 %2619
        %2621 = vrot.lane.b32.xlu0 %v2598, 72
        %v2622 = vpop.permute.xlu0 %2621
        %2631 = vst.msk [vmem:[#allocation3 + $0x1c0] sm:$0xff] %vm689, %v2608
        %2632 = vst.msk [vmem:[#allocation3 + $0x1c8] sm:$0xff] %vm689, %v2610
        %2633 = vst.msk [vmem:[#allocation3 + $0x1d0] sm:$0xff] %vm689, %v2612
        %2634 = vst.msk [vmem:[#allocation3 + $0x1d8] sm:$0xff] %vm689, %v2614
        %2635 = vst.msk [vmem:[#allocation3 + $0x1e0] sm:$0xff] %vm689, %v2616
        %2636 = vst.msk [vmem:[#allocation3 + $0x1e8] sm:$0xff] %vm689, %v2618
        %2637 = vst.msk [vmem:[#allocation3 + $0x1f0] sm:$0xff] %vm689, %v2620
        %2638 = vst.msk [vmem:[#allocation3 + $0x1f8] sm:$0xff] %vm689, %v2622
        %v2639 = vld [vmem:[%s5] sm:$0xff]
        %v2640 = vld [vmem:[%s5 + $0x8] sm:$0xff]
        %v2641 = vld [vmem:[%s5 + $0x10] sm:$0xff]
        %v2642 = vld [vmem:[%s5 + $0x18] sm:$0xff]
        %v2643 = vld [vmem:[%s5 + $0x20] sm:$0xff]
        %v2644 = vld [vmem:[%s5 + $0x28] sm:$0xff]
        %v2645 = vld [vmem:[%s5 + $0x30] sm:$0xff]
        %v2646 = vld [vmem:[%s5 + $0x38] sm:$0xff]
        %v2647 = vld [vmem:[%s5 + $0x40] sm:$0xff]
        %v2648 = vld [vmem:[%s5 + $0x48] sm:$0xff]
        %v2649 = vld [vmem:[%s5 + $0x50] sm:$0xff]
        %v2650 = vld [vmem:[%s5 + $0x58] sm:$0xff]
        %v2651 = vld [vmem:[%s5 + $0x60] sm:$0xff]
        %v2652 = vld [vmem:[%s5 + $0x68] sm:$0xff]
        %v2653 = vld [vmem:[%s5 + $0x70] sm:$0xff]
        %v2654 = vld [vmem:[%s5 + $0x78] sm:$0xff]
        %v2655 = vld [vmem:[%s5 + $0x80] sm:$0xff]
        %v2656 = vld [vmem:[%s5 + $0x88] sm:$0xff]
        %v2657 = vld [vmem:[%s5 + $0x90] sm:$0xff]
        %v2658 = vld [vmem:[%s5 + $0x98] sm:$0xff]
        %v2659 = vld [vmem:[%s5 + $0xa0] sm:$0xff]
        %v2660 = vld [vmem:[%s5 + $0xa8] sm:$0xff]
        %v2661 = vld [vmem:[%s5 + $0xb0] sm:$0xff]
        %v2662 = vld [vmem:[%s5 + $0xb8] sm:$0xff]
        %v2663 = vld [vmem:[%s5 + $0xc0] sm:$0xff]
        %v2664 = vld [vmem:[%s5 + $0xc8] sm:$0xff]
        %v2665 = vld [vmem:[%s5 + $0xd0] sm:$0xff]
        %v2666 = vld [vmem:[%s5 + $0xd8] sm:$0xff]
        %v2667 = vld [vmem:[%s5 + $0xe0] sm:$0xff]
        %v2668 = vld [vmem:[%s5 + $0xe8] sm:$0xff]
        %v2669 = vld [vmem:[%s5 + $0xf0] sm:$0xff]
        %v2670 = vld [vmem:[%s5 + $0xf8] sm:$0xff]
        %v2671 = vld [vmem:[%s5 + $0x100] sm:$0xff]
        %v2672 = vld [vmem:[%s5 + $0x108] sm:$0xff]
        %v2673 = vld [vmem:[%s5 + $0x110] sm:$0xff]
        %v2674 = vld [vmem:[%s5 + $0x118] sm:$0xff]
        %v2675 = vld [vmem:[%s5 + $0x120] sm:$0xff]
        %v2676 = vld [vmem:[%s5 + $0x128] sm:$0xff]
        %v2677 = vld [vmem:[%s5 + $0x130] sm:$0xff]
        %v2678 = vld [vmem:[%s5 + $0x138] sm:$0xff]
        %v2679 = vld [vmem:[%s5 + $0x140] sm:$0xff]
        %v2680 = vld [vmem:[%s5 + $0x148] sm:$0xff]
        %v2681 = vld [vmem:[%s5 + $0x150] sm:$0xff]
        %v2682 = vld [vmem:[%s5 + $0x158] sm:$0xff]
        %v2683 = vld [vmem:[%s5 + $0x160] sm:$0xff]
        %v2684 = vld [vmem:[%s5 + $0x168] sm:$0xff]
        %v2685 = vld [vmem:[%s5 + $0x170] sm:$0xff]
        %v2686 = vld [vmem:[%s5 + $0x178] sm:$0xff]
        %v2687 = vld [vmem:[%s5 + $0x180] sm:$0xff]
        %v2688 = vld [vmem:[%s5 + $0x188] sm:$0xff]
        %v2689 = vld [vmem:[%s5 + $0x190] sm:$0xff]
        %v2690 = vld [vmem:[%s5 + $0x198] sm:$0xff]
        %v2691 = vld [vmem:[%s5 + $0x1a0] sm:$0xff]
        %v2692 = vld [vmem:[%s5 + $0x1a8] sm:$0xff]
        %v2693 = vld [vmem:[%s5 + $0x1b0] sm:$0xff]
        %v2694 = vld [vmem:[%s5 + $0x1b8] sm:$0xff]
        %v2695 = vld [vmem:[%s5 + $0x1c0] sm:$0xff]
        %v2696 = vld [vmem:[%s5 + $0x1c8] sm:$0xff]
        %v2697 = vld [vmem:[%s5 + $0x1d0] sm:$0xff]
        %v2698 = vld [vmem:[%s5 + $0x1d8] sm:$0xff]
        %v2699 = vld [vmem:[%s5 + $0x1e0] sm:$0xff]
        %v2700 = vld [vmem:[%s5 + $0x1e8] sm:$0xff]
        %v2701 = vld [vmem:[%s5 + $0x1f0] sm:$0xff]
        %v2702 = vld [vmem:[%s5 + $0x1f8] sm:$0xff]
        %v2703 = vld [vmem:[%s5 + $0x200] sm:$0xff]
        %v2704 = vld [vmem:[%s5 + $0x208] sm:$0xff]
        %v2705 = vld [vmem:[%s5 + $0x210] sm:$0xff]
        %v2706 = vld [vmem:[%s5 + $0x218] sm:$0xff]
        %v2707 = vld [vmem:[%s5 + $0x220] sm:$0xff]
        %v2708 = vld [vmem:[%s5 + $0x228] sm:$0xff]
        %v2709 = vld [vmem:[%s5 + $0x230] sm:$0xff]
        %v2710 = vld [vmem:[%s5 + $0x238] sm:$0xff]
        %v2711 = vld [vmem:[%s5 + $0x240] sm:$0xff]
        %v2712 = vld [vmem:[%s5 + $0x248] sm:$0xff]
        %v2713 = vld [vmem:[%s5 + $0x250] sm:$0xff]
        %v2714 = vld [vmem:[%s5 + $0x258] sm:$0xff]
        %v2715 = vld [vmem:[%s5 + $0x260] sm:$0xff]
        %v2716 = vld [vmem:[%s5 + $0x268] sm:$0xff]
        %v2717 = vld [vmem:[%s5 + $0x270] sm:$0xff]
        %v2718 = vld [vmem:[%s5 + $0x278] sm:$0xff]
        %v2719 = vld [vmem:[%s5 + $0x280] sm:$0xff]
        %v2720 = vld [vmem:[%s5 + $0x288] sm:$0xff]
        %v2721 = vld [vmem:[%s5 + $0x290] sm:$0xff]
        %v2722 = vld [vmem:[%s5 + $0x298] sm:$0xff]
        %v2723 = vld [vmem:[%s5 + $0x2a0] sm:$0xff]
        %v2724 = vld [vmem:[%s5 + $0x2a8] sm:$0xff]
        %v2725 = vld [vmem:[%s5 + $0x2b0] sm:$0xff]
        %v2726 = vld [vmem:[%s5 + $0x2b8] sm:$0xff]
        %v2727 = vld [vmem:[%s5 + $0x2c0] sm:$0xff]
        %v2728 = vld [vmem:[%s5 + $0x2c8] sm:$0xff]
        %v2729 = vld [vmem:[%s5 + $0x2d0] sm:$0xff]
        %v2730 = vld [vmem:[%s5 + $0x2d8] sm:$0xff]
        %v2731 = vld [vmem:[%s5 + $0x2e0] sm:$0xff]
        %v2732 = vld [vmem:[%s5 + $0x2e8] sm:$0xff]
        %v2733 = vld [vmem:[%s5 + $0x2f0] sm:$0xff]
        %v2734 = vld [vmem:[%s5 + $0x2f8] sm:$0xff]
        %v2735 = vld [vmem:[%s5 + $0x300] sm:$0xff]
        %v2736 = vld [vmem:[%s5 + $0x308] sm:$0xff]
        %v2737 = vld [vmem:[%s5 + $0x310] sm:$0xff]
        %v2738 = vld [vmem:[%s5 + $0x318] sm:$0xff]
        %v2739 = vld [vmem:[%s5 + $0x320] sm:$0xff]
        %v2740 = vld [vmem:[%s5 + $0x328] sm:$0xff]
        %v2741 = vld [vmem:[%s5 + $0x330] sm:$0xff]
        %v2742 = vld [vmem:[%s5 + $0x338] sm:$0xff]
        %v2743 = vld [vmem:[%s5 + $0x340] sm:$0xff]
        %v2744 = vld [vmem:[%s5 + $0x348] sm:$0xff]
        %v2745 = vld [vmem:[%s5 + $0x350] sm:$0xff]
        %v2746 = vld [vmem:[%s5 + $0x358] sm:$0xff]
        %v2747 = vld [vmem:[%s5 + $0x360] sm:$0xff]
        %v2748 = vld [vmem:[%s5 + $0x368] sm:$0xff]
        %v2749 = vld [vmem:[%s5 + $0x370] sm:$0xff]
        %v2750 = vld [vmem:[%s5 + $0x378] sm:$0xff]
        %v2751 = vld [vmem:[%s5 + $0x380] sm:$0xff]
        %v2752 = vld [vmem:[%s5 + $0x388] sm:$0xff]
        %v2753 = vld [vmem:[%s5 + $0x390] sm:$0xff]
        %v2754 = vld [vmem:[%s5 + $0x398] sm:$0xff]
        %v2755 = vld [vmem:[%s5 + $0x3a0] sm:$0xff]
        %v2756 = vld [vmem:[%s5 + $0x3a8] sm:$0xff]
        %v2757 = vld [vmem:[%s5 + $0x3b0] sm:$0xff]
        %v2758 = vld [vmem:[%s5 + $0x3b8] sm:$0xff]
        %v2759 = vld [vmem:[%s5 + $0x3c0] sm:$0xff]
        %v2760 = vld [vmem:[%s5 + $0x3c8] sm:$0xff]
        %v2761 = vld [vmem:[%s5 + $0x3d0] sm:$0xff]
        %v2762 = vld [vmem:[%s5 + $0x3d8] sm:$0xff]
        %v2763 = vld [vmem:[%s5 + $0x3e0] sm:$0xff]
        %v2764 = vld [vmem:[%s5 + $0x3e8] sm:$0xff]
        %v2765 = vld [vmem:[%s5 + $0x3f0] sm:$0xff]
        %v2766 = vld [vmem:[%s5 + $0x3f8] sm:$0xff]
        %v2767 = vld [vmem:[%s5 + $0x400] sm:$0xff]
        %v2768 = vld [vmem:[%s5 + $0x408] sm:$0xff]
        %v2769 = vld [vmem:[%s5 + $0x410] sm:$0xff]
        %v2770 = vld [vmem:[%s5 + $0x418] sm:$0xff]
        %v2771 = vld [vmem:[%s5 + $0x420] sm:$0xff]
        %v2772 = vld [vmem:[%s5 + $0x428] sm:$0xff]
        %v2773 = vld [vmem:[%s5 + $0x430] sm:$0xff]
        %v2774 = vld [vmem:[%s5 + $0x438] sm:$0xff]
        %v2775 = vld [vmem:[%s5 + $0x440] sm:$0xff]
        %v2776 = vld [vmem:[%s5 + $0x448] sm:$0xff]
        %v2777 = vld [vmem:[%s5 + $0x450] sm:$0xff]
        %v2778 = vld [vmem:[%s5 + $0x458] sm:$0xff]
        %v2779 = vld [vmem:[%s5 + $0x460] sm:$0xff]
        %v2780 = vld [vmem:[%s5 + $0x468] sm:$0xff]
        %v2781 = vld [vmem:[%s5 + $0x470] sm:$0xff]
        %v2782 = vld [vmem:[%s5 + $0x478] sm:$0xff]
        %v2783 = vld [vmem:[%s5 + $0x480] sm:$0xff]
        %v2784 = vld [vmem:[%s5 + $0x488] sm:$0xff]
        %v2785 = vld [vmem:[%s5 + $0x490] sm:$0xff]
        %v2786 = vld [vmem:[%s5 + $0x498] sm:$0xff]
        %v2787 = vld [vmem:[%s5 + $0x4a0] sm:$0xff]
        %v2788 = vld [vmem:[%s5 + $0x4a8] sm:$0xff]
        %v2789 = vld [vmem:[%s5 + $0x4b0] sm:$0xff]
        %v2790 = vld [vmem:[%s5 + $0x4b8] sm:$0xff]
        %v2791 = vld [vmem:[%s5 + $0x4c0] sm:$0xff]
        %v2792 = vld [vmem:[%s5 + $0x4c8] sm:$0xff]
        %v2793 = vld [vmem:[%s5 + $0x4d0] sm:$0xff]
        %v2794 = vld [vmem:[%s5 + $0x4d8] sm:$0xff]
        %v2795 = vld [vmem:[%s5 + $0x4e0] sm:$0xff]
        %v2796 = vld [vmem:[%s5 + $0x4e8] sm:$0xff]
        %v2797 = vld [vmem:[%s5 + $0x4f0] sm:$0xff]
        %v2798 = vld [vmem:[%s5 + $0x4f8] sm:$0xff]
        %v2799 = vld [vmem:[%s5 + $0x500] sm:$0xff]
        %v2800 = vld [vmem:[%s5 + $0x508] sm:$0xff]
        %v2801 = vld [vmem:[%s5 + $0x510] sm:$0xff]
        %v2802 = vld [vmem:[%s5 + $0x518] sm:$0xff]
        %v2803 = vld [vmem:[%s5 + $0x520] sm:$0xff]
        %v2804 = vld [vmem:[%s5 + $0x528] sm:$0xff]
        %v2805 = vld [vmem:[%s5 + $0x530] sm:$0xff]
        %v2806 = vld [vmem:[%s5 + $0x538] sm:$0xff]
        %v2807 = vld [vmem:[%s5 + $0x540] sm:$0xff]
        %v2808 = vld [vmem:[%s5 + $0x548] sm:$0xff]
        %v2809 = vld [vmem:[%s5 + $0x550] sm:$0xff]
        %v2810 = vld [vmem:[%s5 + $0x558] sm:$0xff]
        %v2811 = vld [vmem:[%s5 + $0x560] sm:$0xff]
        %v2812 = vld [vmem:[%s5 + $0x568] sm:$0xff]
        %v2813 = vld [vmem:[%s5 + $0x570] sm:$0xff]
        %v2814 = vld [vmem:[%s5 + $0x578] sm:$0xff]
        %v2815 = vld [vmem:[%s5 + $0x580] sm:$0xff]
        %v2816 = vld [vmem:[%s5 + $0x588] sm:$0xff]
        %v2817 = vld [vmem:[%s5 + $0x590] sm:$0xff]
        %v2818 = vld [vmem:[%s5 + $0x598] sm:$0xff]
        %v2819 = vld [vmem:[%s5 + $0x5a0] sm:$0xff]
        %v2820 = vld [vmem:[%s5 + $0x5a8] sm:$0xff]
        %v2821 = vld [vmem:[%s5 + $0x5b0] sm:$0xff]
        %v2822 = vld [vmem:[%s5 + $0x5b8] sm:$0xff]
        %v2823 = vld [vmem:[%s5 + $0x5c0] sm:$0xff]
        %v2824 = vld [vmem:[%s5 + $0x5c8] sm:$0xff]
        %v2825 = vld [vmem:[%s5 + $0x5d0] sm:$0xff]
        %v2826 = vld [vmem:[%s5 + $0x5d8] sm:$0xff]
        %v2827 = vld [vmem:[%s5 + $0x5e0] sm:$0xff]
        %v2828 = vld [vmem:[%s5 + $0x5e8] sm:$0xff]
        %v2829 = vld [vmem:[%s5 + $0x5f0] sm:$0xff]
        %v2830 = vld [vmem:[%s5 + $0x5f8] sm:$0xff]
        %v2831 = vld [vmem:[%s5 + $0x600] sm:$0xff]
        %v2832 = vld [vmem:[%s5 + $0x608] sm:$0xff]
        %v2833 = vld [vmem:[%s5 + $0x610] sm:$0xff]
        %v2834 = vld [vmem:[%s5 + $0x618] sm:$0xff]
        %v2835 = vld [vmem:[%s5 + $0x620] sm:$0xff]
        %v2836 = vld [vmem:[%s5 + $0x628] sm:$0xff]
        %v2837 = vld [vmem:[%s5 + $0x630] sm:$0xff]
        %v2838 = vld [vmem:[%s5 + $0x638] sm:$0xff]
        %v2839 = vld [vmem:[%s5 + $0x640] sm:$0xff]
        %v2840 = vld [vmem:[%s5 + $0x648] sm:$0xff]
        %v2841 = vld [vmem:[%s5 + $0x650] sm:$0xff]
        %v2842 = vld [vmem:[%s5 + $0x658] sm:$0xff]
        %v2843 = vld [vmem:[%s5 + $0x660] sm:$0xff]
        %v2844 = vld [vmem:[%s5 + $0x668] sm:$0xff]
        %v2845 = vld [vmem:[%s5 + $0x670] sm:$0xff]
        %v2846 = vld [vmem:[%s5 + $0x678] sm:$0xff]
        %v2847 = vld [vmem:[%s5 + $0x680] sm:$0xff]
        %v2848 = vld [vmem:[%s5 + $0x688] sm:$0xff]
        %v2849 = vld [vmem:[%s5 + $0x690] sm:$0xff]
        %v2850 = vld [vmem:[%s5 + $0x698] sm:$0xff]
        %v2851 = vld [vmem:[%s5 + $0x6a0] sm:$0xff]
        %v2852 = vld [vmem:[%s5 + $0x6a8] sm:$0xff]
        %v2853 = vld [vmem:[%s5 + $0x6b0] sm:$0xff]
        %v2854 = vld [vmem:[%s5 + $0x6b8] sm:$0xff]
        %v2855 = vld [vmem:[%s5 + $0x6c0] sm:$0xff]
        %v2856 = vld [vmem:[%s5 + $0x6c8] sm:$0xff]
        %v2857 = vld [vmem:[%s5 + $0x6d0] sm:$0xff]
        %v2858 = vld [vmem:[%s5 + $0x6d8] sm:$0xff]
        %v2859 = vld [vmem:[%s5 + $0x6e0] sm:$0xff]
        %v2860 = vld [vmem:[%s5 + $0x6e8] sm:$0xff]
        %v2861 = vld [vmem:[%s5 + $0x6f0] sm:$0xff]
        %v2862 = vld [vmem:[%s5 + $0x6f8] sm:$0xff]
        %v2863 = vld [vmem:[%s5 + $0x700] sm:$0xff]
        %v2864 = vld [vmem:[%s5 + $0x708] sm:$0xff]
        %v2865 = vld [vmem:[%s5 + $0x710] sm:$0xff]
        %v2866 = vld [vmem:[%s5 + $0x718] sm:$0xff]
        %v2867 = vld [vmem:[%s5 + $0x720] sm:$0xff]
        %v2868 = vld [vmem:[%s5 + $0x728] sm:$0xff]
        %v2869 = vld [vmem:[%s5 + $0x730] sm:$0xff]
        %v2870 = vld [vmem:[%s5 + $0x738] sm:$0xff]
        %v2871 = vld [vmem:[%s5 + $0x740] sm:$0xff]
        %v2872 = vld [vmem:[%s5 + $0x748] sm:$0xff]
        %v2873 = vld [vmem:[%s5 + $0x750] sm:$0xff]
        %v2874 = vld [vmem:[%s5 + $0x758] sm:$0xff]
        %v2875 = vld [vmem:[%s5 + $0x760] sm:$0xff]
        %v2876 = vld [vmem:[%s5 + $0x768] sm:$0xff]
        %v2877 = vld [vmem:[%s5 + $0x770] sm:$0xff]
        %v2878 = vld [vmem:[%s5 + $0x778] sm:$0xff]
        %v2879 = vld [vmem:[%s5 + $0x780] sm:$0xff]
        %v2880 = vld [vmem:[%s5 + $0x788] sm:$0xff]
        %v2881 = vld [vmem:[%s5 + $0x790] sm:$0xff]
        %v2882 = vld [vmem:[%s5 + $0x798] sm:$0xff]
        %v2883 = vld [vmem:[%s5 + $0x7a0] sm:$0xff]
        %v2884 = vld [vmem:[%s5 + $0x7a8] sm:$0xff]
        %v2885 = vld [vmem:[%s5 + $0x7b0] sm:$0xff]
        %v2886 = vld [vmem:[%s5 + $0x7b8] sm:$0xff]
        %v2887 = vld [vmem:[%s5 + $0x7c0] sm:$0xff]
        %v2888 = vld [vmem:[%s5 + $0x7c8] sm:$0xff]
        %v2889 = vld [vmem:[%s5 + $0x7d0] sm:$0xff]
        %v2890 = vld [vmem:[%s5 + $0x7d8] sm:$0xff]
        %v2891 = vld [vmem:[%s5 + $0x7e0] sm:$0xff]
        %v2892 = vld [vmem:[%s5 + $0x7e8] sm:$0xff]
        %v2893 = vld [vmem:[%s5 + $0x7f0] sm:$0xff]
        %v2894 = vld [vmem:[%s5 + $0x7f8] sm:$0xff]
        %v2895 = vld [vmem:[#allocation3] sm:$0xff]
        %v2896 = vld [vmem:[#allocation3 + $0x8] sm:$0xff]
        %v2897 = vld [vmem:[#allocation3 + $0x10] sm:$0xff]
        %v2898 = vld [vmem:[#allocation3 + $0x18] sm:$0xff]
        %v2899 = vld [vmem:[#allocation3 + $0x20] sm:$0xff]
        %v2900 = vld [vmem:[#allocation3 + $0x28] sm:$0xff]
        %v2901 = vld [vmem:[#allocation3 + $0x30] sm:$0xff]
        %v2902 = vld [vmem:[#allocation3 + $0x38] sm:$0xff]
        %v2903 = vld [vmem:[#allocation3 + $0x40] sm:$0xff]
        %v2904 = vld [vmem:[#allocation3 + $0x48] sm:$0xff]
        %v2905 = vld [vmem:[#allocation3 + $0x50] sm:$0xff]
        %v2906 = vld [vmem:[#allocation3 + $0x58] sm:$0xff]
        %v2907 = vld [vmem:[#allocation3 + $0x60] sm:$0xff]
        %v2908 = vld [vmem:[#allocation3 + $0x68] sm:$0xff]
        %v2909 = vld [vmem:[#allocation3 + $0x70] sm:$0xff]
        %v2910 = vld [vmem:[#allocation3 + $0x78] sm:$0xff]
        %v2911 = vld [vmem:[#allocation3 + $0x80] sm:$0xff]
        %v2912 = vld [vmem:[#allocation3 + $0x88] sm:$0xff]
        %v2913 = vld [vmem:[#allocation3 + $0x90] sm:$0xff]
        %v2914 = vld [vmem:[#allocation3 + $0x98] sm:$0xff]
        %v2915 = vld [vmem:[#allocation3 + $0xa0] sm:$0xff]
        %v2916 = vld [vmem:[#allocation3 + $0xa8] sm:$0xff]
        %v2917 = vld [vmem:[#allocation3 + $0xb0] sm:$0xff]
        %v2918 = vld [vmem:[#allocation3 + $0xb8] sm:$0xff]
        %v2919 = vld [vmem:[#allocation3 + $0xc0] sm:$0xff]
        %v2920 = vld [vmem:[#allocation3 + $0xc8] sm:$0xff]
        %v2921 = vld [vmem:[#allocation3 + $0xd0] sm:$0xff]
        %v2922 = vld [vmem:[#allocation3 + $0xd8] sm:$0xff]
        %v2923 = vld [vmem:[#allocation3 + $0xe0] sm:$0xff]
        %v2924 = vld [vmem:[#allocation3 + $0xe8] sm:$0xff]
        %v2925 = vld [vmem:[#allocation3 + $0xf0] sm:$0xff]
        %v2926 = vld [vmem:[#allocation3 + $0xf8] sm:$0xff]
        %v2927 = vld [vmem:[#allocation3 + $0x100] sm:$0xff]
        %v2928 = vld [vmem:[#allocation3 + $0x108] sm:$0xff]
        %v2929 = vld [vmem:[#allocation3 + $0x110] sm:$0xff]
        %v2930 = vld [vmem:[#allocation3 + $0x118] sm:$0xff]
        %v2931 = vld [vmem:[#allocation3 + $0x120] sm:$0xff]
        %v2932 = vld [vmem:[#allocation3 + $0x128] sm:$0xff]
        %v2933 = vld [vmem:[#allocation3 + $0x130] sm:$0xff]
        %v2934 = vld [vmem:[#allocation3 + $0x138] sm:$0xff]
        %v2935 = vld [vmem:[#allocation3 + $0x140] sm:$0xff]
        %v2936 = vld [vmem:[#allocation3 + $0x148] sm:$0xff]
        %v2937 = vld [vmem:[#allocation3 + $0x150] sm:$0xff]
        %v2938 = vld [vmem:[#allocation3 + $0x158] sm:$0xff]
        %v2939 = vld [vmem:[#allocation3 + $0x160] sm:$0xff]
        %v2940 = vld [vmem:[#allocation3 + $0x168] sm:$0xff]
        %v2941 = vld [vmem:[#allocation3 + $0x170] sm:$0xff]
        %v2942 = vld [vmem:[#allocation3 + $0x178] sm:$0xff]
        %v2943 = vld [vmem:[#allocation3 + $0x180] sm:$0xff]
        %v2944 = vld [vmem:[#allocation3 + $0x188] sm:$0xff]
        %v2945 = vld [vmem:[#allocation3 + $0x190] sm:$0xff]
        %v2946 = vld [vmem:[#allocation3 + $0x198] sm:$0xff]
        %v2947 = vld [vmem:[#allocation3 + $0x1a0] sm:$0xff]
        %v2948 = vld [vmem:[#allocation3 + $0x1a8] sm:$0xff]
        %v2949 = vld [vmem:[#allocation3 + $0x1b0] sm:$0xff]
        %v2950 = vld [vmem:[#allocation3 + $0x1b8] sm:$0xff]
        %v2951 = vld [vmem:[#allocation3 + $0x1c0] sm:$0xff]
        %v2952 = vld [vmem:[#allocation3 + $0x1c8] sm:$0xff]
        %v2953 = vld [vmem:[#allocation3 + $0x1d0] sm:$0xff]
        %v2954 = vld [vmem:[#allocation3 + $0x1d8] sm:$0xff]
        %v2955 = vld [vmem:[#allocation3 + $0x1e0] sm:$0xff]
        %v2956 = vld [vmem:[#allocation3 + $0x1e8] sm:$0xff]
        %v2957 = vld [vmem:[#allocation3 + $0x1f0] sm:$0xff]
        %v2958 = vld [vmem:[#allocation3 + $0x1f8] sm:$0xff]
        %2959 = vmatpush.msra.mxu0 %v2910
        %2960 = vmatpush.msra.mxu0 %v2909
        %2961 = vmatpush.msra.mxu0 %v2908
        %2962 = vmatpush.msra.mxu0 %v2907
        %2963 = vmatpush.msra.mxu0 %v2906
        %2964 = vmatpush.msra.mxu0 %v2905
        %2965 = vmatpush.msra.mxu0 %v2904
        %2966 = vmatpush.msra.mxu0 %v2903
        %2967 = vmatpush.msra.mxu0 %v2902
        %2968 = vmatpush.msra.mxu0 %v2901
        %2969 = vmatpush.msra.mxu0 %v2900
        %2970 = vmatpush.msra.mxu0 %v2899
        %2971 = vmatpush.msra.mxu0 %v2898
        %2972 = vmatpush.msra.mxu0 %v2897
        %2973 = vmatpush.msra.mxu0 %v2896
        %2974 = vmatpush.msra.mxu0 %v2895
        %2975 = vmatmul.f32.gmra.mxu0 %v2639
        %v2976 = vpop.f32.mrf.mxu0
        %v2977 = vadd.f32 0.0, %v2976
        %2978 = vmatmul.f32.gmra.mxu0 %v2643
        %v2979 = vpop.f32.mrf.mxu0
        %v2980 = vadd.f32 0.0, %v2979
        %2981 = vmatmul.f32.gmra.mxu0 %v2647
        %v2982 = vpop.f32.mrf.mxu0
        %v2983 = vadd.f32 0.0, %v2982
        %2984 = vmatmul.f32.gmra.mxu0 %v2651
        %v2985 = vpop.f32.mrf.mxu0
        %v2986 = vadd.f32 0.0, %v2985
        %2987 = vmatmul.f32.gmra.mxu0 %v2655
        %v2988 = vpop.f32.mrf.mxu0
        %v2989 = vadd.f32 0.0, %v2988
        %2990 = vmatmul.f32.gmra.mxu0 %v2659
        %v2991 = vpop.f32.mrf.mxu0
        %v2992 = vadd.f32 0.0, %v2991
        %2993 = vmatmul.f32.gmra.mxu0 %v2663
        %v2994 = vpop.f32.mrf.mxu0
        %v2995 = vadd.f32 0.0, %v2994
        %2996 = vmatmul.f32.gmra.mxu0 %v2667
        %v2997 = vpop.f32.mrf.mxu0
        %v2998 = vadd.f32 0.0, %v2997
        %2999 = vmatmul.f32.gmra.mxu0 %v2671
        %v3000 = vpop.f32.mrf.mxu0
        %v3001 = vadd.f32 0.0, %v3000
        %3002 = vmatmul.f32.gmra.mxu0 %v2675
        %v3003 = vpop.f32.mrf.mxu0
        %v3004 = vadd.f32 0.0, %v3003
        %3005 = vmatmul.f32.gmra.mxu0 %v2679
        %v3006 = vpop.f32.mrf.mxu0
        %v3007 = vadd.f32 0.0, %v3006
        %3008 = vmatmul.f32.gmra.mxu0 %v2683
        %v3009 = vpop.f32.mrf.mxu0
        %v3010 = vadd.f32 0.0, %v3009
        %3011 = vmatmul.f32.gmra.mxu0 %v2687
        %v3012 = vpop.f32.mrf.mxu0
        %v3013 = vadd.f32 0.0, %v3012
        %3014 = vmatmul.f32.gmra.mxu0 %v2691
        %v3015 = vpop.f32.mrf.mxu0
        %v3016 = vadd.f32 0.0, %v3015
        %3017 = vmatmul.f32.gmra.mxu0 %v2695
        %v3018 = vpop.f32.mrf.mxu0
        %v3019 = vadd.f32 0.0, %v3018
        %3020 = vmatmul.f32.gmra.mxu0 %v2699
        %v3021 = vpop.f32.mrf.mxu0
        %v3022 = vadd.f32 0.0, %v3021
        %3023 = vmatmul.f32.gmra.mxu0 %v2703
        %v3024 = vpop.f32.mrf.mxu0
        %v3025 = vadd.f32 0.0, %v3024
        %3026 = vmatmul.f32.gmra.mxu0 %v2707
        %v3027 = vpop.f32.mrf.mxu0
        %v3028 = vadd.f32 0.0, %v3027
        %3029 = vmatmul.f32.gmra.mxu0 %v2711
        %v3030 = vpop.f32.mrf.mxu0
        %v3031 = vadd.f32 0.0, %v3030
        %3032 = vmatmul.f32.gmra.mxu0 %v2715
        %v3033 = vpop.f32.mrf.mxu0
        %v3034 = vadd.f32 0.0, %v3033
        %3035 = vmatmul.f32.gmra.mxu0 %v2719
        %v3036 = vpop.f32.mrf.mxu0
        %v3037 = vadd.f32 0.0, %v3036
        %3038 = vmatmul.f32.gmra.mxu0 %v2723
        %v3039 = vpop.f32.mrf.mxu0
        %v3040 = vadd.f32 0.0, %v3039
        %3041 = vmatmul.f32.gmra.mxu0 %v2727
        %v3042 = vpop.f32.mrf.mxu0
        %v3043 = vadd.f32 0.0, %v3042
        %3044 = vmatmul.f32.gmra.mxu0 %v2731
        %v3045 = vpop.f32.mrf.mxu0
        %v3046 = vadd.f32 0.0, %v3045
        %3047 = vmatmul.f32.gmra.mxu0 %v2735
        %v3048 = vpop.f32.mrf.mxu0
        %v3049 = vadd.f32 0.0, %v3048
        %3050 = vmatmul.f32.gmra.mxu0 %v2739
        %v3051 = vpop.f32.mrf.mxu0
        %v3052 = vadd.f32 0.0, %v3051
        %3053 = vmatmul.f32.gmra.mxu0 %v2743
        %v3054 = vpop.f32.mrf.mxu0
        %v3055 = vadd.f32 0.0, %v3054
        %3056 = vmatmul.f32.gmra.mxu0 %v2747
        %v3057 = vpop.f32.mrf.mxu0
        %v3058 = vadd.f32 0.0, %v3057
        %3059 = vmatmul.f32.gmra.mxu0 %v2751
        %v3060 = vpop.f32.mrf.mxu0
        %v3061 = vadd.f32 0.0, %v3060
        %3062 = vmatmul.f32.gmra.mxu0 %v2755
        %v3063 = vpop.f32.mrf.mxu0
        %v3064 = vadd.f32 0.0, %v3063
        %3065 = vmatmul.f32.gmra.mxu0 %v2759
        %v3066 = vpop.f32.mrf.mxu0
        %v3067 = vadd.f32 0.0, %v3066
        %3068 = vmatmul.f32.gmra.mxu0 %v2763
        %v3069 = vpop.f32.mrf.mxu0
        %v3070 = vadd.f32 0.0, %v3069
        %3071 = vmatmul.f32.gmra.mxu0 %v2767
        %v3072 = vpop.f32.mrf.mxu0
        %v3073 = vadd.f32 0.0, %v3072
        %3074 = vmatmul.f32.gmra.mxu0 %v2771
        %v3075 = vpop.f32.mrf.mxu0
        %v3076 = vadd.f32 0.0, %v3075
        %3077 = vmatmul.f32.gmra.mxu0 %v2775
        %v3078 = vpop.f32.mrf.mxu0
        %v3079 = vadd.f32 0.0, %v3078
        %3080 = vmatmul.f32.gmra.mxu0 %v2779
        %v3081 = vpop.f32.mrf.mxu0
        %v3082 = vadd.f32 0.0, %v3081
        %3083 = vmatmul.f32.gmra.mxu0 %v2783
        %v3084 = vpop.f32.mrf.mxu0
        %v3085 = vadd.f32 0.0, %v3084
        %3086 = vmatmul.f32.gmra.mxu0 %v2787
        %v3087 = vpop.f32.mrf.mxu0
        %v3088 = vadd.f32 0.0, %v3087
        %3089 = vmatmul.f32.gmra.mxu0 %v2791
        %v3090 = vpop.f32.mrf.mxu0
        %v3091 = vadd.f32 0.0, %v3090
        %3092 = vmatmul.f32.gmra.mxu0 %v2795
        %v3093 = vpop.f32.mrf.mxu0
        %v3094 = vadd.f32 0.0, %v3093
        %3095 = vmatmul.f32.gmra.mxu0 %v2799
        %v3096 = vpop.f32.mrf.mxu0
        %v3097 = vadd.f32 0.0, %v3096
        %3098 = vmatmul.f32.gmra.mxu0 %v2803
        %v3099 = vpop.f32.mrf.mxu0
        %v3100 = vadd.f32 0.0, %v3099
        %3101 = vmatmul.f32.gmra.mxu0 %v2807
        %v3102 = vpop.f32.mrf.mxu0
        %v3103 = vadd.f32 0.0, %v3102
        %3104 = vmatmul.f32.gmra.mxu0 %v2811
        %v3105 = vpop.f32.mrf.mxu0
        %v3106 = vadd.f32 0.0, %v3105
        %3107 = vmatmul.f32.gmra.mxu0 %v2815
        %v3108 = vpop.f32.mrf.mxu0
        %v3109 = vadd.f32 0.0, %v3108
        %3110 = vmatmul.f32.gmra.mxu0 %v2819
        %v3111 = vpop.f32.mrf.mxu0
        %v3112 = vadd.f32 0.0, %v3111
        %3113 = vmatmul.f32.gmra.mxu0 %v2823
        %v3114 = vpop.f32.mrf.mxu0
        %v3115 = vadd.f32 0.0, %v3114
        %3116 = vmatmul.f32.gmra.mxu0 %v2827
        %v3117 = vpop.f32.mrf.mxu0
        %v3118 = vadd.f32 0.0, %v3117
        %3119 = vmatmul.f32.gmra.mxu0 %v2831
        %v3120 = vpop.f32.mrf.mxu0
        %v3121 = vadd.f32 0.0, %v3120
        %3122 = vmatmul.f32.gmra.mxu0 %v2835
        %v3123 = vpop.f32.mrf.mxu0
        %v3124 = vadd.f32 0.0, %v3123
        %3125 = vmatmul.f32.gmra.mxu0 %v2839
        %v3126 = vpop.f32.mrf.mxu0
        %v3127 = vadd.f32 0.0, %v3126
        %3128 = vmatmul.f32.gmra.mxu0 %v2843
        %v3129 = vpop.f32.mrf.mxu0
        %v3130 = vadd.f32 0.0, %v3129
        %3131 = vmatmul.f32.gmra.mxu0 %v2847
        %v3132 = vpop.f32.mrf.mxu0
        %v3133 = vadd.f32 0.0, %v3132
        %3134 = vmatmul.f32.gmra.mxu0 %v2851
        %v3135 = vpop.f32.mrf.mxu0
        %v3136 = vadd.f32 0.0, %v3135
        %3137 = vmatmul.f32.gmra.mxu0 %v2855
        %v3138 = vpop.f32.mrf.mxu0
        %v3139 = vadd.f32 0.0, %v3138
        %3140 = vmatmul.f32.gmra.mxu0 %v2859
        %v3141 = vpop.f32.mrf.mxu0
        %v3142 = vadd.f32 0.0, %v3141
        %3143 = vmatmul.f32.gmra.mxu0 %v2863
        %v3144 = vpop.f32.mrf.mxu0
        %v3145 = vadd.f32 0.0, %v3144
        %3146 = vmatmul.f32.gmra.mxu0 %v2867
        %v3147 = vpop.f32.mrf.mxu0
        %v3148 = vadd.f32 0.0, %v3147
        %3149 = vmatmul.f32.gmra.mxu0 %v2871
        %v3150 = vpop.f32.mrf.mxu0
        %v3151 = vadd.f32 0.0, %v3150
        %3152 = vmatmul.f32.gmra.mxu0 %v2875
        %v3153 = vpop.f32.mrf.mxu0
        %v3154 = vadd.f32 0.0, %v3153
        %3155 = vmatmul.f32.gmra.mxu0 %v2879
        %v3156 = vpop.f32.mrf.mxu0
        %v3157 = vadd.f32 0.0, %v3156
        %3158 = vmatmul.f32.gmra.mxu0 %v2883
        %v3159 = vpop.f32.mrf.mxu0
        %v3160 = vadd.f32 0.0, %v3159
        %3161 = vmatmul.f32.gmra.mxu0 %v2887
        %v3162 = vpop.f32.mrf.mxu0
        %v3163 = vadd.f32 0.0, %v3162
        %3164 = vmatmul.f32.gmra.mxu0 %v2891
        %v3165 = vpop.f32.mrf.mxu0
        %v3166 = vadd.f32 0.0, %v3165
        %3167 = vdwg.mxu0
        %3168 = vmatpush.msra.mxu0 %v2926
        %3169 = vmatpush.msra.mxu0 %v2925
        %3170 = vmatpush.msra.mxu0 %v2924
        %3171 = vmatpush.msra.mxu0 %v2923
        %3172 = vmatpush.msra.mxu0 %v2922
        %3173 = vmatpush.msra.mxu0 %v2921
        %3174 = vmatpush.msra.mxu0 %v2920
        %3175 = vmatpush.msra.mxu0 %v2919
        %3176 = vmatpush.msra.mxu0 %v2918
        %3177 = vmatpush.msra.mxu0 %v2917
        %3178 = vmatpush.msra.mxu0 %v2916
        %3179 = vmatpush.msra.mxu0 %v2915
        %3180 = vmatpush.msra.mxu0 %v2914
        %3181 = vmatpush.msra.mxu0 %v2913
        %3182 = vmatpush.msra.mxu0 %v2912
        %3183 = vmatpush.msra.mxu0 %v2911
        %3184 = vmatmul.f32.gmra.mxu0 %v2640
        %v3185 = vpop.f32.mrf.mxu0
        %v3186 = vadd.f32 %v2977, %v3185
        %3187 = vmatmul.f32.gmra.mxu0 %v2644
        %v3188 = vpop.f32.mrf.mxu0
        %v3189 = vadd.f32 %v2980, %v3188
        %3190 = vmatmul.f32.gmra.mxu0 %v2648
        %v3191 = vpop.f32.mrf.mxu0
        %v3192 = vadd.f32 %v2983, %v3191
        %3193 = vmatmul.f32.gmra.mxu0 %v2652
        %v3194 = vpop.f32.mrf.mxu0
        %v3195 = vadd.f32 %v2986, %v3194
        %3196 = vmatmul.f32.gmra.mxu0 %v2656
        %v3197 = vpop.f32.mrf.mxu0
        %v3198 = vadd.f32 %v2989, %v3197
        %3199 = vmatmul.f32.gmra.mxu0 %v2660
        %v3200 = vpop.f32.mrf.mxu0
        %v3201 = vadd.f32 %v2992, %v3200
        %3202 = vmatmul.f32.gmra.mxu0 %v2664
        %v3203 = vpop.f32.mrf.mxu0
        %v3204 = vadd.f32 %v2995, %v3203
        %3205 = vmatmul.f32.gmra.mxu0 %v2668
        %v3206 = vpop.f32.mrf.mxu0
        %v3207 = vadd.f32 %v2998, %v3206
        %3208 = vmatmul.f32.gmra.mxu0 %v2672
        %v3209 = vpop.f32.mrf.mxu0
        %v3210 = vadd.f32 %v3001, %v3209
        %3211 = vmatmul.f32.gmra.mxu0 %v2676
        %v3212 = vpop.f32.mrf.mxu0
        %v3213 = vadd.f32 %v3004, %v3212
        %3214 = vmatmul.f32.gmra.mxu0 %v2680
        %v3215 = vpop.f32.mrf.mxu0
        %v3216 = vadd.f32 %v3007, %v3215
        %3217 = vmatmul.f32.gmra.mxu0 %v2684
        %v3218 = vpop.f32.mrf.mxu0
        %v3219 = vadd.f32 %v3010, %v3218
        %3220 = vmatmul.f32.gmra.mxu0 %v2688
        %v3221 = vpop.f32.mrf.mxu0
        %v3222 = vadd.f32 %v3013, %v3221
        %3223 = vmatmul.f32.gmra.mxu0 %v2692
        %v3224 = vpop.f32.mrf.mxu0
        %v3225 = vadd.f32 %v3016, %v3224
        %3226 = vmatmul.f32.gmra.mxu0 %v2696
        %v3227 = vpop.f32.mrf.mxu0
        %v3228 = vadd.f32 %v3019, %v3227
        %3229 = vmatmul.f32.gmra.mxu0 %v2700
        %v3230 = vpop.f32.mrf.mxu0
        %v3231 = vadd.f32 %v3022, %v3230
        %3232 = vmatmul.f32.gmra.mxu0 %v2704
        %v3233 = vpop.f32.mrf.mxu0
        %v3234 = vadd.f32 %v3025, %v3233
        %3235 = vmatmul.f32.gmra.mxu0 %v2708
        %v3236 = vpop.f32.mrf.mxu0
        %v3237 = vadd.f32 %v3028, %v3236
        %3238 = vmatmul.f32.gmra.mxu0 %v2712
        %v3239 = vpop.f32.mrf.mxu0
        %v3240 = vadd.f32 %v3031, %v3239
        %3241 = vmatmul.f32.gmra.mxu0 %v2716
        %v3242 = vpop.f32.mrf.mxu0
        %v3243 = vadd.f32 %v3034, %v3242
        %3244 = vmatmul.f32.gmra.mxu0 %v2720
        %v3245 = vpop.f32.mrf.mxu0
        %v3246 = vadd.f32 %v3037, %v3245
        %3247 = vmatmul.f32.gmra.mxu0 %v2724
        %v3248 = vpop.f32.mrf.mxu0
        %v3249 = vadd.f32 %v3040, %v3248
        %3250 = vmatmul.f32.gmra.mxu0 %v2728
        %v3251 = vpop.f32.mrf.mxu0
        %v3252 = vadd.f32 %v3043, %v3251
        %3253 = vmatmul.f32.gmra.mxu0 %v2732
        %v3254 = vpop.f32.mrf.mxu0
        %v3255 = vadd.f32 %v3046, %v3254
        %3256 = vmatmul.f32.gmra.mxu0 %v2736
        %v3257 = vpop.f32.mrf.mxu0
        %v3258 = vadd.f32 %v3049, %v3257
        %3259 = vmatmul.f32.gmra.mxu0 %v2740
        %v3260 = vpop.f32.mrf.mxu0
        %v3261 = vadd.f32 %v3052, %v3260
        %3262 = vmatmul.f32.gmra.mxu0 %v2744
        %v3263 = vpop.f32.mrf.mxu0
        %v3264 = vadd.f32 %v3055, %v3263
        %3265 = vmatmul.f32.gmra.mxu0 %v2748
        %v3266 = vpop.f32.mrf.mxu0
        %v3267 = vadd.f32 %v3058, %v3266
        %3268 = vmatmul.f32.gmra.mxu0 %v2752
        %v3269 = vpop.f32.mrf.mxu0
        %v3270 = vadd.f32 %v3061, %v3269
        %3271 = vmatmul.f32.gmra.mxu0 %v2756
        %v3272 = vpop.f32.mrf.mxu0
        %v3273 = vadd.f32 %v3064, %v3272
        %3274 = vmatmul.f32.gmra.mxu0 %v2760
        %v3275 = vpop.f32.mrf.mxu0
        %v3276 = vadd.f32 %v3067, %v3275
        %3277 = vmatmul.f32.gmra.mxu0 %v2764
        %v3278 = vpop.f32.mrf.mxu0
        %v3279 = vadd.f32 %v3070, %v3278
        %3280 = vmatmul.f32.gmra.mxu0 %v2768
        %v3281 = vpop.f32.mrf.mxu0
        %v3282 = vadd.f32 %v3073, %v3281
        %3283 = vmatmul.f32.gmra.mxu0 %v2772
        %v3284 = vpop.f32.mrf.mxu0
        %v3285 = vadd.f32 %v3076, %v3284
        %3286 = vmatmul.f32.gmra.mxu0 %v2776
        %v3287 = vpop.f32.mrf.mxu0
        %v3288 = vadd.f32 %v3079, %v3287
        %3289 = vmatmul.f32.gmra.mxu0 %v2780
        %v3290 = vpop.f32.mrf.mxu0
        %v3291 = vadd.f32 %v3082, %v3290
        %3292 = vmatmul.f32.gmra.mxu0 %v2784
        %v3293 = vpop.f32.mrf.mxu0
        %v3294 = vadd.f32 %v3085, %v3293
        %3295 = vmatmul.f32.gmra.mxu0 %v2788
        %v3296 = vpop.f32.mrf.mxu0
        %v3297 = vadd.f32 %v3088, %v3296
        %3298 = vmatmul.f32.gmra.mxu0 %v2792
        %v3299 = vpop.f32.mrf.mxu0
        %v3300 = vadd.f32 %v3091, %v3299
        %3301 = vmatmul.f32.gmra.mxu0 %v2796
        %v3302 = vpop.f32.mrf.mxu0
        %v3303 = vadd.f32 %v3094, %v3302
        %3304 = vmatmul.f32.gmra.mxu0 %v2800
        %v3305 = vpop.f32.mrf.mxu0
        %v3306 = vadd.f32 %v3097, %v3305
        %3307 = vmatmul.f32.gmra.mxu0 %v2804
        %v3308 = vpop.f32.mrf.mxu0
        %v3309 = vadd.f32 %v3100, %v3308
        %3310 = vmatmul.f32.gmra.mxu0 %v2808
        %v3311 = vpop.f32.mrf.mxu0
        %v3312 = vadd.f32 %v3103, %v3311
        %3313 = vmatmul.f32.gmra.mxu0 %v2812
        %v3314 = vpop.f32.mrf.mxu0
        %v3315 = vadd.f32 %v3106, %v3314
        %3316 = vmatmul.f32.gmra.mxu0 %v2816
        %v3317 = vpop.f32.mrf.mxu0
        %v3318 = vadd.f32 %v3109, %v3317
        %3319 = vmatmul.f32.gmra.mxu0 %v2820
        %v3320 = vpop.f32.mrf.mxu0
        %v3321 = vadd.f32 %v3112, %v3320
        %3322 = vmatmul.f32.gmra.mxu0 %v2824
        %v3323 = vpop.f32.mrf.mxu0
        %v3324 = vadd.f32 %v3115, %v3323
        %3325 = vmatmul.f32.gmra.mxu0 %v2828
        %v3326 = vpop.f32.mrf.mxu0
        %v3327 = vadd.f32 %v3118, %v3326
        %3328 = vmatmul.f32.gmra.mxu0 %v2832
        %v3329 = vpop.f32.mrf.mxu0
        %v3330 = vadd.f32 %v3121, %v3329
        %3331 = vmatmul.f32.gmra.mxu0 %v2836
        %v3332 = vpop.f32.mrf.mxu0
        %v3333 = vadd.f32 %v3124, %v3332
        %3334 = vmatmul.f32.gmra.mxu0 %v2840
        %v3335 = vpop.f32.mrf.mxu0
        %v3336 = vadd.f32 %v3127, %v3335
        %3337 = vmatmul.f32.gmra.mxu0 %v2844
        %v3338 = vpop.f32.mrf.mxu0
        %v3339 = vadd.f32 %v3130, %v3338
        %3340 = vmatmul.f32.gmra.mxu0 %v2848
        %v3341 = vpop.f32.mrf.mxu0
        %v3342 = vadd.f32 %v3133, %v3341
        %3343 = vmatmul.f32.gmra.mxu0 %v2852
        %v3344 = vpop.f32.mrf.mxu0
        %v3345 = vadd.f32 %v3136, %v3344
        %3346 = vmatmul.f32.gmra.mxu0 %v2856
        %v3347 = vpop.f32.mrf.mxu0
        %v3348 = vadd.f32 %v3139, %v3347
        %3349 = vmatmul.f32.gmra.mxu0 %v2860
        %v3350 = vpop.f32.mrf.mxu0
        %v3351 = vadd.f32 %v3142, %v3350
        %3352 = vmatmul.f32.gmra.mxu0 %v2864
        %v3353 = vpop.f32.mrf.mxu0
        %v3354 = vadd.f32 %v3145, %v3353
        %3355 = vmatmul.f32.gmra.mxu0 %v2868
        %v3356 = vpop.f32.mrf.mxu0
        %v3357 = vadd.f32 %v3148, %v3356
        %3358 = vmatmul.f32.gmra.mxu0 %v2872
        %v3359 = vpop.f32.mrf.mxu0
        %v3360 = vadd.f32 %v3151, %v3359
        %3361 = vmatmul.f32.gmra.mxu0 %v2876
        %v3362 = vpop.f32.mrf.mxu0
        %v3363 = vadd.f32 %v3154, %v3362
        %3364 = vmatmul.f32.gmra.mxu0 %v2880
        %v3365 = vpop.f32.mrf.mxu0
        %v3366 = vadd.f32 %v3157, %v3365
        %3367 = vmatmul.f32.gmra.mxu0 %v2884
        %v3368 = vpop.f32.mrf.mxu0
        %v3369 = vadd.f32 %v3160, %v3368
        %3370 = vmatmul.f32.gmra.mxu0 %v2888
        %v3371 = vpop.f32.mrf.mxu0
        %v3372 = vadd.f32 %v3163, %v3371
        %3373 = vmatmul.f32.gmra.mxu0 %v2892
        %v3374 = vpop.f32.mrf.mxu0
        %v3375 = vadd.f32 %v3166, %v3374
        %3376 = vdwg.mxu0
        %3377 = vmatpush.msra.mxu0 %v2942
        %3378 = vmatpush.msra.mxu0 %v2941
        %3379 = vmatpush.msra.mxu0 %v2940
        %3380 = vmatpush.msra.mxu0 %v2939
        %3381 = vmatpush.msra.mxu0 %v2938
        %3382 = vmatpush.msra.mxu0 %v2937
        %3383 = vmatpush.msra.mxu0 %v2936
        %3384 = vmatpush.msra.mxu0 %v2935
        %3385 = vmatpush.msra.mxu0 %v2934
        %3386 = vmatpush.msra.mxu0 %v2933
        %3387 = vmatpush.msra.mxu0 %v2932
        %3388 = vmatpush.msra.mxu0 %v2931
        %3389 = vmatpush.msra.mxu0 %v2930
        %3390 = vmatpush.msra.mxu0 %v2929
        %3391 = vmatpush.msra.mxu0 %v2928
        %3392 = vmatpush.msra.mxu0 %v2927
        %3393 = vmatmul.f32.gmra.mxu0 %v2641
        %v3394 = vpop.f32.mrf.mxu0
        %v3395 = vadd.f32 %v3186, %v3394
        %3396 = vmatmul.f32.gmra.mxu0 %v2645
        %v3397 = vpop.f32.mrf.mxu0
        %v3398 = vadd.f32 %v3189, %v3397
        %3399 = vmatmul.f32.gmra.mxu0 %v2649
        %v3400 = vpop.f32.mrf.mxu0
        %v3401 = vadd.f32 %v3192, %v3400
        %3402 = vmatmul.f32.gmra.mxu0 %v2653
        %v3403 = vpop.f32.mrf.mxu0
        %v3404 = vadd.f32 %v3195, %v3403
        %3405 = vmatmul.f32.gmra.mxu0 %v2657
        %v3406 = vpop.f32.mrf.mxu0
        %v3407 = vadd.f32 %v3198, %v3406
        %3408 = vmatmul.f32.gmra.mxu0 %v2661
        %v3409 = vpop.f32.mrf.mxu0
        %v3410 = vadd.f32 %v3201, %v3409
        %3411 = vmatmul.f32.gmra.mxu0 %v2665
        %v3412 = vpop.f32.mrf.mxu0
        %v3413 = vadd.f32 %v3204, %v3412
        %3414 = vmatmul.f32.gmra.mxu0 %v2669
        %v3415 = vpop.f32.mrf.mxu0
        %v3416 = vadd.f32 %v3207, %v3415
        %3417 = vmatmul.f32.gmra.mxu0 %v2673
        %v3418 = vpop.f32.mrf.mxu0
        %v3419 = vadd.f32 %v3210, %v3418
        %3420 = vmatmul.f32.gmra.mxu0 %v2677
        %v3421 = vpop.f32.mrf.mxu0
        %v3422 = vadd.f32 %v3213, %v3421
        %3423 = vmatmul.f32.gmra.mxu0 %v2681
        %v3424 = vpop.f32.mrf.mxu0
        %v3425 = vadd.f32 %v3216, %v3424
        %3426 = vmatmul.f32.gmra.mxu0 %v2685
        %v3427 = vpop.f32.mrf.mxu0
        %v3428 = vadd.f32 %v3219, %v3427
        %3429 = vmatmul.f32.gmra.mxu0 %v2689
        %v3430 = vpop.f32.mrf.mxu0
        %v3431 = vadd.f32 %v3222, %v3430
        %3432 = vmatmul.f32.gmra.mxu0 %v2693
        %v3433 = vpop.f32.mrf.mxu0
        %v3434 = vadd.f32 %v3225, %v3433
        %3435 = vmatmul.f32.gmra.mxu0 %v2697
        %v3436 = vpop.f32.mrf.mxu0
        %v3437 = vadd.f32 %v3228, %v3436
        %3438 = vmatmul.f32.gmra.mxu0 %v2701
        %v3439 = vpop.f32.mrf.mxu0
        %v3440 = vadd.f32 %v3231, %v3439
        %3441 = vmatmul.f32.gmra.mxu0 %v2705
        %v3442 = vpop.f32.mrf.mxu0
        %v3443 = vadd.f32 %v3234, %v3442
        %3444 = vmatmul.f32.gmra.mxu0 %v2709
        %v3445 = vpop.f32.mrf.mxu0
        %v3446 = vadd.f32 %v3237, %v3445
        %3447 = vmatmul.f32.gmra.mxu0 %v2713
        %v3448 = vpop.f32.mrf.mxu0
        %v3449 = vadd.f32 %v3240, %v3448
        %3450 = vmatmul.f32.gmra.mxu0 %v2717
        %v3451 = vpop.f32.mrf.mxu0
        %v3452 = vadd.f32 %v3243, %v3451
        %3453 = vmatmul.f32.gmra.mxu0 %v2721
        %v3454 = vpop.f32.mrf.mxu0
        %v3455 = vadd.f32 %v3246, %v3454
        %3456 = vmatmul.f32.gmra.mxu0 %v2725
        %v3457 = vpop.f32.mrf.mxu0
        %v3458 = vadd.f32 %v3249, %v3457
        %3459 = vmatmul.f32.gmra.mxu0 %v2729
        %v3460 = vpop.f32.mrf.mxu0
        %v3461 = vadd.f32 %v3252, %v3460
        %3462 = vmatmul.f32.gmra.mxu0 %v2733
        %v3463 = vpop.f32.mrf.mxu0
        %v3464 = vadd.f32 %v3255, %v3463
        %3465 = vmatmul.f32.gmra.mxu0 %v2737
        %v3466 = vpop.f32.mrf.mxu0
        %v3467 = vadd.f32 %v3258, %v3466
        %3468 = vmatmul.f32.gmra.mxu0 %v2741
        %v3469 = vpop.f32.mrf.mxu0
        %v3470 = vadd.f32 %v3261, %v3469
        %3471 = vmatmul.f32.gmra.mxu0 %v2745
        %v3472 = vpop.f32.mrf.mxu0
        %v3473 = vadd.f32 %v3264, %v3472
        %3474 = vmatmul.f32.gmra.mxu0 %v2749
        %v3475 = vpop.f32.mrf.mxu0
        %v3476 = vadd.f32 %v3267, %v3475
        %3477 = vmatmul.f32.gmra.mxu0 %v2753
        %v3478 = vpop.f32.mrf.mxu0
        %v3479 = vadd.f32 %v3270, %v3478
        %3480 = vmatmul.f32.gmra.mxu0 %v2757
        %v3481 = vpop.f32.mrf.mxu0
        %v3482 = vadd.f32 %v3273, %v3481
        %3483 = vmatmul.f32.gmra.mxu0 %v2761
        %v3484 = vpop.f32.mrf.mxu0
        %v3485 = vadd.f32 %v3276, %v3484
        %3486 = vmatmul.f32.gmra.mxu0 %v2765
        %v3487 = vpop.f32.mrf.mxu0
        %v3488 = vadd.f32 %v3279, %v3487
        %3489 = vmatmul.f32.gmra.mxu0 %v2769
        %v3490 = vpop.f32.mrf.mxu0
        %v3491 = vadd.f32 %v3282, %v3490
        %3492 = vmatmul.f32.gmra.mxu0 %v2773
        %v3493 = vpop.f32.mrf.mxu0
        %v3494 = vadd.f32 %v3285, %v3493
        %3495 = vmatmul.f32.gmra.mxu0 %v2777
        %v3496 = vpop.f32.mrf.mxu0
        %v3497 = vadd.f32 %v3288, %v3496
        %3498 = vmatmul.f32.gmra.mxu0 %v2781
        %v3499 = vpop.f32.mrf.mxu0
        %v3500 = vadd.f32 %v3291, %v3499
        %3501 = vmatmul.f32.gmra.mxu0 %v2785
        %v3502 = vpop.f32.mrf.mxu0
        %v3503 = vadd.f32 %v3294, %v3502
        %3504 = vmatmul.f32.gmra.mxu0 %v2789
        %v3505 = vpop.f32.mrf.mxu0
        %v3506 = vadd.f32 %v3297, %v3505
        %3507 = vmatmul.f32.gmra.mxu0 %v2793
        %v3508 = vpop.f32.mrf.mxu0
        %v3509 = vadd.f32 %v3300, %v3508
        %3510 = vmatmul.f32.gmra.mxu0 %v2797
        %v3511 = vpop.f32.mrf.mxu0
        %v3512 = vadd.f32 %v3303, %v3511
        %3513 = vmatmul.f32.gmra.mxu0 %v2801
        %v3514 = vpop.f32.mrf.mxu0
        %v3515 = vadd.f32 %v3306, %v3514
        %3516 = vmatmul.f32.gmra.mxu0 %v2805
        %v3517 = vpop.f32.mrf.mxu0
        %v3518 = vadd.f32 %v3309, %v3517
        %3519 = vmatmul.f32.gmra.mxu0 %v2809
        %v3520 = vpop.f32.mrf.mxu0
        %v3521 = vadd.f32 %v3312, %v3520
        %3522 = vmatmul.f32.gmra.mxu0 %v2813
        %v3523 = vpop.f32.mrf.mxu0
        %v3524 = vadd.f32 %v3315, %v3523
        %3525 = vmatmul.f32.gmra.mxu0 %v2817
        %v3526 = vpop.f32.mrf.mxu0
        %v3527 = vadd.f32 %v3318, %v3526
        %3528 = vmatmul.f32.gmra.mxu0 %v2821
        %v3529 = vpop.f32.mrf.mxu0
        %v3530 = vadd.f32 %v3321, %v3529
        %3531 = vmatmul.f32.gmra.mxu0 %v2825
        %v3532 = vpop.f32.mrf.mxu0
        %v3533 = vadd.f32 %v3324, %v3532
        %3534 = vmatmul.f32.gmra.mxu0 %v2829
        %v3535 = vpop.f32.mrf.mxu0
        %v3536 = vadd.f32 %v3327, %v3535
        %3537 = vmatmul.f32.gmra.mxu0 %v2833
        %v3538 = vpop.f32.mrf.mxu0
        %v3539 = vadd.f32 %v3330, %v3538
        %3540 = vmatmul.f32.gmra.mxu0 %v2837
        %v3541 = vpop.f32.mrf.mxu0
        %v3542 = vadd.f32 %v3333, %v3541
        %3543 = vmatmul.f32.gmra.mxu0 %v2841
        %v3544 = vpop.f32.mrf.mxu0
        %v3545 = vadd.f32 %v3336, %v3544
        %3546 = vmatmul.f32.gmra.mxu0 %v2845
        %v3547 = vpop.f32.mrf.mxu0
        %v3548 = vadd.f32 %v3339, %v3547
        %3549 = vmatmul.f32.gmra.mxu0 %v2849
        %v3550 = vpop.f32.mrf.mxu0
        %v3551 = vadd.f32 %v3342, %v3550
        %3552 = vmatmul.f32.gmra.mxu0 %v2853
        %v3553 = vpop.f32.mrf.mxu0
        %v3554 = vadd.f32 %v3345, %v3553
        %3555 = vmatmul.f32.gmra.mxu0 %v2857
        %v3556 = vpop.f32.mrf.mxu0
        %v3557 = vadd.f32 %v3348, %v3556
        %3558 = vmatmul.f32.gmra.mxu0 %v2861
        %v3559 = vpop.f32.mrf.mxu0
        %v3560 = vadd.f32 %v3351, %v3559
        %3561 = vmatmul.f32.gmra.mxu0 %v2865
        %v3562 = vpop.f32.mrf.mxu0
        %v3563 = vadd.f32 %v3354, %v3562
        %3564 = vmatmul.f32.gmra.mxu0 %v2869
        %v3565 = vpop.f32.mrf.mxu0
        %v3566 = vadd.f32 %v3357, %v3565
        %3567 = vmatmul.f32.gmra.mxu0 %v2873
        %v3568 = vpop.f32.mrf.mxu0
        %v3569 = vadd.f32 %v3360, %v3568
        %3570 = vmatmul.f32.gmra.mxu0 %v2877
        %v3571 = vpop.f32.mrf.mxu0
        %v3572 = vadd.f32 %v3363, %v3571
        %3573 = vmatmul.f32.gmra.mxu0 %v2881
        %v3574 = vpop.f32.mrf.mxu0
        %v3575 = vadd.f32 %v3366, %v3574
        %3576 = vmatmul.f32.gmra.mxu0 %v2885
        %v3577 = vpop.f32.mrf.mxu0
        %v3578 = vadd.f32 %v3369, %v3577
        %3579 = vmatmul.f32.gmra.mxu0 %v2889
        %v3580 = vpop.f32.mrf.mxu0
        %v3581 = vadd.f32 %v3372, %v3580
        %3582 = vmatmul.f32.gmra.mxu0 %v2893
        %v3583 = vpop.f32.mrf.mxu0
        %v3584 = vadd.f32 %v3375, %v3583
        %3585 = vdwg.mxu0
        %3586 = vmatpush.msra.mxu0 %v2958
        %3587 = vmatpush.msra.mxu0 %v2957
        %3588 = vmatpush.msra.mxu0 %v2956
        %3589 = vmatpush.msra.mxu0 %v2955
        %3590 = vmatpush.msra.mxu0 %v2954
        %3591 = vmatpush.msra.mxu0 %v2953
        %3592 = vmatpush.msra.mxu0 %v2952
        %3593 = vmatpush.msra.mxu0 %v2951
        %3594 = vmatpush.msra.mxu0 %v2950
        %3595 = vmatpush.msra.mxu0 %v2949
        %3596 = vmatpush.msra.mxu0 %v2948
        %3597 = vmatpush.msra.mxu0 %v2947
        %3598 = vmatpush.msra.mxu0 %v2946
        %3599 = vmatpush.msra.mxu0 %v2945
        %3600 = vmatpush.msra.mxu0 %v2944
        %3601 = vmatpush.msra.mxu0 %v2943
        %3602 = vmatmul.f32.gmra.mxu0 %v2642
        %v3603 = vpop.f32.mrf.mxu0
        %v3604 = vadd.f32 %v3395, %v3603
        %3605 = vmatmul.f32.gmra.mxu0 %v2646
        %v3606 = vpop.f32.mrf.mxu0
        %v3607 = vadd.f32 %v3398, %v3606
        %3608 = vmatmul.f32.gmra.mxu0 %v2650
        %v3609 = vpop.f32.mrf.mxu0
        %v3610 = vadd.f32 %v3401, %v3609
        %3611 = vmatmul.f32.gmra.mxu0 %v2654
        %v3612 = vpop.f32.mrf.mxu0
        %v3613 = vadd.f32 %v3404, %v3612
        %3614 = vmatmul.f32.gmra.mxu0 %v2658
        %v3615 = vpop.f32.mrf.mxu0
        %v3616 = vadd.f32 %v3407, %v3615
        %3617 = vmatmul.f32.gmra.mxu0 %v2662
        %v3618 = vpop.f32.mrf.mxu0
        %v3619 = vadd.f32 %v3410, %v3618
        %3620 = vmatmul.f32.gmra.mxu0 %v2666
        %v3621 = vpop.f32.mrf.mxu0
        %v3622 = vadd.f32 %v3413, %v3621
        %3623 = vmatmul.f32.gmra.mxu0 %v2670
        %v3624 = vpop.f32.mrf.mxu0
        %v3625 = vadd.f32 %v3416, %v3624
        %3626 = vmatmul.f32.gmra.mxu0 %v2674
        %v3627 = vpop.f32.mrf.mxu0
        %v3628 = vadd.f32 %v3419, %v3627
        %3629 = vmatmul.f32.gmra.mxu0 %v2678
        %v3630 = vpop.f32.mrf.mxu0
        %v3631 = vadd.f32 %v3422, %v3630
        %3632 = vmatmul.f32.gmra.mxu0 %v2682
        %v3633 = vpop.f32.mrf.mxu0
        %v3634 = vadd.f32 %v3425, %v3633
        %3635 = vmatmul.f32.gmra.mxu0 %v2686
        %v3636 = vpop.f32.mrf.mxu0
        %v3637 = vadd.f32 %v3428, %v3636
        %3638 = vmatmul.f32.gmra.mxu0 %v2690
        %v3639 = vpop.f32.mrf.mxu0
        %v3640 = vadd.f32 %v3431, %v3639
        %3641 = vmatmul.f32.gmra.mxu0 %v2694
        %v3642 = vpop.f32.mrf.mxu0
        %v3643 = vadd.f32 %v3434, %v3642
        %3644 = vmatmul.f32.gmra.mxu0 %v2698
        %v3645 = vpop.f32.mrf.mxu0
        %v3646 = vadd.f32 %v3437, %v3645
        %3647 = vmatmul.f32.gmra.mxu0 %v2702
        %v3648 = vpop.f32.mrf.mxu0
        %v3649 = vadd.f32 %v3440, %v3648
        %3650 = vmatmul.f32.gmra.mxu0 %v2706
        %v3651 = vpop.f32.mrf.mxu0
        %v3652 = vadd.f32 %v3443, %v3651
        %3653 = vmatmul.f32.gmra.mxu0 %v2710
        %v3654 = vpop.f32.mrf.mxu0
        %v3655 = vadd.f32 %v3446, %v3654
        %3656 = vmatmul.f32.gmra.mxu0 %v2714
        %v3657 = vpop.f32.mrf.mxu0
        %v3658 = vadd.f32 %v3449, %v3657
        %3659 = vmatmul.f32.gmra.mxu0 %v2718
        %v3660 = vpop.f32.mrf.mxu0
        %v3661 = vadd.f32 %v3452, %v3660
        %3662 = vmatmul.f32.gmra.mxu0 %v2722
        %v3663 = vpop.f32.mrf.mxu0
        %v3664 = vadd.f32 %v3455, %v3663
        %3665 = vmatmul.f32.gmra.mxu0 %v2726
        %v3666 = vpop.f32.mrf.mxu0
        %v3667 = vadd.f32 %v3458, %v3666
        %3668 = vmatmul.f32.gmra.mxu0 %v2730
        %v3669 = vpop.f32.mrf.mxu0
        %v3670 = vadd.f32 %v3461, %v3669
        %3671 = vmatmul.f32.gmra.mxu0 %v2734
        %v3672 = vpop.f32.mrf.mxu0
        %v3673 = vadd.f32 %v3464, %v3672
        %3674 = vmatmul.f32.gmra.mxu0 %v2738
        %v3675 = vpop.f32.mrf.mxu0
        %v3676 = vadd.f32 %v3467, %v3675
        %3677 = vmatmul.f32.gmra.mxu0 %v2742
        %v3678 = vpop.f32.mrf.mxu0
        %v3679 = vadd.f32 %v3470, %v3678
        %3680 = vmatmul.f32.gmra.mxu0 %v2746
        %v3681 = vpop.f32.mrf.mxu0
        %v3682 = vadd.f32 %v3473, %v3681
        %3683 = vmatmul.f32.gmra.mxu0 %v2750
        %v3684 = vpop.f32.mrf.mxu0
        %v3685 = vadd.f32 %v3476, %v3684
        %3686 = vmatmul.f32.gmra.mxu0 %v2754
        %v3687 = vpop.f32.mrf.mxu0
        %v3688 = vadd.f32 %v3479, %v3687
        %3689 = vmatmul.f32.gmra.mxu0 %v2758
        %v3690 = vpop.f32.mrf.mxu0
        %v3691 = vadd.f32 %v3482, %v3690
        %3692 = vmatmul.f32.gmra.mxu0 %v2762
        %v3693 = vpop.f32.mrf.mxu0
        %v3694 = vadd.f32 %v3485, %v3693
        %3695 = vmatmul.f32.gmra.mxu0 %v2766
        %v3696 = vpop.f32.mrf.mxu0
        %v3697 = vadd.f32 %v3488, %v3696
        %3698 = vmatmul.f32.gmra.mxu0 %v2770
        %v3699 = vpop.f32.mrf.mxu0
        %v3700 = vadd.f32 %v3491, %v3699
        %3701 = vmatmul.f32.gmra.mxu0 %v2774
        %v3702 = vpop.f32.mrf.mxu0
        %v3703 = vadd.f32 %v3494, %v3702
        %3704 = vmatmul.f32.gmra.mxu0 %v2778
        %v3705 = vpop.f32.mrf.mxu0
        %v3706 = vadd.f32 %v3497, %v3705
        %3707 = vmatmul.f32.gmra.mxu0 %v2782
        %v3708 = vpop.f32.mrf.mxu0
        %v3709 = vadd.f32 %v3500, %v3708
        %3710 = vmatmul.f32.gmra.mxu0 %v2786
        %v3711 = vpop.f32.mrf.mxu0
        %v3712 = vadd.f32 %v3503, %v3711
        %3713 = vmatmul.f32.gmra.mxu0 %v2790
        %v3714 = vpop.f32.mrf.mxu0
        %v3715 = vadd.f32 %v3506, %v3714
        %3716 = vmatmul.f32.gmra.mxu0 %v2794
        %v3717 = vpop.f32.mrf.mxu0
        %v3718 = vadd.f32 %v3509, %v3717
        %3719 = vmatmul.f32.gmra.mxu0 %v2798
        %v3720 = vpop.f32.mrf.mxu0
        %v3721 = vadd.f32 %v3512, %v3720
        %3722 = vmatmul.f32.gmra.mxu0 %v2802
        %v3723 = vpop.f32.mrf.mxu0
        %v3724 = vadd.f32 %v3515, %v3723
        %3725 = vmatmul.f32.gmra.mxu0 %v2806
        %v3726 = vpop.f32.mrf.mxu0
        %v3727 = vadd.f32 %v3518, %v3726
        %3728 = vmatmul.f32.gmra.mxu0 %v2810
        %v3729 = vpop.f32.mrf.mxu0
        %v3730 = vadd.f32 %v3521, %v3729
        %3731 = vmatmul.f32.gmra.mxu0 %v2814
        %v3732 = vpop.f32.mrf.mxu0
        %v3733 = vadd.f32 %v3524, %v3732
        %3734 = vmatmul.f32.gmra.mxu0 %v2818
        %v3735 = vpop.f32.mrf.mxu0
        %v3736 = vadd.f32 %v3527, %v3735
        %3737 = vmatmul.f32.gmra.mxu0 %v2822
        %v3738 = vpop.f32.mrf.mxu0
        %v3739 = vadd.f32 %v3530, %v3738
        %3740 = vmatmul.f32.gmra.mxu0 %v2826
        %v3741 = vpop.f32.mrf.mxu0
        %v3742 = vadd.f32 %v3533, %v3741
        %3743 = vmatmul.f32.gmra.mxu0 %v2830
        %v3744 = vpop.f32.mrf.mxu0
        %v3745 = vadd.f32 %v3536, %v3744
        %3746 = vmatmul.f32.gmra.mxu0 %v2834
        %v3747 = vpop.f32.mrf.mxu0
        %v3748 = vadd.f32 %v3539, %v3747
        %3749 = vmatmul.f32.gmra.mxu0 %v2838
        %v3750 = vpop.f32.mrf.mxu0
        %v3751 = vadd.f32 %v3542, %v3750
        %3752 = vmatmul.f32.gmra.mxu0 %v2842
        %v3753 = vpop.f32.mrf.mxu0
        %v3754 = vadd.f32 %v3545, %v3753
        %3755 = vmatmul.f32.gmra.mxu0 %v2846
        %v3756 = vpop.f32.mrf.mxu0
        %v3757 = vadd.f32 %v3548, %v3756
        %3758 = vmatmul.f32.gmra.mxu0 %v2850
        %v3759 = vpop.f32.mrf.mxu0
        %v3760 = vadd.f32 %v3551, %v3759
        %3761 = vmatmul.f32.gmra.mxu0 %v2854
        %v3762 = vpop.f32.mrf.mxu0
        %v3763 = vadd.f32 %v3554, %v3762
        %3764 = vmatmul.f32.gmra.mxu0 %v2858
        %v3765 = vpop.f32.mrf.mxu0
        %v3766 = vadd.f32 %v3557, %v3765
        %3767 = vmatmul.f32.gmra.mxu0 %v2862
        %v3768 = vpop.f32.mrf.mxu0
        %v3769 = vadd.f32 %v3560, %v3768
        %3770 = vmatmul.f32.gmra.mxu0 %v2866
        %v3771 = vpop.f32.mrf.mxu0
        %v3772 = vadd.f32 %v3563, %v3771
        %3773 = vmatmul.f32.gmra.mxu0 %v2870
        %v3774 = vpop.f32.mrf.mxu0
        %v3775 = vadd.f32 %v3566, %v3774
        %3776 = vmatmul.f32.gmra.mxu0 %v2874
        %v3777 = vpop.f32.mrf.mxu0
        %v3778 = vadd.f32 %v3569, %v3777
        %3779 = vmatmul.f32.gmra.mxu0 %v2878
        %v3780 = vpop.f32.mrf.mxu0
        %v3781 = vadd.f32 %v3572, %v3780
        %3782 = vmatmul.f32.gmra.mxu0 %v2882
        %v3783 = vpop.f32.mrf.mxu0
        %v3784 = vadd.f32 %v3575, %v3783
        %3785 = vmatmul.f32.gmra.mxu0 %v2886
        %v3786 = vpop.f32.mrf.mxu0
        %v3787 = vadd.f32 %v3578, %v3786
        %3788 = vmatmul.f32.gmra.mxu0 %v2890
        %v3789 = vpop.f32.mrf.mxu0
        %v3790 = vadd.f32 %v3581, %v3789
        %3791 = vmatmul.f32.gmra.mxu0 %v2894
        %v3792 = vpop.f32.mrf.mxu0
        %v3793 = vadd.f32 %v3584, %v3792
        %3794 = vdwg.mxu0
        %3795 = vst [vmem:[#allocation4] sm:$0xff] %v3604
        %3796 = vst [vmem:[#allocation4 + $0x8] sm:$0xff] %v3607
        %3797 = vst [vmem:[#allocation4 + $0x10] sm:$0xff] %v3610
        %3798 = vst [vmem:[#allocation4 + $0x18] sm:$0xff] %v3613
        %3799 = vst [vmem:[#allocation4 + $0x20] sm:$0xff] %v3616
        %3800 = vst [vmem:[#allocation4 + $0x28] sm:$0xff] %v3619
        %3801 = vst [vmem:[#allocation4 + $0x30] sm:$0xff] %v3622
        %3802 = vst [vmem:[#allocation4 + $0x38] sm:$0xff] %v3625
        %3803 = vst [vmem:[#allocation4 + $0x40] sm:$0xff] %v3628
        %3804 = vst [vmem:[#allocation4 + $0x48] sm:$0xff] %v3631
        %3805 = vst [vmem:[#allocation4 + $0x50] sm:$0xff] %v3634
        %3806 = vst [vmem:[#allocation4 + $0x58] sm:$0xff] %v3637
        %3807 = vst [vmem:[#allocation4 + $0x60] sm:$0xff] %v3640
        %3808 = vst [vmem:[#allocation4 + $0x68] sm:$0xff] %v3643
        %3809 = vst [vmem:[#allocation4 + $0x70] sm:$0xff] %v3646
        %3810 = vst [vmem:[#allocation4 + $0x78] sm:$0xff] %v3649
        %3811 = vst [vmem:[#allocation4 + $0x80] sm:$0xff] %v3652
        %3812 = vst [vmem:[#allocation4 + $0x88] sm:$0xff] %v3655
        %3813 = vst [vmem:[#allocation4 + $0x90] sm:$0xff] %v3658
        %3814 = vst [vmem:[#allocation4 + $0x98] sm:$0xff] %v3661
        %3815 = vst [vmem:[#allocation4 + $0xa0] sm:$0xff] %v3664
        %3816 = vst [vmem:[#allocation4 + $0xa8] sm:$0xff] %v3667
        %3817 = vst [vmem:[#allocation4 + $0xb0] sm:$0xff] %v3670
        %3818 = vst [vmem:[#allocation4 + $0xb8] sm:$0xff] %v3673
        %3819 = vst [vmem:[#allocation4 + $0xc0] sm:$0xff] %v3676
        %3820 = vst [vmem:[#allocation4 + $0xc8] sm:$0xff] %v3679
        %3821 = vst [vmem:[#allocation4 + $0xd0] sm:$0xff] %v3682
        %3822 = vst [vmem:[#allocation4 + $0xd8] sm:$0xff] %v3685
        %3823 = vst [vmem:[#allocation4 + $0xe0] sm:$0xff] %v3688
        %3824 = vst [vmem:[#allocation4 + $0xe8] sm:$0xff] %v3691
        %3825 = vst [vmem:[#allocation4 + $0xf0] sm:$0xff] %v3694
        %3826 = vst [vmem:[#allocation4 + $0xf8] sm:$0xff] %v3697
        %3827 = vst [vmem:[#allocation4 + $0x100] sm:$0xff] %v3700
        %3828 = vst [vmem:[#allocation4 + $0x108] sm:$0xff] %v3703
        %3829 = vst [vmem:[#allocation4 + $0x110] sm:$0xff] %v3706
        %3830 = vst [vmem:[#allocation4 + $0x118] sm:$0xff] %v3709
        %3831 = vst [vmem:[#allocation4 + $0x120] sm:$0xff] %v3712
        %3832 = vst [vmem:[#allocation4 + $0x128] sm:$0xff] %v3715
        %3833 = vst [vmem:[#allocation4 + $0x130] sm:$0xff] %v3718
        %3834 = vst [vmem:[#allocation4 + $0x138] sm:$0xff] %v3721
        %3835 = vst [vmem:[#allocation4 + $0x140] sm:$0xff] %v3724
        %3836 = vst [vmem:[#allocation4 + $0x148] sm:$0xff] %v3727
        %3837 = vst [vmem:[#allocation4 + $0x150] sm:$0xff] %v3730
        %3838 = vst [vmem:[#allocation4 + $0x158] sm:$0xff] %v3733
        %3839 = vst [vmem:[#allocation4 + $0x160] sm:$0xff] %v3736
        %3840 = vst [vmem:[#allocation4 + $0x168] sm:$0xff] %v3739
        %3841 = vst [vmem:[#allocation4 + $0x170] sm:$0xff] %v3742
        %3842 = vst [vmem:[#allocation4 + $0x178] sm:$0xff] %v3745
        %3843 = vst [vmem:[#allocation4 + $0x180] sm:$0xff] %v3748
        %3844 = vst [vmem:[#allocation4 + $0x188] sm:$0xff] %v3751
        %3845 = vst [vmem:[#allocation4 + $0x190] sm:$0xff] %v3754
        %3846 = vst [vmem:[#allocation4 + $0x198] sm:$0xff] %v3757
        %3847 = vst [vmem:[#allocation4 + $0x1a0] sm:$0xff] %v3760
        %3848 = vst [vmem:[#allocation4 + $0x1a8] sm:$0xff] %v3763
        %3849 = vst [vmem:[#allocation4 + $0x1b0] sm:$0xff] %v3766
        %3850 = vst [vmem:[#allocation4 + $0x1b8] sm:$0xff] %v3769
        %3851 = vst [vmem:[#allocation4 + $0x1c0] sm:$0xff] %v3772
        %3852 = vst [vmem:[#allocation4 + $0x1c8] sm:$0xff] %v3775
        %3853 = vst [vmem:[#allocation4 + $0x1d0] sm:$0xff] %v3778
        %3854 = vst [vmem:[#allocation4 + $0x1d8] sm:$0xff] %v3781
        %3855 = vst [vmem:[#allocation4 + $0x1e0] sm:$0xff] %v3784
        %3856 = vst [vmem:[#allocation4 + $0x1e8] sm:$0xff] %v3787
        %3857 = vst [vmem:[#allocation4 + $0x1f0] sm:$0xff] %v3790
        %3858 = vst [vmem:[#allocation4 + $0x1f8] sm:$0xff] %v3793
        %v3859 = vld [vmem:[%s6] sm:$0xff]
        %v3860 = vld [vmem:[%s6 + $0x8] sm:$0xff]
        %v3861 = vld [vmem:[%s6 + $0x10] sm:$0xff]
        %v3862 = vld [vmem:[%s6 + $0x18] sm:$0xff]
        %v3863 = vld [vmem:[%s6 + $0x20] sm:$0xff]
        %v3864 = vld [vmem:[%s6 + $0x28] sm:$0xff]
        %v3865 = vld [vmem:[%s6 + $0x30] sm:$0xff]
        %v3866 = vld [vmem:[%s6 + $0x38] sm:$0xff]
        %v3867 = vld [vmem:[%s7] sm:$0xff]
        %v3868 = vld [vmem:[%s7 + $0x8] sm:$0xff]
        %v3869 = vld [vmem:[%s7 + $0x10] sm:$0xff]
        %v3870 = vld [vmem:[%s7 + $0x18] sm:$0xff]
        %v3871 = vld [vmem:[%s7 + $0x20] sm:$0xff]
        %v3872 = vld [vmem:[%s7 + $0x28] sm:$0xff]
        %v3873 = vld [vmem:[%s7 + $0x30] sm:$0xff]
        %v3874 = vld [vmem:[%s7 + $0x38] sm:$0xff]
        %vm3875 = vcmask 523264
        %v3877 = vsel %vm3875, %v2287, 0
        %v3880 = vsel %vm3875, %v2288, 0
        %v3883 = vsel %vm3875, %v2289, 0
        %v3886 = vsel %vm3875, %v2290, 0
        %v3889 = vsel %vm3875, %v2291, 0
        %v3892 = vsel %vm3875, %v2292, 0
        %v3895 = vsel %vm3875, %v2293, 0
        %v3898 = vsel %vm3875, %v2294, 0
        %3900 = vmatpush.msra.mxu0 0.0
        %3901 = vmatpush.msra.mxu0 0.0
        %3902 = vmatpush.msra.mxu0 0.0
        %3903 = vmatpush.msra.mxu0 0.0
        %3904 = vmatpush.msra.mxu0 0.0
        %3905 = vmatpush.msra.mxu0 0.0
        %3906 = vmatpush.msra.mxu0 0.0
        %3907 = vmatpush.msra.mxu0 0.0
        %3908 = vmatpush.msra.mxu0 %v3866
        %3909 = vmatpush.msra.mxu0 %v3865
        %3910 = vmatpush.msra.mxu0 %v3864
        %3911 = vmatpush.msra.mxu0 %v3863
        %3912 = vmatpush.msra.mxu0 %v3862
        %3913 = vmatpush.msra.mxu0 %v3861
        %3914 = vmatpush.msra.mxu0 %v3860
        %3915 = vmatpush.msra.mxu0 %v3859
        %3916 = vmatmul.f32.gmra.mxu0 %v3877
        %v3917 = vpop.f32.mrf.mxu0
        %v3918 = vadd.f32 %v3867, %v3917
        %3919 = vmatmul.f32.gmra.mxu0 %v3880
        %v3920 = vpop.f32.mrf.mxu0
        %v3921 = vadd.f32 %v3868, %v3920
        %3922 = vmatmul.f32.gmra.mxu0 %v3883
        %v3923 = vpop.f32.mrf.mxu0
        %v3924 = vadd.f32 %v3869, %v3923
        %3925 = vmatmul.f32.gmra.mxu0 %v3886
        %v3926 = vpop.f32.mrf.mxu0
        %v3927 = vadd.f32 %v3870, %v3926
        %3928 = vmatmul.f32.gmra.mxu0 %v3889
        %v3929 = vpop.f32.mrf.mxu0
        %v3930 = vadd.f32 %v3871, %v3929
        %3931 = vmatmul.f32.gmra.mxu0 %v3892
        %v3932 = vpop.f32.mrf.mxu0
        %v3933 = vadd.f32 %v3872, %v3932
        %3934 = vmatmul.f32.gmra.mxu0 %v3895
        %v3935 = vpop.f32.mrf.mxu0
        %v3936 = vadd.f32 %v3873, %v3935
        %3937 = vmatmul.f32.gmra.mxu0 %v3898
        %v3938 = vpop.f32.mrf.mxu0
        %v3939 = vadd.f32 %v3874, %v3938
        %3940 = vdwg.mxu0
        %3941 = vst.msk [vmem:[#allocation5] sm:$0xff] %vm3875, %v3918
        %3942 = vst.msk [vmem:[#allocation5 + $0x8] sm:$0xff] %vm3875, %v3921
        %3943 = vst.msk [vmem:[#allocation5 + $0x10] sm:$0xff] %vm3875, %v3924
        %3944 = vst.msk [vmem:[#allocation5 + $0x18] sm:$0xff] %vm3875, %v3927
        %3945 = vst.msk [vmem:[#allocation5 + $0x20] sm:$0xff] %vm3875, %v3930
        %3946 = vst.msk [vmem:[#allocation5 + $0x28] sm:$0xff] %vm3875, %v3933
        %3947 = vst.msk [vmem:[#allocation5 + $0x30] sm:$0xff] %vm3875, %v3936
        %3948 = vst.msk [vmem:[#allocation5 + $0x38] sm:$0xff] %vm3875, %v3939
        %v3949 = vld [vmem:[#allocation5] sm:$0xff]
        %v3950 = vld [vmem:[#allocation5 + $0x8] sm:$0xff]
        %v3951 = vld [vmem:[#allocation5 + $0x10] sm:$0xff]
        %v3952 = vld [vmem:[#allocation5 + $0x18] sm:$0xff]
        %v3953 = vld [vmem:[#allocation5 + $0x20] sm:$0xff]
        %v3954 = vld [vmem:[#allocation5 + $0x28] sm:$0xff]
        %v3955 = vld [vmem:[#allocation5 + $0x30] sm:$0xff]
        %v3956 = vld [vmem:[#allocation5 + $0x38] sm:$0xff]
        %v3957 = vld [vmem:[#allocation4] sm:$0xff]
        %v3958 = vld [vmem:[#allocation4 + $0x8] sm:$0xff]
        %v3959 = vld [vmem:[#allocation4 + $0x10] sm:$0xff]
        %v3960 = vld [vmem:[#allocation4 + $0x18] sm:$0xff]
        %v3961 = vld [vmem:[#allocation4 + $0x20] sm:$0xff]
        %v3962 = vld [vmem:[#allocation4 + $0x28] sm:$0xff]
        %v3963 = vld [vmem:[#allocation4 + $0x30] sm:$0xff]
        %v3964 = vld [vmem:[#allocation4 + $0x38] sm:$0xff]
        %v3965 = vadd.f32 %v3949, %v3957
        %v3966 = vadd.f32 %v3950, %v3958
        %v3967 = vadd.f32 %v3951, %v3959
        %v3968 = vadd.f32 %v3952, %v3960
        %v3969 = vadd.f32 %v3953, %v3961
        %v3970 = vadd.f32 %v3954, %v3962
        %v3971 = vadd.f32 %v3955, %v3963
        %v3972 = vadd.f32 %v3956, %v3964
        %3973 = vst.msk [vmem:[#allocation5] sm:$0xff] %vm689, %v3965
        %3974 = vst.msk [vmem:[#allocation5 + $0x8] sm:$0xff] %vm689, %v3966
        %3975 = vst.msk [vmem:[#allocation5 + $0x10] sm:$0xff] %vm689, %v3967
        %3976 = vst.msk [vmem:[#allocation5 + $0x18] sm:$0xff] %vm689, %v3968
        %3977 = vst.msk [vmem:[#allocation5 + $0x20] sm:$0xff] %vm689, %v3969
        %3978 = vst.msk [vmem:[#allocation5 + $0x28] sm:$0xff] %vm689, %v3970
        %3979 = vst.msk [vmem:[#allocation5 + $0x30] sm:$0xff] %vm689, %v3971
        %3980 = vst.msk [vmem:[#allocation5 + $0x38] sm:$0xff] %vm689, %v3972
        %v3981 = vld [vmem:[#allocation5] sm:$0xff]
        %v3982 = vld [vmem:[#allocation5 + $0x8] sm:$0xff]
        %v3983 = vld [vmem:[#allocation5 + $0x10] sm:$0xff]
        %v3984 = vld [vmem:[#allocation5 + $0x18] sm:$0xff]
        %v3985 = vld [vmem:[#allocation5 + $0x20] sm:$0xff]
        %v3986 = vld [vmem:[#allocation5 + $0x28] sm:$0xff]
        %v3987 = vld [vmem:[#allocation5 + $0x30] sm:$0xff]
        %v3988 = vld [vmem:[#allocation5 + $0x38] sm:$0xff]
        %v3989 = vld [vmem:[#allocation4 + $0x40] sm:$0xff]
        %v3990 = vld [vmem:[#allocation4 + $0x48] sm:$0xff]
        %v3991 = vld [vmem:[#allocation4 + $0x50] sm:$0xff]
        %v3992 = vld [vmem:[#allocation4 + $0x58] sm:$0xff]
        %v3993 = vld [vmem:[#allocation4 + $0x60] sm:$0xff]
        %v3994 = vld [vmem:[#allocation4 + $0x68] sm:$0xff]
        %v3995 = vld [vmem:[#allocation4 + $0x70] sm:$0xff]
        %v3996 = vld [vmem:[#allocation4 + $0x78] sm:$0xff]
        %4005 = vrot.lane.b32.xlu0 %v3989, 8
        %v4006 = vpop.permute.xlu0 %4005
        %4007 = vrot.lane.b32.xlu0 %v3990, 8
        %v4008 = vpop.permute.xlu0 %4007
        %4009 = vrot.lane.b32.xlu0 %v3991, 8
        %v4010 = vpop.permute.xlu0 %4009
        %4011 = vrot.lane.b32.xlu0 %v3992, 8
        %v4012 = vpop.permute.xlu0 %4011
        %4013 = vrot.lane.b32.xlu0 %v3993, 8
        %v4014 = vpop.permute.xlu0 %4013
        %4015 = vrot.lane.b32.xlu0 %v3994, 8
        %v4016 = vpop.permute.xlu0 %4015
        %4017 = vrot.lane.b32.xlu0 %v3995, 8
        %v4018 = vpop.permute.xlu0 %4017
        %4019 = vrot.lane.b32.xlu0 %v3996, 8
        %v4020 = vpop.permute.xlu0 %4019
        %v4029 = vadd.f32 %v3981, %v4006
        %v4030 = vadd.f32 %v3982, %v4008
        %v4031 = vadd.f32 %v3983, %v4010
        %v4032 = vadd.f32 %v3984, %v4012
        %v4033 = vadd.f32 %v3985, %v4014
        %v4034 = vadd.f32 %v3986, %v4016
        %v4035 = vadd.f32 %v3987, %v4018
        %v4036 = vadd.f32 %v3988, %v4020
        %4037 = vst.msk [vmem:[#allocation5] sm:$0xff] %vm916, %v4029
        %4038 = vst.msk [vmem:[#allocation5 + $0x8] sm:$0xff] %vm916, %v4030
        %4039 = vst.msk [vmem:[#allocation5 + $0x10] sm:$0xff] %vm916, %v4031
        %4040 = vst.msk [vmem:[#allocation5 + $0x18] sm:$0xff] %vm916, %v4032
        %4041 = vst.msk [vmem:[#allocation5 + $0x20] sm:$0xff] %vm916, %v4033
        %4042 = vst.msk [vmem:[#allocation5 + $0x28] sm:$0xff] %vm916, %v4034
        %4043 = vst.msk [vmem:[#allocation5 + $0x30] sm:$0xff] %vm916, %v4035
        %4044 = vst.msk [vmem:[#allocation5 + $0x38] sm:$0xff] %vm916, %v4036
        %v4045 = vld [vmem:[#allocation5] sm:$0xff]
        %v4046 = vld [vmem:[#allocation5 + $0x8] sm:$0xff]
        %v4047 = vld [vmem:[#allocation5 + $0x10] sm:$0xff]
        %v4048 = vld [vmem:[#allocation5 + $0x18] sm:$0xff]
        %v4049 = vld [vmem:[#allocation5 + $0x20] sm:$0xff]
        %v4050 = vld [vmem:[#allocation5 + $0x28] sm:$0xff]
        %v4051 = vld [vmem:[#allocation5 + $0x30] sm:$0xff]
        %v4052 = vld [vmem:[#allocation5 + $0x38] sm:$0xff]
        %v4053 = vld [vmem:[#allocation4 + $0x80] sm:$0xff]
        %v4054 = vld [vmem:[#allocation4 + $0x88] sm:$0xff]
        %v4055 = vld [vmem:[#allocation4 + $0x90] sm:$0xff]
        %v4056 = vld [vmem:[#allocation4 + $0x98] sm:$0xff]
        %v4057 = vld [vmem:[#allocation4 + $0xa0] sm:$0xff]
        %v4058 = vld [vmem:[#allocation4 + $0xa8] sm:$0xff]
        %v4059 = vld [vmem:[#allocation4 + $0xb0] sm:$0xff]
        %v4060 = vld [vmem:[#allocation4 + $0xb8] sm:$0xff]
        %4069 = vrot.lane.b32.xlu0 %v4053, 16
        %v4070 = vpop.permute.xlu0 %4069
        %4071 = vrot.lane.b32.xlu0 %v4054, 16
        %v4072 = vpop.permute.xlu0 %4071
        %4073 = vrot.lane.b32.xlu0 %v4055, 16
        %v4074 = vpop.permute.xlu0 %4073
        %4075 = vrot.lane.b32.xlu0 %v4056, 16
        %v4076 = vpop.permute.xlu0 %4075
        %4077 = vrot.lane.b32.xlu0 %v4057, 16
        %v4078 = vpop.permute.xlu0 %4077
        %4079 = vrot.lane.b32.xlu0 %v4058, 16
        %v4080 = vpop.permute.xlu0 %4079
        %4081 = vrot.lane.b32.xlu0 %v4059, 16
        %v4082 = vpop.permute.xlu0 %4081
        %4083 = vrot.lane.b32.xlu0 %v4060, 16
        %v4084 = vpop.permute.xlu0 %4083
        %v4093 = vadd.f32 %v4045, %v4070
        %v4094 = vadd.f32 %v4046, %v4072
        %v4095 = vadd.f32 %v4047, %v4074
        %v4096 = vadd.f32 %v4048, %v4076
        %v4097 = vadd.f32 %v4049, %v4078
        %v4098 = vadd.f32 %v4050, %v4080
        %v4099 = vadd.f32 %v4051, %v4082
        %v4100 = vadd.f32 %v4052, %v4084
        %4101 = vst.msk [vmem:[#allocation5] sm:$0xff] %vm1143, %v4093
        %4102 = vst.msk [vmem:[#allocation5 + $0x8] sm:$0xff] %vm1143, %v4094
        %4103 = vst.msk [vmem:[#allocation5 + $0x10] sm:$0xff] %vm1143, %v4095
        %4104 = vst.msk [vmem:[#allocation5 + $0x18] sm:$0xff] %vm1143, %v4096
        %4105 = vst.msk [vmem:[#allocation5 + $0x20] sm:$0xff] %vm1143, %v4097
        %4106 = vst.msk [vmem:[#allocation5 + $0x28] sm:$0xff] %vm1143, %v4098
        %4107 = vst.msk [vmem:[#allocation5 + $0x30] sm:$0xff] %vm1143, %v4099
        %4108 = vst.msk [vmem:[#allocation5 + $0x38] sm:$0xff] %vm1143, %v4100
        %v4109 = vld [vmem:[#allocation5] sm:$0xff]
        %v4110 = vld [vmem:[#allocation5 + $0x8] sm:$0xff]
        %v4111 = vld [vmem:[#allocation5 + $0x10] sm:$0xff]
        %v4112 = vld [vmem:[#allocation5 + $0x18] sm:$0xff]
        %v4113 = vld [vmem:[#allocation5 + $0x20] sm:$0xff]
        %v4114 = vld [vmem:[#allocation5 + $0x28] sm:$0xff]
        %v4115 = vld [vmem:[#allocation5 + $0x30] sm:$0xff]
        %v4116 = vld [vmem:[#allocation5 + $0x38] sm:$0xff]
        %v4117 = vld [vmem:[#allocation4 + $0xc0] sm:$0xff]
        %v4118 = vld [vmem:[#allocation4 + $0xc8] sm:$0xff]
        %v4119 = vld [vmem:[#allocation4 + $0xd0] sm:$0xff]
        %v4120 = vld [vmem:[#allocation4 + $0xd8] sm:$0xff]
        %v4121 = vld [vmem:[#allocation4 + $0xe0] sm:$0xff]
        %v4122 = vld [vmem:[#allocation4 + $0xe8] sm:$0xff]
        %v4123 = vld [vmem:[#allocation4 + $0xf0] sm:$0xff]
        %v4124 = vld [vmem:[#allocation4 + $0xf8] sm:$0xff]
        %4133 = vrot.lane.b32.xlu0 %v4117, 24
        %v4134 = vpop.permute.xlu0 %4133
        %4135 = vrot.lane.b32.xlu0 %v4118, 24
        %v4136 = vpop.permute.xlu0 %4135
        %4137 = vrot.lane.b32.xlu0 %v4119, 24
        %v4138 = vpop.permute.xlu0 %4137
        %4139 = vrot.lane.b32.xlu0 %v4120, 24
        %v4140 = vpop.permute.xlu0 %4139
        %4141 = vrot.lane.b32.xlu0 %v4121, 24
        %v4142 = vpop.permute.xlu0 %4141
        %4143 = vrot.lane.b32.xlu0 %v4122, 24
        %v4144 = vpop.permute.xlu0 %4143
        %4145 = vrot.lane.b32.xlu0 %v4123, 24
        %v4146 = vpop.permute.xlu0 %4145
        %4147 = vrot.lane.b32.xlu0 %v4124, 24
        %v4148 = vpop.permute.xlu0 %4147
        %v4157 = vadd.f32 %v4109, %v4134
        %v4158 = vadd.f32 %v4110, %v4136
        %v4159 = vadd.f32 %v4111, %v4138
        %v4160 = vadd.f32 %v4112, %v4140
        %v4161 = vadd.f32 %v4113, %v4142
        %v4162 = vadd.f32 %v4114, %v4144
        %v4163 = vadd.f32 %v4115, %v4146
        %v4164 = vadd.f32 %v4116, %v4148
        %4165 = vst.msk [vmem:[#allocation5] sm:$0xff] %vm1370, %v4157
        %4166 = vst.msk [vmem:[#allocation5 + $0x8] sm:$0xff] %vm1370, %v4158
        %4167 = vst.msk [vmem:[#allocation5 + $0x10] sm:$0xff] %vm1370, %v4159
        %4168 = vst.msk [vmem:[#allocation5 + $0x18] sm:$0xff] %vm1370, %v4160
        %4169 = vst.msk [vmem:[#allocation5 + $0x20] sm:$0xff] %vm1370, %v4161
        %4170 = vst.msk [vmem:[#allocation5 + $0x28] sm:$0xff] %vm1370, %v4162
        %4171 = vst.msk [vmem:[#allocation5 + $0x30] sm:$0xff] %vm1370, %v4163
        %4172 = vst.msk [vmem:[#allocation5 + $0x38] sm:$0xff] %vm1370, %v4164
        %v4173 = vld [vmem:[#allocation5] sm:$0xff]
        %v4174 = vld [vmem:[#allocation5 + $0x8] sm:$0xff]
        %v4175 = vld [vmem:[#allocation5 + $0x10] sm:$0xff]
        %v4176 = vld [vmem:[#allocation5 + $0x18] sm:$0xff]
        %v4177 = vld [vmem:[#allocation5 + $0x20] sm:$0xff]
        %v4178 = vld [vmem:[#allocation5 + $0x28] sm:$0xff]
        %v4179 = vld [vmem:[#allocation5 + $0x30] sm:$0xff]
        %v4180 = vld [vmem:[#allocation5 + $0x38] sm:$0xff]
        %v4181 = vld [vmem:[#allocation4 + $0x100] sm:$0xff]
        %v4182 = vld [vmem:[#allocation4 + $0x108] sm:$0xff]
        %v4183 = vld [vmem:[#allocation4 + $0x110] sm:$0xff]
        %v4184 = vld [vmem:[#allocation4 + $0x118] sm:$0xff]
        %v4185 = vld [vmem:[#allocation4 + $0x120] sm:$0xff]
        %v4186 = vld [vmem:[#allocation4 + $0x128] sm:$0xff]
        %v4187 = vld [vmem:[#allocation4 + $0x130] sm:$0xff]
        %v4188 = vld [vmem:[#allocation4 + $0x138] sm:$0xff]
        %4197 = vrot.lane.b32.xlu0 %v4181, 32
        %v4198 = vpop.permute.xlu0 %4197
        %4199 = vrot.lane.b32.xlu0 %v4182, 32
        %v4200 = vpop.permute.xlu0 %4199
        %4201 = vrot.lane.b32.xlu0 %v4183, 32
        %v4202 = vpop.permute.xlu0 %4201
        %4203 = vrot.lane.b32.xlu0 %v4184, 32
        %v4204 = vpop.permute.xlu0 %4203
        %4205 = vrot.lane.b32.xlu0 %v4185, 32
        %v4206 = vpop.permute.xlu0 %4205
        %4207 = vrot.lane.b32.xlu0 %v4186, 32
        %v4208 = vpop.permute.xlu0 %4207
        %4209 = vrot.lane.b32.xlu0 %v4187, 32
        %v4210 = vpop.permute.xlu0 %4209
        %4211 = vrot.lane.b32.xlu0 %v4188, 32
        %v4212 = vpop.permute.xlu0 %4211
        %v4221 = vadd.f32 %v4173, %v4198
        %v4222 = vadd.f32 %v4174, %v4200
        %v4223 = vadd.f32 %v4175, %v4202
        %v4224 = vadd.f32 %v4176, %v4204
        %v4225 = vadd.f32 %v4177, %v4206
        %v4226 = vadd.f32 %v4178, %v4208
        %v4227 = vadd.f32 %v4179, %v4210
        %v4228 = vadd.f32 %v4180, %v4212
        %4229 = vst.msk [vmem:[#allocation5] sm:$0xff] %vm1597, %v4221
        %4230 = vst.msk [vmem:[#allocation5 + $0x8] sm:$0xff] %vm1597, %v4222
        %4231 = vst.msk [vmem:[#allocation5 + $0x10] sm:$0xff] %vm1597, %v4223
        %4232 = vst.msk [vmem:[#allocation5 + $0x18] sm:$0xff] %vm1597, %v4224
        %4233 = vst.msk [vmem:[#allocation5 + $0x20] sm:$0xff] %vm1597, %v4225
        %4234 = vst.msk [vmem:[#allocation5 + $0x28] sm:$0xff] %vm1597, %v4226
        %4235 = vst.msk [vmem:[#allocation5 + $0x30] sm:$0xff] %vm1597, %v4227
        %4236 = vst.msk [vmem:[#allocation5 + $0x38] sm:$0xff] %vm1597, %v4228
        %v4237 = vld [vmem:[#allocation5] sm:$0xff]
        %v4238 = vld [vmem:[#allocation5 + $0x8] sm:$0xff]
        %v4239 = vld [vmem:[#allocation5 + $0x10] sm:$0xff]
        %v4240 = vld [vmem:[#allocation5 + $0x18] sm:$0xff]
        %v4241 = vld [vmem:[#allocation5 + $0x20] sm:$0xff]
        %v4242 = vld [vmem:[#allocation5 + $0x28] sm:$0xff]
        %v4243 = vld [vmem:[#allocation5 + $0x30] sm:$0xff]
        %v4244 = vld [vmem:[#allocation5 + $0x38] sm:$0xff]
        %v4245 = vld [vmem:[#allocation4 + $0x140] sm:$0xff]
        %v4246 = vld [vmem:[#allocation4 + $0x148] sm:$0xff]
        %v4247 = vld [vmem:[#allocation4 + $0x150] sm:$0xff]
        %v4248 = vld [vmem:[#allocation4 + $0x158] sm:$0xff]
        %v4249 = vld [vmem:[#allocation4 + $0x160] sm:$0xff]
        %v4250 = vld [vmem:[#allocation4 + $0x168] sm:$0xff]
        %v4251 = vld [vmem:[#allocation4 + $0x170] sm:$0xff]
        %v4252 = vld [vmem:[#allocation4 + $0x178] sm:$0xff]
        %4261 = vrot.lane.b32.xlu0 %v4245, 40
        %v4262 = vpop.permute.xlu0 %4261
        %4263 = vrot.lane.b32.xlu0 %v4246, 40
        %v4264 = vpop.permute.xlu0 %4263
        %4265 = vrot.lane.b32.xlu0 %v4247, 40
        %v4266 = vpop.permute.xlu0 %4265
        %4267 = vrot.lane.b32.xlu0 %v4248, 40
        %v4268 = vpop.permute.xlu0 %4267
        %4269 = vrot.lane.b32.xlu0 %v4249, 40
        %v4270 = vpop.permute.xlu0 %4269
        %4271 = vrot.lane.b32.xlu0 %v4250, 40
        %v4272 = vpop.permute.xlu0 %4271
        %4273 = vrot.lane.b32.xlu0 %v4251, 40
        %v4274 = vpop.permute.xlu0 %4273
        %4275 = vrot.lane.b32.xlu0 %v4252, 40
        %v4276 = vpop.permute.xlu0 %4275
        %v4285 = vadd.f32 %v4237, %v4262
        %v4286 = vadd.f32 %v4238, %v4264
        %v4287 = vadd.f32 %v4239, %v4266
        %v4288 = vadd.f32 %v4240, %v4268
        %v4289 = vadd.f32 %v4241, %v4270
        %v4290 = vadd.f32 %v4242, %v4272
        %v4291 = vadd.f32 %v4243, %v4274
        %v4292 = vadd.f32 %v4244, %v4276
        %4293 = vst.msk [vmem:[#allocation5] sm:$0xff] %vm1824, %v4285
        %4294 = vst.msk [vmem:[#allocation5 + $0x8] sm:$0xff] %vm1824, %v4286
        %4295 = vst.msk [vmem:[#allocation5 + $0x10] sm:$0xff] %vm1824, %v4287
        %4296 = vst.msk [vmem:[#allocation5 + $0x18] sm:$0xff] %vm1824, %v4288
        %4297 = vst.msk [vmem:[#allocation5 + $0x20] sm:$0xff] %vm1824, %v4289
        %4298 = vst.msk [vmem:[#allocation5 + $0x28] sm:$0xff] %vm1824, %v4290
        %4299 = vst.msk [vmem:[#allocation5 + $0x30] sm:$0xff] %vm1824, %v4291
        %4300 = vst.msk [vmem:[#allocation5 + $0x38] sm:$0xff] %vm1824, %v4292
        %v4301 = vld [vmem:[#allocation5] sm:$0xff]
        %v4302 = vld [vmem:[#allocation5 + $0x8] sm:$0xff]
        %v4303 = vld [vmem:[#allocation5 + $0x10] sm:$0xff]
        %v4304 = vld [vmem:[#allocation5 + $0x18] sm:$0xff]
        %v4305 = vld [vmem:[#allocation5 + $0x20] sm:$0xff]
        %v4306 = vld [vmem:[#allocation5 + $0x28] sm:$0xff]
        %v4307 = vld [vmem:[#allocation5 + $0x30] sm:$0xff]
        %v4308 = vld [vmem:[#allocation5 + $0x38] sm:$0xff]
        %v4309 = vld [vmem:[#allocation4 + $0x180] sm:$0xff]
        %v4310 = vld [vmem:[#allocation4 + $0x188] sm:$0xff]
        %v4311 = vld [vmem:[#allocation4 + $0x190] sm:$0xff]
        %v4312 = vld [vmem:[#allocation4 + $0x198] sm:$0xff]
        %v4313 = vld [vmem:[#allocation4 + $0x1a0] sm:$0xff]
        %v4314 = vld [vmem:[#allocation4 + $0x1a8] sm:$0xff]
        %v4315 = vld [vmem:[#allocation4 + $0x1b0] sm:$0xff]
        %v4316 = vld [vmem:[#allocation4 + $0x1b8] sm:$0xff]
        %4325 = vrot.lane.b32.xlu0 %v4309, 48
        %v4326 = vpop.permute.xlu0 %4325
        %4327 = vrot.lane.b32.xlu0 %v4310, 48
        %v4328 = vpop.permute.xlu0 %4327
        %4329 = vrot.lane.b32.xlu0 %v4311, 48
        %v4330 = vpop.permute.xlu0 %4329
        %4331 = vrot.lane.b32.xlu0 %v4312, 48
        %v4332 = vpop.permute.xlu0 %4331
        %4333 = vrot.lane.b32.xlu0 %v4313, 48
        %v4334 = vpop.permute.xlu0 %4333
        %4335 = vrot.lane.b32.xlu0 %v4314, 48
        %v4336 = vpop.permute.xlu0 %4335
        %4337 = vrot.lane.b32.xlu0 %v4315, 48
        %v4338 = vpop.permute.xlu0 %4337
        %4339 = vrot.lane.b32.xlu0 %v4316, 48
        %v4340 = vpop.permute.xlu0 %4339
        %v4349 = vadd.f32 %v4301, %v4326
        %v4350 = vadd.f32 %v4302, %v4328
        %v4351 = vadd.f32 %v4303, %v4330
        %v4352 = vadd.f32 %v4304, %v4332
        %v4353 = vadd.f32 %v4305, %v4334
        %v4354 = vadd.f32 %v4306, %v4336
        %v4355 = vadd.f32 %v4307, %v4338
        %v4356 = vadd.f32 %v4308, %v4340
        %4357 = vst.msk [vmem:[#allocation5] sm:$0xff] %vm2051, %v4349
        %4358 = vst.msk [vmem:[#allocation5 + $0x8] sm:$0xff] %vm2051, %v4350
        %4359 = vst.msk [vmem:[#allocation5 + $0x10] sm:$0xff] %vm2051, %v4351
        %4360 = vst.msk [vmem:[#allocation5 + $0x18] sm:$0xff] %vm2051, %v4352
        %4361 = vst.msk [vmem:[#allocation5 + $0x20] sm:$0xff] %vm2051, %v4353
        %4362 = vst.msk [vmem:[#allocation5 + $0x28] sm:$0xff] %vm2051, %v4354
        %4363 = vst.msk [vmem:[#allocation5 + $0x30] sm:$0xff] %vm2051, %v4355
        %4364 = vst.msk [vmem:[#allocation5 + $0x38] sm:$0xff] %vm2051, %v4356
        %v4365 = vld [vmem:[#allocation5] sm:$0xff]
        %v4366 = vld [vmem:[#allocation5 + $0x8] sm:$0xff]
        %v4367 = vld [vmem:[#allocation5 + $0x10] sm:$0xff]
        %v4368 = vld [vmem:[#allocation5 + $0x18] sm:$0xff]
        %v4369 = vld [vmem:[#allocation5 + $0x20] sm:$0xff]
        %v4370 = vld [vmem:[#allocation5 + $0x28] sm:$0xff]
        %v4371 = vld [vmem:[#allocation5 + $0x30] sm:$0xff]
        %v4372 = vld [vmem:[#allocation5 + $0x38] sm:$0xff]
        %v4373 = vld [vmem:[#allocation4 + $0x1c0] sm:$0xff]
        %v4374 = vld [vmem:[#allocation4 + $0x1c8] sm:$0xff]
        %v4375 = vld [vmem:[#allocation4 + $0x1d0] sm:$0xff]
        %v4376 = vld [vmem:[#allocation4 + $0x1d8] sm:$0xff]
        %v4377 = vld [vmem:[#allocation4 + $0x1e0] sm:$0xff]
        %v4378 = vld [vmem:[#allocation4 + $0x1e8] sm:$0xff]
        %v4379 = vld [vmem:[#allocation4 + $0x1f0] sm:$0xff]
        %v4380 = vld [vmem:[#allocation4 + $0x1f8] sm:$0xff]
        %4389 = vrot.lane.b32.xlu0 %v4373, 56
        %v4390 = vpop.permute.xlu0 %4389
        %4391 = vrot.lane.b32.xlu0 %v4374, 56
        %v4392 = vpop.permute.xlu0 %4391
        %4393 = vrot.lane.b32.xlu0 %v4375, 56
        %v4394 = vpop.permute.xlu0 %4393
        %4395 = vrot.lane.b32.xlu0 %v4376, 56
        %v4396 = vpop.permute.xlu0 %4395
        %4397 = vrot.lane.b32.xlu0 %v4377, 56
        %v4398 = vpop.permute.xlu0 %4397
        %4399 = vrot.lane.b32.xlu0 %v4378, 56
        %v4400 = vpop.permute.xlu0 %4399
        %4401 = vrot.lane.b32.xlu0 %v4379, 56
        %v4402 = vpop.permute.xlu0 %4401
        %4403 = vrot.lane.b32.xlu0 %v4380, 56
        %v4404 = vpop.permute.xlu0 %4403
        %v4413 = vadd.f32 %v4365, %v4390
        %v4414 = vadd.f32 %v4366, %v4392
        %v4415 = vadd.f32 %v4367, %v4394
        %v4416 = vadd.f32 %v4368, %v4396
        %v4417 = vadd.f32 %v4369, %v4398
        %v4418 = vadd.f32 %v4370, %v4400
        %v4419 = vadd.f32 %v4371, %v4402
        %v4420 = vadd.f32 %v4372, %v4404
        %4421 = vst.msk [vmem:[#allocation5] sm:$0xff] %vm2278, %v4413
        %4422 = vst.msk [vmem:[#allocation5 + $0x8] sm:$0xff] %vm2278, %v4414
        %4423 = vst.msk [vmem:[#allocation5 + $0x10] sm:$0xff] %vm2278, %v4415
        %4424 = vst.msk [vmem:[#allocation5 + $0x18] sm:$0xff] %vm2278, %v4416
        %4425 = vst.msk [vmem:[#allocation5 + $0x20] sm:$0xff] %vm2278, %v4417
        %4426 = vst.msk [vmem:[#allocation5 + $0x28] sm:$0xff] %vm2278, %v4418
        %4427 = vst.msk [vmem:[#allocation5 + $0x30] sm:$0xff] %vm2278, %v4419
        %4428 = vst.msk [vmem:[#allocation5 + $0x38] sm:$0xff] %vm2278, %v4420
        %v4429 = vld [vmem:[#allocation5] sm:$0xff]
        %v4430 = vld [vmem:[#allocation5 + $0x8] sm:$0xff]
        %v4431 = vld [vmem:[#allocation5 + $0x10] sm:$0xff]
        %v4432 = vld [vmem:[#allocation5 + $0x18] sm:$0xff]
        %v4433 = vld [vmem:[#allocation5 + $0x20] sm:$0xff]
        %v4434 = vld [vmem:[#allocation5 + $0x28] sm:$0xff]
        %v4435 = vld [vmem:[#allocation5 + $0x30] sm:$0xff]
        %v4436 = vld [vmem:[#allocation5 + $0x38] sm:$0xff]
        %vm4437 = vcmp.ge.f32.partialorder %v4429, 0.0
        %vm4438 = vcmp.ge.f32.partialorder %v4430, 0.0
        %vm4439 = vcmp.ge.f32.partialorder %v4431, 0.0
        %vm4440 = vcmp.ge.f32.partialorder %v4432, 0.0
        %vm4441 = vcmp.ge.f32.partialorder %v4433, 0.0
        %vm4442 = vcmp.ge.f32.partialorder %v4434, 0.0
        %vm4443 = vcmp.ge.f32.partialorder %v4435, 0.0
        %vm4444 = vcmp.ge.f32.partialorder %v4436, 0.0
        %v4445 = vmul.f32 %v4429, 0.01
        %v4446 = vmul.f32 %v4430, 0.01
        %v4447 = vmul.f32 %v4431, 0.01
        %v4448 = vmul.f32 %v4432, 0.01
        %v4449 = vmul.f32 %v4433, 0.01
        %v4450 = vmul.f32 %v4434, 0.01
        %v4451 = vmul.f32 %v4435, 0.01
        %v4452 = vmul.f32 %v4436, 0.01
        %v4453 = vsel %vm4437, %v4429, %v4445
        %v4454 = vsel %vm4438, %v4430, %v4446
        %v4455 = vsel %vm4439, %v4431, %v4447
        %v4456 = vsel %vm4440, %v4432, %v4448
        %v4457 = vsel %vm4441, %v4433, %v4449
        %v4458 = vsel %vm4442, %v4434, %v4450
        %v4459 = vsel %vm4443, %v4435, %v4451
        %v4460 = vsel %vm4444, %v4436, %v4452
        %v4461 = vadd.f32 %v2287, %v4453
        %v4462 = vadd.f32 %v2288, %v4454
        %v4463 = vadd.f32 %v2289, %v4455
        %v4464 = vadd.f32 %v2290, %v4456
        %v4465 = vadd.f32 %v2291, %v4457
        %v4466 = vadd.f32 %v2292, %v4458
        %v4467 = vadd.f32 %v2293, %v4459
        %v4468 = vadd.f32 %v2294, %v4460
        %4469 = vst.msk [vmem:[#allocation2] sm:$0xff] %vm3875, %v4461
        %4470 = vst.msk [vmem:[#allocation2 + $0x8] sm:$0xff] %vm3875, %v4462
        %4471 = vst.msk [vmem:[#allocation2 + $0x10] sm:$0xff] %vm3875, %v4463
        %4472 = vst.msk [vmem:[#allocation2 + $0x18] sm:$0xff] %vm3875, %v4464
        %4473 = vst.msk [vmem:[#allocation2 + $0x20] sm:$0xff] %vm3875, %v4465
        %4474 = vst.msk [vmem:[#allocation2 + $0x28] sm:$0xff] %vm3875, %v4466
        %4475 = vst.msk [vmem:[#allocation2 + $0x30] sm:$0xff] %vm3875, %v4467
        %4476 = vst.msk [vmem:[#allocation2 + $0x38] sm:$0xff] %vm3875, %v4468
        %v4477 = vld [vmem:[#allocation2] sm:$0xff]
        %v4478 = vld [vmem:[#allocation2 + $0x8] sm:$0xff]
        %v4479 = vld [vmem:[#allocation2 + $0x10] sm:$0xff]
        %v4480 = vld [vmem:[#allocation2 + $0x18] sm:$0xff]
        %v4481 = vld [vmem:[#allocation2 + $0x20] sm:$0xff]
        %v4482 = vld [vmem:[#allocation2 + $0x28] sm:$0xff]
        %v4483 = vld [vmem:[#allocation2 + $0x30] sm:$0xff]
        %v4484 = vld [vmem:[#allocation2 + $0x38] sm:$0xff]
        %4485 = vst.msk [vmem:[#allocation3] sm:$0xff] %vm689, %v4477
        %4486 = vst.msk [vmem:[#allocation3 + $0x8] sm:$0xff] %vm689, %v4478
        %4487 = vst.msk [vmem:[#allocation3 + $0x10] sm:$0xff] %vm689, %v4479
        %4488 = vst.msk [vmem:[#allocation3 + $0x18] sm:$0xff] %vm689, %v4480
        %4489 = vst.msk [vmem:[#allocation3 + $0x20] sm:$0xff] %vm689, %v4481
        %4490 = vst.msk [vmem:[#allocation3 + $0x28] sm:$0xff] %vm689, %v4482
        %4491 = vst.msk [vmem:[#allocation3 + $0x30] sm:$0xff] %vm689, %v4483
        %4492 = vst.msk [vmem:[#allocation3 + $0x38] sm:$0xff] %vm689, %v4484
        %v4493 = vld [vmem:[#allocation2] sm:$0xff]
        %v4494 = vld [vmem:[#allocation2 + $0x8] sm:$0xff]
        %v4495 = vld [vmem:[#allocation2 + $0x10] sm:$0xff]
        %v4496 = vld [vmem:[#allocation2 + $0x18] sm:$0xff]
        %v4497 = vld [vmem:[#allocation2 + $0x20] sm:$0xff]
        %v4498 = vld [vmem:[#allocation2 + $0x28] sm:$0xff]
        %v4499 = vld [vmem:[#allocation2 + $0x30] sm:$0xff]
        %v4500 = vld [vmem:[#allocation2 + $0x38] sm:$0xff]
        %4509 = vrot.lane.b32.xlu0 %v4493, 120
        %v4510 = vpop.permute.xlu0 %4509
        %4511 = vrot.lane.b32.xlu0 %v4494, 120
        %v4512 = vpop.permute.xlu0 %4511
        %4513 = vrot.lane.b32.xlu0 %v4495, 120
        %v4514 = vpop.permute.xlu0 %4513
        %4515 = vrot.lane.b32.xlu0 %v4496, 120
        %v4516 = vpop.permute.xlu0 %4515
        %4517 = vrot.lane.b32.xlu0 %v4497, 120
        %v4518 = vpop.permute.xlu0 %4517
        %4519 = vrot.lane.b32.xlu0 %v4498, 120
        %v4520 = vpop.permute.xlu0 %4519
        %4521 = vrot.lane.b32.xlu0 %v4499, 120
        %v4522 = vpop.permute.xlu0 %4521
        %4523 = vrot.lane.b32.xlu0 %v4500, 120
        %v4524 = vpop.permute.xlu0 %4523
        %4533 = vst.msk [vmem:[#allocation3 + $0x40] sm:$0xff] %vm689, %v4510
        %4534 = vst.msk [vmem:[#allocation3 + $0x48] sm:$0xff] %vm689, %v4512
        %4535 = vst.msk [vmem:[#allocation3 + $0x50] sm:$0xff] %vm689, %v4514
        %4536 = vst.msk [vmem:[#allocation3 + $0x58] sm:$0xff] %vm689, %v4516
        %4537 = vst.msk [vmem:[#allocation3 + $0x60] sm:$0xff] %vm689, %v4518
        %4538 = vst.msk [vmem:[#allocation3 + $0x68] sm:$0xff] %vm689, %v4520
        %4539 = vst.msk [vmem:[#allocation3 + $0x70] sm:$0xff] %vm689, %v4522
        %4540 = vst.msk [vmem:[#allocation3 + $0x78] sm:$0xff] %vm689, %v4524
        %v4541 = vld [vmem:[#allocation2] sm:$0xff]
        %v4542 = vld [vmem:[#allocation2 + $0x8] sm:$0xff]
        %v4543 = vld [vmem:[#allocation2 + $0x10] sm:$0xff]
        %v4544 = vld [vmem:[#allocation2 + $0x18] sm:$0xff]
        %v4545 = vld [vmem:[#allocation2 + $0x20] sm:$0xff]
        %v4546 = vld [vmem:[#allocation2 + $0x28] sm:$0xff]
        %v4547 = vld [vmem:[#allocation2 + $0x30] sm:$0xff]
        %v4548 = vld [vmem:[#allocation2 + $0x38] sm:$0xff]
        %4557 = vrot.lane.b32.xlu0 %v4541, 112
        %v4558 = vpop.permute.xlu0 %4557
        %4559 = vrot.lane.b32.xlu0 %v4542, 112
        %v4560 = vpop.permute.xlu0 %4559
        %4561 = vrot.lane.b32.xlu0 %v4543, 112
        %v4562 = vpop.permute.xlu0 %4561
        %4563 = vrot.lane.b32.xlu0 %v4544, 112
        %v4564 = vpop.permute.xlu0 %4563
        %4565 = vrot.lane.b32.xlu0 %v4545, 112
        %v4566 = vpop.permute.xlu0 %4565
        %4567 = vrot.lane.b32.xlu0 %v4546, 112
        %v4568 = vpop.permute.xlu0 %4567
        %4569 = vrot.lane.b32.xlu0 %v4547, 112
        %v4570 = vpop.permute.xlu0 %4569
        %4571 = vrot.lane.b32.xlu0 %v4548, 112
        %v4572 = vpop.permute.xlu0 %4571
        %4581 = vst.msk [vmem:[#allocation3 + $0x80] sm:$0xff] %vm689, %v4558
        %4582 = vst.msk [vmem:[#allocation3 + $0x88] sm:$0xff] %vm689, %v4560
        %4583 = vst.msk [vmem:[#allocation3 + $0x90] sm:$0xff] %vm689, %v4562
        %4584 = vst.msk [vmem:[#allocation3 + $0x98] sm:$0xff] %vm689, %v4564
        %4585 = vst.msk [vmem:[#allocation3 + $0xa0] sm:$0xff] %vm689, %v4566
        %4586 = vst.msk [vmem:[#allocation3 + $0xa8] sm:$0xff] %vm689, %v4568
        %4587 = vst.msk [vmem:[#allocation3 + $0xb0] sm:$0xff] %vm689, %v4570
        %4588 = vst.msk [vmem:[#allocation3 + $0xb8] sm:$0xff] %vm689, %v4572
        %v4589 = vld [vmem:[#allocation2] sm:$0xff]
        %v4590 = vld [vmem:[#allocation2 + $0x8] sm:$0xff]
        %v4591 = vld [vmem:[#allocation2 + $0x10] sm:$0xff]
        %v4592 = vld [vmem:[#allocation2 + $0x18] sm:$0xff]
        %v4593 = vld [vmem:[#allocation2 + $0x20] sm:$0xff]
        %v4594 = vld [vmem:[#allocation2 + $0x28] sm:$0xff]
        %v4595 = vld [vmem:[#allocation2 + $0x30] sm:$0xff]
        %v4596 = vld [vmem:[#allocation2 + $0x38] sm:$0xff]
        %4605 = vrot.lane.b32.xlu0 %v4589, 104
        %v4606 = vpop.permute.xlu0 %4605
        %4607 = vrot.lane.b32.xlu0 %v4590, 104
        %v4608 = vpop.permute.xlu0 %4607
        %4609 = vrot.lane.b32.xlu0 %v4591, 104
        %v4610 = vpop.permute.xlu0 %4609
        %4611 = vrot.lane.b32.xlu0 %v4592, 104
        %v4612 = vpop.permute.xlu0 %4611
        %4613 = vrot.lane.b32.xlu0 %v4593, 104
        %v4614 = vpop.permute.xlu0 %4613
        %4615 = vrot.lane.b32.xlu0 %v4594, 104
        %v4616 = vpop.permute.xlu0 %4615
        %4617 = vrot.lane.b32.xlu0 %v4595, 104
        %v4618 = vpop.permute.xlu0 %4617
        %4619 = vrot.lane.b32.xlu0 %v4596, 104
        %v4620 = vpop.permute.xlu0 %4619
        %4629 = vst.msk [vmem:[#allocation3 + $0xc0] sm:$0xff] %vm689, %v4606
        %4630 = vst.msk [vmem:[#allocation3 + $0xc8] sm:$0xff] %vm689, %v4608
        %4631 = vst.msk [vmem:[#allocation3 + $0xd0] sm:$0xff] %vm689, %v4610
        %4632 = vst.msk [vmem:[#allocation3 + $0xd8] sm:$0xff] %vm689, %v4612
        %4633 = vst.msk [vmem:[#allocation3 + $0xe0] sm:$0xff] %vm689, %v4614
        %4634 = vst.msk [vmem:[#allocation3 + $0xe8] sm:$0xff] %vm689, %v4616
        %4635 = vst.msk [vmem:[#allocation3 + $0xf0] sm:$0xff] %vm689, %v4618
        %4636 = vst.msk [vmem:[#allocation3 + $0xf8] sm:$0xff] %vm689, %v4620
        %v4637 = vld [vmem:[#allocation2] sm:$0xff]
        %v4638 = vld [vmem:[#allocation2 + $0x8] sm:$0xff]
        %v4639 = vld [vmem:[#allocation2 + $0x10] sm:$0xff]
        %v4640 = vld [vmem:[#allocation2 + $0x18] sm:$0xff]
        %v4641 = vld [vmem:[#allocation2 + $0x20] sm:$0xff]
        %v4642 = vld [vmem:[#allocation2 + $0x28] sm:$0xff]
        %v4643 = vld [vmem:[#allocation2 + $0x30] sm:$0xff]
        %v4644 = vld [vmem:[#allocation2 + $0x38] sm:$0xff]
        %4653 = vrot.lane.b32.xlu0 %v4637, 96
        %v4654 = vpop.permute.xlu0 %4653
        %4655 = vrot.lane.b32.xlu0 %v4638, 96
        %v4656 = vpop.permute.xlu0 %4655
        %4657 = vrot.lane.b32.xlu0 %v4639, 96
        %v4658 = vpop.permute.xlu0 %4657
        %4659 = vrot.lane.b32.xlu0 %v4640, 96
        %v4660 = vpop.permute.xlu0 %4659
        %4661 = vrot.lane.b32.xlu0 %v4641, 96
        %v4662 = vpop.permute.xlu0 %4661
        %4663 = vrot.lane.b32.xlu0 %v4642, 96
        %v4664 = vpop.permute.xlu0 %4663
        %4665 = vrot.lane.b32.xlu0 %v4643, 96
        %v4666 = vpop.permute.xlu0 %4665
        %4667 = vrot.lane.b32.xlu0 %v4644, 96
        %v4668 = vpop.permute.xlu0 %4667
        %4677 = vst.msk [vmem:[#allocation3 + $0x100] sm:$0xff] %vm689, %v4654
        %4678 = vst.msk [vmem:[#allocation3 + $0x108] sm:$0xff] %vm689, %v4656
        %4679 = vst.msk [vmem:[#allocation3 + $0x110] sm:$0xff] %vm689, %v4658
        %4680 = vst.msk [vmem:[#allocation3 + $0x118] sm:$0xff] %vm689, %v4660
        %4681 = vst.msk [vmem:[#allocation3 + $0x120] sm:$0xff] %vm689, %v4662
        %4682 = vst.msk [vmem:[#allocation3 + $0x128] sm:$0xff] %vm689, %v4664
        %4683 = vst.msk [vmem:[#allocation3 + $0x130] sm:$0xff] %vm689, %v4666
        %4684 = vst.msk [vmem:[#allocation3 + $0x138] sm:$0xff] %vm689, %v4668
        %v4685 = vld [vmem:[#allocation2] sm:$0xff]
        %v4686 = vld [vmem:[#allocation2 + $0x8] sm:$0xff]
        %v4687 = vld [vmem:[#allocation2 + $0x10] sm:$0xff]
        %v4688 = vld [vmem:[#allocation2 + $0x18] sm:$0xff]
        %v4689 = vld [vmem:[#allocation2 + $0x20] sm:$0xff]
        %v4690 = vld [vmem:[#allocation2 + $0x28] sm:$0xff]
        %v4691 = vld [vmem:[#allocation2 + $0x30] sm:$0xff]
        %v4692 = vld [vmem:[#allocation2 + $0x38] sm:$0xff]
        %4701 = vrot.lane.b32.xlu0 %v4685, 88
        %v4702 = vpop.permute.xlu0 %4701
        %4703 = vrot.lane.b32.xlu0 %v4686, 88
        %v4704 = vpop.permute.xlu0 %4703
        %4705 = vrot.lane.b32.xlu0 %v4687, 88
        %v4706 = vpop.permute.xlu0 %4705
        %4707 = vrot.lane.b32.xlu0 %v4688, 88
        %v4708 = vpop.permute.xlu0 %4707
        %4709 = vrot.lane.b32.xlu0 %v4689, 88
        %v4710 = vpop.permute.xlu0 %4709
        %4711 = vrot.lane.b32.xlu0 %v4690, 88
        %v4712 = vpop.permute.xlu0 %4711
        %4713 = vrot.lane.b32.xlu0 %v4691, 88
        %v4714 = vpop.permute.xlu0 %4713
        %4715 = vrot.lane.b32.xlu0 %v4692, 88
        %v4716 = vpop.permute.xlu0 %4715
        %4725 = vst.msk [vmem:[#allocation3 + $0x140] sm:$0xff] %vm689, %v4702
        %4726 = vst.msk [vmem:[#allocation3 + $0x148] sm:$0xff] %vm689, %v4704
        %4727 = vst.msk [vmem:[#allocation3 + $0x150] sm:$0xff] %vm689, %v4706
        %4728 = vst.msk [vmem:[#allocation3 + $0x158] sm:$0xff] %vm689, %v4708
        %4729 = vst.msk [vmem:[#allocation3 + $0x160] sm:$0xff] %vm689, %v4710
        %4730 = vst.msk [vmem:[#allocation3 + $0x168] sm:$0xff] %vm689, %v4712
        %4731 = vst.msk [vmem:[#allocation3 + $0x170] sm:$0xff] %vm689, %v4714
        %4732 = vst.msk [vmem:[#allocation3 + $0x178] sm:$0xff] %vm689, %v4716
        %v4733 = vld [vmem:[#allocation2] sm:$0xff]
        %v4734 = vld [vmem:[#allocation2 + $0x8] sm:$0xff]
        %v4735 = vld [vmem:[#allocation2 + $0x10] sm:$0xff]
        %v4736 = vld [vmem:[#allocation2 + $0x18] sm:$0xff]
        %v4737 = vld [vmem:[#allocation2 + $0x20] sm:$0xff]
        %v4738 = vld [vmem:[#allocation2 + $0x28] sm:$0xff]
        %v4739 = vld [vmem:[#allocation2 + $0x30] sm:$0xff]
        %v4740 = vld [vmem:[#allocation2 + $0x38] sm:$0xff]
        %4749 = vrot.lane.b32.xlu0 %v4733, 80
        %v4750 = vpop.permute.xlu0 %4749
        %4751 = vrot.lane.b32.xlu0 %v4734, 80
        %v4752 = vpop.permute.xlu0 %4751
        %4753 = vrot.lane.b32.xlu0 %v4735, 80
        %v4754 = vpop.permute.xlu0 %4753
        %4755 = vrot.lane.b32.xlu0 %v4736, 80
        %v4756 = vpop.permute.xlu0 %4755
        %4757 = vrot.lane.b32.xlu0 %v4737, 80
        %v4758 = vpop.permute.xlu0 %4757
        %4759 = vrot.lane.b32.xlu0 %v4738, 80
        %v4760 = vpop.permute.xlu0 %4759
        %4761 = vrot.lane.b32.xlu0 %v4739, 80
        %v4762 = vpop.permute.xlu0 %4761
        %4763 = vrot.lane.b32.xlu0 %v4740, 80
        %v4764 = vpop.permute.xlu0 %4763
        %4773 = vst.msk [vmem:[#allocation3 + $0x180] sm:$0xff] %vm689, %v4750
        %4774 = vst.msk [vmem:[#allocation3 + $0x188] sm:$0xff] %vm689, %v4752
        %4775 = vst.msk [vmem:[#allocation3 + $0x190] sm:$0xff] %vm689, %v4754
        %4776 = vst.msk [vmem:[#allocation3 + $0x198] sm:$0xff] %vm689, %v4756
        %4777 = vst.msk [vmem:[#allocation3 + $0x1a0] sm:$0xff] %vm689, %v4758
        %4778 = vst.msk [vmem:[#allocation3 + $0x1a8] sm:$0xff] %vm689, %v4760
        %4779 = vst.msk [vmem:[#allocation3 + $0x1b0] sm:$0xff] %vm689, %v4762
        %4780 = vst.msk [vmem:[#allocation3 + $0x1b8] sm:$0xff] %vm689, %v4764
        %v4781 = vld [vmem:[#allocation2] sm:$0xff]
        %v4782 = vld [vmem:[#allocation2 + $0x8] sm:$0xff]
        %v4783 = vld [vmem:[#allocation2 + $0x10] sm:$0xff]
        %v4784 = vld [vmem:[#allocation2 + $0x18] sm:$0xff]
        %v4785 = vld [vmem:[#allocation2 + $0x20] sm:$0xff]
        %v4786 = vld [vmem:[#allocation2 + $0x28] sm:$0xff]
        %v4787 = vld [vmem:[#allocation2 + $0x30] sm:$0xff]
        %v4788 = vld [vmem:[#allocation2 + $0x38] sm:$0xff]
        %4797 = vrot.lane.b32.xlu0 %v4781, 72
        %v4798 = vpop.permute.xlu0 %4797
        %4799 = vrot.lane.b32.xlu0 %v4782, 72
        %v4800 = vpop.permute.xlu0 %4799
        %4801 = vrot.lane.b32.xlu0 %v4783, 72
        %v4802 = vpop.permute.xlu0 %4801
        %4803 = vrot.lane.b32.xlu0 %v4784, 72
        %v4804 = vpop.permute.xlu0 %4803
        %4805 = vrot.lane.b32.xlu0 %v4785, 72
        %v4806 = vpop.permute.xlu0 %4805
        %4807 = vrot.lane.b32.xlu0 %v4786, 72
        %v4808 = vpop.permute.xlu0 %4807
        %4809 = vrot.lane.b32.xlu0 %v4787, 72
        %v4810 = vpop.permute.xlu0 %4809
        %4811 = vrot.lane.b32.xlu0 %v4788, 72
        %v4812 = vpop.permute.xlu0 %4811
        %4821 = vst.msk [vmem:[#allocation3 + $0x1c0] sm:$0xff] %vm689, %v4798
        %4822 = vst.msk [vmem:[#allocation3 + $0x1c8] sm:$0xff] %vm689, %v4800
        %4823 = vst.msk [vmem:[#allocation3 + $0x1d0] sm:$0xff] %vm689, %v4802
        %4824 = vst.msk [vmem:[#allocation3 + $0x1d8] sm:$0xff] %vm689, %v4804
        %4825 = vst.msk [vmem:[#allocation3 + $0x1e0] sm:$0xff] %vm689, %v4806
        %4826 = vst.msk [vmem:[#allocation3 + $0x1e8] sm:$0xff] %vm689, %v4808
        %4827 = vst.msk [vmem:[#allocation3 + $0x1f0] sm:$0xff] %vm689, %v4810
        %4828 = vst.msk [vmem:[#allocation3 + $0x1f8] sm:$0xff] %vm689, %v4812
        %v4829 = vld [vmem:[%s8] sm:$0xff]
        %v4830 = vld [vmem:[%s8 + $0x8] sm:$0xff]
        %v4831 = vld [vmem:[%s8 + $0x10] sm:$0xff]
        %v4832 = vld [vmem:[%s8 + $0x18] sm:$0xff]
        %v4833 = vld [vmem:[%s8 + $0x20] sm:$0xff]
        %v4834 = vld [vmem:[%s8 + $0x28] sm:$0xff]
        %v4835 = vld [vmem:[%s8 + $0x30] sm:$0xff]
        %v4836 = vld [vmem:[%s8 + $0x38] sm:$0xff]
        %v4837 = vld [vmem:[%s8 + $0x40] sm:$0xff]
        %v4838 = vld [vmem:[%s8 + $0x48] sm:$0xff]
        %v4839 = vld [vmem:[%s8 + $0x50] sm:$0xff]
        %v4840 = vld [vmem:[%s8 + $0x58] sm:$0xff]
        %v4841 = vld [vmem:[%s8 + $0x60] sm:$0xff]
        %v4842 = vld [vmem:[%s8 + $0x68] sm:$0xff]
        %v4843 = vld [vmem:[%s8 + $0x70] sm:$0xff]
        %v4844 = vld [vmem:[%s8 + $0x78] sm:$0xff]
        %v4845 = vld [vmem:[%s8 + $0x80] sm:$0xff]
        %v4846 = vld [vmem:[%s8 + $0x88] sm:$0xff]
        %v4847 = vld [vmem:[%s8 + $0x90] sm:$0xff]
        %v4848 = vld [vmem:[%s8 + $0x98] sm:$0xff]
        %v4849 = vld [vmem:[%s8 + $0xa0] sm:$0xff]
        %v4850 = vld [vmem:[%s8 + $0xa8] sm:$0xff]
        %v4851 = vld [vmem:[%s8 + $0xb0] sm:$0xff]
        %v4852 = vld [vmem:[%s8 + $0xb8] sm:$0xff]
        %v4853 = vld [vmem:[%s8 + $0xc0] sm:$0xff]
        %v4854 = vld [vmem:[%s8 + $0xc8] sm:$0xff]
        %v4855 = vld [vmem:[%s8 + $0xd0] sm:$0xff]
        %v4856 = vld [vmem:[%s8 + $0xd8] sm:$0xff]
        %v4857 = vld [vmem:[%s8 + $0xe0] sm:$0xff]
        %v4858 = vld [vmem:[%s8 + $0xe8] sm:$0xff]
        %v4859 = vld [vmem:[%s8 + $0xf0] sm:$0xff]
        %v4860 = vld [vmem:[%s8 + $0xf8] sm:$0xff]
        %v4861 = vld [vmem:[%s8 + $0x100] sm:$0xff]
        %v4862 = vld [vmem:[%s8 + $0x108] sm:$0xff]
        %v4863 = vld [vmem:[%s8 + $0x110] sm:$0xff]
        %v4864 = vld [vmem:[%s8 + $0x118] sm:$0xff]
        %v4865 = vld [vmem:[%s8 + $0x120] sm:$0xff]
        %v4866 = vld [vmem:[%s8 + $0x128] sm:$0xff]
        %v4867 = vld [vmem:[%s8 + $0x130] sm:$0xff]
        %v4868 = vld [vmem:[%s8 + $0x138] sm:$0xff]
        %v4869 = vld [vmem:[%s8 + $0x140] sm:$0xff]
        %v4870 = vld [vmem:[%s8 + $0x148] sm:$0xff]
        %v4871 = vld [vmem:[%s8 + $0x150] sm:$0xff]
        %v4872 = vld [vmem:[%s8 + $0x158] sm:$0xff]
        %v4873 = vld [vmem:[%s8 + $0x160] sm:$0xff]
        %v4874 = vld [vmem:[%s8 + $0x168] sm:$0xff]
        %v4875 = vld [vmem:[%s8 + $0x170] sm:$0xff]
        %v4876 = vld [vmem:[%s8 + $0x178] sm:$0xff]
        %v4877 = vld [vmem:[%s8 + $0x180] sm:$0xff]
        %v4878 = vld [vmem:[%s8 + $0x188] sm:$0xff]
        %v4879 = vld [vmem:[%s8 + $0x190] sm:$0xff]
        %v4880 = vld [vmem:[%s8 + $0x198] sm:$0xff]
        %v4881 = vld [vmem:[%s8 + $0x1a0] sm:$0xff]
        %v4882 = vld [vmem:[%s8 + $0x1a8] sm:$0xff]
        %v4883 = vld [vmem:[%s8 + $0x1b0] sm:$0xff]
        %v4884 = vld [vmem:[%s8 + $0x1b8] sm:$0xff]
        %v4885 = vld [vmem:[%s8 + $0x1c0] sm:$0xff]
        %v4886 = vld [vmem:[%s8 + $0x1c8] sm:$0xff]
        %v4887 = vld [vmem:[%s8 + $0x1d0] sm:$0xff]
        %v4888 = vld [vmem:[%s8 + $0x1d8] sm:$0xff]
        %v4889 = vld [vmem:[%s8 + $0x1e0] sm:$0xff]
        %v4890 = vld [vmem:[%s8 + $0x1e8] sm:$0xff]
        %v4891 = vld [vmem:[%s8 + $0x1f0] sm:$0xff]
        %v4892 = vld [vmem:[%s8 + $0x1f8] sm:$0xff]
        %v4893 = vld [vmem:[%s8 + $0x200] sm:$0xff]
        %v4894 = vld [vmem:[%s8 + $0x208] sm:$0xff]
        %v4895 = vld [vmem:[%s8 + $0x210] sm:$0xff]
        %v4896 = vld [vmem:[%s8 + $0x218] sm:$0xff]
        %v4897 = vld [vmem:[%s8 + $0x220] sm:$0xff]
        %v4898 = vld [vmem:[%s8 + $0x228] sm:$0xff]
        %v4899 = vld [vmem:[%s8 + $0x230] sm:$0xff]
        %v4900 = vld [vmem:[%s8 + $0x238] sm:$0xff]
        %v4901 = vld [vmem:[%s8 + $0x240] sm:$0xff]
        %v4902 = vld [vmem:[%s8 + $0x248] sm:$0xff]
        %v4903 = vld [vmem:[%s8 + $0x250] sm:$0xff]
        %v4904 = vld [vmem:[%s8 + $0x258] sm:$0xff]
        %v4905 = vld [vmem:[%s8 + $0x260] sm:$0xff]
        %v4906 = vld [vmem:[%s8 + $0x268] sm:$0xff]
        %v4907 = vld [vmem:[%s8 + $0x270] sm:$0xff]
        %v4908 = vld [vmem:[%s8 + $0x278] sm:$0xff]
        %v4909 = vld [vmem:[%s8 + $0x280] sm:$0xff]
        %v4910 = vld [vmem:[%s8 + $0x288] sm:$0xff]
        %v4911 = vld [vmem:[%s8 + $0x290] sm:$0xff]
        %v4912 = vld [vmem:[%s8 + $0x298] sm:$0xff]
        %v4913 = vld [vmem:[%s8 + $0x2a0] sm:$0xff]
        %v4914 = vld [vmem:[%s8 + $0x2a8] sm:$0xff]
        %v4915 = vld [vmem:[%s8 + $0x2b0] sm:$0xff]
        %v4916 = vld [vmem:[%s8 + $0x2b8] sm:$0xff]
        %v4917 = vld [vmem:[%s8 + $0x2c0] sm:$0xff]
        %v4918 = vld [vmem:[%s8 + $0x2c8] sm:$0xff]
        %v4919 = vld [vmem:[%s8 + $0x2d0] sm:$0xff]
        %v4920 = vld [vmem:[%s8 + $0x2d8] sm:$0xff]
        %v4921 = vld [vmem:[%s8 + $0x2e0] sm:$0xff]
        %v4922 = vld [vmem:[%s8 + $0x2e8] sm:$0xff]
        %v4923 = vld [vmem:[%s8 + $0x2f0] sm:$0xff]
        %v4924 = vld [vmem:[%s8 + $0x2f8] sm:$0xff]
        %v4925 = vld [vmem:[%s8 + $0x300] sm:$0xff]
        %v4926 = vld [vmem:[%s8 + $0x308] sm:$0xff]
        %v4927 = vld [vmem:[%s8 + $0x310] sm:$0xff]
        %v4928 = vld [vmem:[%s8 + $0x318] sm:$0xff]
        %v4929 = vld [vmem:[%s8 + $0x320] sm:$0xff]
        %v4930 = vld [vmem:[%s8 + $0x328] sm:$0xff]
        %v4931 = vld [vmem:[%s8 + $0x330] sm:$0xff]
        %v4932 = vld [vmem:[%s8 + $0x338] sm:$0xff]
        %v4933 = vld [vmem:[%s8 + $0x340] sm:$0xff]
        %v4934 = vld [vmem:[%s8 + $0x348] sm:$0xff]
        %v4935 = vld [vmem:[%s8 + $0x350] sm:$0xff]
        %v4936 = vld [vmem:[%s8 + $0x358] sm:$0xff]
        %v4937 = vld [vmem:[%s8 + $0x360] sm:$0xff]
        %v4938 = vld [vmem:[%s8 + $0x368] sm:$0xff]
        %v4939 = vld [vmem:[%s8 + $0x370] sm:$0xff]
        %v4940 = vld [vmem:[%s8 + $0x378] sm:$0xff]
        %v4941 = vld [vmem:[%s8 + $0x380] sm:$0xff]
        %v4942 = vld [vmem:[%s8 + $0x388] sm:$0xff]
        %v4943 = vld [vmem:[%s8 + $0x390] sm:$0xff]
        %v4944 = vld [vmem:[%s8 + $0x398] sm:$0xff]
        %v4945 = vld [vmem:[%s8 + $0x3a0] sm:$0xff]
        %v4946 = vld [vmem:[%s8 + $0x3a8] sm:$0xff]
        %v4947 = vld [vmem:[%s8 + $0x3b0] sm:$0xff]
        %v4948 = vld [vmem:[%s8 + $0x3b8] sm:$0xff]
        %v4949 = vld [vmem:[%s8 + $0x3c0] sm:$0xff]
        %v4950 = vld [vmem:[%s8 + $0x3c8] sm:$0xff]
        %v4951 = vld [vmem:[%s8 + $0x3d0] sm:$0xff]
        %v4952 = vld [vmem:[%s8 + $0x3d8] sm:$0xff]
        %v4953 = vld [vmem:[%s8 + $0x3e0] sm:$0xff]
        %v4954 = vld [vmem:[%s8 + $0x3e8] sm:$0xff]
        %v4955 = vld [vmem:[%s8 + $0x3f0] sm:$0xff]
        %v4956 = vld [vmem:[%s8 + $0x3f8] sm:$0xff]
        %v4957 = vld [vmem:[%s8 + $0x400] sm:$0xff]
        %v4958 = vld [vmem:[%s8 + $0x408] sm:$0xff]
        %v4959 = vld [vmem:[%s8 + $0x410] sm:$0xff]
        %v4960 = vld [vmem:[%s8 + $0x418] sm:$0xff]
        %v4961 = vld [vmem:[%s8 + $0x420] sm:$0xff]
        %v4962 = vld [vmem:[%s8 + $0x428] sm:$0xff]
        %v4963 = vld [vmem:[%s8 + $0x430] sm:$0xff]
        %v4964 = vld [vmem:[%s8 + $0x438] sm:$0xff]
        %v4965 = vld [vmem:[%s8 + $0x440] sm:$0xff]
        %v4966 = vld [vmem:[%s8 + $0x448] sm:$0xff]
        %v4967 = vld [vmem:[%s8 + $0x450] sm:$0xff]
        %v4968 = vld [vmem:[%s8 + $0x458] sm:$0xff]
        %v4969 = vld [vmem:[%s8 + $0x460] sm:$0xff]
        %v4970 = vld [vmem:[%s8 + $0x468] sm:$0xff]
        %v4971 = vld [vmem:[%s8 + $0x470] sm:$0xff]
        %v4972 = vld [vmem:[%s8 + $0x478] sm:$0xff]
        %v4973 = vld [vmem:[%s8 + $0x480] sm:$0xff]
        %v4974 = vld [vmem:[%s8 + $0x488] sm:$0xff]
        %v4975 = vld [vmem:[%s8 + $0x490] sm:$0xff]
        %v4976 = vld [vmem:[%s8 + $0x498] sm:$0xff]
        %v4977 = vld [vmem:[%s8 + $0x4a0] sm:$0xff]
        %v4978 = vld [vmem:[%s8 + $0x4a8] sm:$0xff]
        %v4979 = vld [vmem:[%s8 + $0x4b0] sm:$0xff]
        %v4980 = vld [vmem:[%s8 + $0x4b8] sm:$0xff]
        %v4981 = vld [vmem:[%s8 + $0x4c0] sm:$0xff]
        %v4982 = vld [vmem:[%s8 + $0x4c8] sm:$0xff]
        %v4983 = vld [vmem:[%s8 + $0x4d0] sm:$0xff]
        %v4984 = vld [vmem:[%s8 + $0x4d8] sm:$0xff]
        %v4985 = vld [vmem:[%s8 + $0x4e0] sm:$0xff]
        %v4986 = vld [vmem:[%s8 + $0x4e8] sm:$0xff]
        %v4987 = vld [vmem:[%s8 + $0x4f0] sm:$0xff]
        %v4988 = vld [vmem:[%s8 + $0x4f8] sm:$0xff]
        %v4989 = vld [vmem:[%s8 + $0x500] sm:$0xff]
        %v4990 = vld [vmem:[%s8 + $0x508] sm:$0xff]
        %v4991 = vld [vmem:[%s8 + $0x510] sm:$0xff]
        %v4992 = vld [vmem:[%s8 + $0x518] sm:$0xff]
        %v4993 = vld [vmem:[%s8 + $0x520] sm:$0xff]
        %v4994 = vld [vmem:[%s8 + $0x528] sm:$0xff]
        %v4995 = vld [vmem:[%s8 + $0x530] sm:$0xff]
        %v4996 = vld [vmem:[%s8 + $0x538] sm:$0xff]
        %v4997 = vld [vmem:[%s8 + $0x540] sm:$0xff]
        %v4998 = vld [vmem:[%s8 + $0x548] sm:$0xff]
        %v4999 = vld [vmem:[%s8 + $0x550] sm:$0xff]
        %v5000 = vld [vmem:[%s8 + $0x558] sm:$0xff]
        %v5001 = vld [vmem:[%s8 + $0x560] sm:$0xff]
        %v5002 = vld [vmem:[%s8 + $0x568] sm:$0xff]
        %v5003 = vld [vmem:[%s8 + $0x570] sm:$0xff]
        %v5004 = vld [vmem:[%s8 + $0x578] sm:$0xff]
        %v5005 = vld [vmem:[%s8 + $0x580] sm:$0xff]
        %v5006 = vld [vmem:[%s8 + $0x588] sm:$0xff]
        %v5007 = vld [vmem:[%s8 + $0x590] sm:$0xff]
        %v5008 = vld [vmem:[%s8 + $0x598] sm:$0xff]
        %v5009 = vld [vmem:[%s8 + $0x5a0] sm:$0xff]
        %v5010 = vld [vmem:[%s8 + $0x5a8] sm:$0xff]
        %v5011 = vld [vmem:[%s8 + $0x5b0] sm:$0xff]
        %v5012 = vld [vmem:[%s8 + $0x5b8] sm:$0xff]
        %v5013 = vld [vmem:[%s8 + $0x5c0] sm:$0xff]
        %v5014 = vld [vmem:[%s8 + $0x5c8] sm:$0xff]
        %v5015 = vld [vmem:[%s8 + $0x5d0] sm:$0xff]
        %v5016 = vld [vmem:[%s8 + $0x5d8] sm:$0xff]
        %v5017 = vld [vmem:[%s8 + $0x5e0] sm:$0xff]
        %v5018 = vld [vmem:[%s8 + $0x5e8] sm:$0xff]
        %v5019 = vld [vmem:[%s8 + $0x5f0] sm:$0xff]
        %v5020 = vld [vmem:[%s8 + $0x5f8] sm:$0xff]
        %v5021 = vld [vmem:[%s8 + $0x600] sm:$0xff]
        %v5022 = vld [vmem:[%s8 + $0x608] sm:$0xff]
        %v5023 = vld [vmem:[%s8 + $0x610] sm:$0xff]
        %v5024 = vld [vmem:[%s8 + $0x618] sm:$0xff]
        %v5025 = vld [vmem:[%s8 + $0x620] sm:$0xff]
        %v5026 = vld [vmem:[%s8 + $0x628] sm:$0xff]
        %v5027 = vld [vmem:[%s8 + $0x630] sm:$0xff]
        %v5028 = vld [vmem:[%s8 + $0x638] sm:$0xff]
        %v5029 = vld [vmem:[%s8 + $0x640] sm:$0xff]
        %v5030 = vld [vmem:[%s8 + $0x648] sm:$0xff]
        %v5031 = vld [vmem:[%s8 + $0x650] sm:$0xff]
        %v5032 = vld [vmem:[%s8 + $0x658] sm:$0xff]
        %v5033 = vld [vmem:[%s8 + $0x660] sm:$0xff]
        %v5034 = vld [vmem:[%s8 + $0x668] sm:$0xff]
        %v5035 = vld [vmem:[%s8 + $0x670] sm:$0xff]
        %v5036 = vld [vmem:[%s8 + $0x678] sm:$0xff]
        %v5037 = vld [vmem:[%s8 + $0x680] sm:$0xff]
        %v5038 = vld [vmem:[%s8 + $0x688] sm:$0xff]
        %v5039 = vld [vmem:[%s8 + $0x690] sm:$0xff]
        %v5040 = vld [vmem:[%s8 + $0x698] sm:$0xff]
        %v5041 = vld [vmem:[%s8 + $0x6a0] sm:$0xff]
        %v5042 = vld [vmem:[%s8 + $0x6a8] sm:$0xff]
        %v5043 = vld [vmem:[%s8 + $0x6b0] sm:$0xff]
        %v5044 = vld [vmem:[%s8 + $0x6b8] sm:$0xff]
        %v5045 = vld [vmem:[%s8 + $0x6c0] sm:$0xff]
        %v5046 = vld [vmem:[%s8 + $0x6c8] sm:$0xff]
        %v5047 = vld [vmem:[%s8 + $0x6d0] sm:$0xff]
        %v5048 = vld [vmem:[%s8 + $0x6d8] sm:$0xff]
        %v5049 = vld [vmem:[%s8 + $0x6e0] sm:$0xff]
        %v5050 = vld [vmem:[%s8 + $0x6e8] sm:$0xff]
        %v5051 = vld [vmem:[%s8 + $0x6f0] sm:$0xff]
        %v5052 = vld [vmem:[%s8 + $0x6f8] sm:$0xff]
        %v5053 = vld [vmem:[%s8 + $0x700] sm:$0xff]
        %v5054 = vld [vmem:[%s8 + $0x708] sm:$0xff]
        %v5055 = vld [vmem:[%s8 + $0x710] sm:$0xff]
        %v5056 = vld [vmem:[%s8 + $0x718] sm:$0xff]
        %v5057 = vld [vmem:[%s8 + $0x720] sm:$0xff]
        %v5058 = vld [vmem:[%s8 + $0x728] sm:$0xff]
        %v5059 = vld [vmem:[%s8 + $0x730] sm:$0xff]
        %v5060 = vld [vmem:[%s8 + $0x738] sm:$0xff]
        %v5061 = vld [vmem:[%s8 + $0x740] sm:$0xff]
        %v5062 = vld [vmem:[%s8 + $0x748] sm:$0xff]
        %v5063 = vld [vmem:[%s8 + $0x750] sm:$0xff]
        %v5064 = vld [vmem:[%s8 + $0x758] sm:$0xff]
        %v5065 = vld [vmem:[%s8 + $0x760] sm:$0xff]
        %v5066 = vld [vmem:[%s8 + $0x768] sm:$0xff]
        %v5067 = vld [vmem:[%s8 + $0x770] sm:$0xff]
        %v5068 = vld [vmem:[%s8 + $0x778] sm:$0xff]
        %v5069 = vld [vmem:[%s8 + $0x780] sm:$0xff]
        %v5070 = vld [vmem:[%s8 + $0x788] sm:$0xff]
        %v5071 = vld [vmem:[%s8 + $0x790] sm:$0xff]
        %v5072 = vld [vmem:[%s8 + $0x798] sm:$0xff]
        %v5073 = vld [vmem:[%s8 + $0x7a0] sm:$0xff]
        %v5074 = vld [vmem:[%s8 + $0x7a8] sm:$0xff]
        %v5075 = vld [vmem:[%s8 + $0x7b0] sm:$0xff]
        %v5076 = vld [vmem:[%s8 + $0x7b8] sm:$0xff]
        %v5077 = vld [vmem:[%s8 + $0x7c0] sm:$0xff]
        %v5078 = vld [vmem:[%s8 + $0x7c8] sm:$0xff]
        %v5079 = vld [vmem:[%s8 + $0x7d0] sm:$0xff]
        %v5080 = vld [vmem:[%s8 + $0x7d8] sm:$0xff]
        %v5081 = vld [vmem:[%s8 + $0x7e0] sm:$0xff]
        %v5082 = vld [vmem:[%s8 + $0x7e8] sm:$0xff]
        %v5083 = vld [vmem:[%s8 + $0x7f0] sm:$0xff]
        %v5084 = vld [vmem:[%s8 + $0x7f8] sm:$0xff]
        %v5085 = vld [vmem:[#allocation3] sm:$0xff]
        %v5086 = vld [vmem:[#allocation3 + $0x8] sm:$0xff]
        %v5087 = vld [vmem:[#allocation3 + $0x10] sm:$0xff]
        %v5088 = vld [vmem:[#allocation3 + $0x18] sm:$0xff]
        %v5089 = vld [vmem:[#allocation3 + $0x20] sm:$0xff]
        %v5090 = vld [vmem:[#allocation3 + $0x28] sm:$0xff]
        %v5091 = vld [vmem:[#allocation3 + $0x30] sm:$0xff]
        %v5092 = vld [vmem:[#allocation3 + $0x38] sm:$0xff]
        %v5093 = vld [vmem:[#allocation3 + $0x40] sm:$0xff]
        %v5094 = vld [vmem:[#allocation3 + $0x48] sm:$0xff]
        %v5095 = vld [vmem:[#allocation3 + $0x50] sm:$0xff]
        %v5096 = vld [vmem:[#allocation3 + $0x58] sm:$0xff]
        %v5097 = vld [vmem:[#allocation3 + $0x60] sm:$0xff]
        %v5098 = vld [vmem:[#allocation3 + $0x68] sm:$0xff]
        %v5099 = vld [vmem:[#allocation3 + $0x70] sm:$0xff]
        %v5100 = vld [vmem:[#allocation3 + $0x78] sm:$0xff]
        %v5101 = vld [vmem:[#allocation3 + $0x80] sm:$0xff]
        %v5102 = vld [vmem:[#allocation3 + $0x88] sm:$0xff]
        %v5103 = vld [vmem:[#allocation3 + $0x90] sm:$0xff]
        %v5104 = vld [vmem:[#allocation3 + $0x98] sm:$0xff]
        %v5105 = vld [vmem:[#allocation3 + $0xa0] sm:$0xff]
        %v5106 = vld [vmem:[#allocation3 + $0xa8] sm:$0xff]
        %v5107 = vld [vmem:[#allocation3 + $0xb0] sm:$0xff]
        %v5108 = vld [vmem:[#allocation3 + $0xb8] sm:$0xff]
        %v5109 = vld [vmem:[#allocation3 + $0xc0] sm:$0xff]
        %v5110 = vld [vmem:[#allocation3 + $0xc8] sm:$0xff]
        %v5111 = vld [vmem:[#allocation3 + $0xd0] sm:$0xff]
        %v5112 = vld [vmem:[#allocation3 + $0xd8] sm:$0xff]
        %v5113 = vld [vmem:[#allocation3 + $0xe0] sm:$0xff]
        %v5114 = vld [vmem:[#allocation3 + $0xe8] sm:$0xff]
        %v5115 = vld [vmem:[#allocation3 + $0xf0] sm:$0xff]
        %v5116 = vld [vmem:[#allocation3 + $0xf8] sm:$0xff]
        %v5117 = vld [vmem:[#allocation3 + $0x100] sm:$0xff]
        %v5118 = vld [vmem:[#allocation3 + $0x108] sm:$0xff]
        %v5119 = vld [vmem:[#allocation3 + $0x110] sm:$0xff]
        %v5120 = vld [vmem:[#allocation3 + $0x118] sm:$0xff]
        %v5121 = vld [vmem:[#allocation3 + $0x120] sm:$0xff]
        %v5122 = vld [vmem:[#allocation3 + $0x128] sm:$0xff]
        %v5123 = vld [vmem:[#allocation3 + $0x130] sm:$0xff]
        %v5124 = vld [vmem:[#allocation3 + $0x138] sm:$0xff]
        %v5125 = vld [vmem:[#allocation3 + $0x140] sm:$0xff]
        %v5126 = vld [vmem:[#allocation3 + $0x148] sm:$0xff]
        %v5127 = vld [vmem:[#allocation3 + $0x150] sm:$0xff]
        %v5128 = vld [vmem:[#allocation3 + $0x158] sm:$0xff]
        %v5129 = vld [vmem:[#allocation3 + $0x160] sm:$0xff]
        %v5130 = vld [vmem:[#allocation3 + $0x168] sm:$0xff]
        %v5131 = vld [vmem:[#allocation3 + $0x170] sm:$0xff]
        %v5132 = vld [vmem:[#allocation3 + $0x178] sm:$0xff]
        %v5133 = vld [vmem:[#allocation3 + $0x180] sm:$0xff]
        %v5134 = vld [vmem:[#allocation3 + $0x188] sm:$0xff]
        %v5135 = vld [vmem:[#allocation3 + $0x190] sm:$0xff]
        %v5136 = vld [vmem:[#allocation3 + $0x198] sm:$0xff]
        %v5137 = vld [vmem:[#allocation3 + $0x1a0] sm:$0xff]
        %v5138 = vld [vmem:[#allocation3 + $0x1a8] sm:$0xff]
        %v5139 = vld [vmem:[#allocation3 + $0x1b0] sm:$0xff]
        %v5140 = vld [vmem:[#allocation3 + $0x1b8] sm:$0xff]
        %v5141 = vld [vmem:[#allocation3 + $0x1c0] sm:$0xff]
        %v5142 = vld [vmem:[#allocation3 + $0x1c8] sm:$0xff]
        %v5143 = vld [vmem:[#allocation3 + $0x1d0] sm:$0xff]
        %v5144 = vld [vmem:[#allocation3 + $0x1d8] sm:$0xff]
        %v5145 = vld [vmem:[#allocation3 + $0x1e0] sm:$0xff]
        %v5146 = vld [vmem:[#allocation3 + $0x1e8] sm:$0xff]
        %v5147 = vld [vmem:[#allocation3 + $0x1f0] sm:$0xff]
        %v5148 = vld [vmem:[#allocation3 + $0x1f8] sm:$0xff]
        %5149 = vmatpush.msra.mxu0 %v5100
        %5150 = vmatpush.msra.mxu0 %v5099
        %5151 = vmatpush.msra.mxu0 %v5098
        %5152 = vmatpush.msra.mxu0 %v5097
        %5153 = vmatpush.msra.mxu0 %v5096
        %5154 = vmatpush.msra.mxu0 %v5095
        %5155 = vmatpush.msra.mxu0 %v5094
        %5156 = vmatpush.msra.mxu0 %v5093
        %5157 = vmatpush.msra.mxu0 %v5092
        %5158 = vmatpush.msra.mxu0 %v5091
        %5159 = vmatpush.msra.mxu0 %v5090
        %5160 = vmatpush.msra.mxu0 %v5089
        %5161 = vmatpush.msra.mxu0 %v5088
        %5162 = vmatpush.msra.mxu0 %v5087
        %5163 = vmatpush.msra.mxu0 %v5086
        %5164 = vmatpush.msra.mxu0 %v5085
        %5165 = vmatmul.f32.gmra.mxu0 %v4829
        %v5166 = vpop.f32.mrf.mxu0
        %v5167 = vadd.f32 0.0, %v5166
        %5168 = vmatmul.f32.gmra.mxu0 %v4833
        %v5169 = vpop.f32.mrf.mxu0
        %v5170 = vadd.f32 0.0, %v5169
        %5171 = vmatmul.f32.gmra.mxu0 %v4837
        %v5172 = vpop.f32.mrf.mxu0
        %v5173 = vadd.f32 0.0, %v5172
        %5174 = vmatmul.f32.gmra.mxu0 %v4841
        %v5175 = vpop.f32.mrf.mxu0
        %v5176 = vadd.f32 0.0, %v5175
        %5177 = vmatmul.f32.gmra.mxu0 %v4845
        %v5178 = vpop.f32.mrf.mxu0
        %v5179 = vadd.f32 0.0, %v5178
        %5180 = vmatmul.f32.gmra.mxu0 %v4849
        %v5181 = vpop.f32.mrf.mxu0
        %v5182 = vadd.f32 0.0, %v5181
        %5183 = vmatmul.f32.gmra.mxu0 %v4853
        %v5184 = vpop.f32.mrf.mxu0
        %v5185 = vadd.f32 0.0, %v5184
        %5186 = vmatmul.f32.gmra.mxu0 %v4857
        %v5187 = vpop.f32.mrf.mxu0
        %v5188 = vadd.f32 0.0, %v5187
        %5189 = vmatmul.f32.gmra.mxu0 %v4861
        %v5190 = vpop.f32.mrf.mxu0
        %v5191 = vadd.f32 0.0, %v5190
        %5192 = vmatmul.f32.gmra.mxu0 %v4865
        %v5193 = vpop.f32.mrf.mxu0
        %v5194 = vadd.f32 0.0, %v5193
        %5195 = vmatmul.f32.gmra.mxu0 %v4869
        %v5196 = vpop.f32.mrf.mxu0
        %v5197 = vadd.f32 0.0, %v5196
        %5198 = vmatmul.f32.gmra.mxu0 %v4873
        %v5199 = vpop.f32.mrf.mxu0
        %v5200 = vadd.f32 0.0, %v5199
        %5201 = vmatmul.f32.gmra.mxu0 %v4877
        %v5202 = vpop.f32.mrf.mxu0
        %v5203 = vadd.f32 0.0, %v5202
        %5204 = vmatmul.f32.gmra.mxu0 %v4881
        %v5205 = vpop.f32.mrf.mxu0
        %v5206 = vadd.f32 0.0, %v5205
        %5207 = vmatmul.f32.gmra.mxu0 %v4885
        %v5208 = vpop.f32.mrf.mxu0
        %v5209 = vadd.f32 0.0, %v5208
        %5210 = vmatmul.f32.gmra.mxu0 %v4889
        %v5211 = vpop.f32.mrf.mxu0
        %v5212 = vadd.f32 0.0, %v5211
        %5213 = vmatmul.f32.gmra.mxu0 %v4893
        %v5214 = vpop.f32.mrf.mxu0
        %v5215 = vadd.f32 0.0, %v5214
        %5216 = vmatmul.f32.gmra.mxu0 %v4897
        %v5217 = vpop.f32.mrf.mxu0
        %v5218 = vadd.f32 0.0, %v5217
        %5219 = vmatmul.f32.gmra.mxu0 %v4901
        %v5220 = vpop.f32.mrf.mxu0
        %v5221 = vadd.f32 0.0, %v5220
        %5222 = vmatmul.f32.gmra.mxu0 %v4905
        %v5223 = vpop.f32.mrf.mxu0
        %v5224 = vadd.f32 0.0, %v5223
        %5225 = vmatmul.f32.gmra.mxu0 %v4909
        %v5226 = vpop.f32.mrf.mxu0
        %v5227 = vadd.f32 0.0, %v5226
        %5228 = vmatmul.f32.gmra.mxu0 %v4913
        %v5229 = vpop.f32.mrf.mxu0
        %v5230 = vadd.f32 0.0, %v5229
        %5231 = vmatmul.f32.gmra.mxu0 %v4917
        %v5232 = vpop.f32.mrf.mxu0
        %v5233 = vadd.f32 0.0, %v5232
        %5234 = vmatmul.f32.gmra.mxu0 %v4921
        %v5235 = vpop.f32.mrf.mxu0
        %v5236 = vadd.f32 0.0, %v5235
        %5237 = vmatmul.f32.gmra.mxu0 %v4925
        %v5238 = vpop.f32.mrf.mxu0
        %v5239 = vadd.f32 0.0, %v5238
        %5240 = vmatmul.f32.gmra.mxu0 %v4929
        %v5241 = vpop.f32.mrf.mxu0
        %v5242 = vadd.f32 0.0, %v5241
        %5243 = vmatmul.f32.gmra.mxu0 %v4933
        %v5244 = vpop.f32.mrf.mxu0
        %v5245 = vadd.f32 0.0, %v5244
        %5246 = vmatmul.f32.gmra.mxu0 %v4937
        %v5247 = vpop.f32.mrf.mxu0
        %v5248 = vadd.f32 0.0, %v5247
        %5249 = vmatmul.f32.gmra.mxu0 %v4941
        %v5250 = vpop.f32.mrf.mxu0
        %v5251 = vadd.f32 0.0, %v5250
        %5252 = vmatmul.f32.gmra.mxu0 %v4945
        %v5253 = vpop.f32.mrf.mxu0
        %v5254 = vadd.f32 0.0, %v5253
        %5255 = vmatmul.f32.gmra.mxu0 %v4949
        %v5256 = vpop.f32.mrf.mxu0
        %v5257 = vadd.f32 0.0, %v5256
        %5258 = vmatmul.f32.gmra.mxu0 %v4953
        %v5259 = vpop.f32.mrf.mxu0
        %v5260 = vadd.f32 0.0, %v5259
        %5261 = vmatmul.f32.gmra.mxu0 %v4957
        %v5262 = vpop.f32.mrf.mxu0
        %v5263 = vadd.f32 0.0, %v5262
        %5264 = vmatmul.f32.gmra.mxu0 %v4961
        %v5265 = vpop.f32.mrf.mxu0
        %v5266 = vadd.f32 0.0, %v5265
        %5267 = vmatmul.f32.gmra.mxu0 %v4965
        %v5268 = vpop.f32.mrf.mxu0
        %v5269 = vadd.f32 0.0, %v5268
        %5270 = vmatmul.f32.gmra.mxu0 %v4969
        %v5271 = vpop.f32.mrf.mxu0
        %v5272 = vadd.f32 0.0, %v5271
        %5273 = vmatmul.f32.gmra.mxu0 %v4973
        %v5274 = vpop.f32.mrf.mxu0
        %v5275 = vadd.f32 0.0, %v5274
        %5276 = vmatmul.f32.gmra.mxu0 %v4977
        %v5277 = vpop.f32.mrf.mxu0
        %v5278 = vadd.f32 0.0, %v5277
        %5279 = vmatmul.f32.gmra.mxu0 %v4981
        %v5280 = vpop.f32.mrf.mxu0
        %v5281 = vadd.f32 0.0, %v5280
        %5282 = vmatmul.f32.gmra.mxu0 %v4985
        %v5283 = vpop.f32.mrf.mxu0
        %v5284 = vadd.f32 0.0, %v5283
        %5285 = vmatmul.f32.gmra.mxu0 %v4989
        %v5286 = vpop.f32.mrf.mxu0
        %v5287 = vadd.f32 0.0, %v5286
        %5288 = vmatmul.f32.gmra.mxu0 %v4993
        %v5289 = vpop.f32.mrf.mxu0
        %v5290 = vadd.f32 0.0, %v5289
        %5291 = vmatmul.f32.gmra.mxu0 %v4997
        %v5292 = vpop.f32.mrf.mxu0
        %v5293 = vadd.f32 0.0, %v5292
        %5294 = vmatmul.f32.gmra.mxu0 %v5001
        %v5295 = vpop.f32.mrf.mxu0
        %v5296 = vadd.f32 0.0, %v5295
        %5297 = vmatmul.f32.gmra.mxu0 %v5005
        %v5298 = vpop.f32.mrf.mxu0
        %v5299 = vadd.f32 0.0, %v5298
        %5300 = vmatmul.f32.gmra.mxu0 %v5009
        %v5301 = vpop.f32.mrf.mxu0
        %v5302 = vadd.f32 0.0, %v5301
        %5303 = vmatmul.f32.gmra.mxu0 %v5013
        %v5304 = vpop.f32.mrf.mxu0
        %v5305 = vadd.f32 0.0, %v5304
        %5306 = vmatmul.f32.gmra.mxu0 %v5017
        %v5307 = vpop.f32.mrf.mxu0
        %v5308 = vadd.f32 0.0, %v5307
        %5309 = vmatmul.f32.gmra.mxu0 %v5021
        %v5310 = vpop.f32.mrf.mxu0
        %v5311 = vadd.f32 0.0, %v5310
        %5312 = vmatmul.f32.gmra.mxu0 %v5025
        %v5313 = vpop.f32.mrf.mxu0
        %v5314 = vadd.f32 0.0, %v5313
        %5315 = vmatmul.f32.gmra.mxu0 %v5029
        %v5316 = vpop.f32.mrf.mxu0
        %v5317 = vadd.f32 0.0, %v5316
        %5318 = vmatmul.f32.gmra.mxu0 %v5033
        %v5319 = vpop.f32.mrf.mxu0
        %v5320 = vadd.f32 0.0, %v5319
        %5321 = vmatmul.f32.gmra.mxu0 %v5037
        %v5322 = vpop.f32.mrf.mxu0
        %v5323 = vadd.f32 0.0, %v5322
        %5324 = vmatmul.f32.gmra.mxu0 %v5041
        %v5325 = vpop.f32.mrf.mxu0
        %v5326 = vadd.f32 0.0, %v5325
        %5327 = vmatmul.f32.gmra.mxu0 %v5045
        %v5328 = vpop.f32.mrf.mxu0
        %v5329 = vadd.f32 0.0, %v5328
        %5330 = vmatmul.f32.gmra.mxu0 %v5049
        %v5331 = vpop.f32.mrf.mxu0
        %v5332 = vadd.f32 0.0, %v5331
        %5333 = vmatmul.f32.gmra.mxu0 %v5053
        %v5334 = vpop.f32.mrf.mxu0
        %v5335 = vadd.f32 0.0, %v5334
        %5336 = vmatmul.f32.gmra.mxu0 %v5057
        %v5337 = vpop.f32.mrf.mxu0
        %v5338 = vadd.f32 0.0, %v5337
        %5339 = vmatmul.f32.gmra.mxu0 %v5061
        %v5340 = vpop.f32.mrf.mxu0
        %v5341 = vadd.f32 0.0, %v5340
        %5342 = vmatmul.f32.gmra.mxu0 %v5065
        %v5343 = vpop.f32.mrf.mxu0
        %v5344 = vadd.f32 0.0, %v5343
        %5345 = vmatmul.f32.gmra.mxu0 %v5069
        %v5346 = vpop.f32.mrf.mxu0
        %v5347 = vadd.f32 0.0, %v5346
        %5348 = vmatmul.f32.gmra.mxu0 %v5073
        %v5349 = vpop.f32.mrf.mxu0
        %v5350 = vadd.f32 0.0, %v5349
        %5351 = vmatmul.f32.gmra.mxu0 %v5077
        %v5352 = vpop.f32.mrf.mxu0
        %v5353 = vadd.f32 0.0, %v5352
        %5354 = vmatmul.f32.gmra.mxu0 %v5081
        %v5355 = vpop.f32.mrf.mxu0
        %v5356 = vadd.f32 0.0, %v5355
        %5357 = vdwg.mxu0
        %5358 = vmatpush.msra.mxu0 %v5116
        %5359 = vmatpush.msra.mxu0 %v5115
        %5360 = vmatpush.msra.mxu0 %v5114
        %5361 = vmatpush.msra.mxu0 %v5113
        %5362 = vmatpush.msra.mxu0 %v5112
        %5363 = vmatpush.msra.mxu0 %v5111
        %5364 = vmatpush.msra.mxu0 %v5110
        %5365 = vmatpush.msra.mxu0 %v5109
        %5366 = vmatpush.msra.mxu0 %v5108
        %5367 = vmatpush.msra.mxu0 %v5107
        %5368 = vmatpush.msra.mxu0 %v5106
        %5369 = vmatpush.msra.mxu0 %v5105
        %5370 = vmatpush.msra.mxu0 %v5104
        %5371 = vmatpush.msra.mxu0 %v5103
        %5372 = vmatpush.msra.mxu0 %v5102
        %5373 = vmatpush.msra.mxu0 %v5101
        %5374 = vmatmul.f32.gmra.mxu0 %v4830
        %v5375 = vpop.f32.mrf.mxu0
        %v5376 = vadd.f32 %v5167, %v5375
        %5377 = vmatmul.f32.gmra.mxu0 %v4834
        %v5378 = vpop.f32.mrf.mxu0
        %v5379 = vadd.f32 %v5170, %v5378
        %5380 = vmatmul.f32.gmra.mxu0 %v4838
        %v5381 = vpop.f32.mrf.mxu0
        %v5382 = vadd.f32 %v5173, %v5381
        %5383 = vmatmul.f32.gmra.mxu0 %v4842
        %v5384 = vpop.f32.mrf.mxu0
        %v5385 = vadd.f32 %v5176, %v5384
        %5386 = vmatmul.f32.gmra.mxu0 %v4846
        %v5387 = vpop.f32.mrf.mxu0
        %v5388 = vadd.f32 %v5179, %v5387
        %5389 = vmatmul.f32.gmra.mxu0 %v4850
        %v5390 = vpop.f32.mrf.mxu0
        %v5391 = vadd.f32 %v5182, %v5390
        %5392 = vmatmul.f32.gmra.mxu0 %v4854
        %v5393 = vpop.f32.mrf.mxu0
        %v5394 = vadd.f32 %v5185, %v5393
        %5395 = vmatmul.f32.gmra.mxu0 %v4858
        %v5396 = vpop.f32.mrf.mxu0
        %v5397 = vadd.f32 %v5188, %v5396
        %5398 = vmatmul.f32.gmra.mxu0 %v4862
        %v5399 = vpop.f32.mrf.mxu0
        %v5400 = vadd.f32 %v5191, %v5399
        %5401 = vmatmul.f32.gmra.mxu0 %v4866
        %v5402 = vpop.f32.mrf.mxu0
        %v5403 = vadd.f32 %v5194, %v5402
        %5404 = vmatmul.f32.gmra.mxu0 %v4870
        %v5405 = vpop.f32.mrf.mxu0
        %v5406 = vadd.f32 %v5197, %v5405
        %5407 = vmatmul.f32.gmra.mxu0 %v4874
        %v5408 = vpop.f32.mrf.mxu0
        %v5409 = vadd.f32 %v5200, %v5408
        %5410 = vmatmul.f32.gmra.mxu0 %v4878
        %v5411 = vpop.f32.mrf.mxu0
        %v5412 = vadd.f32 %v5203, %v5411
        %5413 = vmatmul.f32.gmra.mxu0 %v4882
        %v5414 = vpop.f32.mrf.mxu0
        %v5415 = vadd.f32 %v5206, %v5414
        %5416 = vmatmul.f32.gmra.mxu0 %v4886
        %v5417 = vpop.f32.mrf.mxu0
        %v5418 = vadd.f32 %v5209, %v5417
        %5419 = vmatmul.f32.gmra.mxu0 %v4890
        %v5420 = vpop.f32.mrf.mxu0
        %v5421 = vadd.f32 %v5212, %v5420
        %5422 = vmatmul.f32.gmra.mxu0 %v4894
        %v5423 = vpop.f32.mrf.mxu0
        %v5424 = vadd.f32 %v5215, %v5423
        %5425 = vmatmul.f32.gmra.mxu0 %v4898
        %v5426 = vpop.f32.mrf.mxu0
        %v5427 = vadd.f32 %v5218, %v5426
        %5428 = vmatmul.f32.gmra.mxu0 %v4902
        %v5429 = vpop.f32.mrf.mxu0
        %v5430 = vadd.f32 %v5221, %v5429
        %5431 = vmatmul.f32.gmra.mxu0 %v4906
        %v5432 = vpop.f32.mrf.mxu0
        %v5433 = vadd.f32 %v5224, %v5432
        %5434 = vmatmul.f32.gmra.mxu0 %v4910
        %v5435 = vpop.f32.mrf.mxu0
        %v5436 = vadd.f32 %v5227, %v5435
        %5437 = vmatmul.f32.gmra.mxu0 %v4914
        %v5438 = vpop.f32.mrf.mxu0
        %v5439 = vadd.f32 %v5230, %v5438
        %5440 = vmatmul.f32.gmra.mxu0 %v4918
        %v5441 = vpop.f32.mrf.mxu0
        %v5442 = vadd.f32 %v5233, %v5441
        %5443 = vmatmul.f32.gmra.mxu0 %v4922
        %v5444 = vpop.f32.mrf.mxu0
        %v5445 = vadd.f32 %v5236, %v5444
        %5446 = vmatmul.f32.gmra.mxu0 %v4926
        %v5447 = vpop.f32.mrf.mxu0
        %v5448 = vadd.f32 %v5239, %v5447
        %5449 = vmatmul.f32.gmra.mxu0 %v4930
        %v5450 = vpop.f32.mrf.mxu0
        %v5451 = vadd.f32 %v5242, %v5450
        %5452 = vmatmul.f32.gmra.mxu0 %v4934
        %v5453 = vpop.f32.mrf.mxu0
        %v5454 = vadd.f32 %v5245, %v5453
        %5455 = vmatmul.f32.gmra.mxu0 %v4938
        %v5456 = vpop.f32.mrf.mxu0
        %v5457 = vadd.f32 %v5248, %v5456
        %5458 = vmatmul.f32.gmra.mxu0 %v4942
        %v5459 = vpop.f32.mrf.mxu0
        %v5460 = vadd.f32 %v5251, %v5459
        %5461 = vmatmul.f32.gmra.mxu0 %v4946
        %v5462 = vpop.f32.mrf.mxu0
        %v5463 = vadd.f32 %v5254, %v5462
        %5464 = vmatmul.f32.gmra.mxu0 %v4950
        %v5465 = vpop.f32.mrf.mxu0
        %v5466 = vadd.f32 %v5257, %v5465
        %5467 = vmatmul.f32.gmra.mxu0 %v4954
        %v5468 = vpop.f32.mrf.mxu0
        %v5469 = vadd.f32 %v5260, %v5468
        %5470 = vmatmul.f32.gmra.mxu0 %v4958
        %v5471 = vpop.f32.mrf.mxu0
        %v5472 = vadd.f32 %v5263, %v5471
        %5473 = vmatmul.f32.gmra.mxu0 %v4962
        %v5474 = vpop.f32.mrf.mxu0
        %v5475 = vadd.f32 %v5266, %v5474
        %5476 = vmatmul.f32.gmra.mxu0 %v4966
        %v5477 = vpop.f32.mrf.mxu0
        %v5478 = vadd.f32 %v5269, %v5477
        %5479 = vmatmul.f32.gmra.mxu0 %v4970
        %v5480 = vpop.f32.mrf.mxu0
        %v5481 = vadd.f32 %v5272, %v5480
        %5482 = vmatmul.f32.gmra.mxu0 %v4974
        %v5483 = vpop.f32.mrf.mxu0
        %v5484 = vadd.f32 %v5275, %v5483
        %5485 = vmatmul.f32.gmra.mxu0 %v4978
        %v5486 = vpop.f32.mrf.mxu0
        %v5487 = vadd.f32 %v5278, %v5486
        %5488 = vmatmul.f32.gmra.mxu0 %v4982
        %v5489 = vpop.f32.mrf.mxu0
        %v5490 = vadd.f32 %v5281, %v5489
        %5491 = vmatmul.f32.gmra.mxu0 %v4986
        %v5492 = vpop.f32.mrf.mxu0
        %v5493 = vadd.f32 %v5284, %v5492
        %5494 = vmatmul.f32.gmra.mxu0 %v4990
        %v5495 = vpop.f32.mrf.mxu0
        %v5496 = vadd.f32 %v5287, %v5495
        %5497 = vmatmul.f32.gmra.mxu0 %v4994
        %v5498 = vpop.f32.mrf.mxu0
        %v5499 = vadd.f32 %v5290, %v5498
        %5500 = vmatmul.f32.gmra.mxu0 %v4998
        %v5501 = vpop.f32.mrf.mxu0
        %v5502 = vadd.f32 %v5293, %v5501
        %5503 = vmatmul.f32.gmra.mxu0 %v5002
        %v5504 = vpop.f32.mrf.mxu0
        %v5505 = vadd.f32 %v5296, %v5504
        %5506 = vmatmul.f32.gmra.mxu0 %v5006
        %v5507 = vpop.f32.mrf.mxu0
        %v5508 = vadd.f32 %v5299, %v5507
        %5509 = vmatmul.f32.gmra.mxu0 %v5010
        %v5510 = vpop.f32.mrf.mxu0
        %v5511 = vadd.f32 %v5302, %v5510
        %5512 = vmatmul.f32.gmra.mxu0 %v5014
        %v5513 = vpop.f32.mrf.mxu0
        %v5514 = vadd.f32 %v5305, %v5513
        %5515 = vmatmul.f32.gmra.mxu0 %v5018
        %v5516 = vpop.f32.mrf.mxu0
        %v5517 = vadd.f32 %v5308, %v5516
        %5518 = vmatmul.f32.gmra.mxu0 %v5022
        %v5519 = vpop.f32.mrf.mxu0
        %v5520 = vadd.f32 %v5311, %v5519
        %5521 = vmatmul.f32.gmra.mxu0 %v5026
        %v5522 = vpop.f32.mrf.mxu0
        %v5523 = vadd.f32 %v5314, %v5522
        %5524 = vmatmul.f32.gmra.mxu0 %v5030
        %v5525 = vpop.f32.mrf.mxu0
        %v5526 = vadd.f32 %v5317, %v5525
        %5527 = vmatmul.f32.gmra.mxu0 %v5034
        %v5528 = vpop.f32.mrf.mxu0
        %v5529 = vadd.f32 %v5320, %v5528
        %5530 = vmatmul.f32.gmra.mxu0 %v5038
        %v5531 = vpop.f32.mrf.mxu0
        %v5532 = vadd.f32 %v5323, %v5531
        %5533 = vmatmul.f32.gmra.mxu0 %v5042
        %v5534 = vpop.f32.mrf.mxu0
        %v5535 = vadd.f32 %v5326, %v5534
        %5536 = vmatmul.f32.gmra.mxu0 %v5046
        %v5537 = vpop.f32.mrf.mxu0
        %v5538 = vadd.f32 %v5329, %v5537
        %5539 = vmatmul.f32.gmra.mxu0 %v5050
        %v5540 = vpop.f32.mrf.mxu0
        %v5541 = vadd.f32 %v5332, %v5540
        %5542 = vmatmul.f32.gmra.mxu0 %v5054
        %v5543 = vpop.f32.mrf.mxu0
        %v5544 = vadd.f32 %v5335, %v5543
        %5545 = vmatmul.f32.gmra.mxu0 %v5058
        %v5546 = vpop.f32.mrf.mxu0
        %v5547 = vadd.f32 %v5338, %v5546
        %5548 = vmatmul.f32.gmra.mxu0 %v5062
        %v5549 = vpop.f32.mrf.mxu0
        %v5550 = vadd.f32 %v5341, %v5549
        %5551 = vmatmul.f32.gmra.mxu0 %v5066
        %v5552 = vpop.f32.mrf.mxu0
        %v5553 = vadd.f32 %v5344, %v5552
        %5554 = vmatmul.f32.gmra.mxu0 %v5070
        %v5555 = vpop.f32.mrf.mxu0
        %v5556 = vadd.f32 %v5347, %v5555
        %5557 = vmatmul.f32.gmra.mxu0 %v5074
        %v5558 = vpop.f32.mrf.mxu0
        %v5559 = vadd.f32 %v5350, %v5558
        %5560 = vmatmul.f32.gmra.mxu0 %v5078
        %v5561 = vpop.f32.mrf.mxu0
        %v5562 = vadd.f32 %v5353, %v5561
        %5563 = vmatmul.f32.gmra.mxu0 %v5082
        %v5564 = vpop.f32.mrf.mxu0
        %v5565 = vadd.f32 %v5356, %v5564
        %5566 = vdwg.mxu0
        %5567 = vmatpush.msra.mxu0 %v5132
        %5568 = vmatpush.msra.mxu0 %v5131
        %5569 = vmatpush.msra.mxu0 %v5130
        %5570 = vmatpush.msra.mxu0 %v5129
        %5571 = vmatpush.msra.mxu0 %v5128
        %5572 = vmatpush.msra.mxu0 %v5127
        %5573 = vmatpush.msra.mxu0 %v5126
        %5574 = vmatpush.msra.mxu0 %v5125
        %5575 = vmatpush.msra.mxu0 %v5124
        %5576 = vmatpush.msra.mxu0 %v5123
        %5577 = vmatpush.msra.mxu0 %v5122
        %5578 = vmatpush.msra.mxu0 %v5121
        %5579 = vmatpush.msra.mxu0 %v5120
        %5580 = vmatpush.msra.mxu0 %v5119
        %5581 = vmatpush.msra.mxu0 %v5118
        %5582 = vmatpush.msra.mxu0 %v5117
        %5583 = vmatmul.f32.gmra.mxu0 %v4831
        %v5584 = vpop.f32.mrf.mxu0
        %v5585 = vadd.f32 %v5376, %v5584
        %5586 = vmatmul.f32.gmra.mxu0 %v4835
        %v5587 = vpop.f32.mrf.mxu0
        %v5588 = vadd.f32 %v5379, %v5587
        %5589 = vmatmul.f32.gmra.mxu0 %v4839
        %v5590 = vpop.f32.mrf.mxu0
        %v5591 = vadd.f32 %v5382, %v5590
        %5592 = vmatmul.f32.gmra.mxu0 %v4843
        %v5593 = vpop.f32.mrf.mxu0
        %v5594 = vadd.f32 %v5385, %v5593
        %5595 = vmatmul.f32.gmra.mxu0 %v4847
        %v5596 = vpop.f32.mrf.mxu0
        %v5597 = vadd.f32 %v5388, %v5596
        %5598 = vmatmul.f32.gmra.mxu0 %v4851
        %v5599 = vpop.f32.mrf.mxu0
        %v5600 = vadd.f32 %v5391, %v5599
        %5601 = vmatmul.f32.gmra.mxu0 %v4855
        %v5602 = vpop.f32.mrf.mxu0
        %v5603 = vadd.f32 %v5394, %v5602
        %5604 = vmatmul.f32.gmra.mxu0 %v4859
        %v5605 = vpop.f32.mrf.mxu0
        %v5606 = vadd.f32 %v5397, %v5605
        %5607 = vmatmul.f32.gmra.mxu0 %v4863
        %v5608 = vpop.f32.mrf.mxu0
        %v5609 = vadd.f32 %v5400, %v5608
        %5610 = vmatmul.f32.gmra.mxu0 %v4867
        %v5611 = vpop.f32.mrf.mxu0
        %v5612 = vadd.f32 %v5403, %v5611
        %5613 = vmatmul.f32.gmra.mxu0 %v4871
        %v5614 = vpop.f32.mrf.mxu0
        %v5615 = vadd.f32 %v5406, %v5614
        %5616 = vmatmul.f32.gmra.mxu0 %v4875
        %v5617 = vpop.f32.mrf.mxu0
        %v5618 = vadd.f32 %v5409, %v5617
        %5619 = vmatmul.f32.gmra.mxu0 %v4879
        %v5620 = vpop.f32.mrf.mxu0
        %v5621 = vadd.f32 %v5412, %v5620
        %5622 = vmatmul.f32.gmra.mxu0 %v4883
        %v5623 = vpop.f32.mrf.mxu0
        %v5624 = vadd.f32 %v5415, %v5623
        %5625 = vmatmul.f32.gmra.mxu0 %v4887
        %v5626 = vpop.f32.mrf.mxu0
        %v5627 = vadd.f32 %v5418, %v5626
        %5628 = vmatmul.f32.gmra.mxu0 %v4891
        %v5629 = vpop.f32.mrf.mxu0
        %v5630 = vadd.f32 %v5421, %v5629
        %5631 = vmatmul.f32.gmra.mxu0 %v4895
        %v5632 = vpop.f32.mrf.mxu0
        %v5633 = vadd.f32 %v5424, %v5632
        %5634 = vmatmul.f32.gmra.mxu0 %v4899
        %v5635 = vpop.f32.mrf.mxu0
        %v5636 = vadd.f32 %v5427, %v5635
        %5637 = vmatmul.f32.gmra.mxu0 %v4903
        %v5638 = vpop.f32.mrf.mxu0
        %v5639 = vadd.f32 %v5430, %v5638
        %5640 = vmatmul.f32.gmra.mxu0 %v4907
        %v5641 = vpop.f32.mrf.mxu0
        %v5642 = vadd.f32 %v5433, %v5641
        %5643 = vmatmul.f32.gmra.mxu0 %v4911
        %v5644 = vpop.f32.mrf.mxu0
        %v5645 = vadd.f32 %v5436, %v5644
        %5646 = vmatmul.f32.gmra.mxu0 %v4915
        %v5647 = vpop.f32.mrf.mxu0
        %v5648 = vadd.f32 %v5439, %v5647
        %5649 = vmatmul.f32.gmra.mxu0 %v4919
        %v5650 = vpop.f32.mrf.mxu0
        %v5651 = vadd.f32 %v5442, %v5650
        %5652 = vmatmul.f32.gmra.mxu0 %v4923
        %v5653 = vpop.f32.mrf.mxu0
        %v5654 = vadd.f32 %v5445, %v5653
        %5655 = vmatmul.f32.gmra.mxu0 %v4927
        %v5656 = vpop.f32.mrf.mxu0
        %v5657 = vadd.f32 %v5448, %v5656
        %5658 = vmatmul.f32.gmra.mxu0 %v4931
        %v5659 = vpop.f32.mrf.mxu0
        %v5660 = vadd.f32 %v5451, %v5659
        %5661 = vmatmul.f32.gmra.mxu0 %v4935
        %v5662 = vpop.f32.mrf.mxu0
        %v5663 = vadd.f32 %v5454, %v5662
        %5664 = vmatmul.f32.gmra.mxu0 %v4939
        %v5665 = vpop.f32.mrf.mxu0
        %v5666 = vadd.f32 %v5457, %v5665
        %5667 = vmatmul.f32.gmra.mxu0 %v4943
        %v5668 = vpop.f32.mrf.mxu0
        %v5669 = vadd.f32 %v5460, %v5668
        %5670 = vmatmul.f32.gmra.mxu0 %v4947
        %v5671 = vpop.f32.mrf.mxu0
        %v5672 = vadd.f32 %v5463, %v5671
        %5673 = vmatmul.f32.gmra.mxu0 %v4951
        %v5674 = vpop.f32.mrf.mxu0
        %v5675 = vadd.f32 %v5466, %v5674
        %5676 = vmatmul.f32.gmra.mxu0 %v4955
        %v5677 = vpop.f32.mrf.mxu0
        %v5678 = vadd.f32 %v5469, %v5677
        %5679 = vmatmul.f32.gmra.mxu0 %v4959
        %v5680 = vpop.f32.mrf.mxu0
        %v5681 = vadd.f32 %v5472, %v5680
        %5682 = vmatmul.f32.gmra.mxu0 %v4963
        %v5683 = vpop.f32.mrf.mxu0
        %v5684 = vadd.f32 %v5475, %v5683
        %5685 = vmatmul.f32.gmra.mxu0 %v4967
        %v5686 = vpop.f32.mrf.mxu0
        %v5687 = vadd.f32 %v5478, %v5686
        %5688 = vmatmul.f32.gmra.mxu0 %v4971
        %v5689 = vpop.f32.mrf.mxu0
        %v5690 = vadd.f32 %v5481, %v5689
        %5691 = vmatmul.f32.gmra.mxu0 %v4975
        %v5692 = vpop.f32.mrf.mxu0
        %v5693 = vadd.f32 %v5484, %v5692
        %5694 = vmatmul.f32.gmra.mxu0 %v4979
        %v5695 = vpop.f32.mrf.mxu0
        %v5696 = vadd.f32 %v5487, %v5695
        %5697 = vmatmul.f32.gmra.mxu0 %v4983
        %v5698 = vpop.f32.mrf.mxu0
        %v5699 = vadd.f32 %v5490, %v5698
        %5700 = vmatmul.f32.gmra.mxu0 %v4987
        %v5701 = vpop.f32.mrf.mxu0
        %v5702 = vadd.f32 %v5493, %v5701
        %5703 = vmatmul.f32.gmra.mxu0 %v4991
        %v5704 = vpop.f32.mrf.mxu0
        %v5705 = vadd.f32 %v5496, %v5704
        %5706 = vmatmul.f32.gmra.mxu0 %v4995
        %v5707 = vpop.f32.mrf.mxu0
        %v5708 = vadd.f32 %v5499, %v5707
        %5709 = vmatmul.f32.gmra.mxu0 %v4999
        %v5710 = vpop.f32.mrf.mxu0
        %v5711 = vadd.f32 %v5502, %v5710
        %5712 = vmatmul.f32.gmra.mxu0 %v5003
        %v5713 = vpop.f32.mrf.mxu0
        %v5714 = vadd.f32 %v5505, %v5713
        %5715 = vmatmul.f32.gmra.mxu0 %v5007
        %v5716 = vpop.f32.mrf.mxu0
        %v5717 = vadd.f32 %v5508, %v5716
        %5718 = vmatmul.f32.gmra.mxu0 %v5011
        %v5719 = vpop.f32.mrf.mxu0
        %v5720 = vadd.f32 %v5511, %v5719
        %5721 = vmatmul.f32.gmra.mxu0 %v5015
        %v5722 = vpop.f32.mrf.mxu0
        %v5723 = vadd.f32 %v5514, %v5722
        %5724 = vmatmul.f32.gmra.mxu0 %v5019
        %v5725 = vpop.f32.mrf.mxu0
        %v5726 = vadd.f32 %v5517, %v5725
        %5727 = vmatmul.f32.gmra.mxu0 %v5023
        %v5728 = vpop.f32.mrf.mxu0
        %v5729 = vadd.f32 %v5520, %v5728
        %5730 = vmatmul.f32.gmra.mxu0 %v5027
        %v5731 = vpop.f32.mrf.mxu0
        %v5732 = vadd.f32 %v5523, %v5731
        %5733 = vmatmul.f32.gmra.mxu0 %v5031
        %v5734 = vpop.f32.mrf.mxu0
        %v5735 = vadd.f32 %v5526, %v5734
        %5736 = vmatmul.f32.gmra.mxu0 %v5035
        %v5737 = vpop.f32.mrf.mxu0
        %v5738 = vadd.f32 %v5529, %v5737
        %5739 = vmatmul.f32.gmra.mxu0 %v5039
        %v5740 = vpop.f32.mrf.mxu0
        %v5741 = vadd.f32 %v5532, %v5740
        %5742 = vmatmul.f32.gmra.mxu0 %v5043
        %v5743 = vpop.f32.mrf.mxu0
        %v5744 = vadd.f32 %v5535, %v5743
        %5745 = vmatmul.f32.gmra.mxu0 %v5047
        %v5746 = vpop.f32.mrf.mxu0
        %v5747 = vadd.f32 %v5538, %v5746
        %5748 = vmatmul.f32.gmra.mxu0 %v5051
        %v5749 = vpop.f32.mrf.mxu0
        %v5750 = vadd.f32 %v5541, %v5749
        %5751 = vmatmul.f32.gmra.mxu0 %v5055
        %v5752 = vpop.f32.mrf.mxu0
        %v5753 = vadd.f32 %v5544, %v5752
        %5754 = vmatmul.f32.gmra.mxu0 %v5059
        %v5755 = vpop.f32.mrf.mxu0
        %v5756 = vadd.f32 %v5547, %v5755
        %5757 = vmatmul.f32.gmra.mxu0 %v5063
        %v5758 = vpop.f32.mrf.mxu0
        %v5759 = vadd.f32 %v5550, %v5758
        %5760 = vmatmul.f32.gmra.mxu0 %v5067
        %v5761 = vpop.f32.mrf.mxu0
        %v5762 = vadd.f32 %v5553, %v5761
        %5763 = vmatmul.f32.gmra.mxu0 %v5071
        %v5764 = vpop.f32.mrf.mxu0
        %v5765 = vadd.f32 %v5556, %v5764
        %5766 = vmatmul.f32.gmra.mxu0 %v5075
        %v5767 = vpop.f32.mrf.mxu0
        %v5768 = vadd.f32 %v5559, %v5767
        %5769 = vmatmul.f32.gmra.mxu0 %v5079
        %v5770 = vpop.f32.mrf.mxu0
        %v5771 = vadd.f32 %v5562, %v5770
        %5772 = vmatmul.f32.gmra.mxu0 %v5083
        %v5773 = vpop.f32.mrf.mxu0
        %v5774 = vadd.f32 %v5565, %v5773
        %5775 = vdwg.mxu0
        %5776 = vmatpush.msra.mxu0 %v5148
        %5777 = vmatpush.msra.mxu0 %v5147
        %5778 = vmatpush.msra.mxu0 %v5146
        %5779 = vmatpush.msra.mxu0 %v5145
        %5780 = vmatpush.msra.mxu0 %v5144
        %5781 = vmatpush.msra.mxu0 %v5143
        %5782 = vmatpush.msra.mxu0 %v5142
        %5783 = vmatpush.msra.mxu0 %v5141
        %5784 = vmatpush.msra.mxu0 %v5140
        %5785 = vmatpush.msra.mxu0 %v5139
        %5786 = vmatpush.msra.mxu0 %v5138
        %5787 = vmatpush.msra.mxu0 %v5137
        %5788 = vmatpush.msra.mxu0 %v5136
        %5789 = vmatpush.msra.mxu0 %v5135
        %5790 = vmatpush.msra.mxu0 %v5134
        %5791 = vmatpush.msra.mxu0 %v5133
        %5792 = vmatmul.f32.gmra.mxu0 %v4832
        %v5793 = vpop.f32.mrf.mxu0
        %v5794 = vadd.f32 %v5585, %v5793
        %5795 = vmatmul.f32.gmra.mxu0 %v4836
        %v5796 = vpop.f32.mrf.mxu0
        %v5797 = vadd.f32 %v5588, %v5796
        %5798 = vmatmul.f32.gmra.mxu0 %v4840
        %v5799 = vpop.f32.mrf.mxu0
        %v5800 = vadd.f32 %v5591, %v5799
        %5801 = vmatmul.f32.gmra.mxu0 %v4844
        %v5802 = vpop.f32.mrf.mxu0
        %v5803 = vadd.f32 %v5594, %v5802
        %5804 = vmatmul.f32.gmra.mxu0 %v4848
        %v5805 = vpop.f32.mrf.mxu0
        %v5806 = vadd.f32 %v5597, %v5805
        %5807 = vmatmul.f32.gmra.mxu0 %v4852
        %v5808 = vpop.f32.mrf.mxu0
        %v5809 = vadd.f32 %v5600, %v5808
        %5810 = vmatmul.f32.gmra.mxu0 %v4856
        %v5811 = vpop.f32.mrf.mxu0
        %v5812 = vadd.f32 %v5603, %v5811
        %5813 = vmatmul.f32.gmra.mxu0 %v4860
        %v5814 = vpop.f32.mrf.mxu0
        %v5815 = vadd.f32 %v5606, %v5814
        %5816 = vmatmul.f32.gmra.mxu0 %v4864
        %v5817 = vpop.f32.mrf.mxu0
        %v5818 = vadd.f32 %v5609, %v5817
        %5819 = vmatmul.f32.gmra.mxu0 %v4868
        %v5820 = vpop.f32.mrf.mxu0
        %v5821 = vadd.f32 %v5612, %v5820
        %5822 = vmatmul.f32.gmra.mxu0 %v4872
        %v5823 = vpop.f32.mrf.mxu0
        %v5824 = vadd.f32 %v5615, %v5823
        %5825 = vmatmul.f32.gmra.mxu0 %v4876
        %v5826 = vpop.f32.mrf.mxu0
        %v5827 = vadd.f32 %v5618, %v5826
        %5828 = vmatmul.f32.gmra.mxu0 %v4880
        %v5829 = vpop.f32.mrf.mxu0
        %v5830 = vadd.f32 %v5621, %v5829
        %5831 = vmatmul.f32.gmra.mxu0 %v4884
        %v5832 = vpop.f32.mrf.mxu0
        %v5833 = vadd.f32 %v5624, %v5832
        %5834 = vmatmul.f32.gmra.mxu0 %v4888
        %v5835 = vpop.f32.mrf.mxu0
        %v5836 = vadd.f32 %v5627, %v5835
        %5837 = vmatmul.f32.gmra.mxu0 %v4892
        %v5838 = vpop.f32.mrf.mxu0
        %v5839 = vadd.f32 %v5630, %v5838
        %5840 = vmatmul.f32.gmra.mxu0 %v4896
        %v5841 = vpop.f32.mrf.mxu0
        %v5842 = vadd.f32 %v5633, %v5841
        %5843 = vmatmul.f32.gmra.mxu0 %v4900
        %v5844 = vpop.f32.mrf.mxu0
        %v5845 = vadd.f32 %v5636, %v5844
        %5846 = vmatmul.f32.gmra.mxu0 %v4904
        %v5847 = vpop.f32.mrf.mxu0
        %v5848 = vadd.f32 %v5639, %v5847
        %5849 = vmatmul.f32.gmra.mxu0 %v4908
        %v5850 = vpop.f32.mrf.mxu0
        %v5851 = vadd.f32 %v5642, %v5850
        %5852 = vmatmul.f32.gmra.mxu0 %v4912
        %v5853 = vpop.f32.mrf.mxu0
        %v5854 = vadd.f32 %v5645, %v5853
        %5855 = vmatmul.f32.gmra.mxu0 %v4916
        %v5856 = vpop.f32.mrf.mxu0
        %v5857 = vadd.f32 %v5648, %v5856
        %5858 = vmatmul.f32.gmra.mxu0 %v4920
        %v5859 = vpop.f32.mrf.mxu0
        %v5860 = vadd.f32 %v5651, %v5859
        %5861 = vmatmul.f32.gmra.mxu0 %v4924
        %v5862 = vpop.f32.mrf.mxu0
        %v5863 = vadd.f32 %v5654, %v5862
        %5864 = vmatmul.f32.gmra.mxu0 %v4928
        %v5865 = vpop.f32.mrf.mxu0
        %v5866 = vadd.f32 %v5657, %v5865
        %5867 = vmatmul.f32.gmra.mxu0 %v4932
        %v5868 = vpop.f32.mrf.mxu0
        %v5869 = vadd.f32 %v5660, %v5868
        %5870 = vmatmul.f32.gmra.mxu0 %v4936
        %v5871 = vpop.f32.mrf.mxu0
        %v5872 = vadd.f32 %v5663, %v5871
        %5873 = vmatmul.f32.gmra.mxu0 %v4940
        %v5874 = vpop.f32.mrf.mxu0
        %v5875 = vadd.f32 %v5666, %v5874
        %5876 = vmatmul.f32.gmra.mxu0 %v4944
        %v5877 = vpop.f32.mrf.mxu0
        %v5878 = vadd.f32 %v5669, %v5877
        %5879 = vmatmul.f32.gmra.mxu0 %v4948
        %v5880 = vpop.f32.mrf.mxu0
        %v5881 = vadd.f32 %v5672, %v5880
        %5882 = vmatmul.f32.gmra.mxu0 %v4952
        %v5883 = vpop.f32.mrf.mxu0
        %v5884 = vadd.f32 %v5675, %v5883
        %5885 = vmatmul.f32.gmra.mxu0 %v4956
        %v5886 = vpop.f32.mrf.mxu0
        %v5887 = vadd.f32 %v5678, %v5886
        %5888 = vmatmul.f32.gmra.mxu0 %v4960
        %v5889 = vpop.f32.mrf.mxu0
        %v5890 = vadd.f32 %v5681, %v5889
        %5891 = vmatmul.f32.gmra.mxu0 %v4964
        %v5892 = vpop.f32.mrf.mxu0
        %v5893 = vadd.f32 %v5684, %v5892
        %5894 = vmatmul.f32.gmra.mxu0 %v4968
        %v5895 = vpop.f32.mrf.mxu0
        %v5896 = vadd.f32 %v5687, %v5895
        %5897 = vmatmul.f32.gmra.mxu0 %v4972
        %v5898 = vpop.f32.mrf.mxu0
        %v5899 = vadd.f32 %v5690, %v5898
        %5900 = vmatmul.f32.gmra.mxu0 %v4976
        %v5901 = vpop.f32.mrf.mxu0
        %v5902 = vadd.f32 %v5693, %v5901
        %5903 = vmatmul.f32.gmra.mxu0 %v4980
        %v5904 = vpop.f32.mrf.mxu0
        %v5905 = vadd.f32 %v5696, %v5904
        %5906 = vmatmul.f32.gmra.mxu0 %v4984
        %v5907 = vpop.f32.mrf.mxu0
        %v5908 = vadd.f32 %v5699, %v5907
        %5909 = vmatmul.f32.gmra.mxu0 %v4988
        %v5910 = vpop.f32.mrf.mxu0
        %v5911 = vadd.f32 %v5702, %v5910
        %5912 = vmatmul.f32.gmra.mxu0 %v4992
        %v5913 = vpop.f32.mrf.mxu0
        %v5914 = vadd.f32 %v5705, %v5913
        %5915 = vmatmul.f32.gmra.mxu0 %v4996
        %v5916 = vpop.f32.mrf.mxu0
        %v5917 = vadd.f32 %v5708, %v5916
        %5918 = vmatmul.f32.gmra.mxu0 %v5000
        %v5919 = vpop.f32.mrf.mxu0
        %v5920 = vadd.f32 %v5711, %v5919
        %5921 = vmatmul.f32.gmra.mxu0 %v5004
        %v5922 = vpop.f32.mrf.mxu0
        %v5923 = vadd.f32 %v5714, %v5922
        %5924 = vmatmul.f32.gmra.mxu0 %v5008
        %v5925 = vpop.f32.mrf.mxu0
        %v5926 = vadd.f32 %v5717, %v5925
        %5927 = vmatmul.f32.gmra.mxu0 %v5012
        %v5928 = vpop.f32.mrf.mxu0
        %v5929 = vadd.f32 %v5720, %v5928
        %5930 = vmatmul.f32.gmra.mxu0 %v5016
        %v5931 = vpop.f32.mrf.mxu0
        %v5932 = vadd.f32 %v5723, %v5931
        %5933 = vmatmul.f32.gmra.mxu0 %v5020
        %v5934 = vpop.f32.mrf.mxu0
        %v5935 = vadd.f32 %v5726, %v5934
        %5936 = vmatmul.f32.gmra.mxu0 %v5024
        %v5937 = vpop.f32.mrf.mxu0
        %v5938 = vadd.f32 %v5729, %v5937
        %5939 = vmatmul.f32.gmra.mxu0 %v5028
        %v5940 = vpop.f32.mrf.mxu0
        %v5941 = vadd.f32 %v5732, %v5940
        %5942 = vmatmul.f32.gmra.mxu0 %v5032
        %v5943 = vpop.f32.mrf.mxu0
        %v5944 = vadd.f32 %v5735, %v5943
        %5945 = vmatmul.f32.gmra.mxu0 %v5036
        %v5946 = vpop.f32.mrf.mxu0
        %v5947 = vadd.f32 %v5738, %v5946
        %5948 = vmatmul.f32.gmra.mxu0 %v5040
        %v5949 = vpop.f32.mrf.mxu0
        %v5950 = vadd.f32 %v5741, %v5949
        %5951 = vmatmul.f32.gmra.mxu0 %v5044
        %v5952 = vpop.f32.mrf.mxu0
        %v5953 = vadd.f32 %v5744, %v5952
        %5954 = vmatmul.f32.gmra.mxu0 %v5048
        %v5955 = vpop.f32.mrf.mxu0
        %v5956 = vadd.f32 %v5747, %v5955
        %5957 = vmatmul.f32.gmra.mxu0 %v5052
        %v5958 = vpop.f32.mrf.mxu0
        %v5959 = vadd.f32 %v5750, %v5958
        %5960 = vmatmul.f32.gmra.mxu0 %v5056
        %v5961 = vpop.f32.mrf.mxu0
        %v5962 = vadd.f32 %v5753, %v5961
        %5963 = vmatmul.f32.gmra.mxu0 %v5060
        %v5964 = vpop.f32.mrf.mxu0
        %v5965 = vadd.f32 %v5756, %v5964
        %5966 = vmatmul.f32.gmra.mxu0 %v5064
        %v5967 = vpop.f32.mrf.mxu0
        %v5968 = vadd.f32 %v5759, %v5967
        %5969 = vmatmul.f32.gmra.mxu0 %v5068
        %v5970 = vpop.f32.mrf.mxu0
        %v5971 = vadd.f32 %v5762, %v5970
        %5972 = vmatmul.f32.gmra.mxu0 %v5072
        %v5973 = vpop.f32.mrf.mxu0
        %v5974 = vadd.f32 %v5765, %v5973
        %5975 = vmatmul.f32.gmra.mxu0 %v5076
        %v5976 = vpop.f32.mrf.mxu0
        %v5977 = vadd.f32 %v5768, %v5976
        %5978 = vmatmul.f32.gmra.mxu0 %v5080
        %v5979 = vpop.f32.mrf.mxu0
        %v5980 = vadd.f32 %v5771, %v5979
        %5981 = vmatmul.f32.gmra.mxu0 %v5084
        %v5982 = vpop.f32.mrf.mxu0
        %v5983 = vadd.f32 %v5774, %v5982
        %5984 = vdwg.mxu0
        %5985 = vst [vmem:[#allocation4] sm:$0xff] %v5794
        %5986 = vst [vmem:[#allocation4 + $0x8] sm:$0xff] %v5797
        %5987 = vst [vmem:[#allocation4 + $0x10] sm:$0xff] %v5800
        %5988 = vst [vmem:[#allocation4 + $0x18] sm:$0xff] %v5803
        %5989 = vst [vmem:[#allocation4 + $0x20] sm:$0xff] %v5806
        %5990 = vst [vmem:[#allocation4 + $0x28] sm:$0xff] %v5809
        %5991 = vst [vmem:[#allocation4 + $0x30] sm:$0xff] %v5812
        %5992 = vst [vmem:[#allocation4 + $0x38] sm:$0xff] %v5815
        %5993 = vst [vmem:[#allocation4 + $0x40] sm:$0xff] %v5818
        %5994 = vst [vmem:[#allocation4 + $0x48] sm:$0xff] %v5821
        %5995 = vst [vmem:[#allocation4 + $0x50] sm:$0xff] %v5824
        %5996 = vst [vmem:[#allocation4 + $0x58] sm:$0xff] %v5827
        %5997 = vst [vmem:[#allocation4 + $0x60] sm:$0xff] %v5830
        %5998 = vst [vmem:[#allocation4 + $0x68] sm:$0xff] %v5833
        %5999 = vst [vmem:[#allocation4 + $0x70] sm:$0xff] %v5836
        %6000 = vst [vmem:[#allocation4 + $0x78] sm:$0xff] %v5839
        %6001 = vst [vmem:[#allocation4 + $0x80] sm:$0xff] %v5842
        %6002 = vst [vmem:[#allocation4 + $0x88] sm:$0xff] %v5845
        %6003 = vst [vmem:[#allocation4 + $0x90] sm:$0xff] %v5848
        %6004 = vst [vmem:[#allocation4 + $0x98] sm:$0xff] %v5851
        %6005 = vst [vmem:[#allocation4 + $0xa0] sm:$0xff] %v5854
        %6006 = vst [vmem:[#allocation4 + $0xa8] sm:$0xff] %v5857
        %6007 = vst [vmem:[#allocation4 + $0xb0] sm:$0xff] %v5860
        %6008 = vst [vmem:[#allocation4 + $0xb8] sm:$0xff] %v5863
        %6009 = vst [vmem:[#allocation4 + $0xc0] sm:$0xff] %v5866
        %6010 = vst [vmem:[#allocation4 + $0xc8] sm:$0xff] %v5869
        %6011 = vst [vmem:[#allocation4 + $0xd0] sm:$0xff] %v5872
        %6012 = vst [vmem:[#allocation4 + $0xd8] sm:$0xff] %v5875
        %6013 = vst [vmem:[#allocation4 + $0xe0] sm:$0xff] %v5878
        %6014 = vst [vmem:[#allocation4 + $0xe8] sm:$0xff] %v5881
        %6015 = vst [vmem:[#allocation4 + $0xf0] sm:$0xff] %v5884
        %6016 = vst [vmem:[#allocation4 + $0xf8] sm:$0xff] %v5887
        %6017 = vst [vmem:[#allocation4 + $0x100] sm:$0xff] %v5890
        %6018 = vst [vmem:[#allocation4 + $0x108] sm:$0xff] %v5893
        %6019 = vst [vmem:[#allocation4 + $0x110] sm:$0xff] %v5896
        %6020 = vst [vmem:[#allocation4 + $0x118] sm:$0xff] %v5899
        %6021 = vst [vmem:[#allocation4 + $0x120] sm:$0xff] %v5902
        %6022 = vst [vmem:[#allocation4 + $0x128] sm:$0xff] %v5905
        %6023 = vst [vmem:[#allocation4 + $0x130] sm:$0xff] %v5908
        %6024 = vst [vmem:[#allocation4 + $0x138] sm:$0xff] %v5911
        %6025 = vst [vmem:[#allocation4 + $0x140] sm:$0xff] %v5914
        %6026 = vst [vmem:[#allocation4 + $0x148] sm:$0xff] %v5917
        %6027 = vst [vmem:[#allocation4 + $0x150] sm:$0xff] %v5920
        %6028 = vst [vmem:[#allocation4 + $0x158] sm:$0xff] %v5923
        %6029 = vst [vmem:[#allocation4 + $0x160] sm:$0xff] %v5926
        %6030 = vst [vmem:[#allocation4 + $0x168] sm:$0xff] %v5929
        %6031 = vst [vmem:[#allocation4 + $0x170] sm:$0xff] %v5932
        %6032 = vst [vmem:[#allocation4 + $0x178] sm:$0xff] %v5935
        %6033 = vst [vmem:[#allocation4 + $0x180] sm:$0xff] %v5938
        %6034 = vst [vmem:[#allocation4 + $0x188] sm:$0xff] %v5941
        %6035 = vst [vmem:[#allocation4 + $0x190] sm:$0xff] %v5944
        %6036 = vst [vmem:[#allocation4 + $0x198] sm:$0xff] %v5947
        %6037 = vst [vmem:[#allocation4 + $0x1a0] sm:$0xff] %v5950
        %6038 = vst [vmem:[#allocation4 + $0x1a8] sm:$0xff] %v5953
        %6039 = vst [vmem:[#allocation4 + $0x1b0] sm:$0xff] %v5956
        %6040 = vst [vmem:[#allocation4 + $0x1b8] sm:$0xff] %v5959
        %6041 = vst [vmem:[#allocation4 + $0x1c0] sm:$0xff] %v5962
        %6042 = vst [vmem:[#allocation4 + $0x1c8] sm:$0xff] %v5965
        %6043 = vst [vmem:[#allocation4 + $0x1d0] sm:$0xff] %v5968
        %6044 = vst [vmem:[#allocation4 + $0x1d8] sm:$0xff] %v5971
        %6045 = vst [vmem:[#allocation4 + $0x1e0] sm:$0xff] %v5974
        %6046 = vst [vmem:[#allocation4 + $0x1e8] sm:$0xff] %v5977
        %6047 = vst [vmem:[#allocation4 + $0x1f0] sm:$0xff] %v5980
        %6048 = vst [vmem:[#allocation4 + $0x1f8] sm:$0xff] %v5983
        %v6049 = vld [vmem:[%s9] sm:$0xff]
        %v6050 = vld [vmem:[%s9 + $0x8] sm:$0xff]
        %v6051 = vld [vmem:[%s9 + $0x10] sm:$0xff]
        %v6052 = vld [vmem:[%s9 + $0x18] sm:$0xff]
        %v6053 = vld [vmem:[%s9 + $0x20] sm:$0xff]
        %v6054 = vld [vmem:[%s9 + $0x28] sm:$0xff]
        %v6055 = vld [vmem:[%s9 + $0x30] sm:$0xff]
        %v6056 = vld [vmem:[%s9 + $0x38] sm:$0xff]
        %v6057 = vld [vmem:[%s10] sm:$0xff]
        %v6058 = vld [vmem:[%s10 + $0x8] sm:$0xff]
        %v6059 = vld [vmem:[%s10 + $0x10] sm:$0xff]
        %v6060 = vld [vmem:[%s10 + $0x18] sm:$0xff]
        %v6061 = vld [vmem:[%s10 + $0x20] sm:$0xff]
        %v6062 = vld [vmem:[%s10 + $0x28] sm:$0xff]
        %v6063 = vld [vmem:[%s10 + $0x30] sm:$0xff]
        %v6064 = vld [vmem:[%s10 + $0x38] sm:$0xff]
        %v6066 = vsel %vm3875, %v4477, 0
        %v6069 = vsel %vm3875, %v4478, 0
        %v6072 = vsel %vm3875, %v4479, 0
        %v6075 = vsel %vm3875, %v4480, 0
        %v6078 = vsel %vm3875, %v4481, 0
        %v6081 = vsel %vm3875, %v4482, 0
        %v6084 = vsel %vm3875, %v4483, 0
        %v6087 = vsel %vm3875, %v4484, 0
        %6089 = vmatpush.msra.mxu0 0.0
        %6090 = vmatpush.msra.mxu0 0.0
        %6091 = vmatpush.msra.mxu0 0.0
        %6092 = vmatpush.msra.mxu0 0.0
        %6093 = vmatpush.msra.mxu0 0.0
        %6094 = vmatpush.msra.mxu0 0.0
        %6095 = vmatpush.msra.mxu0 0.0
        %6096 = vmatpush.msra.mxu0 0.0
        %6097 = vmatpush.msra.mxu0 %v6056
        %6098 = vmatpush.msra.mxu0 %v6055
        %6099 = vmatpush.msra.mxu0 %v6054
        %6100 = vmatpush.msra.mxu0 %v6053
        %6101 = vmatpush.msra.mxu0 %v6052
        %6102 = vmatpush.msra.mxu0 %v6051
        %6103 = vmatpush.msra.mxu0 %v6050
        %6104 = vmatpush.msra.mxu0 %v6049
        %6105 = vmatmul.f32.gmra.mxu0 %v6066
        %v6106 = vpop.f32.mrf.mxu0
        %v6107 = vadd.f32 %v6057, %v6106
        %6108 = vmatmul.f32.gmra.mxu0 %v6069
        %v6109 = vpop.f32.mrf.mxu0
        %v6110 = vadd.f32 %v6058, %v6109
        %6111 = vmatmul.f32.gmra.mxu0 %v6072
        %v6112 = vpop.f32.mrf.mxu0
        %v6113 = vadd.f32 %v6059, %v6112
        %6114 = vmatmul.f32.gmra.mxu0 %v6075
        %v6115 = vpop.f32.mrf.mxu0
        %v6116 = vadd.f32 %v6060, %v6115
        %6117 = vmatmul.f32.gmra.mxu0 %v6078
        %v6118 = vpop.f32.mrf.mxu0
        %v6119 = vadd.f32 %v6061, %v6118
        %6120 = vmatmul.f32.gmra.mxu0 %v6081
        %v6121 = vpop.f32.mrf.mxu0
        %v6122 = vadd.f32 %v6062, %v6121
        %6123 = vmatmul.f32.gmra.mxu0 %v6084
        %v6124 = vpop.f32.mrf.mxu0
        %v6125 = vadd.f32 %v6063, %v6124
        %6126 = vmatmul.f32.gmra.mxu0 %v6087
        %v6127 = vpop.f32.mrf.mxu0
        %v6128 = vadd.f32 %v6064, %v6127
        %6129 = vdwg.mxu0
        %6130 = vst.msk [vmem:[#allocation5] sm:$0xff] %vm3875, %v6107
        %6131 = vst.msk [vmem:[#allocation5 + $0x8] sm:$0xff] %vm3875, %v6110
        %6132 = vst.msk [vmem:[#allocation5 + $0x10] sm:$0xff] %vm3875, %v6113
        %6133 = vst.msk [vmem:[#allocation5 + $0x18] sm:$0xff] %vm3875, %v6116
        %6134 = vst.msk [vmem:[#allocation5 + $0x20] sm:$0xff] %vm3875, %v6119
        %6135 = vst.msk [vmem:[#allocation5 + $0x28] sm:$0xff] %vm3875, %v6122
        %6136 = vst.msk [vmem:[#allocation5 + $0x30] sm:$0xff] %vm3875, %v6125
        %6137 = vst.msk [vmem:[#allocation5 + $0x38] sm:$0xff] %vm3875, %v6128
        %v6138 = vld [vmem:[#allocation5] sm:$0xff]
        %v6139 = vld [vmem:[#allocation5 + $0x8] sm:$0xff]
        %v6140 = vld [vmem:[#allocation5 + $0x10] sm:$0xff]
        %v6141 = vld [vmem:[#allocation5 + $0x18] sm:$0xff]
        %v6142 = vld [vmem:[#allocation5 + $0x20] sm:$0xff]
        %v6143 = vld [vmem:[#allocation5 + $0x28] sm:$0xff]
        %v6144 = vld [vmem:[#allocation5 + $0x30] sm:$0xff]
        %v6145 = vld [vmem:[#allocation5 + $0x38] sm:$0xff]
        %v6146 = vld [vmem:[#allocation4] sm:$0xff]
        %v6147 = vld [vmem:[#allocation4 + $0x8] sm:$0xff]
        %v6148 = vld [vmem:[#allocation4 + $0x10] sm:$0xff]
        %v6149 = vld [vmem:[#allocation4 + $0x18] sm:$0xff]
        %v6150 = vld [vmem:[#allocation4 + $0x20] sm:$0xff]
        %v6151 = vld [vmem:[#allocation4 + $0x28] sm:$0xff]
        %v6152 = vld [vmem:[#allocation4 + $0x30] sm:$0xff]
        %v6153 = vld [vmem:[#allocation4 + $0x38] sm:$0xff]
        %v6154 = vadd.f32 %v6138, %v6146
        %v6155 = vadd.f32 %v6139, %v6147
        %v6156 = vadd.f32 %v6140, %v6148
        %v6157 = vadd.f32 %v6141, %v6149
        %v6158 = vadd.f32 %v6142, %v6150
        %v6159 = vadd.f32 %v6143, %v6151
        %v6160 = vadd.f32 %v6144, %v6152
        %v6161 = vadd.f32 %v6145, %v6153
        %6162 = vst.msk [vmem:[#allocation5] sm:$0xff] %vm689, %v6154
        %6163 = vst.msk [vmem:[#allocation5 + $0x8] sm:$0xff] %vm689, %v6155
        %6164 = vst.msk [vmem:[#allocation5 + $0x10] sm:$0xff] %vm689, %v6156
        %6165 = vst.msk [vmem:[#allocation5 + $0x18] sm:$0xff] %vm689, %v6157
        %6166 = vst.msk [vmem:[#allocation5 + $0x20] sm:$0xff] %vm689, %v6158
        %6167 = vst.msk [vmem:[#allocation5 + $0x28] sm:$0xff] %vm689, %v6159
        %6168 = vst.msk [vmem:[#allocation5 + $0x30] sm:$0xff] %vm689, %v6160
        %6169 = vst.msk [vmem:[#allocation5 + $0x38] sm:$0xff] %vm689, %v6161
        %v6170 = vld [vmem:[#allocation5] sm:$0xff]
        %v6171 = vld [vmem:[#allocation5 + $0x8] sm:$0xff]
        %v6172 = vld [vmem:[#allocation5 + $0x10] sm:$0xff]
        %v6173 = vld [vmem:[#allocation5 + $0x18] sm:$0xff]
        %v6174 = vld [vmem:[#allocation5 + $0x20] sm:$0xff]
        %v6175 = vld [vmem:[#allocation5 + $0x28] sm:$0xff]
        %v6176 = vld [vmem:[#allocation5 + $0x30] sm:$0xff]
        %v6177 = vld [vmem:[#allocation5 + $0x38] sm:$0xff]
        %v6178 = vld [vmem:[#allocation4 + $0x40] sm:$0xff]
        %v6179 = vld [vmem:[#allocation4 + $0x48] sm:$0xff]
        %v6180 = vld [vmem:[#allocation4 + $0x50] sm:$0xff]
        %v6181 = vld [vmem:[#allocation4 + $0x58] sm:$0xff]
        %v6182 = vld [vmem:[#allocation4 + $0x60] sm:$0xff]
        %v6183 = vld [vmem:[#allocation4 + $0x68] sm:$0xff]
        %v6184 = vld [vmem:[#allocation4 + $0x70] sm:$0xff]
        %v6185 = vld [vmem:[#allocation4 + $0x78] sm:$0xff]
        %6194 = vrot.lane.b32.xlu0 %v6178, 8
        %v6195 = vpop.permute.xlu0 %6194
        %6196 = vrot.lane.b32.xlu0 %v6179, 8
        %v6197 = vpop.permute.xlu0 %6196
        %6198 = vrot.lane.b32.xlu0 %v6180, 8
        %v6199 = vpop.permute.xlu0 %6198
        %6200 = vrot.lane.b32.xlu0 %v6181, 8
        %v6201 = vpop.permute.xlu0 %6200
        %6202 = vrot.lane.b32.xlu0 %v6182, 8
        %v6203 = vpop.permute.xlu0 %6202
        %6204 = vrot.lane.b32.xlu0 %v6183, 8
        %v6205 = vpop.permute.xlu0 %6204
        %6206 = vrot.lane.b32.xlu0 %v6184, 8
        %v6207 = vpop.permute.xlu0 %6206
        %6208 = vrot.lane.b32.xlu0 %v6185, 8
        %v6209 = vpop.permute.xlu0 %6208
        %v6218 = vadd.f32 %v6170, %v6195
        %v6219 = vadd.f32 %v6171, %v6197
        %v6220 = vadd.f32 %v6172, %v6199
        %v6221 = vadd.f32 %v6173, %v6201
        %v6222 = vadd.f32 %v6174, %v6203
        %v6223 = vadd.f32 %v6175, %v6205
        %v6224 = vadd.f32 %v6176, %v6207
        %v6225 = vadd.f32 %v6177, %v6209
        %6226 = vst.msk [vmem:[#allocation5] sm:$0xff] %vm916, %v6218
        %6227 = vst.msk [vmem:[#allocation5 + $0x8] sm:$0xff] %vm916, %v6219
        %6228 = vst.msk [vmem:[#allocation5 + $0x10] sm:$0xff] %vm916, %v6220
        %6229 = vst.msk [vmem:[#allocation5 + $0x18] sm:$0xff] %vm916, %v6221
        %6230 = vst.msk [vmem:[#allocation5 + $0x20] sm:$0xff] %vm916, %v6222
        %6231 = vst.msk [vmem:[#allocation5 + $0x28] sm:$0xff] %vm916, %v6223
        %6232 = vst.msk [vmem:[#allocation5 + $0x30] sm:$0xff] %vm916, %v6224
        %6233 = vst.msk [vmem:[#allocation5 + $0x38] sm:$0xff] %vm916, %v6225
        %v6234 = vld [vmem:[#allocation5] sm:$0xff]
        %v6235 = vld [vmem:[#allocation5 + $0x8] sm:$0xff]
        %v6236 = vld [vmem:[#allocation5 + $0x10] sm:$0xff]
        %v6237 = vld [vmem:[#allocation5 + $0x18] sm:$0xff]
        %v6238 = vld [vmem:[#allocation5 + $0x20] sm:$0xff]
        %v6239 = vld [vmem:[#allocation5 + $0x28] sm:$0xff]
        %v6240 = vld [vmem:[#allocation5 + $0x30] sm:$0xff]
        %v6241 = vld [vmem:[#allocation5 + $0x38] sm:$0xff]
        %v6242 = vld [vmem:[#allocation4 + $0x80] sm:$0xff]
        %v6243 = vld [vmem:[#allocation4 + $0x88] sm:$0xff]
        %v6244 = vld [vmem:[#allocation4 + $0x90] sm:$0xff]
        %v6245 = vld [vmem:[#allocation4 + $0x98] sm:$0xff]
        %v6246 = vld [vmem:[#allocation4 + $0xa0] sm:$0xff]
        %v6247 = vld [vmem:[#allocation4 + $0xa8] sm:$0xff]
        %v6248 = vld [vmem:[#allocation4 + $0xb0] sm:$0xff]
        %v6249 = vld [vmem:[#allocation4 + $0xb8] sm:$0xff]
        %6258 = vrot.lane.b32.xlu0 %v6242, 16
        %v6259 = vpop.permute.xlu0 %6258
        %6260 = vrot.lane.b32.xlu0 %v6243, 16
        %v6261 = vpop.permute.xlu0 %6260
        %6262 = vrot.lane.b32.xlu0 %v6244, 16
        %v6263 = vpop.permute.xlu0 %6262
        %6264 = vrot.lane.b32.xlu0 %v6245, 16
        %v6265 = vpop.permute.xlu0 %6264
        %6266 = vrot.lane.b32.xlu0 %v6246, 16
        %v6267 = vpop.permute.xlu0 %6266
        %6268 = vrot.lane.b32.xlu0 %v6247, 16
        %v6269 = vpop.permute.xlu0 %6268
        %6270 = vrot.lane.b32.xlu0 %v6248, 16
        %v6271 = vpop.permute.xlu0 %6270
        %6272 = vrot.lane.b32.xlu0 %v6249, 16
        %v6273 = vpop.permute.xlu0 %6272
        %v6282 = vadd.f32 %v6234, %v6259
        %v6283 = vadd.f32 %v6235, %v6261
        %v6284 = vadd.f32 %v6236, %v6263
        %v6285 = vadd.f32 %v6237, %v6265
        %v6286 = vadd.f32 %v6238, %v6267
        %v6287 = vadd.f32 %v6239, %v6269
        %v6288 = vadd.f32 %v6240, %v6271
        %v6289 = vadd.f32 %v6241, %v6273
        %6290 = vst.msk [vmem:[#allocation5] sm:$0xff] %vm1143, %v6282
        %6291 = vst.msk [vmem:[#allocation5 + $0x8] sm:$0xff] %vm1143, %v6283
        %6292 = vst.msk [vmem:[#allocation5 + $0x10] sm:$0xff] %vm1143, %v6284
        %6293 = vst.msk [vmem:[#allocation5 + $0x18] sm:$0xff] %vm1143, %v6285
        %6294 = vst.msk [vmem:[#allocation5 + $0x20] sm:$0xff] %vm1143, %v6286
        %6295 = vst.msk [vmem:[#allocation5 + $0x28] sm:$0xff] %vm1143, %v6287
        %6296 = vst.msk [vmem:[#allocation5 + $0x30] sm:$0xff] %vm1143, %v6288
        %6297 = vst.msk [vmem:[#allocation5 + $0x38] sm:$0xff] %vm1143, %v6289
        %v6298 = vld [vmem:[#allocation5] sm:$0xff]
        %v6299 = vld [vmem:[#allocation5 + $0x8] sm:$0xff]
        %v6300 = vld [vmem:[#allocation5 + $0x10] sm:$0xff]
        %v6301 = vld [vmem:[#allocation5 + $0x18] sm:$0xff]
        %v6302 = vld [vmem:[#allocation5 + $0x20] sm:$0xff]
        %v6303 = vld [vmem:[#allocation5 + $0x28] sm:$0xff]
        %v6304 = vld [vmem:[#allocation5 + $0x30] sm:$0xff]
        %v6305 = vld [vmem:[#allocation5 + $0x38] sm:$0xff]
        %v6306 = vld [vmem:[#allocation4 + $0xc0] sm:$0xff]
        %v6307 = vld [vmem:[#allocation4 + $0xc8] sm:$0xff]
        %v6308 = vld [vmem:[#allocation4 + $0xd0] sm:$0xff]
        %v6309 = vld [vmem:[#allocation4 + $0xd8] sm:$0xff]
        %v6310 = vld [vmem:[#allocation4 + $0xe0] sm:$0xff]
        %v6311 = vld [vmem:[#allocation4 + $0xe8] sm:$0xff]
        %v6312 = vld [vmem:[#allocation4 + $0xf0] sm:$0xff]
        %v6313 = vld [vmem:[#allocation4 + $0xf8] sm:$0xff]
        %6322 = vrot.lane.b32.xlu0 %v6306, 24
        %v6323 = vpop.permute.xlu0 %6322
        %6324 = vrot.lane.b32.xlu0 %v6307, 24
        %v6325 = vpop.permute.xlu0 %6324
        %6326 = vrot.lane.b32.xlu0 %v6308, 24
        %v6327 = vpop.permute.xlu0 %6326
        %6328 = vrot.lane.b32.xlu0 %v6309, 24
        %v6329 = vpop.permute.xlu0 %6328
        %6330 = vrot.lane.b32.xlu0 %v6310, 24
        %v6331 = vpop.permute.xlu0 %6330
        %6332 = vrot.lane.b32.xlu0 %v6311, 24
        %v6333 = vpop.permute.xlu0 %6332
        %6334 = vrot.lane.b32.xlu0 %v6312, 24
        %v6335 = vpop.permute.xlu0 %6334
        %6336 = vrot.lane.b32.xlu0 %v6313, 24
        %v6337 = vpop.permute.xlu0 %6336
        %v6346 = vadd.f32 %v6298, %v6323
        %v6347 = vadd.f32 %v6299, %v6325
        %v6348 = vadd.f32 %v6300, %v6327
        %v6349 = vadd.f32 %v6301, %v6329
        %v6350 = vadd.f32 %v6302, %v6331
        %v6351 = vadd.f32 %v6303, %v6333
        %v6352 = vadd.f32 %v6304, %v6335
        %v6353 = vadd.f32 %v6305, %v6337
        %6354 = vst.msk [vmem:[#allocation5] sm:$0xff] %vm1370, %v6346
        %6355 = vst.msk [vmem:[#allocation5 + $0x8] sm:$0xff] %vm1370, %v6347
        %6356 = vst.msk [vmem:[#allocation5 + $0x10] sm:$0xff] %vm1370, %v6348
        %6357 = vst.msk [vmem:[#allocation5 + $0x18] sm:$0xff] %vm1370, %v6349
        %6358 = vst.msk [vmem:[#allocation5 + $0x20] sm:$0xff] %vm1370, %v6350
        %6359 = vst.msk [vmem:[#allocation5 + $0x28] sm:$0xff] %vm1370, %v6351
        %6360 = vst.msk [vmem:[#allocation5 + $0x30] sm:$0xff] %vm1370, %v6352
        %6361 = vst.msk [vmem:[#allocation5 + $0x38] sm:$0xff] %vm1370, %v6353
        %v6362 = vld [vmem:[#allocation5] sm:$0xff]
        %v6363 = vld [vmem:[#allocation5 + $0x8] sm:$0xff]
        %v6364 = vld [vmem:[#allocation5 + $0x10] sm:$0xff]
        %v6365 = vld [vmem:[#allocation5 + $0x18] sm:$0xff]
        %v6366 = vld [vmem:[#allocation5 + $0x20] sm:$0xff]
        %v6367 = vld [vmem:[#allocation5 + $0x28] sm:$0xff]
        %v6368 = vld [vmem:[#allocation5 + $0x30] sm:$0xff]
        %v6369 = vld [vmem:[#allocation5 + $0x38] sm:$0xff]
        %v6370 = vld [vmem:[#allocation4 + $0x100] sm:$0xff]
        %v6371 = vld [vmem:[#allocation4 + $0x108] sm:$0xff]
        %v6372 = vld [vmem:[#allocation4 + $0x110] sm:$0xff]
        %v6373 = vld [vmem:[#allocation4 + $0x118] sm:$0xff]
        %v6374 = vld [vmem:[#allocation4 + $0x120] sm:$0xff]
        %v6375 = vld [vmem:[#allocation4 + $0x128] sm:$0xff]
        %v6376 = vld [vmem:[#allocation4 + $0x130] sm:$0xff]
        %v6377 = vld [vmem:[#allocation4 + $0x138] sm:$0xff]
        %6386 = vrot.lane.b32.xlu0 %v6370, 32
        %v6387 = vpop.permute.xlu0 %6386
        %6388 = vrot.lane.b32.xlu0 %v6371, 32
        %v6389 = vpop.permute.xlu0 %6388
        %6390 = vrot.lane.b32.xlu0 %v6372, 32
        %v6391 = vpop.permute.xlu0 %6390
        %6392 = vrot.lane.b32.xlu0 %v6373, 32
        %v6393 = vpop.permute.xlu0 %6392
        %6394 = vrot.lane.b32.xlu0 %v6374, 32
        %v6395 = vpop.permute.xlu0 %6394
        %6396 = vrot.lane.b32.xlu0 %v6375, 32
        %v6397 = vpop.permute.xlu0 %6396
        %6398 = vrot.lane.b32.xlu0 %v6376, 32
        %v6399 = vpop.permute.xlu0 %6398
        %6400 = vrot.lane.b32.xlu0 %v6377, 32
        %v6401 = vpop.permute.xlu0 %6400
        %v6410 = vadd.f32 %v6362, %v6387
        %v6411 = vadd.f32 %v6363, %v6389
        %v6412 = vadd.f32 %v6364, %v6391
        %v6413 = vadd.f32 %v6365, %v6393
        %v6414 = vadd.f32 %v6366, %v6395
        %v6415 = vadd.f32 %v6367, %v6397
        %v6416 = vadd.f32 %v6368, %v6399
        %v6417 = vadd.f32 %v6369, %v6401
        %6418 = vst.msk [vmem:[#allocation5] sm:$0xff] %vm1597, %v6410
        %6419 = vst.msk [vmem:[#allocation5 + $0x8] sm:$0xff] %vm1597, %v6411
        %6420 = vst.msk [vmem:[#allocation5 + $0x10] sm:$0xff] %vm1597, %v6412
        %6421 = vst.msk [vmem:[#allocation5 + $0x18] sm:$0xff] %vm1597, %v6413
        %6422 = vst.msk [vmem:[#allocation5 + $0x20] sm:$0xff] %vm1597, %v6414
        %6423 = vst.msk [vmem:[#allocation5 + $0x28] sm:$0xff] %vm1597, %v6415
        %6424 = vst.msk [vmem:[#allocation5 + $0x30] sm:$0xff] %vm1597, %v6416
        %6425 = vst.msk [vmem:[#allocation5 + $0x38] sm:$0xff] %vm1597, %v6417
        %v6426 = vld [vmem:[#allocation5] sm:$0xff]
        %v6427 = vld [vmem:[#allocation5 + $0x8] sm:$0xff]
        %v6428 = vld [vmem:[#allocation5 + $0x10] sm:$0xff]
        %v6429 = vld [vmem:[#allocation5 + $0x18] sm:$0xff]
        %v6430 = vld [vmem:[#allocation5 + $0x20] sm:$0xff]
        %v6431 = vld [vmem:[#allocation5 + $0x28] sm:$0xff]
        %v6432 = vld [vmem:[#allocation5 + $0x30] sm:$0xff]
        %v6433 = vld [vmem:[#allocation5 + $0x38] sm:$0xff]
        %v6434 = vld [vmem:[#allocation4 + $0x140] sm:$0xff]
        %v6435 = vld [vmem:[#allocation4 + $0x148] sm:$0xff]
        %v6436 = vld [vmem:[#allocation4 + $0x150] sm:$0xff]
        %v6437 = vld [vmem:[#allocation4 + $0x158] sm:$0xff]
        %v6438 = vld [vmem:[#allocation4 + $0x160] sm:$0xff]
        %v6439 = vld [vmem:[#allocation4 + $0x168] sm:$0xff]
        %v6440 = vld [vmem:[#allocation4 + $0x170] sm:$0xff]
        %v6441 = vld [vmem:[#allocation4 + $0x178] sm:$0xff]
        %6450 = vrot.lane.b32.xlu0 %v6434, 40
        %v6451 = vpop.permute.xlu0 %6450
        %6452 = vrot.lane.b32.xlu0 %v6435, 40
        %v6453 = vpop.permute.xlu0 %6452
        %6454 = vrot.lane.b32.xlu0 %v6436, 40
        %v6455 = vpop.permute.xlu0 %6454
        %6456 = vrot.lane.b32.xlu0 %v6437, 40
        %v6457 = vpop.permute.xlu0 %6456
        %6458 = vrot.lane.b32.xlu0 %v6438, 40
        %v6459 = vpop.permute.xlu0 %6458
        %6460 = vrot.lane.b32.xlu0 %v6439, 40
        %v6461 = vpop.permute.xlu0 %6460
        %6462 = vrot.lane.b32.xlu0 %v6440, 40
        %v6463 = vpop.permute.xlu0 %6462
        %6464 = vrot.lane.b32.xlu0 %v6441, 40
        %v6465 = vpop.permute.xlu0 %6464
        %v6474 = vadd.f32 %v6426, %v6451
        %v6475 = vadd.f32 %v6427, %v6453
        %v6476 = vadd.f32 %v6428, %v6455
        %v6477 = vadd.f32 %v6429, %v6457
        %v6478 = vadd.f32 %v6430, %v6459
        %v6479 = vadd.f32 %v6431, %v6461
        %v6480 = vadd.f32 %v6432, %v6463
        %v6481 = vadd.f32 %v6433, %v6465
        %6482 = vst.msk [vmem:[#allocation5] sm:$0xff] %vm1824, %v6474
        %6483 = vst.msk [vmem:[#allocation5 + $0x8] sm:$0xff] %vm1824, %v6475
        %6484 = vst.msk [vmem:[#allocation5 + $0x10] sm:$0xff] %vm1824, %v6476
        %6485 = vst.msk [vmem:[#allocation5 + $0x18] sm:$0xff] %vm1824, %v6477
        %6486 = vst.msk [vmem:[#allocation5 + $0x20] sm:$0xff] %vm1824, %v6478
        %6487 = vst.msk [vmem:[#allocation5 + $0x28] sm:$0xff] %vm1824, %v6479
        %6488 = vst.msk [vmem:[#allocation5 + $0x30] sm:$0xff] %vm1824, %v6480
        %6489 = vst.msk [vmem:[#allocation5 + $0x38] sm:$0xff] %vm1824, %v6481
        %v6490 = vld [vmem:[#allocation5] sm:$0xff]
        %v6491 = vld [vmem:[#allocation5 + $0x8] sm:$0xff]
        %v6492 = vld [vmem:[#allocation5 + $0x10] sm:$0xff]
        %v6493 = vld [vmem:[#allocation5 + $0x18] sm:$0xff]
        %v6494 = vld [vmem:[#allocation5 + $0x20] sm:$0xff]
        %v6495 = vld [vmem:[#allocation5 + $0x28] sm:$0xff]
        %v6496 = vld [vmem:[#allocation5 + $0x30] sm:$0xff]
        %v6497 = vld [vmem:[#allocation5 + $0x38] sm:$0xff]
        %v6498 = vld [vmem:[#allocation4 + $0x180] sm:$0xff]
        %v6499 = vld [vmem:[#allocation4 + $0x188] sm:$0xff]
        %v6500 = vld [vmem:[#allocation4 + $0x190] sm:$0xff]
        %v6501 = vld [vmem:[#allocation4 + $0x198] sm:$0xff]
        %v6502 = vld [vmem:[#allocation4 + $0x1a0] sm:$0xff]
        %v6503 = vld [vmem:[#allocation4 + $0x1a8] sm:$0xff]
        %v6504 = vld [vmem:[#allocation4 + $0x1b0] sm:$0xff]
        %v6505 = vld [vmem:[#allocation4 + $0x1b8] sm:$0xff]
        %6514 = vrot.lane.b32.xlu0 %v6498, 48
        %v6515 = vpop.permute.xlu0 %6514
        %6516 = vrot.lane.b32.xlu0 %v6499, 48
        %v6517 = vpop.permute.xlu0 %6516
        %6518 = vrot.lane.b32.xlu0 %v6500, 48
        %v6519 = vpop.permute.xlu0 %6518
        %6520 = vrot.lane.b32.xlu0 %v6501, 48
        %v6521 = vpop.permute.xlu0 %6520
        %6522 = vrot.lane.b32.xlu0 %v6502, 48
        %v6523 = vpop.permute.xlu0 %6522
        %6524 = vrot.lane.b32.xlu0 %v6503, 48
        %v6525 = vpop.permute.xlu0 %6524
        %6526 = vrot.lane.b32.xlu0 %v6504, 48
        %v6527 = vpop.permute.xlu0 %6526
        %6528 = vrot.lane.b32.xlu0 %v6505, 48
        %v6529 = vpop.permute.xlu0 %6528
        %v6538 = vadd.f32 %v6490, %v6515
        %v6539 = vadd.f32 %v6491, %v6517
        %v6540 = vadd.f32 %v6492, %v6519
        %v6541 = vadd.f32 %v6493, %v6521
        %v6542 = vadd.f32 %v6494, %v6523
        %v6543 = vadd.f32 %v6495, %v6525
        %v6544 = vadd.f32 %v6496, %v6527
        %v6545 = vadd.f32 %v6497, %v6529
        %6546 = vst.msk [vmem:[#allocation5] sm:$0xff] %vm2051, %v6538
        %6547 = vst.msk [vmem:[#allocation5 + $0x8] sm:$0xff] %vm2051, %v6539
        %6548 = vst.msk [vmem:[#allocation5 + $0x10] sm:$0xff] %vm2051, %v6540
        %6549 = vst.msk [vmem:[#allocation5 + $0x18] sm:$0xff] %vm2051, %v6541
        %6550 = vst.msk [vmem:[#allocation5 + $0x20] sm:$0xff] %vm2051, %v6542
        %6551 = vst.msk [vmem:[#allocation5 + $0x28] sm:$0xff] %vm2051, %v6543
        %6552 = vst.msk [vmem:[#allocation5 + $0x30] sm:$0xff] %vm2051, %v6544
        %6553 = vst.msk [vmem:[#allocation5 + $0x38] sm:$0xff] %vm2051, %v6545
        %v6554 = vld [vmem:[#allocation5] sm:$0xff]
        %v6555 = vld [vmem:[#allocation5 + $0x8] sm:$0xff]
        %v6556 = vld [vmem:[#allocation5 + $0x10] sm:$0xff]
        %v6557 = vld [vmem:[#allocation5 + $0x18] sm:$0xff]
        %v6558 = vld [vmem:[#allocation5 + $0x20] sm:$0xff]
        %v6559 = vld [vmem:[#allocation5 + $0x28] sm:$0xff]
        %v6560 = vld [vmem:[#allocation5 + $0x30] sm:$0xff]
        %v6561 = vld [vmem:[#allocation5 + $0x38] sm:$0xff]
        %v6562 = vld [vmem:[#allocation4 + $0x1c0] sm:$0xff]
        %v6563 = vld [vmem:[#allocation4 + $0x1c8] sm:$0xff]
        %v6564 = vld [vmem:[#allocation4 + $0x1d0] sm:$0xff]
        %v6565 = vld [vmem:[#allocation4 + $0x1d8] sm:$0xff]
        %v6566 = vld [vmem:[#allocation4 + $0x1e0] sm:$0xff]
        %v6567 = vld [vmem:[#allocation4 + $0x1e8] sm:$0xff]
        %v6568 = vld [vmem:[#allocation4 + $0x1f0] sm:$0xff]
        %v6569 = vld [vmem:[#allocation4 + $0x1f8] sm:$0xff]
        %6578 = vrot.lane.b32.xlu0 %v6562, 56
        %v6579 = vpop.permute.xlu0 %6578
        %6580 = vrot.lane.b32.xlu0 %v6563, 56
        %v6581 = vpop.permute.xlu0 %6580
        %6582 = vrot.lane.b32.xlu0 %v6564, 56
        %v6583 = vpop.permute.xlu0 %6582
        %6584 = vrot.lane.b32.xlu0 %v6565, 56
        %v6585 = vpop.permute.xlu0 %6584
        %6586 = vrot.lane.b32.xlu0 %v6566, 56
        %v6587 = vpop.permute.xlu0 %6586
        %6588 = vrot.lane.b32.xlu0 %v6567, 56
        %v6589 = vpop.permute.xlu0 %6588
        %6590 = vrot.lane.b32.xlu0 %v6568, 56
        %v6591 = vpop.permute.xlu0 %6590
        %6592 = vrot.lane.b32.xlu0 %v6569, 56
        %v6593 = vpop.permute.xlu0 %6592
        %v6602 = vadd.f32 %v6554, %v6579
        %v6603 = vadd.f32 %v6555, %v6581
        %v6604 = vadd.f32 %v6556, %v6583
        %v6605 = vadd.f32 %v6557, %v6585
        %v6606 = vadd.f32 %v6558, %v6587
        %v6607 = vadd.f32 %v6559, %v6589
        %v6608 = vadd.f32 %v6560, %v6591
        %v6609 = vadd.f32 %v6561, %v6593
        %6610 = vst.msk [vmem:[#allocation5] sm:$0xff] %vm2278, %v6602
        %6611 = vst.msk [vmem:[#allocation5 + $0x8] sm:$0xff] %vm2278, %v6603
        %6612 = vst.msk [vmem:[#allocation5 + $0x10] sm:$0xff] %vm2278, %v6604
        %6613 = vst.msk [vmem:[#allocation5 + $0x18] sm:$0xff] %vm2278, %v6605
        %6614 = vst.msk [vmem:[#allocation5 + $0x20] sm:$0xff] %vm2278, %v6606
        %6615 = vst.msk [vmem:[#allocation5 + $0x28] sm:$0xff] %vm2278, %v6607
        %6616 = vst.msk [vmem:[#allocation5 + $0x30] sm:$0xff] %vm2278, %v6608
        %6617 = vst.msk [vmem:[#allocation5 + $0x38] sm:$0xff] %vm2278, %v6609
        %v6618 = vld [vmem:[#allocation5] sm:$0xff]
        %v6619 = vld [vmem:[#allocation5 + $0x8] sm:$0xff]
        %v6620 = vld [vmem:[#allocation5 + $0x10] sm:$0xff]
        %v6621 = vld [vmem:[#allocation5 + $0x18] sm:$0xff]
        %v6622 = vld [vmem:[#allocation5 + $0x20] sm:$0xff]
        %v6623 = vld [vmem:[#allocation5 + $0x28] sm:$0xff]
        %v6624 = vld [vmem:[#allocation5 + $0x30] sm:$0xff]
        %v6625 = vld [vmem:[#allocation5 + $0x38] sm:$0xff]
        %vm6626 = vcmp.ge.f32.partialorder %v6618, 0.0
        %vm6627 = vcmp.ge.f32.partialorder %v6619, 0.0
        %vm6628 = vcmp.ge.f32.partialorder %v6620, 0.0
        %vm6629 = vcmp.ge.f32.partialorder %v6621, 0.0
        %vm6630 = vcmp.ge.f32.partialorder %v6622, 0.0
        %vm6631 = vcmp.ge.f32.partialorder %v6623, 0.0
        %vm6632 = vcmp.ge.f32.partialorder %v6624, 0.0
        %vm6633 = vcmp.ge.f32.partialorder %v6625, 0.0
        %v6634 = vmul.f32 %v6618, 0.01
        %v6635 = vmul.f32 %v6619, 0.01
        %v6636 = vmul.f32 %v6620, 0.01
        %v6637 = vmul.f32 %v6621, 0.01
        %v6638 = vmul.f32 %v6622, 0.01
        %v6639 = vmul.f32 %v6623, 0.01
        %v6640 = vmul.f32 %v6624, 0.01
        %v6641 = vmul.f32 %v6625, 0.01
        %v6642 = vsel %vm6626, %v6618, %v6634
        %v6643 = vsel %vm6627, %v6619, %v6635
        %v6644 = vsel %vm6628, %v6620, %v6636
        %v6645 = vsel %vm6629, %v6621, %v6637
        %v6646 = vsel %vm6630, %v6622, %v6638
        %v6647 = vsel %vm6631, %v6623, %v6639
        %v6648 = vsel %vm6632, %v6624, %v6640
        %v6649 = vsel %vm6633, %v6625, %v6641
        %v6650 = vadd.f32 %v4477, %v6642
        %v6651 = vadd.f32 %v4478, %v6643
        %v6652 = vadd.f32 %v4479, %v6644
        %v6653 = vadd.f32 %v4480, %v6645
        %v6654 = vadd.f32 %v4481, %v6646
        %v6655 = vadd.f32 %v4482, %v6647
        %v6656 = vadd.f32 %v4483, %v6648
        %v6657 = vadd.f32 %v4484, %v6649
        %6658 = vst.msk [vmem:[#allocation2] sm:$0xff] %vm3875, %v6650
        %6659 = vst.msk [vmem:[#allocation2 + $0x8] sm:$0xff] %vm3875, %v6651
        %6660 = vst.msk [vmem:[#allocation2 + $0x10] sm:$0xff] %vm3875, %v6652
        %6661 = vst.msk [vmem:[#allocation2 + $0x18] sm:$0xff] %vm3875, %v6653
        %6662 = vst.msk [vmem:[#allocation2 + $0x20] sm:$0xff] %vm3875, %v6654
        %6663 = vst.msk [vmem:[#allocation2 + $0x28] sm:$0xff] %vm3875, %v6655
        %6664 = vst.msk [vmem:[#allocation2 + $0x30] sm:$0xff] %vm3875, %v6656
        %6665 = vst.msk [vmem:[#allocation2 + $0x38] sm:$0xff] %vm3875, %v6657
        %s6666 = sld [smem:[#allocation10]]
        %v6667 = vld [vmem:[#allocation2] sm:$0xff]
        %v6668 = vld [vmem:[#allocation2 + $0x8] sm:$0xff]
        %v6669 = vld [vmem:[#allocation2 + $0x10] sm:$0xff]
        %v6670 = vld [vmem:[#allocation2 + $0x18] sm:$0xff]
        %v6671 = vld [vmem:[#allocation2 + $0x20] sm:$0xff]
        %v6672 = vld [vmem:[#allocation2 + $0x28] sm:$0xff]
        %v6673 = vld [vmem:[#allocation2 + $0x30] sm:$0xff]
        %v6674 = vld [vmem:[#allocation2 + $0x38] sm:$0xff]
        %v6675 = vstv %s6666
        %v6676 = vmul.f32 %v6675, %v6667
        %v6677 = vmul.f32 %v6675, %v6668
        %v6678 = vmul.f32 %v6675, %v6669
        %v6679 = vmul.f32 %v6675, %v6670
        %v6680 = vmul.f32 %v6675, %v6671
        %v6681 = vmul.f32 %v6675, %v6672
        %v6682 = vmul.f32 %v6675, %v6673
        %v6683 = vmul.f32 %v6675, %v6674
        %v6684 = vadd.f32 %v6676, 0.0
        %v6685 = vadd.f32 %v6677, 0.0
        %v6686 = vadd.f32 %v6678, 0.0
        %v6687 = vadd.f32 %v6679, 0.0
        %v6688 = vadd.f32 %v6680, 0.0
        %v6689 = vadd.f32 %v6681, 0.0
        %v6690 = vadd.f32 %v6682, 0.0
        %v6691 = vadd.f32 %v6683, 0.0
        %s6692 = sld [smem:[#allocation10 + $0x80]]
        %v6693 = vstv %s6692
        %v6694 = vmul.f32 %v6693, %v6667
        %v6695 = vmul.f32 %v6693, %v6668
        %v6696 = vmul.f32 %v6693, %v6669
        %v6697 = vmul.f32 %v6693, %v6670
        %v6698 = vmul.f32 %v6693, %v6671
        %v6699 = vmul.f32 %v6693, %v6672
        %v6700 = vmul.f32 %v6693, %v6673
        %v6701 = vmul.f32 %v6693, %v6674
        %6710 = vrot.lane.b32.xlu0 %v6694, 120
        %v6711 = vpop.permute.xlu0 %6710
        %6712 = vrot.lane.b32.xlu0 %v6695, 120
        %v6713 = vpop.permute.xlu0 %6712
        %6714 = vrot.lane.b32.xlu0 %v6696, 120
        %v6715 = vpop.permute.xlu0 %6714
        %6716 = vrot.lane.b32.xlu0 %v6697, 120
        %v6717 = vpop.permute.xlu0 %6716
        %6718 = vrot.lane.b32.xlu0 %v6698, 120
        %v6719 = vpop.permute.xlu0 %6718
        %6720 = vrot.lane.b32.xlu0 %v6699, 120
        %v6721 = vpop.permute.xlu0 %6720
        %6722 = vrot.lane.b32.xlu0 %v6700, 120
        %v6723 = vpop.permute.xlu0 %6722
        %6724 = vrot.lane.b32.xlu0 %v6701, 120
        %v6725 = vpop.permute.xlu0 %6724
        %v6734 = vadd.f32 %v6684, %v6711
        %v6735 = vadd.f32 %v6685, %v6713
        %v6736 = vadd.f32 %v6686, %v6715
        %v6737 = vadd.f32 %v6687, %v6717
        %v6738 = vadd.f32 %v6688, %v6719
        %v6739 = vadd.f32 %v6689, %v6721
        %v6740 = vadd.f32 %v6690, %v6723
        %v6741 = vadd.f32 %v6691, %v6725
        %s6742 = sld [smem:[#allocation10 + $0x100]]
        %v6743 = vstv %s6742
        %v6744 = vmul.f32 %v6743, %v6667
        %v6745 = vmul.f32 %v6743, %v6668
        %v6746 = vmul.f32 %v6743, %v6669
        %v6747 = vmul.f32 %v6743, %v6670
        %v6748 = vmul.f32 %v6743, %v6671
        %v6749 = vmul.f32 %v6743, %v6672
        %v6750 = vmul.f32 %v6743, %v6673
        %v6751 = vmul.f32 %v6743, %v6674
        %6760 = vrot.lane.b32.xlu0 %v6744, 112
        %v6761 = vpop.permute.xlu0 %6760
        %6762 = vrot.lane.b32.xlu0 %v6745, 112
        %v6763 = vpop.permute.xlu0 %6762
        %6764 = vrot.lane.b32.xlu0 %v6746, 112
        %v6765 = vpop.permute.xlu0 %6764
        %6766 = vrot.lane.b32.xlu0 %v6747, 112
        %v6767 = vpop.permute.xlu0 %6766
        %6768 = vrot.lane.b32.xlu0 %v6748, 112
        %v6769 = vpop.permute.xlu0 %6768
        %6770 = vrot.lane.b32.xlu0 %v6749, 112
        %v6771 = vpop.permute.xlu0 %6770
        %6772 = vrot.lane.b32.xlu0 %v6750, 112
        %v6773 = vpop.permute.xlu0 %6772
        %6774 = vrot.lane.b32.xlu0 %v6751, 112
        %v6775 = vpop.permute.xlu0 %6774
        %v6784 = vadd.f32 %v6734, %v6761
        %v6785 = vadd.f32 %v6735, %v6763
        %v6786 = vadd.f32 %v6736, %v6765
        %v6787 = vadd.f32 %v6737, %v6767
        %v6788 = vadd.f32 %v6738, %v6769
        %v6789 = vadd.f32 %v6739, %v6771
        %v6790 = vadd.f32 %v6740, %v6773
        %v6791 = vadd.f32 %v6741, %v6775
        %s6792 = sld [smem:[#allocation10 + $0x180]]
        %v6793 = vstv %s6792
        %v6794 = vmul.f32 %v6793, %v6667
        %v6795 = vmul.f32 %v6793, %v6668
        %v6796 = vmul.f32 %v6793, %v6669
        %v6797 = vmul.f32 %v6793, %v6670
        %v6798 = vmul.f32 %v6793, %v6671
        %v6799 = vmul.f32 %v6793, %v6672
        %v6800 = vmul.f32 %v6793, %v6673
        %v6801 = vmul.f32 %v6793, %v6674
        %6810 = vrot.lane.b32.xlu0 %v6794, 104
        %v6811 = vpop.permute.xlu0 %6810
        %6812 = vrot.lane.b32.xlu0 %v6795, 104
        %v6813 = vpop.permute.xlu0 %6812
        %6814 = vrot.lane.b32.xlu0 %v6796, 104
        %v6815 = vpop.permute.xlu0 %6814
        %6816 = vrot.lane.b32.xlu0 %v6797, 104
        %v6817 = vpop.permute.xlu0 %6816
        %6818 = vrot.lane.b32.xlu0 %v6798, 104
        %v6819 = vpop.permute.xlu0 %6818
        %6820 = vrot.lane.b32.xlu0 %v6799, 104
        %v6821 = vpop.permute.xlu0 %6820
        %6822 = vrot.lane.b32.xlu0 %v6800, 104
        %v6823 = vpop.permute.xlu0 %6822
        %6824 = vrot.lane.b32.xlu0 %v6801, 104
        %v6825 = vpop.permute.xlu0 %6824
        %v6834 = vadd.f32 %v6784, %v6811
        %v6835 = vadd.f32 %v6785, %v6813
        %v6836 = vadd.f32 %v6786, %v6815
        %v6837 = vadd.f32 %v6787, %v6817
        %v6838 = vadd.f32 %v6788, %v6819
        %v6839 = vadd.f32 %v6789, %v6821
        %v6840 = vadd.f32 %v6790, %v6823
        %v6841 = vadd.f32 %v6791, %v6825
        %s6842 = sld [smem:[#allocation10 + $0x200]]
        %v6843 = vstv %s6842
        %v6844 = vmul.f32 %v6843, %v6667
        %v6845 = vmul.f32 %v6843, %v6668
        %v6846 = vmul.f32 %v6843, %v6669
        %v6847 = vmul.f32 %v6843, %v6670
        %v6848 = vmul.f32 %v6843, %v6671
        %v6849 = vmul.f32 %v6843, %v6672
        %v6850 = vmul.f32 %v6843, %v6673
        %v6851 = vmul.f32 %v6843, %v6674
        %6860 = vrot.lane.b32.xlu0 %v6844, 96
        %v6861 = vpop.permute.xlu0 %6860
        %6862 = vrot.lane.b32.xlu0 %v6845, 96
        %v6863 = vpop.permute.xlu0 %6862
        %6864 = vrot.lane.b32.xlu0 %v6846, 96
        %v6865 = vpop.permute.xlu0 %6864
        %6866 = vrot.lane.b32.xlu0 %v6847, 96
        %v6867 = vpop.permute.xlu0 %6866
        %6868 = vrot.lane.b32.xlu0 %v6848, 96
        %v6869 = vpop.permute.xlu0 %6868
        %6870 = vrot.lane.b32.xlu0 %v6849, 96
        %v6871 = vpop.permute.xlu0 %6870
        %6872 = vrot.lane.b32.xlu0 %v6850, 96
        %v6873 = vpop.permute.xlu0 %6872
        %6874 = vrot.lane.b32.xlu0 %v6851, 96
        %v6875 = vpop.permute.xlu0 %6874
        %v6884 = vadd.f32 %v6834, %v6861
        %v6885 = vadd.f32 %v6835, %v6863
        %v6886 = vadd.f32 %v6836, %v6865
        %v6887 = vadd.f32 %v6837, %v6867
        %v6888 = vadd.f32 %v6838, %v6869
        %v6889 = vadd.f32 %v6839, %v6871
        %v6890 = vadd.f32 %v6840, %v6873
        %v6891 = vadd.f32 %v6841, %v6875
        %s6892 = sld [smem:[#allocation10 + $0x280]]
        %v6893 = vstv %s6892
        %v6894 = vmul.f32 %v6893, %v6667
        %v6895 = vmul.f32 %v6893, %v6668
        %v6896 = vmul.f32 %v6893, %v6669
        %v6897 = vmul.f32 %v6893, %v6670
        %v6898 = vmul.f32 %v6893, %v6671
        %v6899 = vmul.f32 %v6893, %v6672
        %v6900 = vmul.f32 %v6893, %v6673
        %v6901 = vmul.f32 %v6893, %v6674
        %6910 = vrot.lane.b32.xlu0 %v6894, 88
        %v6911 = vpop.permute.xlu0 %6910
        %6912 = vrot.lane.b32.xlu0 %v6895, 88
        %v6913 = vpop.permute.xlu0 %6912
        %6914 = vrot.lane.b32.xlu0 %v6896, 88
        %v6915 = vpop.permute.xlu0 %6914
        %6916 = vrot.lane.b32.xlu0 %v6897, 88
        %v6917 = vpop.permute.xlu0 %6916
        %6918 = vrot.lane.b32.xlu0 %v6898, 88
        %v6919 = vpop.permute.xlu0 %6918
        %6920 = vrot.lane.b32.xlu0 %v6899, 88
        %v6921 = vpop.permute.xlu0 %6920
        %6922 = vrot.lane.b32.xlu0 %v6900, 88
        %v6923 = vpop.permute.xlu0 %6922
        %6924 = vrot.lane.b32.xlu0 %v6901, 88
        %v6925 = vpop.permute.xlu0 %6924
        %v6934 = vadd.f32 %v6884, %v6911
        %v6935 = vadd.f32 %v6885, %v6913
        %v6936 = vadd.f32 %v6886, %v6915
        %v6937 = vadd.f32 %v6887, %v6917
        %v6938 = vadd.f32 %v6888, %v6919
        %v6939 = vadd.f32 %v6889, %v6921
        %v6940 = vadd.f32 %v6890, %v6923
        %v6941 = vadd.f32 %v6891, %v6925
        %s6942 = sld [smem:[#allocation10 + $0x300]]
        %v6943 = vstv %s6942
        %v6944 = vmul.f32 %v6943, %v6667
        %v6945 = vmul.f32 %v6943, %v6668
        %v6946 = vmul.f32 %v6943, %v6669
        %v6947 = vmul.f32 %v6943, %v6670
        %v6948 = vmul.f32 %v6943, %v6671
        %v6949 = vmul.f32 %v6943, %v6672
        %v6950 = vmul.f32 %v6943, %v6673
        %v6951 = vmul.f32 %v6943, %v6674
        %6960 = vrot.lane.b32.xlu0 %v6944, 80
        %v6961 = vpop.permute.xlu0 %6960
        %6962 = vrot.lane.b32.xlu0 %v6945, 80
        %v6963 = vpop.permute.xlu0 %6962
        %6964 = vrot.lane.b32.xlu0 %v6946, 80
        %v6965 = vpop.permute.xlu0 %6964
        %6966 = vrot.lane.b32.xlu0 %v6947, 80
        %v6967 = vpop.permute.xlu0 %6966
        %6968 = vrot.lane.b32.xlu0 %v6948, 80
        %v6969 = vpop.permute.xlu0 %6968
        %6970 = vrot.lane.b32.xlu0 %v6949, 80
        %v6971 = vpop.permute.xlu0 %6970
        %6972 = vrot.lane.b32.xlu0 %v6950, 80
        %v6973 = vpop.permute.xlu0 %6972
        %6974 = vrot.lane.b32.xlu0 %v6951, 80
        %v6975 = vpop.permute.xlu0 %6974
        %v6984 = vadd.f32 %v6934, %v6961
        %v6985 = vadd.f32 %v6935, %v6963
        %v6986 = vadd.f32 %v6936, %v6965
        %v6987 = vadd.f32 %v6937, %v6967
        %v6988 = vadd.f32 %v6938, %v6969
        %v6989 = vadd.f32 %v6939, %v6971
        %v6990 = vadd.f32 %v6940, %v6973
        %v6991 = vadd.f32 %v6941, %v6975
        %s6992 = sld [smem:[#allocation10 + $0x380]]
        %v6993 = vstv %s6992
        %v6994 = vmul.f32 %v6993, %v6667
        %v6995 = vmul.f32 %v6993, %v6668
        %v6996 = vmul.f32 %v6993, %v6669
        %v6997 = vmul.f32 %v6993, %v6670
        %v6998 = vmul.f32 %v6993, %v6671
        %v6999 = vmul.f32 %v6993, %v6672
        %v7000 = vmul.f32 %v6993, %v6673
        %v7001 = vmul.f32 %v6993, %v6674
        %7010 = vrot.lane.b32.xlu0 %v6994, 72
        %v7011 = vpop.permute.xlu0 %7010
        %7012 = vrot.lane.b32.xlu0 %v6995, 72
        %v7013 = vpop.permute.xlu0 %7012
        %7014 = vrot.lane.b32.xlu0 %v6996, 72
        %v7015 = vpop.permute.xlu0 %7014
        %7016 = vrot.lane.b32.xlu0 %v6997, 72
        %v7017 = vpop.permute.xlu0 %7016
        %7018 = vrot.lane.b32.xlu0 %v6998, 72
        %v7019 = vpop.permute.xlu0 %7018
        %7020 = vrot.lane.b32.xlu0 %v6999, 72
        %v7021 = vpop.permute.xlu0 %7020
        %7022 = vrot.lane.b32.xlu0 %v7000, 72
        %v7023 = vpop.permute.xlu0 %7022
        %7024 = vrot.lane.b32.xlu0 %v7001, 72
        %v7025 = vpop.permute.xlu0 %7024
        %v7034 = vadd.f32 %v6984, %v7011
        %v7035 = vadd.f32 %v6985, %v7013
        %v7036 = vadd.f32 %v6986, %v7015
        %v7037 = vadd.f32 %v6987, %v7017
        %v7038 = vadd.f32 %v6988, %v7019
        %v7039 = vadd.f32 %v6989, %v7021
        %v7040 = vadd.f32 %v6990, %v7023
        %v7041 = vadd.f32 %v6991, %v7025
        %s7042 = sld [smem:[#allocation11]]
        %v7043 = vstv %s7042
        %v7044 = vadd.f32 %v7034, %v7043
        %v7045 = vadd.f32 %v7035, %v7043
        %v7046 = vadd.f32 %v7036, %v7043
        %v7047 = vadd.f32 %v7037, %v7043
        %v7048 = vadd.f32 %v7038, %v7043
        %v7049 = vadd.f32 %v7039, %v7043
        %v7050 = vadd.f32 %v7040, %v7043
        %v7051 = vadd.f32 %v7041, %v7043
        %7052 = vst.msk [vmem:[%s438] sm:$0xff] %vm689, %v7044
        %7053 = vst.msk [vmem:[%s438 + $0x8] sm:$0xff] %vm689, %v7045
        %7054 = vst.msk [vmem:[%s438 + $0x10] sm:$0xff] %vm689, %v7046
        %7055 = vst.msk [vmem:[%s438 + $0x18] sm:$0xff] %vm689, %v7047
        %7056 = vst.msk [vmem:[%s438 + $0x20] sm:$0xff] %vm689, %v7048
        %7057 = vst.msk [vmem:[%s438 + $0x28] sm:$0xff] %vm689, %v7049
        %7058 = vst.msk [vmem:[%s438 + $0x30] sm:$0xff] %vm689, %v7050
        %7059 = vst.msk [vmem:[%s438 + $0x38] sm:$0xff] %vm689, %v7051
        %s7060 = sld [smem:[#allocation10 + $0x1]]
        %v7061 = vld [vmem:[#allocation2] sm:$0xff]
        %v7062 = vld [vmem:[#allocation2 + $0x8] sm:$0xff]
        %v7063 = vld [vmem:[#allocation2 + $0x10] sm:$0xff]
        %v7064 = vld [vmem:[#allocation2 + $0x18] sm:$0xff]
        %v7065 = vld [vmem:[#allocation2 + $0x20] sm:$0xff]
        %v7066 = vld [vmem:[#allocation2 + $0x28] sm:$0xff]
        %v7067 = vld [vmem:[#allocation2 + $0x30] sm:$0xff]
        %v7068 = vld [vmem:[#allocation2 + $0x38] sm:$0xff]
        %v7069 = vstv %s7060
        %v7070 = vmul.f32 %v7069, %v7061
        %v7071 = vmul.f32 %v7069, %v7062
        %v7072 = vmul.f32 %v7069, %v7063
        %v7073 = vmul.f32 %v7069, %v7064
        %v7074 = vmul.f32 %v7069, %v7065
        %v7075 = vmul.f32 %v7069, %v7066
        %v7076 = vmul.f32 %v7069, %v7067
        %v7077 = vmul.f32 %v7069, %v7068
        %v7078 = vadd.f32 %v7070, 0.0
        %v7079 = vadd.f32 %v7071, 0.0
        %v7080 = vadd.f32 %v7072, 0.0
        %v7081 = vadd.f32 %v7073, 0.0
        %v7082 = vadd.f32 %v7074, 0.0
        %v7083 = vadd.f32 %v7075, 0.0
        %v7084 = vadd.f32 %v7076, 0.0
        %v7085 = vadd.f32 %v7077, 0.0
        %s7086 = sld [smem:[#allocation10 + $0x81]]
        %v7087 = vstv %s7086
        %v7088 = vmul.f32 %v7087, %v7061
        %v7089 = vmul.f32 %v7087, %v7062
        %v7090 = vmul.f32 %v7087, %v7063
        %v7091 = vmul.f32 %v7087, %v7064
        %v7092 = vmul.f32 %v7087, %v7065
        %v7093 = vmul.f32 %v7087, %v7066
        %v7094 = vmul.f32 %v7087, %v7067
        %v7095 = vmul.f32 %v7087, %v7068
        %7104 = vrot.lane.b32.xlu0 %v7088, 120
        %v7105 = vpop.permute.xlu0 %7104
        %7106 = vrot.lane.b32.xlu0 %v7089, 120
        %v7107 = vpop.permute.xlu0 %7106
        %7108 = vrot.lane.b32.xlu0 %v7090, 120
        %v7109 = vpop.permute.xlu0 %7108
        %7110 = vrot.lane.b32.xlu0 %v7091, 120
        %v7111 = vpop.permute.xlu0 %7110
        %7112 = vrot.lane.b32.xlu0 %v7092, 120
        %v7113 = vpop.permute.xlu0 %7112
        %7114 = vrot.lane.b32.xlu0 %v7093, 120
        %v7115 = vpop.permute.xlu0 %7114
        %7116 = vrot.lane.b32.xlu0 %v7094, 120
        %v7117 = vpop.permute.xlu0 %7116
        %7118 = vrot.lane.b32.xlu0 %v7095, 120
        %v7119 = vpop.permute.xlu0 %7118
        %v7128 = vadd.f32 %v7078, %v7105
        %v7129 = vadd.f32 %v7079, %v7107
        %v7130 = vadd.f32 %v7080, %v7109
        %v7131 = vadd.f32 %v7081, %v7111
        %v7132 = vadd.f32 %v7082, %v7113
        %v7133 = vadd.f32 %v7083, %v7115
        %v7134 = vadd.f32 %v7084, %v7117
        %v7135 = vadd.f32 %v7085, %v7119
        %s7136 = sld [smem:[#allocation10 + $0x101]]
        %v7137 = vstv %s7136
        %v7138 = vmul.f32 %v7137, %v7061
        %v7139 = vmul.f32 %v7137, %v7062
        %v7140 = vmul.f32 %v7137, %v7063
        %v7141 = vmul.f32 %v7137, %v7064
        %v7142 = vmul.f32 %v7137, %v7065
        %v7143 = vmul.f32 %v7137, %v7066
        %v7144 = vmul.f32 %v7137, %v7067
        %v7145 = vmul.f32 %v7137, %v7068
        %7154 = vrot.lane.b32.xlu0 %v7138, 112
        %v7155 = vpop.permute.xlu0 %7154
        %7156 = vrot.lane.b32.xlu0 %v7139, 112
        %v7157 = vpop.permute.xlu0 %7156
        %7158 = vrot.lane.b32.xlu0 %v7140, 112
        %v7159 = vpop.permute.xlu0 %7158
        %7160 = vrot.lane.b32.xlu0 %v7141, 112
        %v7161 = vpop.permute.xlu0 %7160
        %7162 = vrot.lane.b32.xlu0 %v7142, 112
        %v7163 = vpop.permute.xlu0 %7162
        %7164 = vrot.lane.b32.xlu0 %v7143, 112
        %v7165 = vpop.permute.xlu0 %7164
        %7166 = vrot.lane.b32.xlu0 %v7144, 112
        %v7167 = vpop.permute.xlu0 %7166
        %7168 = vrot.lane.b32.xlu0 %v7145, 112
        %v7169 = vpop.permute.xlu0 %7168
        %v7178 = vadd.f32 %v7128, %v7155
        %v7179 = vadd.f32 %v7129, %v7157
        %v7180 = vadd.f32 %v7130, %v7159
        %v7181 = vadd.f32 %v7131, %v7161
        %v7182 = vadd.f32 %v7132, %v7163
        %v7183 = vadd.f32 %v7133, %v7165
        %v7184 = vadd.f32 %v7134, %v7167
        %v7185 = vadd.f32 %v7135, %v7169
        %s7186 = sld [smem:[#allocation10 + $0x181]]
        %v7187 = vstv %s7186
        %v7188 = vmul.f32 %v7187, %v7061
        %v7189 = vmul.f32 %v7187, %v7062
        %v7190 = vmul.f32 %v7187, %v7063
        %v7191 = vmul.f32 %v7187, %v7064
        %v7192 = vmul.f32 %v7187, %v7065
        %v7193 = vmul.f32 %v7187, %v7066
        %v7194 = vmul.f32 %v7187, %v7067
        %v7195 = vmul.f32 %v7187, %v7068
        %7204 = vrot.lane.b32.xlu0 %v7188, 104
        %v7205 = vpop.permute.xlu0 %7204
        %7206 = vrot.lane.b32.xlu0 %v7189, 104
        %v7207 = vpop.permute.xlu0 %7206
        %7208 = vrot.lane.b32.xlu0 %v7190, 104
        %v7209 = vpop.permute.xlu0 %7208
        %7210 = vrot.lane.b32.xlu0 %v7191, 104
        %v7211 = vpop.permute.xlu0 %7210
        %7212 = vrot.lane.b32.xlu0 %v7192, 104
        %v7213 = vpop.permute.xlu0 %7212
        %7214 = vrot.lane.b32.xlu0 %v7193, 104
        %v7215 = vpop.permute.xlu0 %7214
        %7216 = vrot.lane.b32.xlu0 %v7194, 104
        %v7217 = vpop.permute.xlu0 %7216
        %7218 = vrot.lane.b32.xlu0 %v7195, 104
        %v7219 = vpop.permute.xlu0 %7218
        %v7228 = vadd.f32 %v7178, %v7205
        %v7229 = vadd.f32 %v7179, %v7207
        %v7230 = vadd.f32 %v7180, %v7209
        %v7231 = vadd.f32 %v7181, %v7211
        %v7232 = vadd.f32 %v7182, %v7213
        %v7233 = vadd.f32 %v7183, %v7215
        %v7234 = vadd.f32 %v7184, %v7217
        %v7235 = vadd.f32 %v7185, %v7219
        %s7236 = sld [smem:[#allocation10 + $0x201]]
        %v7237 = vstv %s7236
        %v7238 = vmul.f32 %v7237, %v7061
        %v7239 = vmul.f32 %v7237, %v7062
        %v7240 = vmul.f32 %v7237, %v7063
        %v7241 = vmul.f32 %v7237, %v7064
        %v7242 = vmul.f32 %v7237, %v7065
        %v7243 = vmul.f32 %v7237, %v7066
        %v7244 = vmul.f32 %v7237, %v7067
        %v7245 = vmul.f32 %v7237, %v7068
        %7254 = vrot.lane.b32.xlu0 %v7238, 96
        %v7255 = vpop.permute.xlu0 %7254
        %7256 = vrot.lane.b32.xlu0 %v7239, 96
        %v7257 = vpop.permute.xlu0 %7256
        %7258 = vrot.lane.b32.xlu0 %v7240, 96
        %v7259 = vpop.permute.xlu0 %7258
        %7260 = vrot.lane.b32.xlu0 %v7241, 96
        %v7261 = vpop.permute.xlu0 %7260
        %7262 = vrot.lane.b32.xlu0 %v7242, 96
        %v7263 = vpop.permute.xlu0 %7262
        %7264 = vrot.lane.b32.xlu0 %v7243, 96
        %v7265 = vpop.permute.xlu0 %7264
        %7266 = vrot.lane.b32.xlu0 %v7244, 96
        %v7267 = vpop.permute.xlu0 %7266
        %7268 = vrot.lane.b32.xlu0 %v7245, 96
        %v7269 = vpop.permute.xlu0 %7268
        %v7278 = vadd.f32 %v7228, %v7255
        %v7279 = vadd.f32 %v7229, %v7257
        %v7280 = vadd.f32 %v7230, %v7259
        %v7281 = vadd.f32 %v7231, %v7261
        %v7282 = vadd.f32 %v7232, %v7263
        %v7283 = vadd.f32 %v7233, %v7265
        %v7284 = vadd.f32 %v7234, %v7267
        %v7285 = vadd.f32 %v7235, %v7269
        %s7286 = sld [smem:[#allocation10 + $0x281]]
        %v7287 = vstv %s7286
        %v7288 = vmul.f32 %v7287, %v7061
        %v7289 = vmul.f32 %v7287, %v7062
        %v7290 = vmul.f32 %v7287, %v7063
        %v7291 = vmul.f32 %v7287, %v7064
        %v7292 = vmul.f32 %v7287, %v7065
        %v7293 = vmul.f32 %v7287, %v7066
        %v7294 = vmul.f32 %v7287, %v7067
        %v7295 = vmul.f32 %v7287, %v7068
        %7304 = vrot.lane.b32.xlu0 %v7288, 88
        %v7305 = vpop.permute.xlu0 %7304
        %7306 = vrot.lane.b32.xlu0 %v7289, 88
        %v7307 = vpop.permute.xlu0 %7306
        %7308 = vrot.lane.b32.xlu0 %v7290, 88
        %v7309 = vpop.permute.xlu0 %7308
        %7310 = vrot.lane.b32.xlu0 %v7291, 88
        %v7311 = vpop.permute.xlu0 %7310
        %7312 = vrot.lane.b32.xlu0 %v7292, 88
        %v7313 = vpop.permute.xlu0 %7312
        %7314 = vrot.lane.b32.xlu0 %v7293, 88
        %v7315 = vpop.permute.xlu0 %7314
        %7316 = vrot.lane.b32.xlu0 %v7294, 88
        %v7317 = vpop.permute.xlu0 %7316
        %7318 = vrot.lane.b32.xlu0 %v7295, 88
        %v7319 = vpop.permute.xlu0 %7318
        %v7328 = vadd.f32 %v7278, %v7305
        %v7329 = vadd.f32 %v7279, %v7307
        %v7330 = vadd.f32 %v7280, %v7309
        %v7331 = vadd.f32 %v7281, %v7311
        %v7332 = vadd.f32 %v7282, %v7313
        %v7333 = vadd.f32 %v7283, %v7315
        %v7334 = vadd.f32 %v7284, %v7317
        %v7335 = vadd.f32 %v7285, %v7319
        %s7336 = sld [smem:[#allocation10 + $0x301]]
        %v7337 = vstv %s7336
        %v7338 = vmul.f32 %v7337, %v7061
        %v7339 = vmul.f32 %v7337, %v7062
        %v7340 = vmul.f32 %v7337, %v7063
        %v7341 = vmul.f32 %v7337, %v7064
        %v7342 = vmul.f32 %v7337, %v7065
        %v7343 = vmul.f32 %v7337, %v7066
        %v7344 = vmul.f32 %v7337, %v7067
        %v7345 = vmul.f32 %v7337, %v7068
        %7354 = vrot.lane.b32.xlu0 %v7338, 80
        %v7355 = vpop.permute.xlu0 %7354
        %7356 = vrot.lane.b32.xlu0 %v7339, 80
        %v7357 = vpop.permute.xlu0 %7356
        %7358 = vrot.lane.b32.xlu0 %v7340, 80
        %v7359 = vpop.permute.xlu0 %7358
        %7360 = vrot.lane.b32.xlu0 %v7341, 80
        %v7361 = vpop.permute.xlu0 %7360
        %7362 = vrot.lane.b32.xlu0 %v7342, 80
        %v7363 = vpop.permute.xlu0 %7362
        %7364 = vrot.lane.b32.xlu0 %v7343, 80
        %v7365 = vpop.permute.xlu0 %7364
        %7366 = vrot.lane.b32.xlu0 %v7344, 80
        %v7367 = vpop.permute.xlu0 %7366
        %7368 = vrot.lane.b32.xlu0 %v7345, 80
        %v7369 = vpop.permute.xlu0 %7368
        %v7378 = vadd.f32 %v7328, %v7355
        %v7379 = vadd.f32 %v7329, %v7357
        %v7380 = vadd.f32 %v7330, %v7359
        %v7381 = vadd.f32 %v7331, %v7361
        %v7382 = vadd.f32 %v7332, %v7363
        %v7383 = vadd.f32 %v7333, %v7365
        %v7384 = vadd.f32 %v7334, %v7367
        %v7385 = vadd.f32 %v7335, %v7369
        %s7386 = sld [smem:[#allocation10 + $0x381]]
        %v7387 = vstv %s7386
        %v7388 = vmul.f32 %v7387, %v7061
        %v7389 = vmul.f32 %v7387, %v7062
        %v7390 = vmul.f32 %v7387, %v7063
        %v7391 = vmul.f32 %v7387, %v7064
        %v7392 = vmul.f32 %v7387, %v7065
        %v7393 = vmul.f32 %v7387, %v7066
        %v7394 = vmul.f32 %v7387, %v7067
        %v7395 = vmul.f32 %v7387, %v7068
        %7404 = vrot.lane.b32.xlu0 %v7388, 72
        %v7405 = vpop.permute.xlu0 %7404
        %7406 = vrot.lane.b32.xlu0 %v7389, 72
        %v7407 = vpop.permute.xlu0 %7406
        %7408 = vrot.lane.b32.xlu0 %v7390, 72
        %v7409 = vpop.permute.xlu0 %7408
        %7410 = vrot.lane.b32.xlu0 %v7391, 72
        %v7411 = vpop.permute.xlu0 %7410
        %7412 = vrot.lane.b32.xlu0 %v7392, 72
        %v7413 = vpop.permute.xlu0 %7412
        %7414 = vrot.lane.b32.xlu0 %v7393, 72
        %v7415 = vpop.permute.xlu0 %7414
        %7416 = vrot.lane.b32.xlu0 %v7394, 72
        %v7417 = vpop.permute.xlu0 %7416
        %7418 = vrot.lane.b32.xlu0 %v7395, 72
        %v7419 = vpop.permute.xlu0 %7418
        %v7428 = vadd.f32 %v7378, %v7405
        %v7429 = vadd.f32 %v7379, %v7407
        %v7430 = vadd.f32 %v7380, %v7409
        %v7431 = vadd.f32 %v7381, %v7411
        %v7432 = vadd.f32 %v7382, %v7413
        %v7433 = vadd.f32 %v7383, %v7415
        %v7434 = vadd.f32 %v7384, %v7417
        %v7435 = vadd.f32 %v7385, %v7419
        %s7436 = sld [smem:[#allocation11 + $0x1]]
        %v7437 = vstv %s7436
        %v7438 = vadd.f32 %v7428, %v7437
        %v7439 = vadd.f32 %v7429, %v7437
        %v7440 = vadd.f32 %v7430, %v7437
        %v7441 = vadd.f32 %v7431, %v7437
        %v7442 = vadd.f32 %v7432, %v7437
        %v7443 = vadd.f32 %v7433, %v7437
        %v7444 = vadd.f32 %v7434, %v7437
        %v7445 = vadd.f32 %v7435, %v7437
        %7454 = vrot.lane.b32.xlu0 %v7438, 8
        %v7455 = vpop.permute.xlu0 %7454
        %7456 = vrot.lane.b32.xlu0 %v7439, 8
        %v7457 = vpop.permute.xlu0 %7456
        %7458 = vrot.lane.b32.xlu0 %v7440, 8
        %v7459 = vpop.permute.xlu0 %7458
        %7460 = vrot.lane.b32.xlu0 %v7441, 8
        %v7461 = vpop.permute.xlu0 %7460
        %7462 = vrot.lane.b32.xlu0 %v7442, 8
        %v7463 = vpop.permute.xlu0 %7462
        %7464 = vrot.lane.b32.xlu0 %v7443, 8
        %v7465 = vpop.permute.xlu0 %7464
        %7466 = vrot.lane.b32.xlu0 %v7444, 8
        %v7467 = vpop.permute.xlu0 %7466
        %7468 = vrot.lane.b32.xlu0 %v7445, 8
        %v7469 = vpop.permute.xlu0 %7468
        %7478 = vst.msk [vmem:[%s438] sm:$0xff] %vm916, %v7455
        %7479 = vst.msk [vmem:[%s438 + $0x8] sm:$0xff] %vm916, %v7457
        %7480 = vst.msk [vmem:[%s438 + $0x10] sm:$0xff] %vm916, %v7459
        %7481 = vst.msk [vmem:[%s438 + $0x18] sm:$0xff] %vm916, %v7461
        %7482 = vst.msk [vmem:[%s438 + $0x20] sm:$0xff] %vm916, %v7463
        %7483 = vst.msk [vmem:[%s438 + $0x28] sm:$0xff] %vm916, %v7465
        %7484 = vst.msk [vmem:[%s438 + $0x30] sm:$0xff] %vm916, %v7467
        %7485 = vst.msk [vmem:[%s438 + $0x38] sm:$0xff] %vm916, %v7469
        %s7486 = sld [smem:[#allocation10 + $0x2]]
        %v7487 = vld [vmem:[#allocation2] sm:$0xff]
        %v7488 = vld [vmem:[#allocation2 + $0x8] sm:$0xff]
        %v7489 = vld [vmem:[#allocation2 + $0x10] sm:$0xff]
        %v7490 = vld [vmem:[#allocation2 + $0x18] sm:$0xff]
        %v7491 = vld [vmem:[#allocation2 + $0x20] sm:$0xff]
        %v7492 = vld [vmem:[#allocation2 + $0x28] sm:$0xff]
        %v7493 = vld [vmem:[#allocation2 + $0x30] sm:$0xff]
        %v7494 = vld [vmem:[#allocation2 + $0x38] sm:$0xff]
        %v7495 = vstv %s7486
        %v7496 = vmul.f32 %v7495, %v7487
        %v7497 = vmul.f32 %v7495, %v7488
        %v7498 = vmul.f32 %v7495, %v7489
        %v7499 = vmul.f32 %v7495, %v7490
        %v7500 = vmul.f32 %v7495, %v7491
        %v7501 = vmul.f32 %v7495, %v7492
        %v7502 = vmul.f32 %v7495, %v7493
        %v7503 = vmul.f32 %v7495, %v7494
        %v7504 = vadd.f32 %v7496, 0.0
        %v7505 = vadd.f32 %v7497, 0.0
        %v7506 = vadd.f32 %v7498, 0.0
        %v7507 = vadd.f32 %v7499, 0.0
        %v7508 = vadd.f32 %v7500, 0.0
        %v7509 = vadd.f32 %v7501, 0.0
        %v7510 = vadd.f32 %v7502, 0.0
        %v7511 = vadd.f32 %v7503, 0.0
        %s7512 = sld [smem:[#allocation10 + $0x82]]
        %v7513 = vstv %s7512
        %v7514 = vmul.f32 %v7513, %v7487
        %v7515 = vmul.f32 %v7513, %v7488
        %v7516 = vmul.f32 %v7513, %v7489
        %v7517 = vmul.f32 %v7513, %v7490
        %v7518 = vmul.f32 %v7513, %v7491
        %v7519 = vmul.f32 %v7513, %v7492
        %v7520 = vmul.f32 %v7513, %v7493
        %v7521 = vmul.f32 %v7513, %v7494
        %7530 = vrot.lane.b32.xlu0 %v7514, 120
        %v7531 = vpop.permute.xlu0 %7530
        %7532 = vrot.lane.b32.xlu0 %v7515, 120
        %v7533 = vpop.permute.xlu0 %7532
        %7534 = vrot.lane.b32.xlu0 %v7516, 120
        %v7535 = vpop.permute.xlu0 %7534
        %7536 = vrot.lane.b32.xlu0 %v7517, 120
        %v7537 = vpop.permute.xlu0 %7536
        %7538 = vrot.lane.b32.xlu0 %v7518, 120
        %v7539 = vpop.permute.xlu0 %7538
        %7540 = vrot.lane.b32.xlu0 %v7519, 120
        %v7541 = vpop.permute.xlu0 %7540
        %7542 = vrot.lane.b32.xlu0 %v7520, 120
        %v7543 = vpop.permute.xlu0 %7542
        %7544 = vrot.lane.b32.xlu0 %v7521, 120
        %v7545 = vpop.permute.xlu0 %7544
        %v7554 = vadd.f32 %v7504, %v7531
        %v7555 = vadd.f32 %v7505, %v7533
        %v7556 = vadd.f32 %v7506, %v7535
        %v7557 = vadd.f32 %v7507, %v7537
        %v7558 = vadd.f32 %v7508, %v7539
        %v7559 = vadd.f32 %v7509, %v7541
        %v7560 = vadd.f32 %v7510, %v7543
        %v7561 = vadd.f32 %v7511, %v7545
        %s7562 = sld [smem:[#allocation10 + $0x102]]
        %v7563 = vstv %s7562
        %v7564 = vmul.f32 %v7563, %v7487
        %v7565 = vmul.f32 %v7563, %v7488
        %v7566 = vmul.f32 %v7563, %v7489
        %v7567 = vmul.f32 %v7563, %v7490
        %v7568 = vmul.f32 %v7563, %v7491
        %v7569 = vmul.f32 %v7563, %v7492
        %v7570 = vmul.f32 %v7563, %v7493
        %v7571 = vmul.f32 %v7563, %v7494
        %7580 = vrot.lane.b32.xlu0 %v7564, 112
        %v7581 = vpop.permute.xlu0 %7580
        %7582 = vrot.lane.b32.xlu0 %v7565, 112
        %v7583 = vpop.permute.xlu0 %7582
        %7584 = vrot.lane.b32.xlu0 %v7566, 112
        %v7585 = vpop.permute.xlu0 %7584
        %7586 = vrot.lane.b32.xlu0 %v7567, 112
        %v7587 = vpop.permute.xlu0 %7586
        %7588 = vrot.lane.b32.xlu0 %v7568, 112
        %v7589 = vpop.permute.xlu0 %7588
        %7590 = vrot.lane.b32.xlu0 %v7569, 112
        %v7591 = vpop.permute.xlu0 %7590
        %7592 = vrot.lane.b32.xlu0 %v7570, 112
        %v7593 = vpop.permute.xlu0 %7592
        %7594 = vrot.lane.b32.xlu0 %v7571, 112
        %v7595 = vpop.permute.xlu0 %7594
        %v7604 = vadd.f32 %v7554, %v7581
        %v7605 = vadd.f32 %v7555, %v7583
        %v7606 = vadd.f32 %v7556, %v7585
        %v7607 = vadd.f32 %v7557, %v7587
        %v7608 = vadd.f32 %v7558, %v7589
        %v7609 = vadd.f32 %v7559, %v7591
        %v7610 = vadd.f32 %v7560, %v7593
        %v7611 = vadd.f32 %v7561, %v7595
        %s7612 = sld [smem:[#allocation10 + $0x182]]
        %v7613 = vstv %s7612
        %v7614 = vmul.f32 %v7613, %v7487
        %v7615 = vmul.f32 %v7613, %v7488
        %v7616 = vmul.f32 %v7613, %v7489
        %v7617 = vmul.f32 %v7613, %v7490
        %v7618 = vmul.f32 %v7613, %v7491
        %v7619 = vmul.f32 %v7613, %v7492
        %v7620 = vmul.f32 %v7613, %v7493
        %v7621 = vmul.f32 %v7613, %v7494
        %7630 = vrot.lane.b32.xlu0 %v7614, 104
        %v7631 = vpop.permute.xlu0 %7630
        %7632 = vrot.lane.b32.xlu0 %v7615, 104
        %v7633 = vpop.permute.xlu0 %7632
        %7634 = vrot.lane.b32.xlu0 %v7616, 104
        %v7635 = vpop.permute.xlu0 %7634
        %7636 = vrot.lane.b32.xlu0 %v7617, 104
        %v7637 = vpop.permute.xlu0 %7636
        %7638 = vrot.lane.b32.xlu0 %v7618, 104
        %v7639 = vpop.permute.xlu0 %7638
        %7640 = vrot.lane.b32.xlu0 %v7619, 104
        %v7641 = vpop.permute.xlu0 %7640
        %7642 = vrot.lane.b32.xlu0 %v7620, 104
        %v7643 = vpop.permute.xlu0 %7642
        %7644 = vrot.lane.b32.xlu0 %v7621, 104
        %v7645 = vpop.permute.xlu0 %7644
        %v7654 = vadd.f32 %v7604, %v7631
        %v7655 = vadd.f32 %v7605, %v7633
        %v7656 = vadd.f32 %v7606, %v7635
        %v7657 = vadd.f32 %v7607, %v7637
        %v7658 = vadd.f32 %v7608, %v7639
        %v7659 = vadd.f32 %v7609, %v7641
        %v7660 = vadd.f32 %v7610, %v7643
        %v7661 = vadd.f32 %v7611, %v7645
        %s7662 = sld [smem:[#allocation10 + $0x202]]
        %v7663 = vstv %s7662
        %v7664 = vmul.f32 %v7663, %v7487
        %v7665 = vmul.f32 %v7663, %v7488
        %v7666 = vmul.f32 %v7663, %v7489
        %v7667 = vmul.f32 %v7663, %v7490
        %v7668 = vmul.f32 %v7663, %v7491
        %v7669 = vmul.f32 %v7663, %v7492
        %v7670 = vmul.f32 %v7663, %v7493
        %v7671 = vmul.f32 %v7663, %v7494
        %7680 = vrot.lane.b32.xlu0 %v7664, 96
        %v7681 = vpop.permute.xlu0 %7680
        %7682 = vrot.lane.b32.xlu0 %v7665, 96
        %v7683 = vpop.permute.xlu0 %7682
        %7684 = vrot.lane.b32.xlu0 %v7666, 96
        %v7685 = vpop.permute.xlu0 %7684
        %7686 = vrot.lane.b32.xlu0 %v7667, 96
        %v7687 = vpop.permute.xlu0 %7686
        %7688 = vrot.lane.b32.xlu0 %v7668, 96
        %v7689 = vpop.permute.xlu0 %7688
        %7690 = vrot.lane.b32.xlu0 %v7669, 96
        %v7691 = vpop.permute.xlu0 %7690
        %7692 = vrot.lane.b32.xlu0 %v7670, 96
        %v7693 = vpop.permute.xlu0 %7692
        %7694 = vrot.lane.b32.xlu0 %v7671, 96
        %v7695 = vpop.permute.xlu0 %7694
        %v7704 = vadd.f32 %v7654, %v7681
        %v7705 = vadd.f32 %v7655, %v7683
        %v7706 = vadd.f32 %v7656, %v7685
        %v7707 = vadd.f32 %v7657, %v7687
        %v7708 = vadd.f32 %v7658, %v7689
        %v7709 = vadd.f32 %v7659, %v7691
        %v7710 = vadd.f32 %v7660, %v7693
        %v7711 = vadd.f32 %v7661, %v7695
        %s7712 = sld [smem:[#allocation10 + $0x282]]
        %v7713 = vstv %s7712
        %v7714 = vmul.f32 %v7713, %v7487
        %v7715 = vmul.f32 %v7713, %v7488
        %v7716 = vmul.f32 %v7713, %v7489
        %v7717 = vmul.f32 %v7713, %v7490
        %v7718 = vmul.f32 %v7713, %v7491
        %v7719 = vmul.f32 %v7713, %v7492
        %v7720 = vmul.f32 %v7713, %v7493
        %v7721 = vmul.f32 %v7713, %v7494
        %7730 = vrot.lane.b32.xlu0 %v7714, 88
        %v7731 = vpop.permute.xlu0 %7730
        %7732 = vrot.lane.b32.xlu0 %v7715, 88
        %v7733 = vpop.permute.xlu0 %7732
        %7734 = vrot.lane.b32.xlu0 %v7716, 88
        %v7735 = vpop.permute.xlu0 %7734
        %7736 = vrot.lane.b32.xlu0 %v7717, 88
        %v7737 = vpop.permute.xlu0 %7736
        %7738 = vrot.lane.b32.xlu0 %v7718, 88
        %v7739 = vpop.permute.xlu0 %7738
        %7740 = vrot.lane.b32.xlu0 %v7719, 88
        %v7741 = vpop.permute.xlu0 %7740
        %7742 = vrot.lane.b32.xlu0 %v7720, 88
        %v7743 = vpop.permute.xlu0 %7742
        %7744 = vrot.lane.b32.xlu0 %v7721, 88
        %v7745 = vpop.permute.xlu0 %7744
        %v7754 = vadd.f32 %v7704, %v7731
        %v7755 = vadd.f32 %v7705, %v7733
        %v7756 = vadd.f32 %v7706, %v7735
        %v7757 = vadd.f32 %v7707, %v7737
        %v7758 = vadd.f32 %v7708, %v7739
        %v7759 = vadd.f32 %v7709, %v7741
        %v7760 = vadd.f32 %v7710, %v7743
        %v7761 = vadd.f32 %v7711, %v7745
        %s7762 = sld [smem:[#allocation10 + $0x302]]
        %v7763 = vstv %s7762
        %v7764 = vmul.f32 %v7763, %v7487
        %v7765 = vmul.f32 %v7763, %v7488
        %v7766 = vmul.f32 %v7763, %v7489
        %v7767 = vmul.f32 %v7763, %v7490
        %v7768 = vmul.f32 %v7763, %v7491
        %v7769 = vmul.f32 %v7763, %v7492
        %v7770 = vmul.f32 %v7763, %v7493
        %v7771 = vmul.f32 %v7763, %v7494
        %7780 = vrot.lane.b32.xlu0 %v7764, 80
        %v7781 = vpop.permute.xlu0 %7780
        %7782 = vrot.lane.b32.xlu0 %v7765, 80
        %v7783 = vpop.permute.xlu0 %7782
        %7784 = vrot.lane.b32.xlu0 %v7766, 80
        %v7785 = vpop.permute.xlu0 %7784
        %7786 = vrot.lane.b32.xlu0 %v7767, 80
        %v7787 = vpop.permute.xlu0 %7786
        %7788 = vrot.lane.b32.xlu0 %v7768, 80
        %v7789 = vpop.permute.xlu0 %7788
        %7790 = vrot.lane.b32.xlu0 %v7769, 80
        %v7791 = vpop.permute.xlu0 %7790
        %7792 = vrot.lane.b32.xlu0 %v7770, 80
        %v7793 = vpop.permute.xlu0 %7792
        %7794 = vrot.lane.b32.xlu0 %v7771, 80
        %v7795 = vpop.permute.xlu0 %7794
        %v7804 = vadd.f32 %v7754, %v7781
        %v7805 = vadd.f32 %v7755, %v7783
        %v7806 = vadd.f32 %v7756, %v7785
        %v7807 = vadd.f32 %v7757, %v7787
        %v7808 = vadd.f32 %v7758, %v7789
        %v7809 = vadd.f32 %v7759, %v7791
        %v7810 = vadd.f32 %v7760, %v7793
        %v7811 = vadd.f32 %v7761, %v7795
        %s7812 = sld [smem:[#allocation10 + $0x382]]
        %v7813 = vstv %s7812
        %v7814 = vmul.f32 %v7813, %v7487
        %v7815 = vmul.f32 %v7813, %v7488
        %v7816 = vmul.f32 %v7813, %v7489
        %v7817 = vmul.f32 %v7813, %v7490
        %v7818 = vmul.f32 %v7813, %v7491
        %v7819 = vmul.f32 %v7813, %v7492
        %v7820 = vmul.f32 %v7813, %v7493
        %v7821 = vmul.f32 %v7813, %v7494
        %7830 = vrot.lane.b32.xlu0 %v7814, 72
        %v7831 = vpop.permute.xlu0 %7830
        %7832 = vrot.lane.b32.xlu0 %v7815, 72
        %v7833 = vpop.permute.xlu0 %7832
        %7834 = vrot.lane.b32.xlu0 %v7816, 72
        %v7835 = vpop.permute.xlu0 %7834
        %7836 = vrot.lane.b32.xlu0 %v7817, 72
        %v7837 = vpop.permute.xlu0 %7836
        %7838 = vrot.lane.b32.xlu0 %v7818, 72
        %v7839 = vpop.permute.xlu0 %7838
        %7840 = vrot.lane.b32.xlu0 %v7819, 72
        %v7841 = vpop.permute.xlu0 %7840
        %7842 = vrot.lane.b32.xlu0 %v7820, 72
        %v7843 = vpop.permute.xlu0 %7842
        %7844 = vrot.lane.b32.xlu0 %v7821, 72
        %v7845 = vpop.permute.xlu0 %7844
        %v7854 = vadd.f32 %v7804, %v7831
        %v7855 = vadd.f32 %v7805, %v7833
        %v7856 = vadd.f32 %v7806, %v7835
        %v7857 = vadd.f32 %v7807, %v7837
        %v7858 = vadd.f32 %v7808, %v7839
        %v7859 = vadd.f32 %v7809, %v7841
        %v7860 = vadd.f32 %v7810, %v7843
        %v7861 = vadd.f32 %v7811, %v7845
        %s7862 = sld [smem:[#allocation11 + $0x2]]
        %v7863 = vstv %s7862
        %v7864 = vadd.f32 %v7854, %v7863
        %v7865 = vadd.f32 %v7855, %v7863
        %v7866 = vadd.f32 %v7856, %v7863
        %v7867 = vadd.f32 %v7857, %v7863
        %v7868 = vadd.f32 %v7858, %v7863
        %v7869 = vadd.f32 %v7859, %v7863
        %v7870 = vadd.f32 %v7860, %v7863
        %v7871 = vadd.f32 %v7861, %v7863
        %7880 = vrot.lane.b32.xlu0 %v7864, 16
        %v7881 = vpop.permute.xlu0 %7880
        %7882 = vrot.lane.b32.xlu0 %v7865, 16
        %v7883 = vpop.permute.xlu0 %7882
        %7884 = vrot.lane.b32.xlu0 %v7866, 16
        %v7885 = vpop.permute.xlu0 %7884
        %7886 = vrot.lane.b32.xlu0 %v7867, 16
        %v7887 = vpop.permute.xlu0 %7886
        %7888 = vrot.lane.b32.xlu0 %v7868, 16
        %v7889 = vpop.permute.xlu0 %7888
        %7890 = vrot.lane.b32.xlu0 %v7869, 16
        %v7891 = vpop.permute.xlu0 %7890
        %7892 = vrot.lane.b32.xlu0 %v7870, 16
        %v7893 = vpop.permute.xlu0 %7892
        %7894 = vrot.lane.b32.xlu0 %v7871, 16
        %v7895 = vpop.permute.xlu0 %7894
        %7904 = vst.msk [vmem:[%s438] sm:$0xff] %vm1143, %v7881
        %7905 = vst.msk [vmem:[%s438 + $0x8] sm:$0xff] %vm1143, %v7883
        %7906 = vst.msk [vmem:[%s438 + $0x10] sm:$0xff] %vm1143, %v7885
        %7907 = vst.msk [vmem:[%s438 + $0x18] sm:$0xff] %vm1143, %v7887
        %7908 = vst.msk [vmem:[%s438 + $0x20] sm:$0xff] %vm1143, %v7889
        %7909 = vst.msk [vmem:[%s438 + $0x28] sm:$0xff] %vm1143, %v7891
        %7910 = vst.msk [vmem:[%s438 + $0x30] sm:$0xff] %vm1143, %v7893
        %7911 = vst.msk [vmem:[%s438 + $0x38] sm:$0xff] %vm1143, %v7895
        %p7912 = scmp.lt.s32.totalorder %s25, 1
        %s7913 = scalar_select %p7912, %s25, 1
        %s7914 = smul.addr %s7913, 8
        %s7915 = smul.addr %s7914, 8
        %s7916 = scalar_lea.vmem %s11, %s7915
        // Predicated region
        $region81: #{axial_mlp_3d_forward.1} parent=63 // pred_check
          %p7917 = pneg %p279
        $region82: #{axial_mlp_3d_forward.1} parent=63 // pred_check_branch
          %7919 = sbr.rel (%p7917) target = $region84
        $region83: #{axial_mlp_3d_forward.1} parent=63 // pred_region
          _
        $region84: #{axial_mlp_3d_forward.1} parent=63 // pred_fallthru
          _
      $region64: #{axial_mlp_3d_forward.1} parent=5 // pred_fallthru
        _
      %p7920 = scmp.le.s32.totalorder 2, %s20
      // Predicated region
      $region85: #{axial_mlp_3d_forward.1} parent=5 // pred_check
        %p7921 = pneg %p7920
      $region86: #{axial_mlp_3d_forward.1} parent=5 // pred_check_branch
        %7923 = sbr.rel (%p7921) target = $region88
      $region87: #{axial_mlp_3d_forward.1} parent=5 // pred_region
        %s7924 = ssub.s32 %s20, 2
        // Predicated region
        $region89: #{axial_mlp_3d_forward.1} parent=87 // pred_check
          %p7925 = pneg %p285
        $region90: #{axial_mlp_3d_forward.1} parent=87 // pred_check_branch
          %7927 = sbr.rel (%p7925) target = $region92
        $region91: #{axial_mlp_3d_forward.1} parent=87 // pred_region
          %p7928 = scmp.lt.s32.totalorder %s26, 1
          %s7929 = scalar_select %p7928, %s26, 1
          %s7930 = smul.addr %s7929, 8
          %s7931 = smul.addr %s7930, 8
          %s7932 = scalar_lea.vmem %s11, %s7931
        $region92: #{axial_mlp_3d_forward.1} parent=87 // pred_fallthru
          _
      $region88: #{axial_mlp_3d_forward.1} parent=5 // pred_fallthru
        _
    $region6: #{axial_mlp_3d_forward.1} parent=1 // loop_footer
      %s24 = sadd.s32 1, %s20
    $region7: #{axial_mlp_3d_forward.1} parent=1 // loop_footer_branch
      %19 = sbr.rel target = $region3
    $region8: #{axial_mlp_3d_forward.1} parent=1 // loop_exit
      _
    %7933 = vsyncpa [#allocation7], 1
    %s7934 = scalar_lea.sflag [#allocation7], 1
    %7935 = vsyncpa %s7934, 1
    %7936 = vsyncpa [#allocation9], 1
    %7937 = vsyncpa [#allocation12], 1

</llo_original>
